<compile_context>
chip_gen: v7x
topology: tpu7x:2x2x1
jax: 0.10.0
libtpu: 0.0.40
codegen_flags: <defaults>
</compile_context>

<pallas_src>
import jax
import jax.numpy as jnp
from jax.experimental import pallas as pl
from jax.experimental.pallas import tpu as pltpu

NUM_PLAYERS = 10
PER_PLAYER_FEATURES = 15
NUM_TEAMS = 2
IN_DIM = NUM_PLAYERS * PER_PLAYER_FEATURES * NUM_TEAMS + 1  # 301
IN_PAD = 320          # next multiple of 16 above 301 (bf16 sublane packing)
H1, H2, H3 = 2048, 1024, 256
OUT = 1
OUT_PAD = 128         # lane-dense head output; real output lives in column 0
TM_MAX = 512          # max batch tile (sweep-selected; fits v7x 64 MiB VMEM)


def _round_up(n, m):
    return (n + m - 1) // m * m


def _mlp_kernel(x_ref,
                w1_ref, b1_ref,
                w2_ref, b2_ref,
                w3_ref, b3_ref,
                wh_ref, bh_ref,
                o_ref):
    # layer 1: bf16 MXU matmul, f32 accumulate, bias + ReLU
    h = jnp.dot(x_ref[...], w1_ref[...], preferred_element_type=jnp.float32)
    h = jnp.maximum(h + b1_ref[...], 0.0)
    # layer 2
    h = jnp.dot(h.astype(jnp.bfloat16), w2_ref[...],
                preferred_element_type=jnp.float32)
    h = jnp.maximum(h + b2_ref[...], 0.0)
    # layer 3
    h = jnp.dot(h.astype(jnp.bfloat16), w3_ref[...],
                preferred_element_type=jnp.float32)
    h = jnp.maximum(h + b3_ref[...], 0.0)
    # head: 128-lane-wide (zero-padded) so the output store is lane-dense
    out = jnp.dot(h.astype(jnp.bfloat16), wh_ref[...],
                  preferred_element_type=jnp.float32)
    o_ref[...] = (out + bh_ref[...]).astype(o_ref.dtype)


def prepare_params(params):
    """Pad / cast f32 'torch-layout' params into the kernel's HBM layout.

    Weights -> bf16 (half the HBM bytes), biases stay f32.
    w1 leading dim padded 301 -> 320 with zeros; head padded to 128 lanes.
    """
    (w1, b1), (w2, b2), (w3, b3), (wh, bh) = params
    w1p = jnp.zeros((IN_PAD, H1), jnp.float32).at[:IN_DIM, :].set(w1)
    whp = jnp.zeros((H3, OUT_PAD), jnp.float32).at[:, :OUT].set(wh)
    bhp = jnp.zeros((1, OUT_PAD), jnp.float32).at[:, :OUT].set(bh)
    return (
        (w1p.astype(jnp.bfloat16), b1),
        (w2.astype(jnp.bfloat16), b2),
        (w3.astype(jnp.bfloat16), b3),
        (whp.astype(jnp.bfloat16), bhp),
    )


def _choose_tile(B):
    """Balanced batch tiles; >=2 grid steps for mid-size B (v7x dual-TC)."""
    ntiles = pl.cdiv(B, TM_MAX)
    if B > TM_MAX // 2:
        ntiles = max(ntiles, 2)
    tm = _round_up(pl.cdiv(B, ntiles), 16)   # 16-row rounding: bf16 sublane pack
    b_pad = _round_up(B, tm)
    return tm, b_pad


def submodel3_forward(x, prepared_params):
    """x: (B, IN_DIM) float32 -> (B, 1) float32."""
    B = x.shape[0]
    (w1, b1), (w2, b2), (w3, b3), (wh, bh) = prepared_params

    tm, b_pad = _choose_tile(B)
    grid = (b_pad // tm,)

    # Build the padded batch directly in bf16 (no f32 intermediate):
    # rows B -> b_pad and features 301 -> 320 are zero-padded.
    x_bf = x.astype(jnp.bfloat16)
    xp = jnp.pad(x_bf, ((0, b_pad - B), (0, IN_PAD - IN_DIM)))

    def tiled(shape):        # blocked along the batch axis
        return pl.BlockSpec(shape, lambda i: (i, 0))

    def resident(shape):     # same block every grid step -> stays in VMEM,
        return pl.BlockSpec(shape, lambda i: (0, 0),        # single-buffered
                            pipeline_mode=pl.Buffered(1))

    # Advisory cost hint so XLA schedules the wrapper pad/slice around the call.
    flops = 2 * b_pad * (IN_PAD * H1 + H1 * H2 + H2 * H3 + H3 * OUT_PAD)
    weight_bytes = 2 * (IN_PAD * H1 + H1 * H2 + H2 * H3 + H3 * OUT_PAD)
    bias_bytes = 4 * (H1 + H2 + H3 + OUT_PAD)
    bytes_accessed = (b_pad * IN_PAD * 2        # bf16 x
                      + b_pad * OUT_PAD * 2     # bf16 out
                      + weight_bytes + bias_bytes)
    cost = pl.CostEstimate(flops=flops, transcendentals=0,
                           bytes_accessed=bytes_accessed)

    out = pl.pallas_call(
        _mlp_kernel,
        out_shape=jax.ShapeDtypeStruct((b_pad, OUT_PAD), jnp.bfloat16),
        grid=grid,
        in_specs=[
            tiled((tm, IN_PAD)),
            resident(w1.shape), resident(b1.shape),
            resident(w2.shape), resident(b2.shape),
            resident(w3.shape), resident(b3.shape),
            resident(wh.shape), resident(bh.shape),
        ],
        out_specs=tiled((tm, OUT_PAD)),
        compiler_params=pltpu.CompilerParams(
            dimension_semantics=("parallel",),
            vmem_limit_bytes=40 << 20,   # fits v7x's 64 MiB physical VMEM
        ),
        cost_estimate=cost,
    )(xp, w1, b1, w2, b2, w3, b3, wh, bh)

    return out[:B, :OUT].astype(jnp.float32)


def init_linear(key, fan_in, fan_out):
    """Deterministic init mimicking torch.nn.Linear (uniform +/- 1/sqrt(fan_in))."""
    kw, kb = jax.random.split(key)
    bound = 1.0 / jnp.sqrt(jnp.float32(fan_in))
    # stored as (in, out) so the kernel computes x @ W + b
    w = jax.random.uniform(kw, (fan_in, fan_out), jnp.float32, -bound, bound)
    b = jax.random.uniform(kb, (1, fan_out), jnp.float32, -bound, bound)
    return w, b


def init_params(key):
    k1, k2, k3, k4 = jax.random.split(key, 4)
    return (
        init_linear(k1, IN_DIM, H1),
        init_linear(k2, H1, H2),
        init_linear(k3, H2, H3),
        init_linear(k4, H3, OUT),
    )


def reference_forward(x, params):
    """Pure-JAX reference mirroring the kernel's bf16-weight / f32-accum math."""
    (w1, b1), (w2, b2), (w3, b3), (wh, bh) = params
    bf = jnp.bfloat16
    h = jnp.dot(x.astype(bf), w1.astype(bf), preferred_element_type=jnp.float32)
    h = jnp.maximum(h + b1, 0.0)
    h = jnp.dot(h.astype(bf), w2.astype(bf), preferred_element_type=jnp.float32)
    h = jnp.maximum(h + b2, 0.0)
    h = jnp.dot(h.astype(bf), w3.astype(bf), preferred_element_type=jnp.float32)
    h = jnp.maximum(h + b3, 0.0)
    return jnp.dot(h.astype(bf), wh.astype(bf),
                   preferred_element_type=jnp.float32) + bh


if __name__ == "__main__":
    key = jax.random.PRNGKey(0)
    kp, kx = jax.random.split(key)

    params = init_params(kp)           # torch-layout f32 params
    prepared = prepare_params(params)  # bf16 / padded kernel params

    B = 8
    x = jax.random.normal(kx, (B, IN_DIM), jnp.float32)

    out = submodel3_forward(x, prepared)
    out = jax.block_until_ready(out)

    ref = reference_forward(x, params)
    assert out.shape == (B, OUT)
    assert jnp.allclose(out, ref, atol=3e-2, rtol=2e-2), "mismatch vs reference"

    print("KERNEL_OK")
</pallas_src>

<mosaic_0001>
module attributes {stable_mosaic.version = 11 : i64} {
  func.func @_mlp_kernel(%arg0: i32, %arg1: memref<16x320xbf16, #tpu.memory_space<vmem>>, %arg2: memref<320x2048xbf16, #tpu.memory_space<vmem>>, %arg3: memref<1x2048xf32, #tpu.memory_space<vmem>>, %arg4: memref<2048x1024xbf16, #tpu.memory_space<vmem>>, %arg5: memref<1x1024xf32, #tpu.memory_space<vmem>>, %arg6: memref<1024x256xbf16, #tpu.memory_space<vmem>>, %arg7: memref<1x256xf32, #tpu.memory_space<vmem>>, %arg8: memref<256x128xbf16, #tpu.memory_space<vmem>>, %arg9: memref<1x128xf32, #tpu.memory_space<vmem>>, %arg10: memref<16x128xbf16, #tpu.memory_space<vmem>>) attributes {dimension_semantics = [#tpu.dimension_semantics<parallel>], iteration_bounds = array<i64: 1>, scalar_prefetch = 0 : i64, scratch_operands = 0 : i64, tpu.core_type = #tpu.core_type<tc>, window_params = [{transform_indices = @transform_0, window_bounds = array<i64: 16, 320>}, {pipeline_mode = #tpu.pipeline_mode<synchronous>, transform_indices = @transform_1, window_bounds = array<i64: 320, 2048>}, {pipeline_mode = #tpu.pipeline_mode<synchronous>, transform_indices = @transform_2, window_bounds = array<i64: 1, 2048>}, {pipeline_mode = #tpu.pipeline_mode<synchronous>, transform_indices = @transform_3, window_bounds = array<i64: 2048, 1024>}, {pipeline_mode = #tpu.pipeline_mode<synchronous>, transform_indices = @transform_4, window_bounds = array<i64: 1, 1024>}, {pipeline_mode = #tpu.pipeline_mode<synchronous>, transform_indices = @transform_5, window_bounds = array<i64: 1024, 256>}, {pipeline_mode = #tpu.pipeline_mode<synchronous>, transform_indices = @transform_6, window_bounds = array<i64: 1, 256>}, {pipeline_mode = #tpu.pipeline_mode<synchronous>, transform_indices = @transform_7, window_bounds = array<i64: 256, 128>}, {pipeline_mode = #tpu.pipeline_mode<synchronous>, transform_indices = @transform_8, window_bounds = array<i64: 1, 128>}, {transform_indices = @transform_9, window_bounds = array<i64: 16, 128>}]} {
    %c0 = arith.constant 0 : index
    %c0_0 = arith.constant 0 : index
    %0 = vector.load %arg1[%c0, %c0_0] : memref<16x320xbf16, #tpu.memory_space<vmem>>, vector<16x320xbf16>
    %c0_1 = arith.constant 0 : index
    %c0_2 = arith.constant 0 : index
    %1 = vector.load %arg2[%c0_1, %c0_2] : memref<320x2048xbf16, #tpu.memory_space<vmem>>, vector<320x2048xbf16>
    %cst = arith.constant dense<0.000000e+00> : vector<16x2048xf32>
    %2 = tpu.matmul %0, %1, %cst {dimension_numbers = #tpu.dot_dimension_numbers<[1], [0], [0], [1], [0, 0, 1, 1], [], []>} : vector<16x320xbf16>, vector<320x2048xbf16>, vector<16x2048xf32> -> vector<16x2048xf32>
    %c0_3 = arith.constant 0 : index
    %c0_4 = arith.constant 0 : index
    %3 = vector.load %arg3[%c0_3, %c0_4] : memref<1x2048xf32, #tpu.memory_space<vmem>>, vector<1x2048xf32>
    %4 = vector.broadcast %3 : vector<1x2048xf32> to vector<16x2048xf32>
    %5 = arith.addf %2, %4 : vector<16x2048xf32>
    %cst_5 = arith.constant 0.000000e+00 : f32
    %6 = vector.broadcast %cst_5 : f32 to vector<16x2048xf32>
    %7 = arith.maximumf %5, %6 : vector<16x2048xf32>
    %8 = arith.truncf %7 : vector<16x2048xf32> to vector<16x2048xbf16>
    %c0_6 = arith.constant 0 : index
    %c0_7 = arith.constant 0 : index
    %9 = vector.load %arg4[%c0_6, %c0_7] : memref<2048x1024xbf16, #tpu.memory_space<vmem>>, vector<2048x1024xbf16>
    %cst_8 = arith.constant dense<0.000000e+00> : vector<16x1024xf32>
    %10 = tpu.matmul %8, %9, %cst_8 {dimension_numbers = #tpu.dot_dimension_numbers<[1], [0], [0], [1], [0, 0, 1, 1], [], []>} : vector<16x2048xbf16>, vector<2048x1024xbf16>, vector<16x1024xf32> -> vector<16x1024xf32>
    %c0_9 = arith.constant 0 : index
    %c0_10 = arith.constant 0 : index
    %11 = vector.load %arg5[%c0_9, %c0_10] : memref<1x1024xf32, #tpu.memory_space<vmem>>, vector<1x1024xf32>
    %12 = vector.broadcast %11 : vector<1x1024xf32> to vector<16x1024xf32>
    %13 = arith.addf %10, %12 : vector<16x1024xf32>
    %cst_11 = arith.constant 0.000000e+00 : f32
    %14 = vector.broadcast %cst_11 : f32 to vector<16x1024xf32>
    %15 = arith.maximumf %13, %14 : vector<16x1024xf32>
    %16 = arith.truncf %15 : vector<16x1024xf32> to vector<16x1024xbf16>
    %c0_12 = arith.constant 0 : index
    %c0_13 = arith.constant 0 : index
    %17 = vector.load %arg6[%c0_12, %c0_13] : memref<1024x256xbf16, #tpu.memory_space<vmem>>, vector<1024x256xbf16>
    %cst_14 = arith.constant dense<0.000000e+00> : vector<16x256xf32>
    %18 = tpu.matmul %16, %17, %cst_14 {dimension_numbers = #tpu.dot_dimension_numbers<[1], [0], [0], [1], [0, 0, 1, 1], [], []>} : vector<16x1024xbf16>, vector<1024x256xbf16>, vector<16x256xf32> -> vector<16x256xf32>
    %c0_15 = arith.constant 0 : index
    %c0_16 = arith.constant 0 : index
    %19 = vector.load %arg7[%c0_15, %c0_16] : memref<1x256xf32, #tpu.memory_space<vmem>>, vector<1x256xf32>
    %20 = vector.broadcast %19 : vector<1x256xf32> to vector<16x256xf32>
    %21 = arith.addf %18, %20 : vector<16x256xf32>
    %cst_17 = arith.constant 0.000000e+00 : f32
    %22 = vector.broadcast %cst_17 : f32 to vector<16x256xf32>
    %23 = arith.maximumf %21, %22 : vector<16x256xf32>
    %24 = arith.truncf %23 : vector<16x256xf32> to vector<16x256xbf16>
    %c0_18 = arith.constant 0 : index
    %c0_19 = arith.constant 0 : index
    %25 = vector.load %arg8[%c0_18, %c0_19] : memref<256x128xbf16, #tpu.memory_space<vmem>>, vector<256x128xbf16>
    %cst_20 = arith.constant dense<0.000000e+00> : vector<16x128xf32>
    %26 = tpu.matmul %24, %25, %cst_20 {dimension_numbers = #tpu.dot_dimension_numbers<[1], [0], [0], [1], [0, 0, 1, 1], [], []>} : vector<16x256xbf16>, vector<256x128xbf16>, vector<16x128xf32> -> vector<16x128xf32>
    %c0_21 = arith.constant 0 : index
    %c0_22 = arith.constant 0 : index
    %27 = vector.load %arg9[%c0_21, %c0_22] : memref<1x128xf32, #tpu.memory_space<vmem>>, vector<1x128xf32>
    %28 = vector.broadcast %27 : vector<1x128xf32> to vector<16x128xf32>
    %29 = arith.addf %26, %28 : vector<16x128xf32>
    %30 = arith.truncf %29 : vector<16x128xf32> to vector<16x128xbf16>
    %c0_23 = arith.constant 0 : index
    %c0_24 = arith.constant 0 : index
    %31 = vector.load %arg10[%c0_23, %c0_24] : memref<16x128xbf16, #tpu.memory_space<vmem>>, vector<16x128xbf16>
    tpu.vector_store %arg10[%c0_23, %c0_24], %30 {strides = array<i32>} : memref<16x128xbf16, #tpu.memory_space<vmem>>, vector<16x128xbf16>,
    return
  }
  func.func @transform_0(%arg0: i32) -> (i32, i32) {
    %c0_i32 = arith.constant 0 : i32
    %c0_i32_0 = arith.constant 0 : i32
    return %arg0, %c0_i32 : i32, i32
  }
  func.func @transform_1(%arg0: i32) -> (i32, i32) {
    %c0_i32 = arith.constant 0 : i32
    %c0_i32_0 = arith.constant 0 : i32
    %c0_i32_1 = arith.constant 0 : i32
    return %c0_i32, %c0_i32_0 : i32, i32
  }
  func.func @transform_2(%arg0: i32) -> (i32, i32) {
    %c0_i32 = arith.constant 0 : i32
    %c0_i32_0 = arith.constant 0 : i32
    %c0_i32_1 = arith.constant 0 : i32
    return %c0_i32, %c0_i32_0 : i32, i32
  }
  func.func @transform_3(%arg0: i32) -> (i32, i32) {
    %c0_i32 = arith.constant 0 : i32
    %c0_i32_0 = arith.constant 0 : i32
    %c0_i32_1 = arith.constant 0 : i32
    return %c0_i32, %c0_i32_0 : i32, i32
  }
  func.func @transform_4(%arg0: i32) -> (i32, i32) {
    %c0_i32 = arith.constant 0 : i32
    %c0_i32_0 = arith.constant 0 : i32
    %c0_i32_1 = arith.constant 0 : i32
    return %c0_i32, %c0_i32_0 : i32, i32
  }
  func.func @transform_5(%arg0: i32) -> (i32, i32) {
    %c0_i32 = arith.constant 0 : i32
    %c0_i32_0 = arith.constant 0 : i32
    %c0_i32_1 = arith.constant 0 : i32
    return %c0_i32, %c0_i32_0 : i32, i32
  }
  func.func @transform_6(%arg0: i32) -> (i32, i32) {
    %c0_i32 = arith.constant 0 : i32
    %c0_i32_0 = arith.constant 0 : i32
    %c0_i32_1 = arith.constant 0 : i32
    return %c0_i32, %c0_i32_0 : i32, i32
  }
  func.func @transform_7(%arg0: i32) -> (i32, i32) {
    %c0_i32 = arith.constant 0 : i32
    %c0_i32_0 = arith.constant 0 : i32
    %c0_i32_1 = arith.constant 0 : i32
    return %c0_i32, %c0_i32_0 : i32, i32
  }
  func.func @transform_8(%arg0: i32) -> (i32, i32) {
    %c0_i32 = arith.constant 0 : i32
    %c0_i32_0 = arith.constant 0 : i32
    %c0_i32_1 = arith.constant 0 : i32
    return %c0_i32, %c0_i32_0 : i32, i32
  }
  func.func @transform_9(%arg0: i32) -> (i32, i32) {
    %c0_i32 = arith.constant 0 : i32
    %c0_i32_0 = arith.constant 0 : i32
    return %arg0, %c0_i32 : i32, i32
  }
}

</mosaic_0001>

<llo_original>
// kernel: tpu_custom_call.1
$region0: #{tpu_custom_call.1}
  #allocation0 [shape = 'u32[]', space=smem, size = 0x4, offset = 0x4, fixed_abs, tag = 'smem constant byte address 0x4 - core index']
  #allocation1 [shape = 'u32[144,128]{1,0:T(1,128)}', space=vmem, size = 0x12000, scoped, tag = 'internal scratch']
  %s0 = inlined_call_operand.hbm [shape: bf16[16,320], index: 0, kind: input, shape index: {}]
  %s1 = inlined_call_operand.hbm [shape: bf16[320,2048], index: 1, kind: input, shape index: {}]
  %s2 = inlined_call_operand.hbm [shape: f32[1,2048], index: 2, kind: input, shape index: {}]
  %s3 = inlined_call_operand.hbm [shape: bf16[2048,1024], index: 3, kind: input, shape index: {}]
  %s4 = inlined_call_operand.hbm [shape: f32[1,1024], index: 4, kind: input, shape index: {}]
  %s5 = inlined_call_operand.hbm [shape: bf16[1024,256], index: 5, kind: input, shape index: {}]
  %s6 = inlined_call_operand.hbm [shape: f32[1,256], index: 6, kind: input, shape index: {}]
  %s7 = inlined_call_operand.hbm [shape: bf16[256,128], index: 7, kind: input, shape index: {}]
  %s8 = inlined_call_operand.hbm [shape: f32[1,128], index: 8, kind: input, shape index: {}]
  %s9 = inlined_call_operand.hbm [shape: bf16[16,128], index: 9, kind: output, shape index: {}]
  %s10 = sld [smem:[#allocation0]]
  $region82: #{tpu_custom_call.1} parent=0
    _
  %s12 = ssub.s32 1, %s10
  %s13 = scalar_select 0, %s12, %s10
  $region1: #{tpu_custom_call.1} parent=0
    #allocation2 [shape = 'u8[12288]{0}', space=vmem, size = 0x3000, scoped, tag = 'input window, operand 0, single buffered']
    #allocation3 [shape = 's32[1]{0}', space=sflag, size = 0x4, scoped, tag = 'scoped memory for tpu_custom_call.1']
    #allocation4 [shape = 's32[1]{0}', space=sflag, size = 0x4, scoped, tag = 'scoped memory for tpu_custom_call.1']
    #allocation5 [shape = 'u8[1310720]{0}', space=vmem, size = 0x140000, scoped, tag = 'input window, operand 1, single buffered']
    #allocation6 [shape = 's32[1]{0}', space=sflag, size = 0x4, scoped, tag = 'scoped memory for tpu_custom_call.1']
    #allocation7 [shape = 'u8[8192]{0}', space=vmem, size = 0x2000, scoped, tag = 'input window, operand 2, single buffered']
    #allocation8 [shape = 'u8[4194304]{0}', space=vmem, size = 0x400000, scoped, tag = 'input window, operand 3, single buffered']
    #allocation9 [shape = 's32[1]{0}', space=sflag, size = 0x4, scoped, tag = 'scoped memory for tpu_custom_call.1']
    #allocation10 [shape = 'u8[4096]{0}', space=vmem, size = 0x1000, scoped, tag = 'input window, operand 4, single buffered']
    #allocation11 [shape = 'u8[524288]{0}', space=vmem, size = 0x80000, scoped, tag = 'input window, operand 5, single buffered']
    #allocation12 [shape = 's32[1]{0}', space=sflag, size = 0x4, scoped, tag = 'scoped memory for tpu_custom_call.1']
    #allocation13 [shape = 'u8[1024]{0}', space=vmem, size = 0x400, scoped, tag = 'input window, operand 6, single buffered']
    #allocation14 [shape = 'u8[65536]{0}', space=vmem, size = 0x10000, scoped, tag = 'input window, operand 7, single buffered']
    #allocation15 [shape = 's32[1]{0}', space=sflag, size = 0x4, scoped, tag = 'scoped memory for tpu_custom_call.1']
    #allocation16 [shape = 'u8[512]{0}', space=vmem, size = 0x400, scoped, tag = 'input window, operand 8, single buffered']
    #allocation17 [shape = 'u8[4096]{0}', space=vmem, size = 0x1000, scoped, tag = 'output window, operand 0, single buffered']
    %14 = vsyncpa [#allocation3], 0
    %15 = vsyncpa [#allocation6], 0
    %16 = vsyncpa [#allocation9], 0
    %17 = vsyncpa [#allocation12], 0
    %18 = vsyncpa [#allocation15], 0
    %19 = vsyncpa [#allocation4], 0
    // Predicated region
    $region2: #{tpu_custom_call.1} parent=1 // pred_check
      _
    $region3: #{tpu_custom_call.1} parent=1 // pred_check_branch
      %21 = sbr.rel (0) target = $region5
    $region4: #{tpu_custom_call.1} parent=1 // pred_region
      %s23 = ssub.s32 384, 384
      %24 = vsyncadd [#allocation3], %s23
      %s25 = sshll.u32 [#allocation2], 4
      %s26 = int_to_ptr.vmem [resolvable:$true] %s25
      %31 = dma.hbm_to_vmem [thread:$0]  %s0, 384, %s26, [#allocation3], 192, 192, 12
    $region5: #{tpu_custom_call.1} parent=1 // pred_fallthru
      _
    // Predicated region
    $region6: #{tpu_custom_call.1} parent=1 // pred_check
      _
    $region7: #{tpu_custom_call.1} parent=1 // pred_check_branch
      %33 = sbr.rel (0) target = $region9
    $region8: #{tpu_custom_call.1} parent=1 // pred_region
      %s35 = ssub.s32 40960, 40960
      %36 = vsyncadd [#allocation6], %s35
      %s37 = sshll.u32 [#allocation5], 4
      %s38 = int_to_ptr.vmem [resolvable:$true] %s37
      %43 = dma.hbm_to_vmem [thread:$0]  %s1, 40960, %s38, [#allocation6], 1024, 1024, 64
    $region9: #{tpu_custom_call.1} parent=1 // pred_fallthru
      _
    // Predicated region
    $region10: #{tpu_custom_call.1} parent=1 // pred_check
      _
    $region11: #{tpu_custom_call.1} parent=1 // pred_check_branch
      %45 = sbr.rel (0) target = $region13
    $region12: #{tpu_custom_call.1} parent=1 // pred_region
      %s47 = ssub.s32 256, 256
      %48 = vsyncadd [#allocation6], %s47
      %s50 = sshll.u32 [#allocation7], 4
      %s51 = int_to_ptr.vmem [resolvable:$true] %s50
      %53 = dma.hbm_to_vmem [thread:$0]  %s2, 256, %s51, [#allocation6]
    $region13: #{tpu_custom_call.1} parent=1 // pred_fallthru
      _
    // Predicated region
    $region14: #{tpu_custom_call.1} parent=1 // pred_check
      _
    $region15: #{tpu_custom_call.1} parent=1 // pred_check_branch
      %55 = sbr.rel (0) target = $region17
    $region16: #{tpu_custom_call.1} parent=1 // pred_region
      %s57 = ssub.s32 131072, 131072
      %58 = vsyncadd [#allocation9], %s57
      %s59 = sshll.u32 [#allocation8], 4
      %s60 = int_to_ptr.vmem [resolvable:$true] %s59
      %65 = dma.hbm_to_vmem [thread:$0]  %s3, 131072, %s60, [#allocation9], 512, 512, 32
    $region17: #{tpu_custom_call.1} parent=1 // pred_fallthru
      _
    // Predicated region
    $region18: #{tpu_custom_call.1} parent=1 // pred_check
      _
    $region19: #{tpu_custom_call.1} parent=1 // pred_check_branch
      %67 = sbr.rel (0) target = $region21
    $region20: #{tpu_custom_call.1} parent=1 // pred_region
      %s69 = ssub.s32 128, 128
      %70 = vsyncadd [#allocation9], %s69
      %s72 = sshll.u32 [#allocation10], 4
      %s73 = int_to_ptr.vmem [resolvable:$true] %s72
      %75 = dma.hbm_to_vmem [thread:$0]  %s4, 128, %s73, [#allocation9]
    $region21: #{tpu_custom_call.1} parent=1 // pred_fallthru
      _
    // Predicated region
    $region22: #{tpu_custom_call.1} parent=1 // pred_check
      _
    $region23: #{tpu_custom_call.1} parent=1 // pred_check_branch
      %77 = sbr.rel (0) target = $region25
    $region24: #{tpu_custom_call.1} parent=1 // pred_region
      %s79 = ssub.s32 16384, 16384
      %80 = vsyncadd [#allocation12], %s79
      %s81 = sshll.u32 [#allocation11], 4
      %s82 = int_to_ptr.vmem [resolvable:$true] %s81
      %87 = dma.hbm_to_vmem [thread:$0]  %s5, 16384, %s82, [#allocation12], 128, 128, 8
    $region25: #{tpu_custom_call.1} parent=1 // pred_fallthru
      _
    // Predicated region
    $region26: #{tpu_custom_call.1} parent=1 // pred_check
      _
    $region27: #{tpu_custom_call.1} parent=1 // pred_check_branch
      %89 = sbr.rel (0) target = $region29
    $region28: #{tpu_custom_call.1} parent=1 // pred_region
      %s91 = ssub.s32 32, 32
      %92 = vsyncadd [#allocation12], %s91
      %s94 = sshll.u32 [#allocation13], 4
      %s95 = int_to_ptr.vmem [resolvable:$true] %s94
      %97 = dma.hbm_to_vmem [thread:$0]  %s6, 32, %s95, [#allocation12]
    $region29: #{tpu_custom_call.1} parent=1 // pred_fallthru
      _
    // Predicated region
    $region30: #{tpu_custom_call.1} parent=1 // pred_check
      _
    $region31: #{tpu_custom_call.1} parent=1 // pred_check_branch
      %99 = sbr.rel (0) target = $region33
    $region32: #{tpu_custom_call.1} parent=1 // pred_region
      %s101 = ssub.s32 2048, 2048
      %102 = vsyncadd [#allocation15], %s101
      %s103 = sshll.u32 [#allocation14], 4
      %s104 = int_to_ptr.vmem [resolvable:$true] %s103
      %109 = dma.hbm_to_vmem [thread:$0]  %s7, 2048, %s104, [#allocation15], 64, 64, 4
    $region33: #{tpu_custom_call.1} parent=1 // pred_fallthru
      _
    // Predicated region
    $region34: #{tpu_custom_call.1} parent=1 // pred_check
      _
    $region35: #{tpu_custom_call.1} parent=1 // pred_check_branch
      %111 = sbr.rel (0) target = $region37
    $region36: #{tpu_custom_call.1} parent=1 // pred_region
      %s113 = ssub.s32 16, 16
      %114 = vsyncadd [#allocation15], %s113
      %s116 = sshll.u32 [#allocation16], 4
      %s117 = int_to_ptr.vmem [resolvable:$true] %s116
      %119 = dma.hbm_to_vmem [thread:$0]  %s8, 16, %s117, [#allocation15]
    $region37: #{tpu_custom_call.1} parent=1 // pred_fallthru
      _
    // Predicated region
    $region38: #{tpu_custom_call.1} parent=1 // pred_check
      _
    $region39: #{tpu_custom_call.1} parent=1 // pred_check_branch
      %121 = sbr.rel (0) target = $region41
    $region40: #{tpu_custom_call.1} parent=1 // pred_region
      %122 = dma.done [#allocation3], 384
    $region41: #{tpu_custom_call.1} parent=1 // pred_fallthru
      _
    // Predicated region
    $region42: #{tpu_custom_call.1} parent=1 // pred_check
      _
    $region43: #{tpu_custom_call.1} parent=1 // pred_check_branch
      %124 = sbr.rel (0) target = $region45
    $region44: #{tpu_custom_call.1} parent=1 // pred_region
      %125 = dma.done [#allocation6], 40960
    $region45: #{tpu_custom_call.1} parent=1 // pred_fallthru
      _
    // Predicated region
    $region46: #{tpu_custom_call.1} parent=1 // pred_check
      _
    $region47: #{tpu_custom_call.1} parent=1 // pred_check_branch
      %127 = sbr.rel (0) target = $region49
    $region48: #{tpu_custom_call.1} parent=1 // pred_region
      %128 = dma.done [#allocation6], 256
    $region49: #{tpu_custom_call.1} parent=1 // pred_fallthru
      _
    // Predicated region
    $region50: #{tpu_custom_call.1} parent=1 // pred_check
      _
    $region51: #{tpu_custom_call.1} parent=1 // pred_check_branch
      %130 = sbr.rel (0) target = $region53
    $region52: #{tpu_custom_call.1} parent=1 // pred_region
      %131 = dma.done [#allocation9], 131072
    $region53: #{tpu_custom_call.1} parent=1 // pred_fallthru
      _
    // Predicated region
    $region54: #{tpu_custom_call.1} parent=1 // pred_check
      _
    $region55: #{tpu_custom_call.1} parent=1 // pred_check_branch
      %133 = sbr.rel (0) target = $region57
    $region56: #{tpu_custom_call.1} parent=1 // pred_region
      %134 = dma.done [#allocation9], 128
    $region57: #{tpu_custom_call.1} parent=1 // pred_fallthru
      _
    // Predicated region
    $region58: #{tpu_custom_call.1} parent=1 // pred_check
      _
    $region59: #{tpu_custom_call.1} parent=1 // pred_check_branch
      %136 = sbr.rel (0) target = $region61
    $region60: #{tpu_custom_call.1} parent=1 // pred_region
      %137 = dma.done [#allocation12], 16384
    $region61: #{tpu_custom_call.1} parent=1 // pred_fallthru
      _
    // Predicated region
    $region62: #{tpu_custom_call.1} parent=1 // pred_check
      _
    $region63: #{tpu_custom_call.1} parent=1 // pred_check_branch
      %139 = sbr.rel (0) target = $region65
    $region64: #{tpu_custom_call.1} parent=1 // pred_region
      %140 = dma.done [#allocation12], 32
    $region65: #{tpu_custom_call.1} parent=1 // pred_fallthru
      _
    // Predicated region
    $region66: #{tpu_custom_call.1} parent=1 // pred_check
      _
    $region67: #{tpu_custom_call.1} parent=1 // pred_check_branch
      %142 = sbr.rel (0) target = $region69
    $region68: #{tpu_custom_call.1} parent=1 // pred_region
      %143 = dma.done [#allocation15], 2048
    $region69: #{tpu_custom_call.1} parent=1 // pred_fallthru
      _
    // Predicated region
    $region70: #{tpu_custom_call.1} parent=1 // pred_check
      _
    $region71: #{tpu_custom_call.1} parent=1 // pred_check_branch
      %145 = sbr.rel (0) target = $region73
    $region72: #{tpu_custom_call.1} parent=1 // pred_region
      %146 = dma.done [#allocation15], 16
    $region73: #{tpu_custom_call.1} parent=1 // pred_fallthru
      _
    %v148 = vld [vmem:[#allocation2] sm:$0xff]
    %v149 = vld [vmem:[#allocation2 + $0x8] sm:$0xf]
    %v150 = vld [vmem:[#allocation2 + $0xc] sm:$0xff]
    %v151 = vld [vmem:[#allocation2 + $0x14] sm:$0xf]
    %v152 = vld [vmem:[#allocation5] sm:$0xff]
    %v153 = vld [vmem:[#allocation5 + $0x8] sm:$0xff]
    %v154 = vld [vmem:[#allocation5 + $0x10] sm:$0xff]
    %v155 = vld [vmem:[#allocation5 + $0x18] sm:$0xff]
    %v156 = vld [vmem:[#allocation5 + $0x20] sm:$0xff]
    %v157 = vld [vmem:[#allocation5 + $0x28] sm:$0xff]
    %v158 = vld [vmem:[#allocation5 + $0x30] sm:$0xff]
    %v159 = vld [vmem:[#allocation5 + $0x38] sm:$0xff]
    %v160 = vld [vmem:[#allocation5 + $0x40] sm:$0xff]
    %v161 = vld [vmem:[#allocation5 + $0x48] sm:$0xff]
    %v162 = vld [vmem:[#allocation5 + $0x50] sm:$0xff]
    %v163 = vld [vmem:[#allocation5 + $0x58] sm:$0xff]
    %v164 = vld [vmem:[#allocation5 + $0x60] sm:$0xff]
    %v165 = vld [vmem:[#allocation5 + $0x68] sm:$0xff]
    %v166 = vld [vmem:[#allocation5 + $0x70] sm:$0xff]
    %v167 = vld [vmem:[#allocation5 + $0x78] sm:$0xff]
    %v168 = vld [vmem:[#allocation5 + $0x80] sm:$0xff]
    %v169 = vld [vmem:[#allocation5 + $0x88] sm:$0xff]
    %v170 = vld [vmem:[#allocation5 + $0x90] sm:$0xff]
    %v171 = vld [vmem:[#allocation5 + $0x98] sm:$0xff]
    %v172 = vld [vmem:[#allocation5 + $0xa0] sm:$0xff]
    %v173 = vld [vmem:[#allocation5 + $0xa8] sm:$0xff]
    %v174 = vld [vmem:[#allocation5 + $0xb0] sm:$0xff]
    %v175 = vld [vmem:[#allocation5 + $0xb8] sm:$0xff]
    %v176 = vld [vmem:[#allocation5 + $0xc0] sm:$0xff]
    %v177 = vld [vmem:[#allocation5 + $0xc8] sm:$0xff]
    %v178 = vld [vmem:[#allocation5 + $0xd0] sm:$0xff]
    %v179 = vld [vmem:[#allocation5 + $0xd8] sm:$0xff]
    %v180 = vld [vmem:[#allocation5 + $0xe0] sm:$0xff]
    %v181 = vld [vmem:[#allocation5 + $0xe8] sm:$0xff]
    %v182 = vld [vmem:[#allocation5 + $0xf0] sm:$0xff]
    %v183 = vld [vmem:[#allocation5 + $0xf8] sm:$0xff]
    %v184 = vld [vmem:[#allocation5 + $0x100] sm:$0xff]
    %v185 = vld [vmem:[#allocation5 + $0x108] sm:$0xff]
    %v186 = vld [vmem:[#allocation5 + $0x110] sm:$0xff]
    %v187 = vld [vmem:[#allocation5 + $0x118] sm:$0xff]
    %v188 = vld [vmem:[#allocation5 + $0x120] sm:$0xff]
    %v189 = vld [vmem:[#allocation5 + $0x128] sm:$0xff]
    %v190 = vld [vmem:[#allocation5 + $0x130] sm:$0xff]
    %v191 = vld [vmem:[#allocation5 + $0x138] sm:$0xff]
    %v192 = vld [vmem:[#allocation5 + $0x140] sm:$0xff]
    %v193 = vld [vmem:[#allocation5 + $0x148] sm:$0xff]
    %v194 = vld [vmem:[#allocation5 + $0x150] sm:$0xff]
    %v195 = vld [vmem:[#allocation5 + $0x158] sm:$0xff]
    %v196 = vld [vmem:[#allocation5 + $0x160] sm:$0xff]
    %v197 = vld [vmem:[#allocation5 + $0x168] sm:$0xff]
    %v198 = vld [vmem:[#allocation5 + $0x170] sm:$0xff]
    %v199 = vld [vmem:[#allocation5 + $0x178] sm:$0xff]
    %v200 = vld [vmem:[#allocation5 + $0x180] sm:$0xff]
    %v201 = vld [vmem:[#allocation5 + $0x188] sm:$0xff]
    %v202 = vld [vmem:[#allocation5 + $0x190] sm:$0xff]
    %v203 = vld [vmem:[#allocation5 + $0x198] sm:$0xff]
    %v204 = vld [vmem:[#allocation5 + $0x1a0] sm:$0xff]
    %v205 = vld [vmem:[#allocation5 + $0x1a8] sm:$0xff]
    %v206 = vld [vmem:[#allocation5 + $0x1b0] sm:$0xff]
    %v207 = vld [vmem:[#allocation5 + $0x1b8] sm:$0xff]
    %v208 = vld [vmem:[#allocation5 + $0x1c0] sm:$0xff]
    %v209 = vld [vmem:[#allocation5 + $0x1c8] sm:$0xff]
    %v210 = vld [vmem:[#allocation5 + $0x1d0] sm:$0xff]
    %v211 = vld [vmem:[#allocation5 + $0x1d8] sm:$0xff]
    %v212 = vld [vmem:[#allocation5 + $0x1e0] sm:$0xff]
    %v213 = vld [vmem:[#allocation5 + $0x1e8] sm:$0xff]
    %v214 = vld [vmem:[#allocation5 + $0x1f0] sm:$0xff]
    %v215 = vld [vmem:[#allocation5 + $0x1f8] sm:$0xff]
    %v216 = vld [vmem:[#allocation5 + $0x200] sm:$0xff]
    %v217 = vld [vmem:[#allocation5 + $0x208] sm:$0xff]
    %v218 = vld [vmem:[#allocation5 + $0x210] sm:$0xff]
    %v219 = vld [vmem:[#allocation5 + $0x218] sm:$0xff]
    %v220 = vld [vmem:[#allocation5 + $0x220] sm:$0xff]
    %v221 = vld [vmem:[#allocation5 + $0x228] sm:$0xff]
    %v222 = vld [vmem:[#allocation5 + $0x230] sm:$0xff]
    %v223 = vld [vmem:[#allocation5 + $0x238] sm:$0xff]
    %v224 = vld [vmem:[#allocation5 + $0x240] sm:$0xff]
    %v225 = vld [vmem:[#allocation5 + $0x248] sm:$0xff]
    %v226 = vld [vmem:[#allocation5 + $0x250] sm:$0xff]
    %v227 = vld [vmem:[#allocation5 + $0x258] sm:$0xff]
    %v228 = vld [vmem:[#allocation5 + $0x260] sm:$0xff]
    %v229 = vld [vmem:[#allocation5 + $0x268] sm:$0xff]
    %v230 = vld [vmem:[#allocation5 + $0x270] sm:$0xff]
    %v231 = vld [vmem:[#allocation5 + $0x278] sm:$0xff]
    %v232 = vld [vmem:[#allocation5 + $0x280] sm:$0xff]
    %v233 = vld [vmem:[#allocation5 + $0x288] sm:$0xff]
    %v234 = vld [vmem:[#allocation5 + $0x290] sm:$0xff]
    %v235 = vld [vmem:[#allocation5 + $0x298] sm:$0xff]
    %v236 = vld [vmem:[#allocation5 + $0x2a0] sm:$0xff]
    %v237 = vld [vmem:[#allocation5 + $0x2a8] sm:$0xff]
    %v238 = vld [vmem:[#allocation5 + $0x2b0] sm:$0xff]
    %v239 = vld [vmem:[#allocation5 + $0x2b8] sm:$0xff]
    %v240 = vld [vmem:[#allocation5 + $0x2c0] sm:$0xff]
    %v241 = vld [vmem:[#allocation5 + $0x2c8] sm:$0xff]
    %v242 = vld [vmem:[#allocation5 + $0x2d0] sm:$0xff]
    %v243 = vld [vmem:[#allocation5 + $0x2d8] sm:$0xff]
    %v244 = vld [vmem:[#allocation5 + $0x2e0] sm:$0xff]
    %v245 = vld [vmem:[#allocation5 + $0x2e8] sm:$0xff]
    %v246 = vld [vmem:[#allocation5 + $0x2f0] sm:$0xff]
    %v247 = vld [vmem:[#allocation5 + $0x2f8] sm:$0xff]
    %v248 = vld [vmem:[#allocation5 + $0x300] sm:$0xff]
    %v249 = vld [vmem:[#allocation5 + $0x308] sm:$0xff]
    %v250 = vld [vmem:[#allocation5 + $0x310] sm:$0xff]
    %v251 = vld [vmem:[#allocation5 + $0x318] sm:$0xff]
    %v252 = vld [vmem:[#allocation5 + $0x320] sm:$0xff]
    %v253 = vld [vmem:[#allocation5 + $0x328] sm:$0xff]
    %v254 = vld [vmem:[#allocation5 + $0x330] sm:$0xff]
    %v255 = vld [vmem:[#allocation5 + $0x338] sm:$0xff]
    %v256 = vld [vmem:[#allocation5 + $0x340] sm:$0xff]
    %v257 = vld [vmem:[#allocation5 + $0x348] sm:$0xff]
    %v258 = vld [vmem:[#allocation5 + $0x350] sm:$0xff]
    %v259 = vld [vmem:[#allocation5 + $0x358] sm:$0xff]
    %v260 = vld [vmem:[#allocation5 + $0x360] sm:$0xff]
    %v261 = vld [vmem:[#allocation5 + $0x368] sm:$0xff]
    %v262 = vld [vmem:[#allocation5 + $0x370] sm:$0xff]
    %v263 = vld [vmem:[#allocation5 + $0x378] sm:$0xff]
    %v264 = vld [vmem:[#allocation5 + $0x380] sm:$0xff]
    %v265 = vld [vmem:[#allocation5 + $0x388] sm:$0xff]
    %v266 = vld [vmem:[#allocation5 + $0x390] sm:$0xff]
    %v267 = vld [vmem:[#allocation5 + $0x398] sm:$0xff]
    %v268 = vld [vmem:[#allocation5 + $0x3a0] sm:$0xff]
    %v269 = vld [vmem:[#allocation5 + $0x3a8] sm:$0xff]
    %v270 = vld [vmem:[#allocation5 + $0x3b0] sm:$0xff]
    %v271 = vld [vmem:[#allocation5 + $0x3b8] sm:$0xff]
    %v272 = vld [vmem:[#allocation5 + $0x3c0] sm:$0xff]
    %v273 = vld [vmem:[#allocation5 + $0x3c8] sm:$0xff]
    %v274 = vld [vmem:[#allocation5 + $0x3d0] sm:$0xff]
    %v275 = vld [vmem:[#allocation5 + $0x3d8] sm:$0xff]
    %v276 = vld [vmem:[#allocation5 + $0x3e0] sm:$0xff]
    %v277 = vld [vmem:[#allocation5 + $0x3e8] sm:$0xff]
    %v278 = vld [vmem:[#allocation5 + $0x3f0] sm:$0xff]
    %v279 = vld [vmem:[#allocation5 + $0x3f8] sm:$0xff]
    %v280 = vld [vmem:[#allocation5 + $0x400] sm:$0xff]
    %v281 = vld [vmem:[#allocation5 + $0x408] sm:$0xff]
    %v282 = vld [vmem:[#allocation5 + $0x410] sm:$0xff]
    %v283 = vld [vmem:[#allocation5 + $0x418] sm:$0xff]
    %v284 = vld [vmem:[#allocation5 + $0x420] sm:$0xff]
    %v285 = vld [vmem:[#allocation5 + $0x428] sm:$0xff]
    %v286 = vld [vmem:[#allocation5 + $0x430] sm:$0xff]
    %v287 = vld [vmem:[#allocation5 + $0x438] sm:$0xff]
    %v288 = vld [vmem:[#allocation5 + $0x440] sm:$0xff]
    %v289 = vld [vmem:[#allocation5 + $0x448] sm:$0xff]
    %v290 = vld [vmem:[#allocation5 + $0x450] sm:$0xff]
    %v291 = vld [vmem:[#allocation5 + $0x458] sm:$0xff]
    %v292 = vld [vmem:[#allocation5 + $0x460] sm:$0xff]
    %v293 = vld [vmem:[#allocation5 + $0x468] sm:$0xff]
    %v294 = vld [vmem:[#allocation5 + $0x470] sm:$0xff]
    %v295 = vld [vmem:[#allocation5 + $0x478] sm:$0xff]
    %v296 = vld [vmem:[#allocation5 + $0x480] sm:$0xff]
    %v297 = vld [vmem:[#allocation5 + $0x488] sm:$0xff]
    %v298 = vld [vmem:[#allocation5 + $0x490] sm:$0xff]
    %v299 = vld [vmem:[#allocation5 + $0x498] sm:$0xff]
    %v300 = vld [vmem:[#allocation5 + $0x4a0] sm:$0xff]
    %v301 = vld [vmem:[#allocation5 + $0x4a8] sm:$0xff]
    %v302 = vld [vmem:[#allocation5 + $0x4b0] sm:$0xff]
    %v303 = vld [vmem:[#allocation5 + $0x4b8] sm:$0xff]
    %v304 = vld [vmem:[#allocation5 + $0x4c0] sm:$0xff]
    %v305 = vld [vmem:[#allocation5 + $0x4c8] sm:$0xff]
    %v306 = vld [vmem:[#allocation5 + $0x4d0] sm:$0xff]
    %v307 = vld [vmem:[#allocation5 + $0x4d8] sm:$0xff]
    %v308 = vld [vmem:[#allocation5 + $0x4e0] sm:$0xff]
    %v309 = vld [vmem:[#allocation5 + $0x4e8] sm:$0xff]
    %v310 = vld [vmem:[#allocation5 + $0x4f0] sm:$0xff]
    %v311 = vld [vmem:[#allocation5 + $0x4f8] sm:$0xff]
    %v312 = vld [vmem:[#allocation5 + $0x500] sm:$0xff]
    %v313 = vld [vmem:[#allocation5 + $0x508] sm:$0xff]
    %v314 = vld [vmem:[#allocation5 + $0x510] sm:$0xff]
    %v315 = vld [vmem:[#allocation5 + $0x518] sm:$0xff]
    %v316 = vld [vmem:[#allocation5 + $0x520] sm:$0xff]
    %v317 = vld [vmem:[#allocation5 + $0x528] sm:$0xff]
    %v318 = vld [vmem:[#allocation5 + $0x530] sm:$0xff]
    %v319 = vld [vmem:[#allocation5 + $0x538] sm:$0xff]
    %v320 = vld [vmem:[#allocation5 + $0x540] sm:$0xff]
    %v321 = vld [vmem:[#allocation5 + $0x548] sm:$0xff]
    %v322 = vld [vmem:[#allocation5 + $0x550] sm:$0xff]
    %v323 = vld [vmem:[#allocation5 + $0x558] sm:$0xff]
    %v324 = vld [vmem:[#allocation5 + $0x560] sm:$0xff]
    %v325 = vld [vmem:[#allocation5 + $0x568] sm:$0xff]
    %v326 = vld [vmem:[#allocation5 + $0x570] sm:$0xff]
    %v327 = vld [vmem:[#allocation5 + $0x578] sm:$0xff]
    %v328 = vld [vmem:[#allocation5 + $0x580] sm:$0xff]
    %v329 = vld [vmem:[#allocation5 + $0x588] sm:$0xff]
    %v330 = vld [vmem:[#allocation5 + $0x590] sm:$0xff]
    %v331 = vld [vmem:[#allocation5 + $0x598] sm:$0xff]
    %v332 = vld [vmem:[#allocation5 + $0x5a0] sm:$0xff]
    %v333 = vld [vmem:[#allocation5 + $0x5a8] sm:$0xff]
    %v334 = vld [vmem:[#allocation5 + $0x5b0] sm:$0xff]
    %v335 = vld [vmem:[#allocation5 + $0x5b8] sm:$0xff]
    %v336 = vld [vmem:[#allocation5 + $0x5c0] sm:$0xff]
    %v337 = vld [vmem:[#allocation5 + $0x5c8] sm:$0xff]
    %v338 = vld [vmem:[#allocation5 + $0x5d0] sm:$0xff]
    %v339 = vld [vmem:[#allocation5 + $0x5d8] sm:$0xff]
    %v340 = vld [vmem:[#allocation5 + $0x5e0] sm:$0xff]
    %v341 = vld [vmem:[#allocation5 + $0x5e8] sm:$0xff]
    %v342 = vld [vmem:[#allocation5 + $0x5f0] sm:$0xff]
    %v343 = vld [vmem:[#allocation5 + $0x5f8] sm:$0xff]
    %v344 = vld [vmem:[#allocation5 + $0x600] sm:$0xff]
    %v345 = vld [vmem:[#allocation5 + $0x608] sm:$0xff]
    %v346 = vld [vmem:[#allocation5 + $0x610] sm:$0xff]
    %v347 = vld [vmem:[#allocation5 + $0x618] sm:$0xff]
    %v348 = vld [vmem:[#allocation5 + $0x620] sm:$0xff]
    %v349 = vld [vmem:[#allocation5 + $0x628] sm:$0xff]
    %v350 = vld [vmem:[#allocation5 + $0x630] sm:$0xff]
    %v351 = vld [vmem:[#allocation5 + $0x638] sm:$0xff]
    %v352 = vld [vmem:[#allocation5 + $0x640] sm:$0xff]
    %v353 = vld [vmem:[#allocation5 + $0x648] sm:$0xff]
    %v354 = vld [vmem:[#allocation5 + $0x650] sm:$0xff]
    %v355 = vld [vmem:[#allocation5 + $0x658] sm:$0xff]
    %v356 = vld [vmem:[#allocation5 + $0x660] sm:$0xff]
    %v357 = vld [vmem:[#allocation5 + $0x668] sm:$0xff]
    %v358 = vld [vmem:[#allocation5 + $0x670] sm:$0xff]
    %v359 = vld [vmem:[#allocation5 + $0x678] sm:$0xff]
    %v360 = vld [vmem:[#allocation5 + $0x680] sm:$0xff]
    %v361 = vld [vmem:[#allocation5 + $0x688] sm:$0xff]
    %v362 = vld [vmem:[#allocation5 + $0x690] sm:$0xff]
    %v363 = vld [vmem:[#allocation5 + $0x698] sm:$0xff]
    %v364 = vld [vmem:[#allocation5 + $0x6a0] sm:$0xff]
    %v365 = vld [vmem:[#allocation5 + $0x6a8] sm:$0xff]
    %v366 = vld [vmem:[#allocation5 + $0x6b0] sm:$0xff]
    %v367 = vld [vmem:[#allocation5 + $0x6b8] sm:$0xff]
    %v368 = vld [vmem:[#allocation5 + $0x6c0] sm:$0xff]
    %v369 = vld [vmem:[#allocation5 + $0x6c8] sm:$0xff]
    %v370 = vld [vmem:[#allocation5 + $0x6d0] sm:$0xff]
    %v371 = vld [vmem:[#allocation5 + $0x6d8] sm:$0xff]
    %v372 = vld [vmem:[#allocation5 + $0x6e0] sm:$0xff]
    %v373 = vld [vmem:[#allocation5 + $0x6e8] sm:$0xff]
    %v374 = vld [vmem:[#allocation5 + $0x6f0] sm:$0xff]
    %v375 = vld [vmem:[#allocation5 + $0x6f8] sm:$0xff]
    %v376 = vld [vmem:[#allocation5 + $0x700] sm:$0xff]
    %v377 = vld [vmem:[#allocation5 + $0x708] sm:$0xff]
    %v378 = vld [vmem:[#allocation5 + $0x710] sm:$0xff]
    %v379 = vld [vmem:[#allocation5 + $0x718] sm:$0xff]
    %v380 = vld [vmem:[#allocation5 + $0x720] sm:$0xff]
    %v381 = vld [vmem:[#allocation5 + $0x728] sm:$0xff]
    %v382 = vld [vmem:[#allocation5 + $0x730] sm:$0xff]
    %v383 = vld [vmem:[#allocation5 + $0x738] sm:$0xff]
    %v384 = vld [vmem:[#allocation5 + $0x740] sm:$0xff]
    %v385 = vld [vmem:[#allocation5 + $0x748] sm:$0xff]
    %v386 = vld [vmem:[#allocation5 + $0x750] sm:$0xff]
    %v387 = vld [vmem:[#allocation5 + $0x758] sm:$0xff]
    %v388 = vld [vmem:[#allocation5 + $0x760] sm:$0xff]
    %v389 = vld [vmem:[#allocation5 + $0x768] sm:$0xff]
    %v390 = vld [vmem:[#allocation5 + $0x770] sm:$0xff]
    %v391 = vld [vmem:[#allocation5 + $0x778] sm:$0xff]
    %v392 = vld [vmem:[#allocation5 + $0x780] sm:$0xff]
    %v393 = vld [vmem:[#allocation5 + $0x788] sm:$0xff]
    %v394 = vld [vmem:[#allocation5 + $0x790] sm:$0xff]
    %v395 = vld [vmem:[#allocation5 + $0x798] sm:$0xff]
    %v396 = vld [vmem:[#allocation5 + $0x7a0] sm:$0xff]
    %v397 = vld [vmem:[#allocation5 + $0x7a8] sm:$0xff]
    %v398 = vld [vmem:[#allocation5 + $0x7b0] sm:$0xff]
    %v399 = vld [vmem:[#allocation5 + $0x7b8] sm:$0xff]
    %v400 = vld [vmem:[#allocation5 + $0x7c0] sm:$0xff]
    %v401 = vld [vmem:[#allocation5 + $0x7c8] sm:$0xff]
    %v402 = vld [vmem:[#allocation5 + $0x7d0] sm:$0xff]
    %v403 = vld [vmem:[#allocation5 + $0x7d8] sm:$0xff]
    %v404 = vld [vmem:[#allocation5 + $0x7e0] sm:$0xff]
    %v405 = vld [vmem:[#allocation5 + $0x7e8] sm:$0xff]
    %v406 = vld [vmem:[#allocation5 + $0x7f0] sm:$0xff]
    %v407 = vld [vmem:[#allocation5 + $0x7f8] sm:$0xff]
    %v408 = vld [vmem:[#allocation5 + $0x800] sm:$0xff]
    %v409 = vld [vmem:[#allocation5 + $0x808] sm:$0xff]
    %v410 = vld [vmem:[#allocation5 + $0x810] sm:$0xff]
    %v411 = vld [vmem:[#allocation5 + $0x818] sm:$0xff]
    %v412 = vld [vmem:[#allocation5 + $0x820] sm:$0xff]
    %v413 = vld [vmem:[#allocation5 + $0x828] sm:$0xff]
    %v414 = vld [vmem:[#allocation5 + $0x830] sm:$0xff]
    %v415 = vld [vmem:[#allocation5 + $0x838] sm:$0xff]
    %v416 = vld [vmem:[#allocation5 + $0x840] sm:$0xff]
    %v417 = vld [vmem:[#allocation5 + $0x848] sm:$0xff]
    %v418 = vld [vmem:[#allocation5 + $0x850] sm:$0xff]
    %v419 = vld [vmem:[#allocation5 + $0x858] sm:$0xff]
    %v420 = vld [vmem:[#allocation5 + $0x860] sm:$0xff]
    %v421 = vld [vmem:[#allocation5 + $0x868] sm:$0xff]
    %v422 = vld [vmem:[#allocation5 + $0x870] sm:$0xff]
    %v423 = vld [vmem:[#allocation5 + $0x878] sm:$0xff]
    %v424 = vld [vmem:[#allocation5 + $0x880] sm:$0xff]
    %v425 = vld [vmem:[#allocation5 + $0x888] sm:$0xff]
    %v426 = vld [vmem:[#allocation5 + $0x890] sm:$0xff]
    %v427 = vld [vmem:[#allocation5 + $0x898] sm:$0xff]
    %v428 = vld [vmem:[#allocation5 + $0x8a0] sm:$0xff]
    %v429 = vld [vmem:[#allocation5 + $0x8a8] sm:$0xff]
    %v430 = vld [vmem:[#allocation5 + $0x8b0] sm:$0xff]
    %v431 = vld [vmem:[#allocation5 + $0x8b8] sm:$0xff]
    %v432 = vld [vmem:[#allocation5 + $0x8c0] sm:$0xff]
    %v433 = vld [vmem:[#allocation5 + $0x8c8] sm:$0xff]
    %v434 = vld [vmem:[#allocation5 + $0x8d0] sm:$0xff]
    %v435 = vld [vmem:[#allocation5 + $0x8d8] sm:$0xff]
    %v436 = vld [vmem:[#allocation5 + $0x8e0] sm:$0xff]
    %v437 = vld [vmem:[#allocation5 + $0x8e8] sm:$0xff]
    %v438 = vld [vmem:[#allocation5 + $0x8f0] sm:$0xff]
    %v439 = vld [vmem:[#allocation5 + $0x8f8] sm:$0xff]
    %v440 = vld [vmem:[#allocation5 + $0x900] sm:$0xff]
    %v441 = vld [vmem:[#allocation5 + $0x908] sm:$0xff]
    %v442 = vld [vmem:[#allocation5 + $0x910] sm:$0xff]
    %v443 = vld [vmem:[#allocation5 + $0x918] sm:$0xff]
    %v444 = vld [vmem:[#allocation5 + $0x920] sm:$0xff]
    %v445 = vld [vmem:[#allocation5 + $0x928] sm:$0xff]
    %v446 = vld [vmem:[#allocation5 + $0x930] sm:$0xff]
    %v447 = vld [vmem:[#allocation5 + $0x938] sm:$0xff]
    %v448 = vld [vmem:[#allocation5 + $0x940] sm:$0xff]
    %v449 = vld [vmem:[#allocation5 + $0x948] sm:$0xff]
    %v450 = vld [vmem:[#allocation5 + $0x950] sm:$0xff]
    %v451 = vld [vmem:[#allocation5 + $0x958] sm:$0xff]
    %v452 = vld [vmem:[#allocation5 + $0x960] sm:$0xff]
    %v453 = vld [vmem:[#allocation5 + $0x968] sm:$0xff]
    %v454 = vld [vmem:[#allocation5 + $0x970] sm:$0xff]
    %v455 = vld [vmem:[#allocation5 + $0x978] sm:$0xff]
    %v456 = vld [vmem:[#allocation5 + $0x980] sm:$0xff]
    %v457 = vld [vmem:[#allocation5 + $0x988] sm:$0xff]
    %v458 = vld [vmem:[#allocation5 + $0x990] sm:$0xff]
    %v459 = vld [vmem:[#allocation5 + $0x998] sm:$0xff]
    %v460 = vld [vmem:[#allocation5 + $0x9a0] sm:$0xff]
    %v461 = vld [vmem:[#allocation5 + $0x9a8] sm:$0xff]
    %v462 = vld [vmem:[#allocation5 + $0x9b0] sm:$0xff]
    %v463 = vld [vmem:[#allocation5 + $0x9b8] sm:$0xff]
    %v464 = vld [vmem:[#allocation5 + $0x9c0] sm:$0xff]
    %v465 = vld [vmem:[#allocation5 + $0x9c8] sm:$0xff]
    %v466 = vld [vmem:[#allocation5 + $0x9d0] sm:$0xff]
    %v467 = vld [vmem:[#allocation5 + $0x9d8] sm:$0xff]
    %v468 = vld [vmem:[#allocation5 + $0x9e0] sm:$0xff]
    %v469 = vld [vmem:[#allocation5 + $0x9e8] sm:$0xff]
    %v470 = vld [vmem:[#allocation5 + $0x9f0] sm:$0xff]
    %v471 = vld [vmem:[#allocation5 + $0x9f8] sm:$0xff]
    %v472 = vld [vmem:[#allocation7] sm:$0xff]
    %v473 = vld [vmem:[#allocation7 + $0x8] sm:$0xff]
    %v476 = vlaneseq
    %v477 = vshrl.u32 %v476, 7
    %v478 = vsub.s32 0, %v477
    %v479 = vrot.slane %v472, %v478
    %v480 = vlaneseq
    %v481 = vshrl.u32 %v480, 7
    %v482 = vsub.s32 1, %v481
    %v483 = vrot.slane %v472, %v482
    %v484 = vlaneseq
    %v485 = vshrl.u32 %v484, 7
    %v486 = vsub.s32 2, %v485
    %v487 = vrot.slane %v472, %v486
    %v488 = vlaneseq
    %v489 = vshrl.u32 %v488, 7
    %v490 = vsub.s32 3, %v489
    %v491 = vrot.slane %v472, %v490
    %v492 = vlaneseq
    %v493 = vshrl.u32 %v492, 7
    %v494 = vsub.s32 4, %v493
    %v495 = vrot.slane %v472, %v494
    %v496 = vlaneseq
    %v497 = vshrl.u32 %v496, 7
    %v498 = vsub.s32 5, %v497
    %v499 = vrot.slane %v472, %v498
    %v500 = vlaneseq
    %v501 = vshrl.u32 %v500, 7
    %v502 = vsub.s32 6, %v501
    %v503 = vrot.slane %v472, %v502
    %v504 = vlaneseq
    %v505 = vshrl.u32 %v504, 7
    %v506 = vsub.s32 7, %v505
    %v507 = vrot.slane %v472, %v506
    %v508 = vlaneseq
    %v509 = vshrl.u32 %v508, 7
    %v510 = vsub.s32 0, %v509
    %v511 = vrot.slane %v473, %v510
    %v512 = vlaneseq
    %v513 = vshrl.u32 %v512, 7
    %v514 = vsub.s32 1, %v513
    %v515 = vrot.slane %v473, %v514
    %v516 = vlaneseq
    %v517 = vshrl.u32 %v516, 7
    %v518 = vsub.s32 2, %v517
    %v519 = vrot.slane %v473, %v518
    %v520 = vlaneseq
    %v521 = vshrl.u32 %v520, 7
    %v522 = vsub.s32 3, %v521
    %v523 = vrot.slane %v473, %v522
    %v524 = vlaneseq
    %v525 = vshrl.u32 %v524, 7
    %v526 = vsub.s32 4, %v525
    %v527 = vrot.slane %v473, %v526
    %v528 = vlaneseq
    %v529 = vshrl.u32 %v528, 7
    %v530 = vsub.s32 5, %v529
    %v531 = vrot.slane %v473, %v530
    %v532 = vlaneseq
    %v533 = vshrl.u32 %v532, 7
    %v534 = vsub.s32 6, %v533
    %v535 = vrot.slane %v473, %v534
    %v536 = vlaneseq
    %v537 = vshrl.u32 %v536, 7
    %v538 = vsub.s32 7, %v537
    %v539 = vrot.slane %v473, %v538
    %v560 = vunpack.c.l.b16 %v148
    %v561 = vunpack.c.h.b16 %v148
    %v562 = vunpack.c.l.b16 %v149
    %v563 = vunpack.c.l.b16 %v150
    %v564 = vunpack.c.h.b16 %v150
    %v565 = vunpack.c.l.b16 %v151
    %v566 = vpack.c.b16 %v563, %v560
    %v567 = vpack.c.b16 %v564, %v561
    %v568 = vpack.c.b16 %v565, %v562
    %v891 = vunpack.c.l.b16 %v152
    %v892 = vunpack.c.h.b16 %v152
    %v893 = vunpack.c.l.b16 %v153
    %v894 = vunpack.c.h.b16 %v153
    %v895 = vunpack.c.l.b16 %v154
    %v896 = vunpack.c.h.b16 %v154
    %v897 = vunpack.c.l.b16 %v155
    %v898 = vunpack.c.h.b16 %v155
    %v899 = vunpack.c.l.b16 %v156
    %v900 = vunpack.c.h.b16 %v156
    %v901 = vunpack.c.l.b16 %v157
    %v902 = vunpack.c.h.b16 %v157
    %v903 = vunpack.c.l.b16 %v158
    %v904 = vunpack.c.h.b16 %v158
    %v905 = vunpack.c.l.b16 %v159
    %v906 = vunpack.c.h.b16 %v159
    %v907 = vunpack.c.l.b16 %v160
    %v908 = vunpack.c.h.b16 %v160
    %v909 = vunpack.c.l.b16 %v161
    %v910 = vunpack.c.h.b16 %v161
    %v911 = vunpack.c.l.b16 %v162
    %v912 = vunpack.c.h.b16 %v162
    %v913 = vunpack.c.l.b16 %v163
    %v914 = vunpack.c.h.b16 %v163
    %v915 = vunpack.c.l.b16 %v164
    %v916 = vunpack.c.h.b16 %v164
    %v917 = vunpack.c.l.b16 %v165
    %v918 = vunpack.c.h.b16 %v165
    %v919 = vunpack.c.l.b16 %v166
    %v920 = vunpack.c.h.b16 %v166
    %v921 = vunpack.c.l.b16 %v167
    %v922 = vunpack.c.h.b16 %v167
    %v923 = vunpack.c.l.b16 %v168
    %v924 = vunpack.c.h.b16 %v168
    %v925 = vunpack.c.l.b16 %v169
    %v926 = vunpack.c.h.b16 %v169
    %v927 = vunpack.c.l.b16 %v170
    %v928 = vunpack.c.h.b16 %v170
    %v929 = vunpack.c.l.b16 %v171
    %v930 = vunpack.c.h.b16 %v171
    %v931 = vunpack.c.l.b16 %v172
    %v932 = vunpack.c.h.b16 %v172
    %v933 = vunpack.c.l.b16 %v173
    %v934 = vunpack.c.h.b16 %v173
    %v935 = vunpack.c.l.b16 %v174
    %v936 = vunpack.c.h.b16 %v174
    %v937 = vunpack.c.l.b16 %v175
    %v938 = vunpack.c.h.b16 %v175
    %v939 = vunpack.c.l.b16 %v176
    %v940 = vunpack.c.h.b16 %v176
    %v941 = vunpack.c.l.b16 %v177
    %v942 = vunpack.c.h.b16 %v177
    %v943 = vunpack.c.l.b16 %v178
    %v944 = vunpack.c.h.b16 %v178
    %v945 = vunpack.c.l.b16 %v179
    %v946 = vunpack.c.h.b16 %v179
    %v947 = vunpack.c.l.b16 %v180
    %v948 = vunpack.c.h.b16 %v180
    %v949 = vunpack.c.l.b16 %v181
    %v950 = vunpack.c.h.b16 %v181
    %v951 = vunpack.c.l.b16 %v182
    %v952 = vunpack.c.h.b16 %v182
    %v953 = vunpack.c.l.b16 %v183
    %v954 = vunpack.c.h.b16 %v183
    %v955 = vunpack.c.l.b16 %v184
    %v956 = vunpack.c.h.b16 %v184
    %v957 = vunpack.c.l.b16 %v185
    %v958 = vunpack.c.h.b16 %v185
    %v959 = vunpack.c.l.b16 %v186
    %v960 = vunpack.c.h.b16 %v186
    %v961 = vunpack.c.l.b16 %v187
    %v962 = vunpack.c.h.b16 %v187
    %v963 = vunpack.c.l.b16 %v188
    %v964 = vunpack.c.h.b16 %v188
    %v965 = vunpack.c.l.b16 %v189
    %v966 = vunpack.c.h.b16 %v189
    %v967 = vunpack.c.l.b16 %v190
    %v968 = vunpack.c.h.b16 %v190
    %v969 = vunpack.c.l.b16 %v191
    %v970 = vunpack.c.h.b16 %v191
    %v971 = vunpack.c.l.b16 %v192
    %v972 = vunpack.c.h.b16 %v192
    %v973 = vunpack.c.l.b16 %v193
    %v974 = vunpack.c.h.b16 %v193
    %v975 = vunpack.c.l.b16 %v194
    %v976 = vunpack.c.h.b16 %v194
    %v977 = vunpack.c.l.b16 %v195
    %v978 = vunpack.c.h.b16 %v195
    %v979 = vunpack.c.l.b16 %v196
    %v980 = vunpack.c.h.b16 %v196
    %v981 = vunpack.c.l.b16 %v197
    %v982 = vunpack.c.h.b16 %v197
    %v983 = vunpack.c.l.b16 %v198
    %v984 = vunpack.c.h.b16 %v198
    %v985 = vunpack.c.l.b16 %v199
    %v986 = vunpack.c.h.b16 %v199
    %v987 = vunpack.c.l.b16 %v200
    %v988 = vunpack.c.h.b16 %v200
    %v989 = vunpack.c.l.b16 %v201
    %v990 = vunpack.c.h.b16 %v201
    %v991 = vunpack.c.l.b16 %v202
    %v992 = vunpack.c.h.b16 %v202
    %v993 = vunpack.c.l.b16 %v203
    %v994 = vunpack.c.h.b16 %v203
    %v995 = vunpack.c.l.b16 %v204
    %v996 = vunpack.c.h.b16 %v204
    %v997 = vunpack.c.l.b16 %v205
    %v998 = vunpack.c.h.b16 %v205
    %v999 = vunpack.c.l.b16 %v206
    %v1000 = vunpack.c.h.b16 %v206
    %v1001 = vunpack.c.l.b16 %v207
    %v1002 = vunpack.c.h.b16 %v207
    %v1003 = vunpack.c.l.b16 %v208
    %v1004 = vunpack.c.h.b16 %v208
    %v1005 = vunpack.c.l.b16 %v209
    %v1006 = vunpack.c.h.b16 %v209
    %v1007 = vunpack.c.l.b16 %v210
    %v1008 = vunpack.c.h.b16 %v210
    %v1009 = vunpack.c.l.b16 %v211
    %v1010 = vunpack.c.h.b16 %v211
    %v1011 = vunpack.c.l.b16 %v212
    %v1012 = vunpack.c.h.b16 %v212
    %v1013 = vunpack.c.l.b16 %v213
    %v1014 = vunpack.c.h.b16 %v213
    %v1015 = vunpack.c.l.b16 %v214
    %v1016 = vunpack.c.h.b16 %v214
    %v1017 = vunpack.c.l.b16 %v215
    %v1018 = vunpack.c.h.b16 %v215
    %v1019 = vunpack.c.l.b16 %v216
    %v1020 = vunpack.c.h.b16 %v216
    %v1021 = vunpack.c.l.b16 %v217
    %v1022 = vunpack.c.h.b16 %v217
    %v1023 = vunpack.c.l.b16 %v218
    %v1024 = vunpack.c.h.b16 %v218
    %v1025 = vunpack.c.l.b16 %v219
    %v1026 = vunpack.c.h.b16 %v219
    %v1027 = vunpack.c.l.b16 %v220
    %v1028 = vunpack.c.h.b16 %v220
    %v1029 = vunpack.c.l.b16 %v221
    %v1030 = vunpack.c.h.b16 %v221
    %v1031 = vunpack.c.l.b16 %v222
    %v1032 = vunpack.c.h.b16 %v222
    %v1033 = vunpack.c.l.b16 %v223
    %v1034 = vunpack.c.h.b16 %v223
    %v1035 = vunpack.c.l.b16 %v224
    %v1036 = vunpack.c.h.b16 %v224
    %v1037 = vunpack.c.l.b16 %v225
    %v1038 = vunpack.c.h.b16 %v225
    %v1039 = vunpack.c.l.b16 %v226
    %v1040 = vunpack.c.h.b16 %v226
    %v1041 = vunpack.c.l.b16 %v227
    %v1042 = vunpack.c.h.b16 %v227
    %v1043 = vunpack.c.l.b16 %v228
    %v1044 = vunpack.c.h.b16 %v228
    %v1045 = vunpack.c.l.b16 %v229
    %v1046 = vunpack.c.h.b16 %v229
    %v1047 = vunpack.c.l.b16 %v230
    %v1048 = vunpack.c.h.b16 %v230
    %v1049 = vunpack.c.l.b16 %v231
    %v1050 = vunpack.c.h.b16 %v231
    %v1051 = vunpack.c.l.b16 %v232
    %v1052 = vunpack.c.h.b16 %v232
    %v1053 = vunpack.c.l.b16 %v233
    %v1054 = vunpack.c.h.b16 %v233
    %v1055 = vunpack.c.l.b16 %v234
    %v1056 = vunpack.c.h.b16 %v234
    %v1057 = vunpack.c.l.b16 %v235
    %v1058 = vunpack.c.h.b16 %v235
    %v1059 = vunpack.c.l.b16 %v236
    %v1060 = vunpack.c.h.b16 %v236
    %v1061 = vunpack.c.l.b16 %v237
    %v1062 = vunpack.c.h.b16 %v237
    %v1063 = vunpack.c.l.b16 %v238
    %v1064 = vunpack.c.h.b16 %v238
    %v1065 = vunpack.c.l.b16 %v239
    %v1066 = vunpack.c.h.b16 %v239
    %v1067 = vunpack.c.l.b16 %v240
    %v1068 = vunpack.c.h.b16 %v240
    %v1069 = vunpack.c.l.b16 %v241
    %v1070 = vunpack.c.h.b16 %v241
    %v1071 = vunpack.c.l.b16 %v242
    %v1072 = vunpack.c.h.b16 %v242
    %v1073 = vunpack.c.l.b16 %v243
    %v1074 = vunpack.c.h.b16 %v243
    %v1075 = vunpack.c.l.b16 %v244
    %v1076 = vunpack.c.h.b16 %v244
    %v1077 = vunpack.c.l.b16 %v245
    %v1078 = vunpack.c.h.b16 %v245
    %v1079 = vunpack.c.l.b16 %v246
    %v1080 = vunpack.c.h.b16 %v246
    %v1081 = vunpack.c.l.b16 %v247
    %v1082 = vunpack.c.h.b16 %v247
    %v1083 = vunpack.c.l.b16 %v248
    %v1084 = vunpack.c.h.b16 %v248
    %v1085 = vunpack.c.l.b16 %v249
    %v1086 = vunpack.c.h.b16 %v249
    %v1087 = vunpack.c.l.b16 %v250
    %v1088 = vunpack.c.h.b16 %v250
    %v1089 = vunpack.c.l.b16 %v251
    %v1090 = vunpack.c.h.b16 %v251
    %v1091 = vunpack.c.l.b16 %v252
    %v1092 = vunpack.c.h.b16 %v252
    %v1093 = vunpack.c.l.b16 %v253
    %v1094 = vunpack.c.h.b16 %v253
    %v1095 = vunpack.c.l.b16 %v254
    %v1096 = vunpack.c.h.b16 %v254
    %v1097 = vunpack.c.l.b16 %v255
    %v1098 = vunpack.c.h.b16 %v255
    %v1099 = vunpack.c.l.b16 %v256
    %v1100 = vunpack.c.h.b16 %v256
    %v1101 = vunpack.c.l.b16 %v257
    %v1102 = vunpack.c.h.b16 %v257
    %v1103 = vunpack.c.l.b16 %v258
    %v1104 = vunpack.c.h.b16 %v258
    %v1105 = vunpack.c.l.b16 %v259
    %v1106 = vunpack.c.h.b16 %v259
    %v1107 = vunpack.c.l.b16 %v260
    %v1108 = vunpack.c.h.b16 %v260
    %v1109 = vunpack.c.l.b16 %v261
    %v1110 = vunpack.c.h.b16 %v261
    %v1111 = vunpack.c.l.b16 %v262
    %v1112 = vunpack.c.h.b16 %v262
    %v1113 = vunpack.c.l.b16 %v263
    %v1114 = vunpack.c.h.b16 %v263
    %v1115 = vunpack.c.l.b16 %v264
    %v1116 = vunpack.c.h.b16 %v264
    %v1117 = vunpack.c.l.b16 %v265
    %v1118 = vunpack.c.h.b16 %v265
    %v1119 = vunpack.c.l.b16 %v266
    %v1120 = vunpack.c.h.b16 %v266
    %v1121 = vunpack.c.l.b16 %v267
    %v1122 = vunpack.c.h.b16 %v267
    %v1123 = vunpack.c.l.b16 %v268
    %v1124 = vunpack.c.h.b16 %v268
    %v1125 = vunpack.c.l.b16 %v269
    %v1126 = vunpack.c.h.b16 %v269
    %v1127 = vunpack.c.l.b16 %v270
    %v1128 = vunpack.c.h.b16 %v270
    %v1129 = vunpack.c.l.b16 %v271
    %v1130 = vunpack.c.h.b16 %v271
    %v1131 = vunpack.c.l.b16 %v272
    %v1132 = vunpack.c.h.b16 %v272
    %v1133 = vunpack.c.l.b16 %v273
    %v1134 = vunpack.c.h.b16 %v273
    %v1135 = vunpack.c.l.b16 %v274
    %v1136 = vunpack.c.h.b16 %v274
    %v1137 = vunpack.c.l.b16 %v275
    %v1138 = vunpack.c.h.b16 %v275
    %v1139 = vunpack.c.l.b16 %v276
    %v1140 = vunpack.c.h.b16 %v276
    %v1141 = vunpack.c.l.b16 %v277
    %v1142 = vunpack.c.h.b16 %v277
    %v1143 = vunpack.c.l.b16 %v278
    %v1144 = vunpack.c.h.b16 %v278
    %v1145 = vunpack.c.l.b16 %v279
    %v1146 = vunpack.c.h.b16 %v279
    %v1147 = vunpack.c.l.b16 %v280
    %v1148 = vunpack.c.h.b16 %v280
    %v1149 = vunpack.c.l.b16 %v281
    %v1150 = vunpack.c.h.b16 %v281
    %v1151 = vunpack.c.l.b16 %v282
    %v1152 = vunpack.c.h.b16 %v282
    %v1153 = vunpack.c.l.b16 %v283
    %v1154 = vunpack.c.h.b16 %v283
    %v1155 = vunpack.c.l.b16 %v284
    %v1156 = vunpack.c.h.b16 %v284
    %v1157 = vunpack.c.l.b16 %v285
    %v1158 = vunpack.c.h.b16 %v285
    %v1159 = vunpack.c.l.b16 %v286
    %v1160 = vunpack.c.h.b16 %v286
    %v1161 = vunpack.c.l.b16 %v287
    %v1162 = vunpack.c.h.b16 %v287
    %v1163 = vunpack.c.l.b16 %v288
    %v1164 = vunpack.c.h.b16 %v288
    %v1165 = vunpack.c.l.b16 %v289
    %v1166 = vunpack.c.h.b16 %v289
    %v1167 = vunpack.c.l.b16 %v290
    %v1168 = vunpack.c.h.b16 %v290
    %v1169 = vunpack.c.l.b16 %v291
    %v1170 = vunpack.c.h.b16 %v291
    %v1171 = vunpack.c.l.b16 %v292
    %v1172 = vunpack.c.h.b16 %v292
    %v1173 = vunpack.c.l.b16 %v293
    %v1174 = vunpack.c.h.b16 %v293
    %v1175 = vunpack.c.l.b16 %v294
    %v1176 = vunpack.c.h.b16 %v294
    %v1177 = vunpack.c.l.b16 %v295
    %v1178 = vunpack.c.h.b16 %v295
    %v1179 = vunpack.c.l.b16 %v296
    %v1180 = vunpack.c.h.b16 %v296
    %v1181 = vunpack.c.l.b16 %v297
    %v1182 = vunpack.c.h.b16 %v297
    %v1183 = vunpack.c.l.b16 %v298
    %v1184 = vunpack.c.h.b16 %v298
    %v1185 = vunpack.c.l.b16 %v299
    %v1186 = vunpack.c.h.b16 %v299
    %v1187 = vunpack.c.l.b16 %v300
    %v1188 = vunpack.c.h.b16 %v300
    %v1189 = vunpack.c.l.b16 %v301
    %v1190 = vunpack.c.h.b16 %v301
    %v1191 = vunpack.c.l.b16 %v302
    %v1192 = vunpack.c.h.b16 %v302
    %v1193 = vunpack.c.l.b16 %v303
    %v1194 = vunpack.c.h.b16 %v303
    %v1195 = vunpack.c.l.b16 %v304
    %v1196 = vunpack.c.h.b16 %v304
    %v1197 = vunpack.c.l.b16 %v305
    %v1198 = vunpack.c.h.b16 %v305
    %v1199 = vunpack.c.l.b16 %v306
    %v1200 = vunpack.c.h.b16 %v306
    %v1201 = vunpack.c.l.b16 %v307
    %v1202 = vunpack.c.h.b16 %v307
    %v1203 = vunpack.c.l.b16 %v308
    %v1204 = vunpack.c.h.b16 %v308
    %v1205 = vunpack.c.l.b16 %v309
    %v1206 = vunpack.c.h.b16 %v309
    %v1207 = vunpack.c.l.b16 %v310
    %v1208 = vunpack.c.h.b16 %v310
    %v1209 = vunpack.c.l.b16 %v311
    %v1210 = vunpack.c.h.b16 %v311
    %v1211 = vunpack.c.l.b16 %v312
    %v1212 = vunpack.c.h.b16 %v312
    %v1213 = vunpack.c.l.b16 %v313
    %v1214 = vunpack.c.h.b16 %v313
    %v1215 = vunpack.c.l.b16 %v314
    %v1216 = vunpack.c.h.b16 %v314
    %v1217 = vunpack.c.l.b16 %v315
    %v1218 = vunpack.c.h.b16 %v315
    %v1219 = vunpack.c.l.b16 %v316
    %v1220 = vunpack.c.h.b16 %v316
    %v1221 = vunpack.c.l.b16 %v317
    %v1222 = vunpack.c.h.b16 %v317
    %v1223 = vunpack.c.l.b16 %v318
    %v1224 = vunpack.c.h.b16 %v318
    %v1225 = vunpack.c.l.b16 %v319
    %v1226 = vunpack.c.h.b16 %v319
    %v1227 = vunpack.c.l.b16 %v320
    %v1228 = vunpack.c.h.b16 %v320
    %v1229 = vunpack.c.l.b16 %v321
    %v1230 = vunpack.c.h.b16 %v321
    %v1231 = vunpack.c.l.b16 %v322
    %v1232 = vunpack.c.h.b16 %v322
    %v1233 = vunpack.c.l.b16 %v323
    %v1234 = vunpack.c.h.b16 %v323
    %v1235 = vunpack.c.l.b16 %v324
    %v1236 = vunpack.c.h.b16 %v324
    %v1237 = vunpack.c.l.b16 %v325
    %v1238 = vunpack.c.h.b16 %v325
    %v1239 = vunpack.c.l.b16 %v326
    %v1240 = vunpack.c.h.b16 %v326
    %v1241 = vunpack.c.l.b16 %v327
    %v1242 = vunpack.c.h.b16 %v327
    %v1243 = vunpack.c.l.b16 %v328
    %v1244 = vunpack.c.h.b16 %v328
    %v1245 = vunpack.c.l.b16 %v329
    %v1246 = vunpack.c.h.b16 %v329
    %v1247 = vunpack.c.l.b16 %v330
    %v1248 = vunpack.c.h.b16 %v330
    %v1249 = vunpack.c.l.b16 %v331
    %v1250 = vunpack.c.h.b16 %v331
    %v1251 = vunpack.c.l.b16 %v332
    %v1252 = vunpack.c.h.b16 %v332
    %v1253 = vunpack.c.l.b16 %v333
    %v1254 = vunpack.c.h.b16 %v333
    %v1255 = vunpack.c.l.b16 %v334
    %v1256 = vunpack.c.h.b16 %v334
    %v1257 = vunpack.c.l.b16 %v335
    %v1258 = vunpack.c.h.b16 %v335
    %v1259 = vunpack.c.l.b16 %v336
    %v1260 = vunpack.c.h.b16 %v336
    %v1261 = vunpack.c.l.b16 %v337
    %v1262 = vunpack.c.h.b16 %v337
    %v1263 = vunpack.c.l.b16 %v338
    %v1264 = vunpack.c.h.b16 %v338
    %v1265 = vunpack.c.l.b16 %v339
    %v1266 = vunpack.c.h.b16 %v339
    %v1267 = vunpack.c.l.b16 %v340
    %v1268 = vunpack.c.h.b16 %v340
    %v1269 = vunpack.c.l.b16 %v341
    %v1270 = vunpack.c.h.b16 %v341
    %v1271 = vunpack.c.l.b16 %v342
    %v1272 = vunpack.c.h.b16 %v342
    %v1273 = vunpack.c.l.b16 %v343
    %v1274 = vunpack.c.h.b16 %v343
    %v1275 = vunpack.c.l.b16 %v344
    %v1276 = vunpack.c.h.b16 %v344
    %v1277 = vunpack.c.l.b16 %v345
    %v1278 = vunpack.c.h.b16 %v345
    %v1279 = vunpack.c.l.b16 %v346
    %v1280 = vunpack.c.h.b16 %v346
    %v1281 = vunpack.c.l.b16 %v347
    %v1282 = vunpack.c.h.b16 %v347
    %v1283 = vunpack.c.l.b16 %v348
    %v1284 = vunpack.c.h.b16 %v348
    %v1285 = vunpack.c.l.b16 %v349
    %v1286 = vunpack.c.h.b16 %v349
    %v1287 = vunpack.c.l.b16 %v350
    %v1288 = vunpack.c.h.b16 %v350
    %v1289 = vunpack.c.l.b16 %v351
    %v1290 = vunpack.c.h.b16 %v351
    %v1291 = vunpack.c.l.b16 %v352
    %v1292 = vunpack.c.h.b16 %v352
    %v1293 = vunpack.c.l.b16 %v353
    %v1294 = vunpack.c.h.b16 %v353
    %v1295 = vunpack.c.l.b16 %v354
    %v1296 = vunpack.c.h.b16 %v354
    %v1297 = vunpack.c.l.b16 %v355
    %v1298 = vunpack.c.h.b16 %v355
    %v1299 = vunpack.c.l.b16 %v356
    %v1300 = vunpack.c.h.b16 %v356
    %v1301 = vunpack.c.l.b16 %v357
    %v1302 = vunpack.c.h.b16 %v357
    %v1303 = vunpack.c.l.b16 %v358
    %v1304 = vunpack.c.h.b16 %v358
    %v1305 = vunpack.c.l.b16 %v359
    %v1306 = vunpack.c.h.b16 %v359
    %v1307 = vunpack.c.l.b16 %v360
    %v1308 = vunpack.c.h.b16 %v360
    %v1309 = vunpack.c.l.b16 %v361
    %v1310 = vunpack.c.h.b16 %v361
    %v1311 = vunpack.c.l.b16 %v362
    %v1312 = vunpack.c.h.b16 %v362
    %v1313 = vunpack.c.l.b16 %v363
    %v1314 = vunpack.c.h.b16 %v363
    %v1315 = vunpack.c.l.b16 %v364
    %v1316 = vunpack.c.h.b16 %v364
    %v1317 = vunpack.c.l.b16 %v365
    %v1318 = vunpack.c.h.b16 %v365
    %v1319 = vunpack.c.l.b16 %v366
    %v1320 = vunpack.c.h.b16 %v366
    %v1321 = vunpack.c.l.b16 %v367
    %v1322 = vunpack.c.h.b16 %v367
    %v1323 = vunpack.c.l.b16 %v368
    %v1324 = vunpack.c.h.b16 %v368
    %v1325 = vunpack.c.l.b16 %v369
    %v1326 = vunpack.c.h.b16 %v369
    %v1327 = vunpack.c.l.b16 %v370
    %v1328 = vunpack.c.h.b16 %v370
    %v1329 = vunpack.c.l.b16 %v371
    %v1330 = vunpack.c.h.b16 %v371
    %v1331 = vunpack.c.l.b16 %v372
    %v1332 = vunpack.c.h.b16 %v372
    %v1333 = vunpack.c.l.b16 %v373
    %v1334 = vunpack.c.h.b16 %v373
    %v1335 = vunpack.c.l.b16 %v374
    %v1336 = vunpack.c.h.b16 %v374
    %v1337 = vunpack.c.l.b16 %v375
    %v1338 = vunpack.c.h.b16 %v375
    %v1339 = vunpack.c.l.b16 %v376
    %v1340 = vunpack.c.h.b16 %v376
    %v1341 = vunpack.c.l.b16 %v377
    %v1342 = vunpack.c.h.b16 %v377
    %v1343 = vunpack.c.l.b16 %v378
    %v1344 = vunpack.c.h.b16 %v378
    %v1345 = vunpack.c.l.b16 %v379
    %v1346 = vunpack.c.h.b16 %v379
    %v1347 = vunpack.c.l.b16 %v380
    %v1348 = vunpack.c.h.b16 %v380
    %v1349 = vunpack.c.l.b16 %v381
    %v1350 = vunpack.c.h.b16 %v381
    %v1351 = vunpack.c.l.b16 %v382
    %v1352 = vunpack.c.h.b16 %v382
    %v1353 = vunpack.c.l.b16 %v383
    %v1354 = vunpack.c.h.b16 %v383
    %v1355 = vunpack.c.l.b16 %v384
    %v1356 = vunpack.c.h.b16 %v384
    %v1357 = vunpack.c.l.b16 %v385
    %v1358 = vunpack.c.h.b16 %v385
    %v1359 = vunpack.c.l.b16 %v386
    %v1360 = vunpack.c.h.b16 %v386
    %v1361 = vunpack.c.l.b16 %v387
    %v1362 = vunpack.c.h.b16 %v387
    %v1363 = vunpack.c.l.b16 %v388
    %v1364 = vunpack.c.h.b16 %v388
    %v1365 = vunpack.c.l.b16 %v389
    %v1366 = vunpack.c.h.b16 %v389
    %v1367 = vunpack.c.l.b16 %v390
    %v1368 = vunpack.c.h.b16 %v390
    %v1369 = vunpack.c.l.b16 %v391
    %v1370 = vunpack.c.h.b16 %v391
    %v1371 = vunpack.c.l.b16 %v392
    %v1372 = vunpack.c.h.b16 %v392
    %v1373 = vunpack.c.l.b16 %v393
    %v1374 = vunpack.c.h.b16 %v393
    %v1375 = vunpack.c.l.b16 %v394
    %v1376 = vunpack.c.h.b16 %v394
    %v1377 = vunpack.c.l.b16 %v395
    %v1378 = vunpack.c.h.b16 %v395
    %v1379 = vunpack.c.l.b16 %v396
    %v1380 = vunpack.c.h.b16 %v396
    %v1381 = vunpack.c.l.b16 %v397
    %v1382 = vunpack.c.h.b16 %v397
    %v1383 = vunpack.c.l.b16 %v398
    %v1384 = vunpack.c.h.b16 %v398
    %v1385 = vunpack.c.l.b16 %v399
    %v1386 = vunpack.c.h.b16 %v399
    %v1387 = vunpack.c.l.b16 %v400
    %v1388 = vunpack.c.h.b16 %v400
    %v1389 = vunpack.c.l.b16 %v401
    %v1390 = vunpack.c.h.b16 %v401
    %v1391 = vunpack.c.l.b16 %v402
    %v1392 = vunpack.c.h.b16 %v402
    %v1393 = vunpack.c.l.b16 %v403
    %v1394 = vunpack.c.h.b16 %v403
    %v1395 = vunpack.c.l.b16 %v404
    %v1396 = vunpack.c.h.b16 %v404
    %v1397 = vunpack.c.l.b16 %v405
    %v1398 = vunpack.c.h.b16 %v405
    %v1399 = vunpack.c.l.b16 %v406
    %v1400 = vunpack.c.h.b16 %v406
    %v1401 = vunpack.c.l.b16 %v407
    %v1402 = vunpack.c.h.b16 %v407
    %v1403 = vunpack.c.l.b16 %v408
    %v1404 = vunpack.c.h.b16 %v408
    %v1405 = vunpack.c.l.b16 %v409
    %v1406 = vunpack.c.h.b16 %v409
    %v1407 = vunpack.c.l.b16 %v410
    %v1408 = vunpack.c.h.b16 %v410
    %v1409 = vunpack.c.l.b16 %v411
    %v1410 = vunpack.c.h.b16 %v411
    %v1411 = vunpack.c.l.b16 %v412
    %v1412 = vunpack.c.h.b16 %v412
    %v1413 = vunpack.c.l.b16 %v413
    %v1414 = vunpack.c.h.b16 %v413
    %v1415 = vunpack.c.l.b16 %v414
    %v1416 = vunpack.c.h.b16 %v414
    %v1417 = vunpack.c.l.b16 %v415
    %v1418 = vunpack.c.h.b16 %v415
    %v1419 = vunpack.c.l.b16 %v416
    %v1420 = vunpack.c.h.b16 %v416
    %v1421 = vunpack.c.l.b16 %v417
    %v1422 = vunpack.c.h.b16 %v417
    %v1423 = vunpack.c.l.b16 %v418
    %v1424 = vunpack.c.h.b16 %v418
    %v1425 = vunpack.c.l.b16 %v419
    %v1426 = vunpack.c.h.b16 %v419
    %v1427 = vunpack.c.l.b16 %v420
    %v1428 = vunpack.c.h.b16 %v420
    %v1429 = vunpack.c.l.b16 %v421
    %v1430 = vunpack.c.h.b16 %v421
    %v1431 = vunpack.c.l.b16 %v422
    %v1432 = vunpack.c.h.b16 %v422
    %v1433 = vunpack.c.l.b16 %v423
    %v1434 = vunpack.c.h.b16 %v423
    %v1435 = vunpack.c.l.b16 %v424
    %v1436 = vunpack.c.h.b16 %v424
    %v1437 = vunpack.c.l.b16 %v425
    %v1438 = vunpack.c.h.b16 %v425
    %v1439 = vunpack.c.l.b16 %v426
    %v1440 = vunpack.c.h.b16 %v426
    %v1441 = vunpack.c.l.b16 %v427
    %v1442 = vunpack.c.h.b16 %v427
    %v1443 = vunpack.c.l.b16 %v428
    %v1444 = vunpack.c.h.b16 %v428
    %v1445 = vunpack.c.l.b16 %v429
    %v1446 = vunpack.c.h.b16 %v429
    %v1447 = vunpack.c.l.b16 %v430
    %v1448 = vunpack.c.h.b16 %v430
    %v1449 = vunpack.c.l.b16 %v431
    %v1450 = vunpack.c.h.b16 %v431
    %v1451 = vunpack.c.l.b16 %v432
    %v1452 = vunpack.c.h.b16 %v432
    %v1453 = vunpack.c.l.b16 %v433
    %v1454 = vunpack.c.h.b16 %v433
    %v1455 = vunpack.c.l.b16 %v434
    %v1456 = vunpack.c.h.b16 %v434
    %v1457 = vunpack.c.l.b16 %v435
    %v1458 = vunpack.c.h.b16 %v435
    %v1459 = vunpack.c.l.b16 %v436
    %v1460 = vunpack.c.h.b16 %v436
    %v1461 = vunpack.c.l.b16 %v437
    %v1462 = vunpack.c.h.b16 %v437
    %v1463 = vunpack.c.l.b16 %v438
    %v1464 = vunpack.c.h.b16 %v438
    %v1465 = vunpack.c.l.b16 %v439
    %v1466 = vunpack.c.h.b16 %v439
    %v1467 = vunpack.c.l.b16 %v440
    %v1468 = vunpack.c.h.b16 %v440
    %v1469 = vunpack.c.l.b16 %v441
    %v1470 = vunpack.c.h.b16 %v441
    %v1471 = vunpack.c.l.b16 %v442
    %v1472 = vunpack.c.h.b16 %v442
    %v1473 = vunpack.c.l.b16 %v443
    %v1474 = vunpack.c.h.b16 %v443
    %v1475 = vunpack.c.l.b16 %v444
    %v1476 = vunpack.c.h.b16 %v444
    %v1477 = vunpack.c.l.b16 %v445
    %v1478 = vunpack.c.h.b16 %v445
    %v1479 = vunpack.c.l.b16 %v446
    %v1480 = vunpack.c.h.b16 %v446
    %v1481 = vunpack.c.l.b16 %v447
    %v1482 = vunpack.c.h.b16 %v447
    %v1483 = vunpack.c.l.b16 %v448
    %v1484 = vunpack.c.h.b16 %v448
    %v1485 = vunpack.c.l.b16 %v449
    %v1486 = vunpack.c.h.b16 %v449
    %v1487 = vunpack.c.l.b16 %v450
    %v1488 = vunpack.c.h.b16 %v450
    %v1489 = vunpack.c.l.b16 %v451
    %v1490 = vunpack.c.h.b16 %v451
    %v1491 = vunpack.c.l.b16 %v452
    %v1492 = vunpack.c.h.b16 %v452
    %v1493 = vunpack.c.l.b16 %v453
    %v1494 = vunpack.c.h.b16 %v453
    %v1495 = vunpack.c.l.b16 %v454
    %v1496 = vunpack.c.h.b16 %v454
    %v1497 = vunpack.c.l.b16 %v455
    %v1498 = vunpack.c.h.b16 %v455
    %v1499 = vunpack.c.l.b16 %v456
    %v1500 = vunpack.c.h.b16 %v456
    %v1501 = vunpack.c.l.b16 %v457
    %v1502 = vunpack.c.h.b16 %v457
    %v1503 = vunpack.c.l.b16 %v458
    %v1504 = vunpack.c.h.b16 %v458
    %v1505 = vunpack.c.l.b16 %v459
    %v1506 = vunpack.c.h.b16 %v459
    %v1507 = vunpack.c.l.b16 %v460
    %v1508 = vunpack.c.h.b16 %v460
    %v1509 = vunpack.c.l.b16 %v461
    %v1510 = vunpack.c.h.b16 %v461
    %v1511 = vunpack.c.l.b16 %v462
    %v1512 = vunpack.c.h.b16 %v462
    %v1513 = vunpack.c.l.b16 %v463
    %v1514 = vunpack.c.h.b16 %v463
    %v1515 = vunpack.c.l.b16 %v464
    %v1516 = vunpack.c.h.b16 %v464
    %v1517 = vunpack.c.l.b16 %v465
    %v1518 = vunpack.c.h.b16 %v465
    %v1519 = vunpack.c.l.b16 %v466
    %v1520 = vunpack.c.h.b16 %v466
    %v1521 = vunpack.c.l.b16 %v467
    %v1522 = vunpack.c.h.b16 %v467
    %v1523 = vunpack.c.l.b16 %v468
    %v1524 = vunpack.c.h.b16 %v468
    %v1525 = vunpack.c.l.b16 %v469
    %v1526 = vunpack.c.h.b16 %v469
    %v1527 = vunpack.c.l.b16 %v470
    %v1528 = vunpack.c.h.b16 %v470
    %v1529 = vunpack.c.l.b16 %v471
    %v1530 = vunpack.c.h.b16 %v471
    %v1531 = vpack.c.b16 %v907, %v891
    %v1532 = vpack.c.b16 %v908, %v892
    %v1533 = vpack.c.b16 %v909, %v893
    %v1534 = vpack.c.b16 %v910, %v894
    %v1535 = vpack.c.b16 %v911, %v895
    %v1536 = vpack.c.b16 %v912, %v896
    %v1537 = vpack.c.b16 %v913, %v897
    %v1538 = vpack.c.b16 %v914, %v898
    %v1539 = vpack.c.b16 %v915, %v899
    %v1540 = vpack.c.b16 %v916, %v900
    %v1541 = vpack.c.b16 %v917, %v901
    %v1542 = vpack.c.b16 %v918, %v902
    %v1543 = vpack.c.b16 %v919, %v903
    %v1544 = vpack.c.b16 %v920, %v904
    %v1545 = vpack.c.b16 %v921, %v905
    %v1546 = vpack.c.b16 %v922, %v906
    %v1547 = vpack.c.b16 %v939, %v923
    %v1548 = vpack.c.b16 %v940, %v924
    %v1549 = vpack.c.b16 %v941, %v925
    %v1550 = vpack.c.b16 %v942, %v926
    %v1551 = vpack.c.b16 %v943, %v927
    %v1552 = vpack.c.b16 %v944, %v928
    %v1553 = vpack.c.b16 %v945, %v929
    %v1554 = vpack.c.b16 %v946, %v930
    %v1555 = vpack.c.b16 %v947, %v931
    %v1556 = vpack.c.b16 %v948, %v932
    %v1557 = vpack.c.b16 %v949, %v933
    %v1558 = vpack.c.b16 %v950, %v934
    %v1559 = vpack.c.b16 %v951, %v935
    %v1560 = vpack.c.b16 %v952, %v936
    %v1561 = vpack.c.b16 %v953, %v937
    %v1562 = vpack.c.b16 %v954, %v938
    %v1563 = vpack.c.b16 %v971, %v955
    %v1564 = vpack.c.b16 %v972, %v956
    %v1565 = vpack.c.b16 %v973, %v957
    %v1566 = vpack.c.b16 %v974, %v958
    %v1567 = vpack.c.b16 %v975, %v959
    %v1568 = vpack.c.b16 %v976, %v960
    %v1569 = vpack.c.b16 %v977, %v961
    %v1570 = vpack.c.b16 %v978, %v962
    %v1571 = vpack.c.b16 %v979, %v963
    %v1572 = vpack.c.b16 %v980, %v964
    %v1573 = vpack.c.b16 %v981, %v965
    %v1574 = vpack.c.b16 %v982, %v966
    %v1575 = vpack.c.b16 %v983, %v967
    %v1576 = vpack.c.b16 %v984, %v968
    %v1577 = vpack.c.b16 %v985, %v969
    %v1578 = vpack.c.b16 %v986, %v970
    %v1579 = vpack.c.b16 %v1003, %v987
    %v1580 = vpack.c.b16 %v1004, %v988
    %v1581 = vpack.c.b16 %v1005, %v989
    %v1582 = vpack.c.b16 %v1006, %v990
    %v1583 = vpack.c.b16 %v1007, %v991
    %v1584 = vpack.c.b16 %v1008, %v992
    %v1585 = vpack.c.b16 %v1009, %v993
    %v1586 = vpack.c.b16 %v1010, %v994
    %v1587 = vpack.c.b16 %v1011, %v995
    %v1588 = vpack.c.b16 %v1012, %v996
    %v1589 = vpack.c.b16 %v1013, %v997
    %v1590 = vpack.c.b16 %v1014, %v998
    %v1591 = vpack.c.b16 %v1015, %v999
    %v1592 = vpack.c.b16 %v1016, %v1000
    %v1593 = vpack.c.b16 %v1017, %v1001
    %v1594 = vpack.c.b16 %v1018, %v1002
    %v1595 = vpack.c.b16 %v1035, %v1019
    %v1596 = vpack.c.b16 %v1036, %v1020
    %v1597 = vpack.c.b16 %v1037, %v1021
    %v1598 = vpack.c.b16 %v1038, %v1022
    %v1599 = vpack.c.b16 %v1039, %v1023
    %v1600 = vpack.c.b16 %v1040, %v1024
    %v1601 = vpack.c.b16 %v1041, %v1025
    %v1602 = vpack.c.b16 %v1042, %v1026
    %v1603 = vpack.c.b16 %v1043, %v1027
    %v1604 = vpack.c.b16 %v1044, %v1028
    %v1605 = vpack.c.b16 %v1045, %v1029
    %v1606 = vpack.c.b16 %v1046, %v1030
    %v1607 = vpack.c.b16 %v1047, %v1031
    %v1608 = vpack.c.b16 %v1048, %v1032
    %v1609 = vpack.c.b16 %v1049, %v1033
    %v1610 = vpack.c.b16 %v1050, %v1034
    %v1611 = vpack.c.b16 %v1067, %v1051
    %v1612 = vpack.c.b16 %v1068, %v1052
    %v1613 = vpack.c.b16 %v1069, %v1053
    %v1614 = vpack.c.b16 %v1070, %v1054
    %v1615 = vpack.c.b16 %v1071, %v1055
    %v1616 = vpack.c.b16 %v1072, %v1056
    %v1617 = vpack.c.b16 %v1073, %v1057
    %v1618 = vpack.c.b16 %v1074, %v1058
    %v1619 = vpack.c.b16 %v1075, %v1059
    %v1620 = vpack.c.b16 %v1076, %v1060
    %v1621 = vpack.c.b16 %v1077, %v1061
    %v1622 = vpack.c.b16 %v1078, %v1062
    %v1623 = vpack.c.b16 %v1079, %v1063
    %v1624 = vpack.c.b16 %v1080, %v1064
    %v1625 = vpack.c.b16 %v1081, %v1065
    %v1626 = vpack.c.b16 %v1082, %v1066
    %v1627 = vpack.c.b16 %v1099, %v1083
    %v1628 = vpack.c.b16 %v1100, %v1084
    %v1629 = vpack.c.b16 %v1101, %v1085
    %v1630 = vpack.c.b16 %v1102, %v1086
    %v1631 = vpack.c.b16 %v1103, %v1087
    %v1632 = vpack.c.b16 %v1104, %v1088
    %v1633 = vpack.c.b16 %v1105, %v1089
    %v1634 = vpack.c.b16 %v1106, %v1090
    %v1635 = vpack.c.b16 %v1107, %v1091
    %v1636 = vpack.c.b16 %v1108, %v1092
    %v1637 = vpack.c.b16 %v1109, %v1093
    %v1638 = vpack.c.b16 %v1110, %v1094
    %v1639 = vpack.c.b16 %v1111, %v1095
    %v1640 = vpack.c.b16 %v1112, %v1096
    %v1641 = vpack.c.b16 %v1113, %v1097
    %v1642 = vpack.c.b16 %v1114, %v1098
    %v1643 = vpack.c.b16 %v1131, %v1115
    %v1644 = vpack.c.b16 %v1132, %v1116
    %v1645 = vpack.c.b16 %v1133, %v1117
    %v1646 = vpack.c.b16 %v1134, %v1118
    %v1647 = vpack.c.b16 %v1135, %v1119
    %v1648 = vpack.c.b16 %v1136, %v1120
    %v1649 = vpack.c.b16 %v1137, %v1121
    %v1650 = vpack.c.b16 %v1138, %v1122
    %v1651 = vpack.c.b16 %v1139, %v1123
    %v1652 = vpack.c.b16 %v1140, %v1124
    %v1653 = vpack.c.b16 %v1141, %v1125
    %v1654 = vpack.c.b16 %v1142, %v1126
    %v1655 = vpack.c.b16 %v1143, %v1127
    %v1656 = vpack.c.b16 %v1144, %v1128
    %v1657 = vpack.c.b16 %v1145, %v1129
    %v1658 = vpack.c.b16 %v1146, %v1130
    %v1659 = vpack.c.b16 %v1163, %v1147
    %v1660 = vpack.c.b16 %v1164, %v1148
    %v1661 = vpack.c.b16 %v1165, %v1149
    %v1662 = vpack.c.b16 %v1166, %v1150
    %v1663 = vpack.c.b16 %v1167, %v1151
    %v1664 = vpack.c.b16 %v1168, %v1152
    %v1665 = vpack.c.b16 %v1169, %v1153
    %v1666 = vpack.c.b16 %v1170, %v1154
    %v1667 = vpack.c.b16 %v1171, %v1155
    %v1668 = vpack.c.b16 %v1172, %v1156
    %v1669 = vpack.c.b16 %v1173, %v1157
    %v1670 = vpack.c.b16 %v1174, %v1158
    %v1671 = vpack.c.b16 %v1175, %v1159
    %v1672 = vpack.c.b16 %v1176, %v1160
    %v1673 = vpack.c.b16 %v1177, %v1161
    %v1674 = vpack.c.b16 %v1178, %v1162
    %v1675 = vpack.c.b16 %v1195, %v1179
    %v1676 = vpack.c.b16 %v1196, %v1180
    %v1677 = vpack.c.b16 %v1197, %v1181
    %v1678 = vpack.c.b16 %v1198, %v1182
    %v1679 = vpack.c.b16 %v1199, %v1183
    %v1680 = vpack.c.b16 %v1200, %v1184
    %v1681 = vpack.c.b16 %v1201, %v1185
    %v1682 = vpack.c.b16 %v1202, %v1186
    %v1683 = vpack.c.b16 %v1203, %v1187
    %v1684 = vpack.c.b16 %v1204, %v1188
    %v1685 = vpack.c.b16 %v1205, %v1189
    %v1686 = vpack.c.b16 %v1206, %v1190
    %v1687 = vpack.c.b16 %v1207, %v1191
    %v1688 = vpack.c.b16 %v1208, %v1192
    %v1689 = vpack.c.b16 %v1209, %v1193
    %v1690 = vpack.c.b16 %v1210, %v1194
    %v1691 = vpack.c.b16 %v1227, %v1211
    %v1692 = vpack.c.b16 %v1228, %v1212
    %v1693 = vpack.c.b16 %v1229, %v1213
    %v1694 = vpack.c.b16 %v1230, %v1214
    %v1695 = vpack.c.b16 %v1231, %v1215
    %v1696 = vpack.c.b16 %v1232, %v1216
    %v1697 = vpack.c.b16 %v1233, %v1217
    %v1698 = vpack.c.b16 %v1234, %v1218
    %v1699 = vpack.c.b16 %v1235, %v1219
    %v1700 = vpack.c.b16 %v1236, %v1220
    %v1701 = vpack.c.b16 %v1237, %v1221
    %v1702 = vpack.c.b16 %v1238, %v1222
    %v1703 = vpack.c.b16 %v1239, %v1223
    %v1704 = vpack.c.b16 %v1240, %v1224
    %v1705 = vpack.c.b16 %v1241, %v1225
    %v1706 = vpack.c.b16 %v1242, %v1226
    %v1707 = vpack.c.b16 %v1259, %v1243
    %v1708 = vpack.c.b16 %v1260, %v1244
    %v1709 = vpack.c.b16 %v1261, %v1245
    %v1710 = vpack.c.b16 %v1262, %v1246
    %v1711 = vpack.c.b16 %v1263, %v1247
    %v1712 = vpack.c.b16 %v1264, %v1248
    %v1713 = vpack.c.b16 %v1265, %v1249
    %v1714 = vpack.c.b16 %v1266, %v1250
    %v1715 = vpack.c.b16 %v1267, %v1251
    %v1716 = vpack.c.b16 %v1268, %v1252
    %v1717 = vpack.c.b16 %v1269, %v1253
    %v1718 = vpack.c.b16 %v1270, %v1254
    %v1719 = vpack.c.b16 %v1271, %v1255
    %v1720 = vpack.c.b16 %v1272, %v1256
    %v1721 = vpack.c.b16 %v1273, %v1257
    %v1722 = vpack.c.b16 %v1274, %v1258
    %v1723 = vpack.c.b16 %v1291, %v1275
    %v1724 = vpack.c.b16 %v1292, %v1276
    %v1725 = vpack.c.b16 %v1293, %v1277
    %v1726 = vpack.c.b16 %v1294, %v1278
    %v1727 = vpack.c.b16 %v1295, %v1279
    %v1728 = vpack.c.b16 %v1296, %v1280
    %v1729 = vpack.c.b16 %v1297, %v1281
    %v1730 = vpack.c.b16 %v1298, %v1282
    %v1731 = vpack.c.b16 %v1299, %v1283
    %v1732 = vpack.c.b16 %v1300, %v1284
    %v1733 = vpack.c.b16 %v1301, %v1285
    %v1734 = vpack.c.b16 %v1302, %v1286
    %v1735 = vpack.c.b16 %v1303, %v1287
    %v1736 = vpack.c.b16 %v1304, %v1288
    %v1737 = vpack.c.b16 %v1305, %v1289
    %v1738 = vpack.c.b16 %v1306, %v1290
    %v1739 = vpack.c.b16 %v1323, %v1307
    %v1740 = vpack.c.b16 %v1324, %v1308
    %v1741 = vpack.c.b16 %v1325, %v1309
    %v1742 = vpack.c.b16 %v1326, %v1310
    %v1743 = vpack.c.b16 %v1327, %v1311
    %v1744 = vpack.c.b16 %v1328, %v1312
    %v1745 = vpack.c.b16 %v1329, %v1313
    %v1746 = vpack.c.b16 %v1330, %v1314
    %v1747 = vpack.c.b16 %v1331, %v1315
    %v1748 = vpack.c.b16 %v1332, %v1316
    %v1749 = vpack.c.b16 %v1333, %v1317
    %v1750 = vpack.c.b16 %v1334, %v1318
    %v1751 = vpack.c.b16 %v1335, %v1319
    %v1752 = vpack.c.b16 %v1336, %v1320
    %v1753 = vpack.c.b16 %v1337, %v1321
    %v1754 = vpack.c.b16 %v1338, %v1322
    %v1755 = vpack.c.b16 %v1355, %v1339
    %v1756 = vpack.c.b16 %v1356, %v1340
    %v1757 = vpack.c.b16 %v1357, %v1341
    %v1758 = vpack.c.b16 %v1358, %v1342
    %v1759 = vpack.c.b16 %v1359, %v1343
    %v1760 = vpack.c.b16 %v1360, %v1344
    %v1761 = vpack.c.b16 %v1361, %v1345
    %v1762 = vpack.c.b16 %v1362, %v1346
    %v1763 = vpack.c.b16 %v1363, %v1347
    %v1764 = vpack.c.b16 %v1364, %v1348
    %v1765 = vpack.c.b16 %v1365, %v1349
    %v1766 = vpack.c.b16 %v1366, %v1350
    %v1767 = vpack.c.b16 %v1367, %v1351
    %v1768 = vpack.c.b16 %v1368, %v1352
    %v1769 = vpack.c.b16 %v1369, %v1353
    %v1770 = vpack.c.b16 %v1370, %v1354
    %v1771 = vpack.c.b16 %v1387, %v1371
    %v1772 = vpack.c.b16 %v1388, %v1372
    %v1773 = vpack.c.b16 %v1389, %v1373
    %v1774 = vpack.c.b16 %v1390, %v1374
    %v1775 = vpack.c.b16 %v1391, %v1375
    %v1776 = vpack.c.b16 %v1392, %v1376
    %v1777 = vpack.c.b16 %v1393, %v1377
    %v1778 = vpack.c.b16 %v1394, %v1378
    %v1779 = vpack.c.b16 %v1395, %v1379
    %v1780 = vpack.c.b16 %v1396, %v1380
    %v1781 = vpack.c.b16 %v1397, %v1381
    %v1782 = vpack.c.b16 %v1398, %v1382
    %v1783 = vpack.c.b16 %v1399, %v1383
    %v1784 = vpack.c.b16 %v1400, %v1384
    %v1785 = vpack.c.b16 %v1401, %v1385
    %v1786 = vpack.c.b16 %v1402, %v1386
    %v1787 = vpack.c.b16 %v1419, %v1403
    %v1788 = vpack.c.b16 %v1420, %v1404
    %v1789 = vpack.c.b16 %v1421, %v1405
    %v1790 = vpack.c.b16 %v1422, %v1406
    %v1791 = vpack.c.b16 %v1423, %v1407
    %v1792 = vpack.c.b16 %v1424, %v1408
    %v1793 = vpack.c.b16 %v1425, %v1409
    %v1794 = vpack.c.b16 %v1426, %v1410
    %v1795 = vpack.c.b16 %v1427, %v1411
    %v1796 = vpack.c.b16 %v1428, %v1412
    %v1797 = vpack.c.b16 %v1429, %v1413
    %v1798 = vpack.c.b16 %v1430, %v1414
    %v1799 = vpack.c.b16 %v1431, %v1415
    %v1800 = vpack.c.b16 %v1432, %v1416
    %v1801 = vpack.c.b16 %v1433, %v1417
    %v1802 = vpack.c.b16 %v1434, %v1418
    %v1803 = vpack.c.b16 %v1451, %v1435
    %v1804 = vpack.c.b16 %v1452, %v1436
    %v1805 = vpack.c.b16 %v1453, %v1437
    %v1806 = vpack.c.b16 %v1454, %v1438
    %v1807 = vpack.c.b16 %v1455, %v1439
    %v1808 = vpack.c.b16 %v1456, %v1440
    %v1809 = vpack.c.b16 %v1457, %v1441
    %v1810 = vpack.c.b16 %v1458, %v1442
    %v1811 = vpack.c.b16 %v1459, %v1443
    %v1812 = vpack.c.b16 %v1460, %v1444
    %v1813 = vpack.c.b16 %v1461, %v1445
    %v1814 = vpack.c.b16 %v1462, %v1446
    %v1815 = vpack.c.b16 %v1463, %v1447
    %v1816 = vpack.c.b16 %v1464, %v1448
    %v1817 = vpack.c.b16 %v1465, %v1449
    %v1818 = vpack.c.b16 %v1466, %v1450
    %v1819 = vpack.c.b16 %v1483, %v1467
    %v1820 = vpack.c.b16 %v1484, %v1468
    %v1821 = vpack.c.b16 %v1485, %v1469
    %v1822 = vpack.c.b16 %v1486, %v1470
    %v1823 = vpack.c.b16 %v1487, %v1471
    %v1824 = vpack.c.b16 %v1488, %v1472
    %v1825 = vpack.c.b16 %v1489, %v1473
    %v1826 = vpack.c.b16 %v1490, %v1474
    %v1827 = vpack.c.b16 %v1491, %v1475
    %v1828 = vpack.c.b16 %v1492, %v1476
    %v1829 = vpack.c.b16 %v1493, %v1477
    %v1830 = vpack.c.b16 %v1494, %v1478
    %v1831 = vpack.c.b16 %v1495, %v1479
    %v1832 = vpack.c.b16 %v1496, %v1480
    %v1833 = vpack.c.b16 %v1497, %v1481
    %v1834 = vpack.c.b16 %v1498, %v1482
    %v1835 = vpack.c.b16 %v1515, %v1499
    %v1836 = vpack.c.b16 %v1516, %v1500
    %v1837 = vpack.c.b16 %v1517, %v1501
    %v1838 = vpack.c.b16 %v1518, %v1502
    %v1839 = vpack.c.b16 %v1519, %v1503
    %v1840 = vpack.c.b16 %v1520, %v1504
    %v1841 = vpack.c.b16 %v1521, %v1505
    %v1842 = vpack.c.b16 %v1522, %v1506
    %v1843 = vpack.c.b16 %v1523, %v1507
    %v1844 = vpack.c.b16 %v1524, %v1508
    %v1845 = vpack.c.b16 %v1525, %v1509
    %v1846 = vpack.c.b16 %v1526, %v1510
    %v1847 = vpack.c.b16 %v1527, %v1511
    %v1848 = vpack.c.b16 %v1528, %v1512
    %v1849 = vpack.c.b16 %v1529, %v1513
    %v1850 = vpack.c.b16 %v1530, %v1514
    %vm2171 = vcmask 523264
    %v2173 = vsel %vm2171, %v568, 0
    %2175 = vmatprep.subr.bf16.mxu0 %v1532
    %2176 = vmatpush1.bf16.msra.mxu0 %v1531
    %2177 = vmatprep.subr.bf16.mxu0 %v1548
    %2178 = vmatpush1.bf16.msra.mxu0 %v1547
    %2179 = vmatprep.subr.bf16.mxu0 %v1564
    %2180 = vmatpush1.bf16.msra.mxu0 %v1563
    %2181 = vmatprep.subr.bf16.mxu0 %v1580
    %2182 = vmatpush1.bf16.msra.mxu0 %v1579
    %2183 = vmatprep.subr.bf16.mxu0 %v1596
    %2184 = vmatpush1.bf16.msra.mxu0 %v1595
    %2185 = vmatprep.subr.bf16.mxu0 %v1612
    %2186 = vmatpush1.bf16.msra.mxu0 %v1611
    %2187 = vmatprep.subr.bf16.mxu0 %v1628
    %2188 = vmatpush1.bf16.msra.mxu0 %v1627
    %2189 = vmatprep.subr.bf16.mxu0 %v1644
    %2190 = vmatpush1.bf16.msra.mxu0 %v1643
    %2191 = vmatprep.subr.bf16.mxu0 %v1660
    %2192 = vmatpush1.bf16.msra.mxu0 %v1659
    %2193 = vmatprep.subr.bf16.mxu0 %v1676
    %2194 = vmatpush1.bf16.msra.mxu0 %v1675
    %2195 = vmatprep.subr.bf16.mxu0 %v1692
    %2196 = vmatpush1.bf16.msra.mxu0 %v1691
    %2197 = vmatprep.subr.bf16.mxu0 %v1708
    %2198 = vmatpush1.bf16.msra.mxu0 %v1707
    %2199 = vmatprep.subr.bf16.mxu0 %v1724
    %2200 = vmatpush1.bf16.msra.mxu0 %v1723
    %2201 = vmatprep.subr.bf16.mxu0 %v1740
    %2202 = vmatpush1.bf16.msra.mxu0 %v1739
    %2203 = vmatprep.subr.bf16.mxu0 %v1756
    %2204 = vmatpush1.bf16.msra.mxu0 %v1755
    %2205 = vmatprep.subr.bf16.mxu0 %v1772
    %2206 = vmatpush1.bf16.msra.mxu0 %v1771
    %2207 = vmatprep.mubr.bf16.mxu0 %v567
    %2208 = vmatmul.mubr.bf16.gmra.mrb[0].mxu0 %v566
    %v2209 = vpop.f32.mrb[0].mxu0
    %v2210 = vadd.f32 %v479, %v2209
    %v2211 = vpop.f32.mrb[0].mxu0
    %v2212 = vadd.f32 %v483, %v2211
    %v2213 = vpop.f32.mrb[0].mxu0
    %v2214 = vadd.f32 %v479, %v2213
    %v2215 = vpop.f32.mrb[0].mxu0
    %v2216 = vadd.f32 %v483, %v2215
    %2217 = vdwg.mxu0
    %2218 = vmatprep.subr.bf16.mxu0 %v1788
    %2219 = vmatpush1.bf16.msra.mxu0 %v1787
    %2220 = vmatprep.subr.bf16.mxu0 %v1804
    %2221 = vmatpush1.bf16.msra.mxu0 %v1803
    %2222 = vmatprep.subr.bf16.mxu0 %v1820
    %2223 = vmatpush1.bf16.msra.mxu0 %v1819
    %2224 = vmatprep.subr.bf16.mxu0 %v1836
    %2225 = vmatpush1.bf16.msra.mxu0 %v1835
    %2226 = vmatprep.subr.bf16.mxu0 0
    %2227 = vmatpush1.bf16.msra.mxu0 0
    %2228 = vmatprep.subr.bf16.mxu0 0
    %2229 = vmatpush1.bf16.msra.mxu0 0
    %2230 = vmatprep.subr.bf16.mxu0 0
    %2231 = vmatpush1.bf16.msra.mxu0 0
    %2232 = vmatprep.subr.bf16.mxu0 0
    %2233 = vmatpush1.bf16.msra.mxu0 0
    %2234 = vmatprep.subr.bf16.mxu0 0
    %2235 = vmatpush1.bf16.msra.mxu0 0
    %2236 = vmatprep.subr.bf16.mxu0 0
    %2237 = vmatpush1.bf16.msra.mxu0 0
    %2238 = vmatprep.subr.bf16.mxu0 0
    %2239 = vmatpush1.bf16.msra.mxu0 0
    %2240 = vmatprep.subr.bf16.mxu0 0
    %2241 = vmatpush1.bf16.msra.mxu0 0
    %2242 = vmatprep.subr.bf16.mxu0 0
    %2243 = vmatpush1.bf16.msra.mxu0 0
    %2244 = vmatprep.subr.bf16.mxu0 0
    %2245 = vmatpush1.bf16.msra.mxu0 0
    %2246 = vmatprep.subr.bf16.mxu0 0
    %2247 = vmatpush1.bf16.msra.mxu0 0
    %2248 = vmatprep.subr.bf16.mxu0 0
    %2249 = vmatpush1.bf16.msra.mxu0 0
    %2250 = vmatprep.mubr.bf16.mxu0 0
    %2251 = vmatmul.mubr.bf16.gmra.mrb[0].mxu0 %v2173
    %v2252 = vpop.f32.mrb[0].mxu0
    %v2253 = vadd.f32 %v2210, %v2252
    %v2254 = vpop.f32.mrb[0].mxu0
    %v2255 = vadd.f32 %v2212, %v2254
    %v2256 = vpop.f32.mrb[0].mxu0
    %v2257 = vadd.f32 %v2214, %v2256
    %v2258 = vpop.f32.mrb[0].mxu0
    %v2259 = vadd.f32 %v2216, %v2258
    %2260 = vdwg.mxu0
    %2261 = vmatprep.subr.bf16.mxu0 %v1534
    %2262 = vmatpush1.bf16.msra.mxu0 %v1533
    %2263 = vmatprep.subr.bf16.mxu0 %v1550
    %2264 = vmatpush1.bf16.msra.mxu0 %v1549
    %2265 = vmatprep.subr.bf16.mxu0 %v1566
    %2266 = vmatpush1.bf16.msra.mxu0 %v1565
    %2267 = vmatprep.subr.bf16.mxu0 %v1582
    %2268 = vmatpush1.bf16.msra.mxu0 %v1581
    %2269 = vmatprep.subr.bf16.mxu0 %v1598
    %2270 = vmatpush1.bf16.msra.mxu0 %v1597
    %2271 = vmatprep.subr.bf16.mxu0 %v1614
    %2272 = vmatpush1.bf16.msra.mxu0 %v1613
    %2273 = vmatprep.subr.bf16.mxu0 %v1630
    %2274 = vmatpush1.bf16.msra.mxu0 %v1629
    %2275 = vmatprep.subr.bf16.mxu0 %v1646
    %2276 = vmatpush1.bf16.msra.mxu0 %v1645
    %2277 = vmatprep.subr.bf16.mxu0 %v1662
    %2278 = vmatpush1.bf16.msra.mxu0 %v1661
    %2279 = vmatprep.subr.bf16.mxu0 %v1678
    %2280 = vmatpush1.bf16.msra.mxu0 %v1677
    %2281 = vmatprep.subr.bf16.mxu0 %v1694
    %2282 = vmatpush1.bf16.msra.mxu0 %v1693
    %2283 = vmatprep.subr.bf16.mxu0 %v1710
    %2284 = vmatpush1.bf16.msra.mxu0 %v1709
    %2285 = vmatprep.subr.bf16.mxu0 %v1726
    %2286 = vmatpush1.bf16.msra.mxu0 %v1725
    %2287 = vmatprep.subr.bf16.mxu0 %v1742
    %2288 = vmatpush1.bf16.msra.mxu0 %v1741
    %2289 = vmatprep.subr.bf16.mxu0 %v1758
    %2290 = vmatpush1.bf16.msra.mxu0 %v1757
    %2291 = vmatprep.subr.bf16.mxu0 %v1774
    %2292 = vmatpush1.bf16.msra.mxu0 %v1773
    %2293 = vmatprep.mubr.bf16.mxu0 %v567
    %2294 = vmatmul.mubr.bf16.gmra.mrb[0].mxu0 %v566
    %v2295 = vpop.f32.mrb[0].mxu0
    %v2296 = vadd.f32 %v487, %v2295
    %v2297 = vpop.f32.mrb[0].mxu0
    %v2298 = vadd.f32 %v491, %v2297
    %v2299 = vpop.f32.mrb[0].mxu0
    %v2300 = vadd.f32 %v487, %v2299
    %v2301 = vpop.f32.mrb[0].mxu0
    %v2302 = vadd.f32 %v491, %v2301
    %2303 = vdwg.mxu0
    %2304 = vmatprep.subr.bf16.mxu0 %v1790
    %2305 = vmatpush1.bf16.msra.mxu0 %v1789
    %2306 = vmatprep.subr.bf16.mxu0 %v1806
    %2307 = vmatpush1.bf16.msra.mxu0 %v1805
    %2308 = vmatprep.subr.bf16.mxu0 %v1822
    %2309 = vmatpush1.bf16.msra.mxu0 %v1821
    %2310 = vmatprep.subr.bf16.mxu0 %v1838
    %2311 = vmatpush1.bf16.msra.mxu0 %v1837
    %2312 = vmatprep.subr.bf16.mxu0 0
    %2313 = vmatpush1.bf16.msra.mxu0 0
    %2314 = vmatprep.subr.bf16.mxu0 0
    %2315 = vmatpush1.bf16.msra.mxu0 0
    %2316 = vmatprep.subr.bf16.mxu0 0
    %2317 = vmatpush1.bf16.msra.mxu0 0
    %2318 = vmatprep.subr.bf16.mxu0 0
    %2319 = vmatpush1.bf16.msra.mxu0 0
    %2320 = vmatprep.subr.bf16.mxu0 0
    %2321 = vmatpush1.bf16.msra.mxu0 0
    %2322 = vmatprep.subr.bf16.mxu0 0
    %2323 = vmatpush1.bf16.msra.mxu0 0
    %2324 = vmatprep.subr.bf16.mxu0 0
    %2325 = vmatpush1.bf16.msra.mxu0 0
    %2326 = vmatprep.subr.bf16.mxu0 0
    %2327 = vmatpush1.bf16.msra.mxu0 0
    %2328 = vmatprep.subr.bf16.mxu0 0
    %2329 = vmatpush1.bf16.msra.mxu0 0
    %2330 = vmatprep.subr.bf16.mxu0 0
    %2331 = vmatpush1.bf16.msra.mxu0 0
    %2332 = vmatprep.subr.bf16.mxu0 0
    %2333 = vmatpush1.bf16.msra.mxu0 0
    %2334 = vmatprep.subr.bf16.mxu0 0
    %2335 = vmatpush1.bf16.msra.mxu0 0
    %2336 = vmatprep.mubr.bf16.mxu0 0
    %2337 = vmatmul.mubr.bf16.gmra.mrb[0].mxu0 %v2173
    %v2338 = vpop.f32.mrb[0].mxu0
    %v2339 = vadd.f32 %v2296, %v2338
    %v2340 = vpop.f32.mrb[0].mxu0
    %v2341 = vadd.f32 %v2298, %v2340
    %v2342 = vpop.f32.mrb[0].mxu0
    %v2343 = vadd.f32 %v2300, %v2342
    %v2344 = vpop.f32.mrb[0].mxu0
    %v2345 = vadd.f32 %v2302, %v2344
    %2346 = vdwg.mxu0
    %2347 = vmatprep.subr.bf16.mxu0 %v1536
    %2348 = vmatpush1.bf16.msra.mxu0 %v1535
    %2349 = vmatprep.subr.bf16.mxu0 %v1552
    %2350 = vmatpush1.bf16.msra.mxu0 %v1551
    %2351 = vmatprep.subr.bf16.mxu0 %v1568
    %2352 = vmatpush1.bf16.msra.mxu0 %v1567
    %2353 = vmatprep.subr.bf16.mxu0 %v1584
    %2354 = vmatpush1.bf16.msra.mxu0 %v1583
    %2355 = vmatprep.subr.bf16.mxu0 %v1600
    %2356 = vmatpush1.bf16.msra.mxu0 %v1599
    %2357 = vmatprep.subr.bf16.mxu0 %v1616
    %2358 = vmatpush1.bf16.msra.mxu0 %v1615
    %2359 = vmatprep.subr.bf16.mxu0 %v1632
    %2360 = vmatpush1.bf16.msra.mxu0 %v1631
    %2361 = vmatprep.subr.bf16.mxu0 %v1648
    %2362 = vmatpush1.bf16.msra.mxu0 %v1647
    %2363 = vmatprep.subr.bf16.mxu0 %v1664
    %2364 = vmatpush1.bf16.msra.mxu0 %v1663
    %2365 = vmatprep.subr.bf16.mxu0 %v1680
    %2366 = vmatpush1.bf16.msra.mxu0 %v1679
    %2367 = vmatprep.subr.bf16.mxu0 %v1696
    %2368 = vmatpush1.bf16.msra.mxu0 %v1695
    %2369 = vmatprep.subr.bf16.mxu0 %v1712
    %2370 = vmatpush1.bf16.msra.mxu0 %v1711
    %2371 = vmatprep.subr.bf16.mxu0 %v1728
    %2372 = vmatpush1.bf16.msra.mxu0 %v1727
    %2373 = vmatprep.subr.bf16.mxu0 %v1744
    %2374 = vmatpush1.bf16.msra.mxu0 %v1743
    %2375 = vmatprep.subr.bf16.mxu0 %v1760
    %2376 = vmatpush1.bf16.msra.mxu0 %v1759
    %2377 = vmatprep.subr.bf16.mxu0 %v1776
    %2378 = vmatpush1.bf16.msra.mxu0 %v1775
    %2379 = vmatprep.mubr.bf16.mxu0 %v567
    %2380 = vmatmul.mubr.bf16.gmra.mrb[0].mxu0 %v566
    %v2381 = vpop.f32.mrb[0].mxu0
    %v2382 = vadd.f32 %v495, %v2381
    %v2383 = vpop.f32.mrb[0].mxu0
    %v2384 = vadd.f32 %v499, %v2383
    %v2385 = vpop.f32.mrb[0].mxu0
    %v2386 = vadd.f32 %v495, %v2385
    %v2387 = vpop.f32.mrb[0].mxu0
    %v2388 = vadd.f32 %v499, %v2387
    %2389 = vdwg.mxu0
    %2390 = vmatprep.subr.bf16.mxu0 %v1792
    %2391 = vmatpush1.bf16.msra.mxu0 %v1791
    %2392 = vmatprep.subr.bf16.mxu0 %v1808
    %2393 = vmatpush1.bf16.msra.mxu0 %v1807
    %2394 = vmatprep.subr.bf16.mxu0 %v1824
    %2395 = vmatpush1.bf16.msra.mxu0 %v1823
    %2396 = vmatprep.subr.bf16.mxu0 %v1840
    %2397 = vmatpush1.bf16.msra.mxu0 %v1839
    %2398 = vmatprep.subr.bf16.mxu0 0
    %2399 = vmatpush1.bf16.msra.mxu0 0
    %2400 = vmatprep.subr.bf16.mxu0 0
    %2401 = vmatpush1.bf16.msra.mxu0 0
    %2402 = vmatprep.subr.bf16.mxu0 0
    %2403 = vmatpush1.bf16.msra.mxu0 0
    %2404 = vmatprep.subr.bf16.mxu0 0
    %2405 = vmatpush1.bf16.msra.mxu0 0
    %2406 = vmatprep.subr.bf16.mxu0 0
    %2407 = vmatpush1.bf16.msra.mxu0 0
    %2408 = vmatprep.subr.bf16.mxu0 0
    %2409 = vmatpush1.bf16.msra.mxu0 0
    %2410 = vmatprep.subr.bf16.mxu0 0
    %2411 = vmatpush1.bf16.msra.mxu0 0
    %2412 = vmatprep.subr.bf16.mxu0 0
    %2413 = vmatpush1.bf16.msra.mxu0 0
    %2414 = vmatprep.subr.bf16.mxu0 0
    %2415 = vmatpush1.bf16.msra.mxu0 0
    %2416 = vmatprep.subr.bf16.mxu0 0
    %2417 = vmatpush1.bf16.msra.mxu0 0
    %2418 = vmatprep.subr.bf16.mxu0 0
    %2419 = vmatpush1.bf16.msra.mxu0 0
    %2420 = vmatprep.subr.bf16.mxu0 0
    %2421 = vmatpush1.bf16.msra.mxu0 0
    %2422 = vmatprep.mubr.bf16.mxu0 0
    %2423 = vmatmul.mubr.bf16.gmra.mrb[0].mxu0 %v2173
    %v2424 = vpop.f32.mrb[0].mxu0
    %v2425 = vadd.f32 %v2382, %v2424
    %v2426 = vpop.f32.mrb[0].mxu0
    %v2427 = vadd.f32 %v2384, %v2426
    %v2428 = vpop.f32.mrb[0].mxu0
    %v2429 = vadd.f32 %v2386, %v2428
    %v2430 = vpop.f32.mrb[0].mxu0
    %v2431 = vadd.f32 %v2388, %v2430
    %2432 = vdwg.mxu0
    %2433 = vmatprep.subr.bf16.mxu0 %v1538
    %2434 = vmatpush1.bf16.msra.mxu0 %v1537
    %2435 = vmatprep.subr.bf16.mxu0 %v1554
    %2436 = vmatpush1.bf16.msra.mxu0 %v1553
    %2437 = vmatprep.subr.bf16.mxu0 %v1570
    %2438 = vmatpush1.bf16.msra.mxu0 %v1569
    %2439 = vmatprep.subr.bf16.mxu0 %v1586
    %2440 = vmatpush1.bf16.msra.mxu0 %v1585
    %2441 = vmatprep.subr.bf16.mxu0 %v1602
    %2442 = vmatpush1.bf16.msra.mxu0 %v1601
    %2443 = vmatprep.subr.bf16.mxu0 %v1618
    %2444 = vmatpush1.bf16.msra.mxu0 %v1617
    %2445 = vmatprep.subr.bf16.mxu0 %v1634
    %2446 = vmatpush1.bf16.msra.mxu0 %v1633
    %2447 = vmatprep.subr.bf16.mxu0 %v1650
    %2448 = vmatpush1.bf16.msra.mxu0 %v1649
    %2449 = vmatprep.subr.bf16.mxu0 %v1666
    %2450 = vmatpush1.bf16.msra.mxu0 %v1665
    %2451 = vmatprep.subr.bf16.mxu0 %v1682
    %2452 = vmatpush1.bf16.msra.mxu0 %v1681
    %2453 = vmatprep.subr.bf16.mxu0 %v1698
    %2454 = vmatpush1.bf16.msra.mxu0 %v1697
    %2455 = vmatprep.subr.bf16.mxu0 %v1714
    %2456 = vmatpush1.bf16.msra.mxu0 %v1713
    %2457 = vmatprep.subr.bf16.mxu0 %v1730
    %2458 = vmatpush1.bf16.msra.mxu0 %v1729
    %2459 = vmatprep.subr.bf16.mxu0 %v1746
    %2460 = vmatpush1.bf16.msra.mxu0 %v1745
    %2461 = vmatprep.subr.bf16.mxu0 %v1762
    %2462 = vmatpush1.bf16.msra.mxu0 %v1761
    %2463 = vmatprep.subr.bf16.mxu0 %v1778
    %2464 = vmatpush1.bf16.msra.mxu0 %v1777
    %2465 = vmatprep.mubr.bf16.mxu0 %v567
    %2466 = vmatmul.mubr.bf16.gmra.mrb[0].mxu0 %v566
    %v2467 = vpop.f32.mrb[0].mxu0
    %v2468 = vadd.f32 %v503, %v2467
    %v2469 = vpop.f32.mrb[0].mxu0
    %v2470 = vadd.f32 %v507, %v2469
    %v2471 = vpop.f32.mrb[0].mxu0
    %v2472 = vadd.f32 %v503, %v2471
    %v2473 = vpop.f32.mrb[0].mxu0
    %v2474 = vadd.f32 %v507, %v2473
    %2475 = vdwg.mxu0
    %2476 = vmatprep.subr.bf16.mxu0 %v1794
    %2477 = vmatpush1.bf16.msra.mxu0 %v1793
    %2478 = vmatprep.subr.bf16.mxu0 %v1810
    %2479 = vmatpush1.bf16.msra.mxu0 %v1809
    %2480 = vmatprep.subr.bf16.mxu0 %v1826
    %2481 = vmatpush1.bf16.msra.mxu0 %v1825
    %2482 = vmatprep.subr.bf16.mxu0 %v1842
    %2483 = vmatpush1.bf16.msra.mxu0 %v1841
    %2484 = vmatprep.subr.bf16.mxu0 0
    %2485 = vmatpush1.bf16.msra.mxu0 0
    %2486 = vmatprep.subr.bf16.mxu0 0
    %2487 = vmatpush1.bf16.msra.mxu0 0
    %2488 = vmatprep.subr.bf16.mxu0 0
    %2489 = vmatpush1.bf16.msra.mxu0 0
    %2490 = vmatprep.subr.bf16.mxu0 0
    %2491 = vmatpush1.bf16.msra.mxu0 0
    %2492 = vmatprep.subr.bf16.mxu0 0
    %2493 = vmatpush1.bf16.msra.mxu0 0
    %2494 = vmatprep.subr.bf16.mxu0 0
    %2495 = vmatpush1.bf16.msra.mxu0 0
    %2496 = vmatprep.subr.bf16.mxu0 0
    %2497 = vmatpush1.bf16.msra.mxu0 0
    %2498 = vmatprep.subr.bf16.mxu0 0
    %2499 = vmatpush1.bf16.msra.mxu0 0
    %2500 = vmatprep.subr.bf16.mxu0 0
    %2501 = vmatpush1.bf16.msra.mxu0 0
    %2502 = vmatprep.subr.bf16.mxu0 0
    %2503 = vmatpush1.bf16.msra.mxu0 0
    %2504 = vmatprep.subr.bf16.mxu0 0
    %2505 = vmatpush1.bf16.msra.mxu0 0
    %2506 = vmatprep.subr.bf16.mxu0 0
    %2507 = vmatpush1.bf16.msra.mxu0 0
    %2508 = vmatprep.mubr.bf16.mxu0 0
    %2509 = vmatmul.mubr.bf16.gmra.mrb[0].mxu0 %v2173
    %v2510 = vpop.f32.mrb[0].mxu0
    %v2511 = vadd.f32 %v2468, %v2510
    %v2512 = vpop.f32.mrb[0].mxu0
    %v2513 = vadd.f32 %v2470, %v2512
    %v2514 = vpop.f32.mrb[0].mxu0
    %v2515 = vadd.f32 %v2472, %v2514
    %v2516 = vpop.f32.mrb[0].mxu0
    %v2517 = vadd.f32 %v2474, %v2516
    %2518 = vdwg.mxu0
    %2519 = vmatprep.subr.bf16.mxu0 %v1540
    %2520 = vmatpush1.bf16.msra.mxu0 %v1539
    %2521 = vmatprep.subr.bf16.mxu0 %v1556
    %2522 = vmatpush1.bf16.msra.mxu0 %v1555
    %2523 = vmatprep.subr.bf16.mxu0 %v1572
    %2524 = vmatpush1.bf16.msra.mxu0 %v1571
    %2525 = vmatprep.subr.bf16.mxu0 %v1588
    %2526 = vmatpush1.bf16.msra.mxu0 %v1587
    %2527 = vmatprep.subr.bf16.mxu0 %v1604
    %2528 = vmatpush1.bf16.msra.mxu0 %v1603
    %2529 = vmatprep.subr.bf16.mxu0 %v1620
    %2530 = vmatpush1.bf16.msra.mxu0 %v1619
    %2531 = vmatprep.subr.bf16.mxu0 %v1636
    %2532 = vmatpush1.bf16.msra.mxu0 %v1635
    %2533 = vmatprep.subr.bf16.mxu0 %v1652
    %2534 = vmatpush1.bf16.msra.mxu0 %v1651
    %2535 = vmatprep.subr.bf16.mxu0 %v1668
    %2536 = vmatpush1.bf16.msra.mxu0 %v1667
    %2537 = vmatprep.subr.bf16.mxu0 %v1684
    %2538 = vmatpush1.bf16.msra.mxu0 %v1683
    %2539 = vmatprep.subr.bf16.mxu0 %v1700
    %2540 = vmatpush1.bf16.msra.mxu0 %v1699
    %2541 = vmatprep.subr.bf16.mxu0 %v1716
    %2542 = vmatpush1.bf16.msra.mxu0 %v1715
    %2543 = vmatprep.subr.bf16.mxu0 %v1732
    %2544 = vmatpush1.bf16.msra.mxu0 %v1731
    %2545 = vmatprep.subr.bf16.mxu0 %v1748
    %2546 = vmatpush1.bf16.msra.mxu0 %v1747
    %2547 = vmatprep.subr.bf16.mxu0 %v1764
    %2548 = vmatpush1.bf16.msra.mxu0 %v1763
    %2549 = vmatprep.subr.bf16.mxu0 %v1780
    %2550 = vmatpush1.bf16.msra.mxu0 %v1779
    %2551 = vmatprep.mubr.bf16.mxu0 %v567
    %2552 = vmatmul.mubr.bf16.gmra.mrb[0].mxu0 %v566
    %v2553 = vpop.f32.mrb[0].mxu0
    %v2554 = vadd.f32 %v511, %v2553
    %v2555 = vpop.f32.mrb[0].mxu0
    %v2556 = vadd.f32 %v515, %v2555
    %v2557 = vpop.f32.mrb[0].mxu0
    %v2558 = vadd.f32 %v511, %v2557
    %v2559 = vpop.f32.mrb[0].mxu0
    %v2560 = vadd.f32 %v515, %v2559
    %2561 = vdwg.mxu0
    %2562 = vmatprep.subr.bf16.mxu0 %v1796
    %2563 = vmatpush1.bf16.msra.mxu0 %v1795
    %2564 = vmatprep.subr.bf16.mxu0 %v1812
    %2565 = vmatpush1.bf16.msra.mxu0 %v1811
    %2566 = vmatprep.subr.bf16.mxu0 %v1828
    %2567 = vmatpush1.bf16.msra.mxu0 %v1827
    %2568 = vmatprep.subr.bf16.mxu0 %v1844
    %2569 = vmatpush1.bf16.msra.mxu0 %v1843
    %2570 = vmatprep.subr.bf16.mxu0 0
    %2571 = vmatpush1.bf16.msra.mxu0 0
    %2572 = vmatprep.subr.bf16.mxu0 0
    %2573 = vmatpush1.bf16.msra.mxu0 0
    %2574 = vmatprep.subr.bf16.mxu0 0
    %2575 = vmatpush1.bf16.msra.mxu0 0
    %2576 = vmatprep.subr.bf16.mxu0 0
    %2577 = vmatpush1.bf16.msra.mxu0 0
    %2578 = vmatprep.subr.bf16.mxu0 0
    %2579 = vmatpush1.bf16.msra.mxu0 0
    %2580 = vmatprep.subr.bf16.mxu0 0
    %2581 = vmatpush1.bf16.msra.mxu0 0
    %2582 = vmatprep.subr.bf16.mxu0 0
    %2583 = vmatpush1.bf16.msra.mxu0 0
    %2584 = vmatprep.subr.bf16.mxu0 0
    %2585 = vmatpush1.bf16.msra.mxu0 0
    %2586 = vmatprep.subr.bf16.mxu0 0
    %2587 = vmatpush1.bf16.msra.mxu0 0
    %2588 = vmatprep.subr.bf16.mxu0 0
    %2589 = vmatpush1.bf16.msra.mxu0 0
    %2590 = vmatprep.subr.bf16.mxu0 0
    %2591 = vmatpush1.bf16.msra.mxu0 0
    %2592 = vmatprep.subr.bf16.mxu0 0
    %2593 = vmatpush1.bf16.msra.mxu0 0
    %2594 = vmatprep.mubr.bf16.mxu0 0
    %2595 = vmatmul.mubr.bf16.gmra.mrb[0].mxu0 %v2173
    %v2596 = vpop.f32.mrb[0].mxu0
    %v2597 = vadd.f32 %v2554, %v2596
    %v2598 = vpop.f32.mrb[0].mxu0
    %v2599 = vadd.f32 %v2556, %v2598
    %v2600 = vpop.f32.mrb[0].mxu0
    %v2601 = vadd.f32 %v2558, %v2600
    %v2602 = vpop.f32.mrb[0].mxu0
    %v2603 = vadd.f32 %v2560, %v2602
    %2604 = vdwg.mxu0
    %2605 = vmatprep.subr.bf16.mxu0 %v1542
    %2606 = vmatpush1.bf16.msra.mxu0 %v1541
    %2607 = vmatprep.subr.bf16.mxu0 %v1558
    %2608 = vmatpush1.bf16.msra.mxu0 %v1557
    %2609 = vmatprep.subr.bf16.mxu0 %v1574
    %2610 = vmatpush1.bf16.msra.mxu0 %v1573
    %2611 = vmatprep.subr.bf16.mxu0 %v1590
    %2612 = vmatpush1.bf16.msra.mxu0 %v1589
    %2613 = vmatprep.subr.bf16.mxu0 %v1606
    %2614 = vmatpush1.bf16.msra.mxu0 %v1605
    %2615 = vmatprep.subr.bf16.mxu0 %v1622
    %2616 = vmatpush1.bf16.msra.mxu0 %v1621
    %2617 = vmatprep.subr.bf16.mxu0 %v1638
    %2618 = vmatpush1.bf16.msra.mxu0 %v1637
    %2619 = vmatprep.subr.bf16.mxu0 %v1654
    %2620 = vmatpush1.bf16.msra.mxu0 %v1653
    %2621 = vmatprep.subr.bf16.mxu0 %v1670
    %2622 = vmatpush1.bf16.msra.mxu0 %v1669
    %2623 = vmatprep.subr.bf16.mxu0 %v1686
    %2624 = vmatpush1.bf16.msra.mxu0 %v1685
    %2625 = vmatprep.subr.bf16.mxu0 %v1702
    %2626 = vmatpush1.bf16.msra.mxu0 %v1701
    %2627 = vmatprep.subr.bf16.mxu0 %v1718
    %2628 = vmatpush1.bf16.msra.mxu0 %v1717
    %2629 = vmatprep.subr.bf16.mxu0 %v1734
    %2630 = vmatpush1.bf16.msra.mxu0 %v1733
    %2631 = vmatprep.subr.bf16.mxu0 %v1750
    %2632 = vmatpush1.bf16.msra.mxu0 %v1749
    %2633 = vmatprep.subr.bf16.mxu0 %v1766
    %2634 = vmatpush1.bf16.msra.mxu0 %v1765
    %2635 = vmatprep.subr.bf16.mxu0 %v1782
    %2636 = vmatpush1.bf16.msra.mxu0 %v1781
    %2637 = vmatprep.mubr.bf16.mxu0 %v567
    %2638 = vmatmul.mubr.bf16.gmra.mrb[0].mxu0 %v566
    %v2639 = vpop.f32.mrb[0].mxu0
    %v2640 = vadd.f32 %v519, %v2639
    %v2641 = vpop.f32.mrb[0].mxu0
    %v2642 = vadd.f32 %v523, %v2641
    %v2643 = vpop.f32.mrb[0].mxu0
    %v2644 = vadd.f32 %v519, %v2643
    %v2645 = vpop.f32.mrb[0].mxu0
    %v2646 = vadd.f32 %v523, %v2645
    %2647 = vdwg.mxu0
    %2648 = vmatprep.subr.bf16.mxu0 %v1798
    %2649 = vmatpush1.bf16.msra.mxu0 %v1797
    %2650 = vmatprep.subr.bf16.mxu0 %v1814
    %2651 = vmatpush1.bf16.msra.mxu0 %v1813
    %2652 = vmatprep.subr.bf16.mxu0 %v1830
    %2653 = vmatpush1.bf16.msra.mxu0 %v1829
    %2654 = vmatprep.subr.bf16.mxu0 %v1846
    %2655 = vmatpush1.bf16.msra.mxu0 %v1845
    %2656 = vmatprep.subr.bf16.mxu0 0
    %2657 = vmatpush1.bf16.msra.mxu0 0
    %2658 = vmatprep.subr.bf16.mxu0 0
    %2659 = vmatpush1.bf16.msra.mxu0 0
    %2660 = vmatprep.subr.bf16.mxu0 0
    %2661 = vmatpush1.bf16.msra.mxu0 0
    %2662 = vmatprep.subr.bf16.mxu0 0
    %2663 = vmatpush1.bf16.msra.mxu0 0
    %2664 = vmatprep.subr.bf16.mxu0 0
    %2665 = vmatpush1.bf16.msra.mxu0 0
    %2666 = vmatprep.subr.bf16.mxu0 0
    %2667 = vmatpush1.bf16.msra.mxu0 0
    %2668 = vmatprep.subr.bf16.mxu0 0
    %2669 = vmatpush1.bf16.msra.mxu0 0
    %2670 = vmatprep.subr.bf16.mxu0 0
    %2671 = vmatpush1.bf16.msra.mxu0 0
    %2672 = vmatprep.subr.bf16.mxu0 0
    %2673 = vmatpush1.bf16.msra.mxu0 0
    %2674 = vmatprep.subr.bf16.mxu0 0
    %2675 = vmatpush1.bf16.msra.mxu0 0
    %2676 = vmatprep.subr.bf16.mxu0 0
    %2677 = vmatpush1.bf16.msra.mxu0 0
    %2678 = vmatprep.subr.bf16.mxu0 0
    %2679 = vmatpush1.bf16.msra.mxu0 0
    %2680 = vmatprep.mubr.bf16.mxu0 0
    %2681 = vmatmul.mubr.bf16.gmra.mrb[0].mxu0 %v2173
    %v2682 = vpop.f32.mrb[0].mxu0
    %v2683 = vadd.f32 %v2640, %v2682
    %v2684 = vpop.f32.mrb[0].mxu0
    %v2685 = vadd.f32 %v2642, %v2684
    %v2686 = vpop.f32.mrb[0].mxu0
    %v2687 = vadd.f32 %v2644, %v2686
    %v2688 = vpop.f32.mrb[0].mxu0
    %v2689 = vadd.f32 %v2646, %v2688
    %2690 = vdwg.mxu0
    %2691 = vmatprep.subr.bf16.mxu0 %v1544
    %2692 = vmatpush1.bf16.msra.mxu0 %v1543
    %2693 = vmatprep.subr.bf16.mxu0 %v1560
    %2694 = vmatpush1.bf16.msra.mxu0 %v1559
    %2695 = vmatprep.subr.bf16.mxu0 %v1576
    %2696 = vmatpush1.bf16.msra.mxu0 %v1575
    %2697 = vmatprep.subr.bf16.mxu0 %v1592
    %2698 = vmatpush1.bf16.msra.mxu0 %v1591
    %2699 = vmatprep.subr.bf16.mxu0 %v1608
    %2700 = vmatpush1.bf16.msra.mxu0 %v1607
    %2701 = vmatprep.subr.bf16.mxu0 %v1624
    %2702 = vmatpush1.bf16.msra.mxu0 %v1623
    %2703 = vmatprep.subr.bf16.mxu0 %v1640
    %2704 = vmatpush1.bf16.msra.mxu0 %v1639
    %2705 = vmatprep.subr.bf16.mxu0 %v1656
    %2706 = vmatpush1.bf16.msra.mxu0 %v1655
    %2707 = vmatprep.subr.bf16.mxu0 %v1672
    %2708 = vmatpush1.bf16.msra.mxu0 %v1671
    %2709 = vmatprep.subr.bf16.mxu0 %v1688
    %2710 = vmatpush1.bf16.msra.mxu0 %v1687
    %2711 = vmatprep.subr.bf16.mxu0 %v1704
    %2712 = vmatpush1.bf16.msra.mxu0 %v1703
    %2713 = vmatprep.subr.bf16.mxu0 %v1720
    %2714 = vmatpush1.bf16.msra.mxu0 %v1719
    %2715 = vmatprep.subr.bf16.mxu0 %v1736
    %2716 = vmatpush1.bf16.msra.mxu0 %v1735
    %2717 = vmatprep.subr.bf16.mxu0 %v1752
    %2718 = vmatpush1.bf16.msra.mxu0 %v1751
    %2719 = vmatprep.subr.bf16.mxu0 %v1768
    %2720 = vmatpush1.bf16.msra.mxu0 %v1767
    %2721 = vmatprep.subr.bf16.mxu0 %v1784
    %2722 = vmatpush1.bf16.msra.mxu0 %v1783
    %2723 = vmatprep.mubr.bf16.mxu0 %v567
    %2724 = vmatmul.mubr.bf16.gmra.mrb[0].mxu0 %v566
    %v2725 = vpop.f32.mrb[0].mxu0
    %v2726 = vadd.f32 %v527, %v2725
    %v2727 = vpop.f32.mrb[0].mxu0
    %v2728 = vadd.f32 %v531, %v2727
    %v2729 = vpop.f32.mrb[0].mxu0
    %v2730 = vadd.f32 %v527, %v2729
    %v2731 = vpop.f32.mrb[0].mxu0
    %v2732 = vadd.f32 %v531, %v2731
    %2733 = vdwg.mxu0
    %2734 = vmatprep.subr.bf16.mxu0 %v1800
    %2735 = vmatpush1.bf16.msra.mxu0 %v1799
    %2736 = vmatprep.subr.bf16.mxu0 %v1816
    %2737 = vmatpush1.bf16.msra.mxu0 %v1815
    %2738 = vmatprep.subr.bf16.mxu0 %v1832
    %2739 = vmatpush1.bf16.msra.mxu0 %v1831
    %2740 = vmatprep.subr.bf16.mxu0 %v1848
    %2741 = vmatpush1.bf16.msra.mxu0 %v1847
    %2742 = vmatprep.subr.bf16.mxu0 0
    %2743 = vmatpush1.bf16.msra.mxu0 0
    %2744 = vmatprep.subr.bf16.mxu0 0
    %2745 = vmatpush1.bf16.msra.mxu0 0
    %2746 = vmatprep.subr.bf16.mxu0 0
    %2747 = vmatpush1.bf16.msra.mxu0 0
    %2748 = vmatprep.subr.bf16.mxu0 0
    %2749 = vmatpush1.bf16.msra.mxu0 0
    %2750 = vmatprep.subr.bf16.mxu0 0
    %2751 = vmatpush1.bf16.msra.mxu0 0
    %2752 = vmatprep.subr.bf16.mxu0 0
    %2753 = vmatpush1.bf16.msra.mxu0 0
    %2754 = vmatprep.subr.bf16.mxu0 0
    %2755 = vmatpush1.bf16.msra.mxu0 0
    %2756 = vmatprep.subr.bf16.mxu0 0
    %2757 = vmatpush1.bf16.msra.mxu0 0
    %2758 = vmatprep.subr.bf16.mxu0 0
    %2759 = vmatpush1.bf16.msra.mxu0 0
    %2760 = vmatprep.subr.bf16.mxu0 0
    %2761 = vmatpush1.bf16.msra.mxu0 0
    %2762 = vmatprep.subr.bf16.mxu0 0
    %2763 = vmatpush1.bf16.msra.mxu0 0
    %2764 = vmatprep.subr.bf16.mxu0 0
    %2765 = vmatpush1.bf16.msra.mxu0 0
    %2766 = vmatprep.mubr.bf16.mxu0 0
    %2767 = vmatmul.mubr.bf16.gmra.mrb[0].mxu0 %v2173
    %v2768 = vpop.f32.mrb[0].mxu0
    %v2769 = vadd.f32 %v2726, %v2768
    %v2770 = vpop.f32.mrb[0].mxu0
    %v2771 = vadd.f32 %v2728, %v2770
    %v2772 = vpop.f32.mrb[0].mxu0
    %v2773 = vadd.f32 %v2730, %v2772
    %v2774 = vpop.f32.mrb[0].mxu0
    %v2775 = vadd.f32 %v2732, %v2774
    %2776 = vdwg.mxu0
    %2777 = vmatprep.subr.bf16.mxu0 %v1546
    %2778 = vmatpush1.bf16.msra.mxu0 %v1545
    %2779 = vmatprep.subr.bf16.mxu0 %v1562
    %2780 = vmatpush1.bf16.msra.mxu0 %v1561
    %2781 = vmatprep.subr.bf16.mxu0 %v1578
    %2782 = vmatpush1.bf16.msra.mxu0 %v1577
    %2783 = vmatprep.subr.bf16.mxu0 %v1594
    %2784 = vmatpush1.bf16.msra.mxu0 %v1593
    %2785 = vmatprep.subr.bf16.mxu0 %v1610
    %2786 = vmatpush1.bf16.msra.mxu0 %v1609
    %2787 = vmatprep.subr.bf16.mxu0 %v1626
    %2788 = vmatpush1.bf16.msra.mxu0 %v1625
    %2789 = vmatprep.subr.bf16.mxu0 %v1642
    %2790 = vmatpush1.bf16.msra.mxu0 %v1641
    %2791 = vmatprep.subr.bf16.mxu0 %v1658
    %2792 = vmatpush1.bf16.msra.mxu0 %v1657
    %2793 = vmatprep.subr.bf16.mxu0 %v1674
    %2794 = vmatpush1.bf16.msra.mxu0 %v1673
    %2795 = vmatprep.subr.bf16.mxu0 %v1690
    %2796 = vmatpush1.bf16.msra.mxu0 %v1689
    %2797 = vmatprep.subr.bf16.mxu0 %v1706
    %2798 = vmatpush1.bf16.msra.mxu0 %v1705
    %2799 = vmatprep.subr.bf16.mxu0 %v1722
    %2800 = vmatpush1.bf16.msra.mxu0 %v1721
    %2801 = vmatprep.subr.bf16.mxu0 %v1738
    %2802 = vmatpush1.bf16.msra.mxu0 %v1737
    %2803 = vmatprep.subr.bf16.mxu0 %v1754
    %2804 = vmatpush1.bf16.msra.mxu0 %v1753
    %2805 = vmatprep.subr.bf16.mxu0 %v1770
    %2806 = vmatpush1.bf16.msra.mxu0 %v1769
    %2807 = vmatprep.subr.bf16.mxu0 %v1786
    %2808 = vmatpush1.bf16.msra.mxu0 %v1785
    %2809 = vmatprep.mubr.bf16.mxu0 %v567
    %2810 = vmatmul.mubr.bf16.gmra.mrb[0].mxu0 %v566
    %v2811 = vpop.f32.mrb[0].mxu0
    %v2812 = vadd.f32 %v535, %v2811
    %v2813 = vpop.f32.mrb[0].mxu0
    %v2814 = vadd.f32 %v539, %v2813
    %v2815 = vpop.f32.mrb[0].mxu0
    %v2816 = vadd.f32 %v535, %v2815
    %v2817 = vpop.f32.mrb[0].mxu0
    %v2818 = vadd.f32 %v539, %v2817
    %2819 = vdwg.mxu0
    %2820 = vmatprep.subr.bf16.mxu0 %v1802
    %2821 = vmatpush1.bf16.msra.mxu0 %v1801
    %2822 = vmatprep.subr.bf16.mxu0 %v1818
    %2823 = vmatpush1.bf16.msra.mxu0 %v1817
    %2824 = vmatprep.subr.bf16.mxu0 %v1834
    %2825 = vmatpush1.bf16.msra.mxu0 %v1833
    %2826 = vmatprep.subr.bf16.mxu0 %v1850
    %2827 = vmatpush1.bf16.msra.mxu0 %v1849
    %2828 = vmatprep.subr.bf16.mxu0 0
    %2829 = vmatpush1.bf16.msra.mxu0 0
    %2830 = vmatprep.subr.bf16.mxu0 0
    %2831 = vmatpush1.bf16.msra.mxu0 0
    %2832 = vmatprep.subr.bf16.mxu0 0
    %2833 = vmatpush1.bf16.msra.mxu0 0
    %2834 = vmatprep.subr.bf16.mxu0 0
    %2835 = vmatpush1.bf16.msra.mxu0 0
    %2836 = vmatprep.subr.bf16.mxu0 0
    %2837 = vmatpush1.bf16.msra.mxu0 0
    %2838 = vmatprep.subr.bf16.mxu0 0
    %2839 = vmatpush1.bf16.msra.mxu0 0
    %2840 = vmatprep.subr.bf16.mxu0 0
    %2841 = vmatpush1.bf16.msra.mxu0 0
    %2842 = vmatprep.subr.bf16.mxu0 0
    %2843 = vmatpush1.bf16.msra.mxu0 0
    %2844 = vmatprep.subr.bf16.mxu0 0
    %2845 = vmatpush1.bf16.msra.mxu0 0
    %2846 = vmatprep.subr.bf16.mxu0 0
    %2847 = vmatpush1.bf16.msra.mxu0 0
    %2848 = vmatprep.subr.bf16.mxu0 0
    %2849 = vmatpush1.bf16.msra.mxu0 0
    %2850 = vmatprep.subr.bf16.mxu0 0
    %2851 = vmatpush1.bf16.msra.mxu0 0
    %2852 = vmatprep.mubr.bf16.mxu0 0
    %2853 = vmatmul.mubr.bf16.gmra.mrb[0].mxu0 %v2173
    %v2854 = vpop.f32.mrb[0].mxu0
    %v2855 = vadd.f32 %v2812, %v2854
    %v2856 = vpop.f32.mrb[0].mxu0
    %v2857 = vadd.f32 %v2814, %v2856
    %v2858 = vpop.f32.mrb[0].mxu0
    %v2859 = vadd.f32 %v2816, %v2858
    %v2860 = vpop.f32.mrb[0].mxu0
    %v2861 = vadd.f32 %v2818, %v2860
    %2862 = vdwg.mxu0
    %v2863 = vmax.f32 %v2253, 0.0
    %v2864 = vmax.f32 %v2255, 0.0
    %v2865 = vmax.f32 %v2339, 0.0
    %v2866 = vmax.f32 %v2341, 0.0
    %v2867 = vmax.f32 %v2425, 0.0
    %v2868 = vmax.f32 %v2427, 0.0
    %v2869 = vmax.f32 %v2511, 0.0
    %v2870 = vmax.f32 %v2513, 0.0
    %v2871 = vmax.f32 %v2597, 0.0
    %v2872 = vmax.f32 %v2599, 0.0
    %v2873 = vmax.f32 %v2683, 0.0
    %v2874 = vmax.f32 %v2685, 0.0
    %v2875 = vmax.f32 %v2769, 0.0
    %v2876 = vmax.f32 %v2771, 0.0
    %v2877 = vmax.f32 %v2855, 0.0
    %v2878 = vmax.f32 %v2857, 0.0
    %v2879 = vmax.f32 %v2257, 0.0
    %v2880 = vmax.f32 %v2259, 0.0
    %v2881 = vmax.f32 %v2343, 0.0
    %v2882 = vmax.f32 %v2345, 0.0
    %v2883 = vmax.f32 %v2429, 0.0
    %v2884 = vmax.f32 %v2431, 0.0
    %v2885 = vmax.f32 %v2515, 0.0
    %v2886 = vmax.f32 %v2517, 0.0
    %v2887 = vmax.f32 %v2601, 0.0
    %v2888 = vmax.f32 %v2603, 0.0
    %v2889 = vmax.f32 %v2687, 0.0
    %v2890 = vmax.f32 %v2689, 0.0
    %v2891 = vmax.f32 %v2773, 0.0
    %v2892 = vmax.f32 %v2775, 0.0
    %v2893 = vmax.f32 %v2859, 0.0
    %v2894 = vmax.f32 %v2861, 0.0
    %v2895 = vpack.c.bf16 %v2879, %v2863
    %v2896 = vpack.c.bf16 %v2880, %v2864
    %v2897 = vpack.c.bf16 %v2881, %v2865
    %v2898 = vpack.c.bf16 %v2882, %v2866
    %v2899 = vpack.c.bf16 %v2883, %v2867
    %v2900 = vpack.c.bf16 %v2884, %v2868
    %v2901 = vpack.c.bf16 %v2885, %v2869
    %v2902 = vpack.c.bf16 %v2886, %v2870
    %v2903 = vpack.c.bf16 %v2887, %v2871
    %v2904 = vpack.c.bf16 %v2888, %v2872
    %v2905 = vpack.c.bf16 %v2889, %v2873
    %v2906 = vpack.c.bf16 %v2890, %v2874
    %v2907 = vpack.c.bf16 %v2891, %v2875
    %v2908 = vpack.c.bf16 %v2892, %v2876
    %v2909 = vpack.c.bf16 %v2893, %v2877
    %v2910 = vpack.c.bf16 %v2894, %v2878
    %v2911 = vld [vmem:[#allocation8] sm:$0xff]
    %v2912 = vld [vmem:[#allocation8 + $0x8] sm:$0xff]
    %v2913 = vld [vmem:[#allocation8 + $0x10] sm:$0xff]
    %v2914 = vld [vmem:[#allocation8 + $0x18] sm:$0xff]
    %v2915 = vld [vmem:[#allocation8 + $0x20] sm:$0xff]
    %v2916 = vld [vmem:[#allocation8 + $0x28] sm:$0xff]
    %v2917 = vld [vmem:[#allocation8 + $0x30] sm:$0xff]
    %v2918 = vld [vmem:[#allocation8 + $0x38] sm:$0xff]
    %v2919 = vld [vmem:[#allocation8 + $0x40] sm:$0xff]
    %v2920 = vld [vmem:[#allocation8 + $0x48] sm:$0xff]
    %v2921 = vld [vmem:[#allocation8 + $0x50] sm:$0xff]
    %v2922 = vld [vmem:[#allocation8 + $0x58] sm:$0xff]
    %v2923 = vld [vmem:[#allocation8 + $0x60] sm:$0xff]
    %v2924 = vld [vmem:[#allocation8 + $0x68] sm:$0xff]
    %v2925 = vld [vmem:[#allocation8 + $0x70] sm:$0xff]
    %v2926 = vld [vmem:[#allocation8 + $0x78] sm:$0xff]
    %v2927 = vld [vmem:[#allocation8 + $0x80] sm:$0xff]
    %v2928 = vld [vmem:[#allocation8 + $0x88] sm:$0xff]
    %v2929 = vld [vmem:[#allocation8 + $0x90] sm:$0xff]
    %v2930 = vld [vmem:[#allocation8 + $0x98] sm:$0xff]
    %v2931 = vld [vmem:[#allocation8 + $0xa0] sm:$0xff]
    %v2932 = vld [vmem:[#allocation8 + $0xa8] sm:$0xff]
    %v2933 = vld [vmem:[#allocation8 + $0xb0] sm:$0xff]
    %v2934 = vld [vmem:[#allocation8 + $0xb8] sm:$0xff]
    %v2935 = vld [vmem:[#allocation8 + $0xc0] sm:$0xff]
    %v2936 = vld [vmem:[#allocation8 + $0xc8] sm:$0xff]
    %v2937 = vld [vmem:[#allocation8 + $0xd0] sm:$0xff]
    %v2938 = vld [vmem:[#allocation8 + $0xd8] sm:$0xff]
    %v2939 = vld [vmem:[#allocation8 + $0xe0] sm:$0xff]
    %v2940 = vld [vmem:[#allocation8 + $0xe8] sm:$0xff]
    %v2941 = vld [vmem:[#allocation8 + $0xf0] sm:$0xff]
    %v2942 = vld [vmem:[#allocation8 + $0xf8] sm:$0xff]
    %v2943 = vld [vmem:[#allocation8 + $0x100] sm:$0xff]
    %v2944 = vld [vmem:[#allocation8 + $0x108] sm:$0xff]
    %v2945 = vld [vmem:[#allocation8 + $0x110] sm:$0xff]
    %v2946 = vld [vmem:[#allocation8 + $0x118] sm:$0xff]
    %v2947 = vld [vmem:[#allocation8 + $0x120] sm:$0xff]
    %v2948 = vld [vmem:[#allocation8 + $0x128] sm:$0xff]
    %v2949 = vld [vmem:[#allocation8 + $0x130] sm:$0xff]
    %v2950 = vld [vmem:[#allocation8 + $0x138] sm:$0xff]
    %v2951 = vld [vmem:[#allocation8 + $0x140] sm:$0xff]
    %v2952 = vld [vmem:[#allocation8 + $0x148] sm:$0xff]
    %v2953 = vld [vmem:[#allocation8 + $0x150] sm:$0xff]
    %v2954 = vld [vmem:[#allocation8 + $0x158] sm:$0xff]
    %v2955 = vld [vmem:[#allocation8 + $0x160] sm:$0xff]
    %v2956 = vld [vmem:[#allocation8 + $0x168] sm:$0xff]
    %v2957 = vld [vmem:[#allocation8 + $0x170] sm:$0xff]
    %v2958 = vld [vmem:[#allocation8 + $0x178] sm:$0xff]
    %v2959 = vld [vmem:[#allocation8 + $0x180] sm:$0xff]
    %v2960 = vld [vmem:[#allocation8 + $0x188] sm:$0xff]
    %v2961 = vld [vmem:[#allocation8 + $0x190] sm:$0xff]
    %v2962 = vld [vmem:[#allocation8 + $0x198] sm:$0xff]
    %v2963 = vld [vmem:[#allocation8 + $0x1a0] sm:$0xff]
    %v2964 = vld [vmem:[#allocation8 + $0x1a8] sm:$0xff]
    %v2965 = vld [vmem:[#allocation8 + $0x1b0] sm:$0xff]
    %v2966 = vld [vmem:[#allocation8 + $0x1b8] sm:$0xff]
    %v2967 = vld [vmem:[#allocation8 + $0x1c0] sm:$0xff]
    %v2968 = vld [vmem:[#allocation8 + $0x1c8] sm:$0xff]
    %v2969 = vld [vmem:[#allocation8 + $0x1d0] sm:$0xff]
    %v2970 = vld [vmem:[#allocation8 + $0x1d8] sm:$0xff]
    %v2971 = vld [vmem:[#allocation8 + $0x1e0] sm:$0xff]
    %v2972 = vld [vmem:[#allocation8 + $0x1e8] sm:$0xff]
    %v2973 = vld [vmem:[#allocation8 + $0x1f0] sm:$0xff]
    %v2974 = vld [vmem:[#allocation8 + $0x1f8] sm:$0xff]
    %v2975 = vld [vmem:[#allocation8 + $0x200] sm:$0xff]
    %v2976 = vld [vmem:[#allocation8 + $0x208] sm:$0xff]
    %v2977 = vld [vmem:[#allocation8 + $0x210] sm:$0xff]
    %v2978 = vld [vmem:[#allocation8 + $0x218] sm:$0xff]
    %v2979 = vld [vmem:[#allocation8 + $0x220] sm:$0xff]
    %v2980 = vld [vmem:[#allocation8 + $0x228] sm:$0xff]
    %v2981 = vld [vmem:[#allocation8 + $0x230] sm:$0xff]
    %v2982 = vld [vmem:[#allocation8 + $0x238] sm:$0xff]
    %v2983 = vld [vmem:[#allocation8 + $0x240] sm:$0xff]
    %v2984 = vld [vmem:[#allocation8 + $0x248] sm:$0xff]
    %v2985 = vld [vmem:[#allocation8 + $0x250] sm:$0xff]
    %v2986 = vld [vmem:[#allocation8 + $0x258] sm:$0xff]
    %v2987 = vld [vmem:[#allocation8 + $0x260] sm:$0xff]
    %v2988 = vld [vmem:[#allocation8 + $0x268] sm:$0xff]
    %v2989 = vld [vmem:[#allocation8 + $0x270] sm:$0xff]
    %v2990 = vld [vmem:[#allocation8 + $0x278] sm:$0xff]
    %v2991 = vld [vmem:[#allocation8 + $0x280] sm:$0xff]
    %v2992 = vld [vmem:[#allocation8 + $0x288] sm:$0xff]
    %v2993 = vld [vmem:[#allocation8 + $0x290] sm:$0xff]
    %v2994 = vld [vmem:[#allocation8 + $0x298] sm:$0xff]
    %v2995 = vld [vmem:[#allocation8 + $0x2a0] sm:$0xff]
    %v2996 = vld [vmem:[#allocation8 + $0x2a8] sm:$0xff]
    %v2997 = vld [vmem:[#allocation8 + $0x2b0] sm:$0xff]
    %v2998 = vld [vmem:[#allocation8 + $0x2b8] sm:$0xff]
    %v2999 = vld [vmem:[#allocation8 + $0x2c0] sm:$0xff]
    %v3000 = vld [vmem:[#allocation8 + $0x2c8] sm:$0xff]
    %v3001 = vld [vmem:[#allocation8 + $0x2d0] sm:$0xff]
    %v3002 = vld [vmem:[#allocation8 + $0x2d8] sm:$0xff]
    %v3003 = vld [vmem:[#allocation8 + $0x2e0] sm:$0xff]
    %v3004 = vld [vmem:[#allocation8 + $0x2e8] sm:$0xff]
    %v3005 = vld [vmem:[#allocation8 + $0x2f0] sm:$0xff]
    %v3006 = vld [vmem:[#allocation8 + $0x2f8] sm:$0xff]
    %v3007 = vld [vmem:[#allocation8 + $0x300] sm:$0xff]
    %v3008 = vld [vmem:[#allocation8 + $0x308] sm:$0xff]
    %v3009 = vld [vmem:[#allocation8 + $0x310] sm:$0xff]
    %v3010 = vld [vmem:[#allocation8 + $0x318] sm:$0xff]
    %v3011 = vld [vmem:[#allocation8 + $0x320] sm:$0xff]
    %v3012 = vld [vmem:[#allocation8 + $0x328] sm:$0xff]
    %v3013 = vld [vmem:[#allocation8 + $0x330] sm:$0xff]
    %v3014 = vld [vmem:[#allocation8 + $0x338] sm:$0xff]
    %v3015 = vld [vmem:[#allocation8 + $0x340] sm:$0xff]
    %v3016 = vld [vmem:[#allocation8 + $0x348] sm:$0xff]
    %v3017 = vld [vmem:[#allocation8 + $0x350] sm:$0xff]
    %v3018 = vld [vmem:[#allocation8 + $0x358] sm:$0xff]
    %v3019 = vld [vmem:[#allocation8 + $0x360] sm:$0xff]
    %v3020 = vld [vmem:[#allocation8 + $0x368] sm:$0xff]
    %v3021 = vld [vmem:[#allocation8 + $0x370] sm:$0xff]
    %v3022 = vld [vmem:[#allocation8 + $0x378] sm:$0xff]
    %v3023 = vld [vmem:[#allocation8 + $0x380] sm:$0xff]
    %v3024 = vld [vmem:[#allocation8 + $0x388] sm:$0xff]
    %v3025 = vld [vmem:[#allocation8 + $0x390] sm:$0xff]
    %v3026 = vld [vmem:[#allocation8 + $0x398] sm:$0xff]
    %v3027 = vld [vmem:[#allocation8 + $0x3a0] sm:$0xff]
    %v3028 = vld [vmem:[#allocation8 + $0x3a8] sm:$0xff]
    %v3029 = vld [vmem:[#allocation8 + $0x3b0] sm:$0xff]
    %v3030 = vld [vmem:[#allocation8 + $0x3b8] sm:$0xff]
    %v3031 = vld [vmem:[#allocation8 + $0x3c0] sm:$0xff]
    %v3032 = vld [vmem:[#allocation8 + $0x3c8] sm:$0xff]
    %v3033 = vld [vmem:[#allocation8 + $0x3d0] sm:$0xff]
    %v3034 = vld [vmem:[#allocation8 + $0x3d8] sm:$0xff]
    %v3035 = vld [vmem:[#allocation8 + $0x3e0] sm:$0xff]
    %v3036 = vld [vmem:[#allocation8 + $0x3e8] sm:$0xff]
    %v3037 = vld [vmem:[#allocation8 + $0x3f0] sm:$0xff]
    %v3038 = vld [vmem:[#allocation8 + $0x3f8] sm:$0xff]
    %v3039 = vld [vmem:[#allocation8 + $0x400] sm:$0xff]
    %v3040 = vld [vmem:[#allocation8 + $0x408] sm:$0xff]
    %v3041 = vld [vmem:[#allocation8 + $0x410] sm:$0xff]
    %v3042 = vld [vmem:[#allocation8 + $0x418] sm:$0xff]
    %v3043 = vld [vmem:[#allocation8 + $0x420] sm:$0xff]
    %v3044 = vld [vmem:[#allocation8 + $0x428] sm:$0xff]
    %v3045 = vld [vmem:[#allocation8 + $0x430] sm:$0xff]
    %v3046 = vld [vmem:[#allocation8 + $0x438] sm:$0xff]
    %v3047 = vld [vmem:[#allocation8 + $0x440] sm:$0xff]
    %v3048 = vld [vmem:[#allocation8 + $0x448] sm:$0xff]
    %v3049 = vld [vmem:[#allocation8 + $0x450] sm:$0xff]
    %v3050 = vld [vmem:[#allocation8 + $0x458] sm:$0xff]
    %v3051 = vld [vmem:[#allocation8 + $0x460] sm:$0xff]
    %v3052 = vld [vmem:[#allocation8 + $0x468] sm:$0xff]
    %v3053 = vld [vmem:[#allocation8 + $0x470] sm:$0xff]
    %v3054 = vld [vmem:[#allocation8 + $0x478] sm:$0xff]
    %v3055 = vld [vmem:[#allocation8 + $0x480] sm:$0xff]
    %v3056 = vld [vmem:[#allocation8 + $0x488] sm:$0xff]
    %v3057 = vld [vmem:[#allocation8 + $0x490] sm:$0xff]
    %v3058 = vld [vmem:[#allocation8 + $0x498] sm:$0xff]
    %v3059 = vld [vmem:[#allocation8 + $0x4a0] sm:$0xff]
    %v3060 = vld [vmem:[#allocation8 + $0x4a8] sm:$0xff]
    %v3061 = vld [vmem:[#allocation8 + $0x4b0] sm:$0xff]
    %v3062 = vld [vmem:[#allocation8 + $0x4b8] sm:$0xff]
    %v3063 = vld [vmem:[#allocation8 + $0x4c0] sm:$0xff]
    %v3064 = vld [vmem:[#allocation8 + $0x4c8] sm:$0xff]
    %v3065 = vld [vmem:[#allocation8 + $0x4d0] sm:$0xff]
    %v3066 = vld [vmem:[#allocation8 + $0x4d8] sm:$0xff]
    %v3067 = vld [vmem:[#allocation8 + $0x4e0] sm:$0xff]
    %v3068 = vld [vmem:[#allocation8 + $0x4e8] sm:$0xff]
    %v3069 = vld [vmem:[#allocation8 + $0x4f0] sm:$0xff]
    %v3070 = vld [vmem:[#allocation8 + $0x4f8] sm:$0xff]
    %v3071 = vld [vmem:[#allocation8 + $0x500] sm:$0xff]
    %v3072 = vld [vmem:[#allocation8 + $0x508] sm:$0xff]
    %v3073 = vld [vmem:[#allocation8 + $0x510] sm:$0xff]
    %v3074 = vld [vmem:[#allocation8 + $0x518] sm:$0xff]
    %v3075 = vld [vmem:[#allocation8 + $0x520] sm:$0xff]
    %v3076 = vld [vmem:[#allocation8 + $0x528] sm:$0xff]
    %v3077 = vld [vmem:[#allocation8 + $0x530] sm:$0xff]
    %v3078 = vld [vmem:[#allocation8 + $0x538] sm:$0xff]
    %v3079 = vld [vmem:[#allocation8 + $0x540] sm:$0xff]
    %v3080 = vld [vmem:[#allocation8 + $0x548] sm:$0xff]
    %v3081 = vld [vmem:[#allocation8 + $0x550] sm:$0xff]
    %v3082 = vld [vmem:[#allocation8 + $0x558] sm:$0xff]
    %v3083 = vld [vmem:[#allocation8 + $0x560] sm:$0xff]
    %v3084 = vld [vmem:[#allocation8 + $0x568] sm:$0xff]
    %v3085 = vld [vmem:[#allocation8 + $0x570] sm:$0xff]
    %v3086 = vld [vmem:[#allocation8 + $0x578] sm:$0xff]
    %v3087 = vld [vmem:[#allocation8 + $0x580] sm:$0xff]
    %v3088 = vld [vmem:[#allocation8 + $0x588] sm:$0xff]
    %v3089 = vld [vmem:[#allocation8 + $0x590] sm:$0xff]
    %v3090 = vld [vmem:[#allocation8 + $0x598] sm:$0xff]
    %v3091 = vld [vmem:[#allocation8 + $0x5a0] sm:$0xff]
    %v3092 = vld [vmem:[#allocation8 + $0x5a8] sm:$0xff]
    %v3093 = vld [vmem:[#allocation8 + $0x5b0] sm:$0xff]
    %v3094 = vld [vmem:[#allocation8 + $0x5b8] sm:$0xff]
    %v3095 = vld [vmem:[#allocation8 + $0x5c0] sm:$0xff]
    %v3096 = vld [vmem:[#allocation8 + $0x5c8] sm:$0xff]
    %v3097 = vld [vmem:[#allocation8 + $0x5d0] sm:$0xff]
    %v3098 = vld [vmem:[#allocation8 + $0x5d8] sm:$0xff]
    %v3099 = vld [vmem:[#allocation8 + $0x5e0] sm:$0xff]
    %v3100 = vld [vmem:[#allocation8 + $0x5e8] sm:$0xff]
    %v3101 = vld [vmem:[#allocation8 + $0x5f0] sm:$0xff]
    %v3102 = vld [vmem:[#allocation8 + $0x5f8] sm:$0xff]
    %v3103 = vld [vmem:[#allocation8 + $0x600] sm:$0xff]
    %v3104 = vld [vmem:[#allocation8 + $0x608] sm:$0xff]
    %v3105 = vld [vmem:[#allocation8 + $0x610] sm:$0xff]
    %v3106 = vld [vmem:[#allocation8 + $0x618] sm:$0xff]
    %v3107 = vld [vmem:[#allocation8 + $0x620] sm:$0xff]
    %v3108 = vld [vmem:[#allocation8 + $0x628] sm:$0xff]
    %v3109 = vld [vmem:[#allocation8 + $0x630] sm:$0xff]
    %v3110 = vld [vmem:[#allocation8 + $0x638] sm:$0xff]
    %v3111 = vld [vmem:[#allocation8 + $0x640] sm:$0xff]
    %v3112 = vld [vmem:[#allocation8 + $0x648] sm:$0xff]
    %v3113 = vld [vmem:[#allocation8 + $0x650] sm:$0xff]
    %v3114 = vld [vmem:[#allocation8 + $0x658] sm:$0xff]
    %v3115 = vld [vmem:[#allocation8 + $0x660] sm:$0xff]
    %v3116 = vld [vmem:[#allocation8 + $0x668] sm:$0xff]
    %v3117 = vld [vmem:[#allocation8 + $0x670] sm:$0xff]
    %v3118 = vld [vmem:[#allocation8 + $0x678] sm:$0xff]
    %v3119 = vld [vmem:[#allocation8 + $0x680] sm:$0xff]
    %v3120 = vld [vmem:[#allocation8 + $0x688] sm:$0xff]
    %v3121 = vld [vmem:[#allocation8 + $0x690] sm:$0xff]
    %v3122 = vld [vmem:[#allocation8 + $0x698] sm:$0xff]
    %v3123 = vld [vmem:[#allocation8 + $0x6a0] sm:$0xff]
    %v3124 = vld [vmem:[#allocation8 + $0x6a8] sm:$0xff]
    %v3125 = vld [vmem:[#allocation8 + $0x6b0] sm:$0xff]
    %v3126 = vld [vmem:[#allocation8 + $0x6b8] sm:$0xff]
    %v3127 = vld [vmem:[#allocation8 + $0x6c0] sm:$0xff]
    %v3128 = vld [vmem:[#allocation8 + $0x6c8] sm:$0xff]
    %v3129 = vld [vmem:[#allocation8 + $0x6d0] sm:$0xff]
    %v3130 = vld [vmem:[#allocation8 + $0x6d8] sm:$0xff]
    %v3131 = vld [vmem:[#allocation8 + $0x6e0] sm:$0xff]
    %v3132 = vld [vmem:[#allocation8 + $0x6e8] sm:$0xff]
    %v3133 = vld [vmem:[#allocation8 + $0x6f0] sm:$0xff]
    %v3134 = vld [vmem:[#allocation8 + $0x6f8] sm:$0xff]
    %v3135 = vld [vmem:[#allocation8 + $0x700] sm:$0xff]
    %v3136 = vld [vmem:[#allocation8 + $0x708] sm:$0xff]
    %v3137 = vld [vmem:[#allocation8 + $0x710] sm:$0xff]
    %v3138 = vld [vmem:[#allocation8 + $0x718] sm:$0xff]
    %v3139 = vld [vmem:[#allocation8 + $0x720] sm:$0xff]
    %v3140 = vld [vmem:[#allocation8 + $0x728] sm:$0xff]
    %v3141 = vld [vmem:[#allocation8 + $0x730] sm:$0xff]
    %v3142 = vld [vmem:[#allocation8 + $0x738] sm:$0xff]
    %v3143 = vld [vmem:[#allocation8 + $0x740] sm:$0xff]
    %v3144 = vld [vmem:[#allocation8 + $0x748] sm:$0xff]
    %v3145 = vld [vmem:[#allocation8 + $0x750] sm:$0xff]
    %v3146 = vld [vmem:[#allocation8 + $0x758] sm:$0xff]
    %v3147 = vld [vmem:[#allocation8 + $0x760] sm:$0xff]
    %v3148 = vld [vmem:[#allocation8 + $0x768] sm:$0xff]
    %v3149 = vld [vmem:[#allocation8 + $0x770] sm:$0xff]
    %v3150 = vld [vmem:[#allocation8 + $0x778] sm:$0xff]
    %v3151 = vld [vmem:[#allocation8 + $0x780] sm:$0xff]
    %v3152 = vld [vmem:[#allocation8 + $0x788] sm:$0xff]
    %v3153 = vld [vmem:[#allocation8 + $0x790] sm:$0xff]
    %v3154 = vld [vmem:[#allocation8 + $0x798] sm:$0xff]
    %v3155 = vld [vmem:[#allocation8 + $0x7a0] sm:$0xff]
    %v3156 = vld [vmem:[#allocation8 + $0x7a8] sm:$0xff]
    %v3157 = vld [vmem:[#allocation8 + $0x7b0] sm:$0xff]
    %v3158 = vld [vmem:[#allocation8 + $0x7b8] sm:$0xff]
    %v3159 = vld [vmem:[#allocation8 + $0x7c0] sm:$0xff]
    %v3160 = vld [vmem:[#allocation8 + $0x7c8] sm:$0xff]
    %v3161 = vld [vmem:[#allocation8 + $0x7d0] sm:$0xff]
    %v3162 = vld [vmem:[#allocation8 + $0x7d8] sm:$0xff]
    %v3163 = vld [vmem:[#allocation8 + $0x7e0] sm:$0xff]
    %v3164 = vld [vmem:[#allocation8 + $0x7e8] sm:$0xff]
    %v3165 = vld [vmem:[#allocation8 + $0x7f0] sm:$0xff]
    %v3166 = vld [vmem:[#allocation8 + $0x7f8] sm:$0xff]
    %v3167 = vld [vmem:[#allocation8 + $0x800] sm:$0xff]
    %v3168 = vld [vmem:[#allocation8 + $0x808] sm:$0xff]
    %v3169 = vld [vmem:[#allocation8 + $0x810] sm:$0xff]
    %v3170 = vld [vmem:[#allocation8 + $0x818] sm:$0xff]
    %v3171 = vld [vmem:[#allocation8 + $0x820] sm:$0xff]
    %v3172 = vld [vmem:[#allocation8 + $0x828] sm:$0xff]
    %v3173 = vld [vmem:[#allocation8 + $0x830] sm:$0xff]
    %v3174 = vld [vmem:[#allocation8 + $0x838] sm:$0xff]
    %v3175 = vld [vmem:[#allocation8 + $0x840] sm:$0xff]
    %v3176 = vld [vmem:[#allocation8 + $0x848] sm:$0xff]
    %v3177 = vld [vmem:[#allocation8 + $0x850] sm:$0xff]
    %v3178 = vld [vmem:[#allocation8 + $0x858] sm:$0xff]
    %v3179 = vld [vmem:[#allocation8 + $0x860] sm:$0xff]
    %v3180 = vld [vmem:[#allocation8 + $0x868] sm:$0xff]
    %v3181 = vld [vmem:[#allocation8 + $0x870] sm:$0xff]
    %v3182 = vld [vmem:[#allocation8 + $0x878] sm:$0xff]
    %v3183 = vld [vmem:[#allocation8 + $0x880] sm:$0xff]
    %v3184 = vld [vmem:[#allocation8 + $0x888] sm:$0xff]
    %v3185 = vld [vmem:[#allocation8 + $0x890] sm:$0xff]
    %v3186 = vld [vmem:[#allocation8 + $0x898] sm:$0xff]
    %v3187 = vld [vmem:[#allocation8 + $0x8a0] sm:$0xff]
    %v3188 = vld [vmem:[#allocation8 + $0x8a8] sm:$0xff]
    %v3189 = vld [vmem:[#allocation8 + $0x8b0] sm:$0xff]
    %v3190 = vld [vmem:[#allocation8 + $0x8b8] sm:$0xff]
    %v3191 = vld [vmem:[#allocation8 + $0x8c0] sm:$0xff]
    %v3192 = vld [vmem:[#allocation8 + $0x8c8] sm:$0xff]
    %v3193 = vld [vmem:[#allocation8 + $0x8d0] sm:$0xff]
    %v3194 = vld [vmem:[#allocation8 + $0x8d8] sm:$0xff]
    %v3195 = vld [vmem:[#allocation8 + $0x8e0] sm:$0xff]
    %v3196 = vld [vmem:[#allocation8 + $0x8e8] sm:$0xff]
    %v3197 = vld [vmem:[#allocation8 + $0x8f0] sm:$0xff]
    %v3198 = vld [vmem:[#allocation8 + $0x8f8] sm:$0xff]
    %v3199 = vld [vmem:[#allocation8 + $0x900] sm:$0xff]
    %v3200 = vld [vmem:[#allocation8 + $0x908] sm:$0xff]
    %v3201 = vld [vmem:[#allocation8 + $0x910] sm:$0xff]
    %v3202 = vld [vmem:[#allocation8 + $0x918] sm:$0xff]
    %v3203 = vld [vmem:[#allocation8 + $0x920] sm:$0xff]
    %v3204 = vld [vmem:[#allocation8 + $0x928] sm:$0xff]
    %v3205 = vld [vmem:[#allocation8 + $0x930] sm:$0xff]
    %v3206 = vld [vmem:[#allocation8 + $0x938] sm:$0xff]
    %v3207 = vld [vmem:[#allocation8 + $0x940] sm:$0xff]
    %v3208 = vld [vmem:[#allocation8 + $0x948] sm:$0xff]
    %v3209 = vld [vmem:[#allocation8 + $0x950] sm:$0xff]
    %v3210 = vld [vmem:[#allocation8 + $0x958] sm:$0xff]
    %v3211 = vld [vmem:[#allocation8 + $0x960] sm:$0xff]
    %v3212 = vld [vmem:[#allocation8 + $0x968] sm:$0xff]
    %v3213 = vld [vmem:[#allocation8 + $0x970] sm:$0xff]
    %v3214 = vld [vmem:[#allocation8 + $0x978] sm:$0xff]
    %v3215 = vld [vmem:[#allocation8 + $0x980] sm:$0xff]
    %v3216 = vld [vmem:[#allocation8 + $0x988] sm:$0xff]
    %v3217 = vld [vmem:[#allocation8 + $0x990] sm:$0xff]
    %v3218 = vld [vmem:[#allocation8 + $0x998] sm:$0xff]
    %v3219 = vld [vmem:[#allocation8 + $0x9a0] sm:$0xff]
    %v3220 = vld [vmem:[#allocation8 + $0x9a8] sm:$0xff]
    %v3221 = vld [vmem:[#allocation8 + $0x9b0] sm:$0xff]
    %v3222 = vld [vmem:[#allocation8 + $0x9b8] sm:$0xff]
    %v3223 = vld [vmem:[#allocation8 + $0x9c0] sm:$0xff]
    %v3224 = vld [vmem:[#allocation8 + $0x9c8] sm:$0xff]
    %v3225 = vld [vmem:[#allocation8 + $0x9d0] sm:$0xff]
    %v3226 = vld [vmem:[#allocation8 + $0x9d8] sm:$0xff]
    %v3227 = vld [vmem:[#allocation8 + $0x9e0] sm:$0xff]
    %v3228 = vld [vmem:[#allocation8 + $0x9e8] sm:$0xff]
    %v3229 = vld [vmem:[#allocation8 + $0x9f0] sm:$0xff]
    %v3230 = vld [vmem:[#allocation8 + $0x9f8] sm:$0xff]
    %v3231 = vld [vmem:[#allocation8 + $0xa00] sm:$0xff]
    %v3232 = vld [vmem:[#allocation8 + $0xa08] sm:$0xff]
    %v3233 = vld [vmem:[#allocation8 + $0xa10] sm:$0xff]
    %v3234 = vld [vmem:[#allocation8 + $0xa18] sm:$0xff]
    %v3235 = vld [vmem:[#allocation8 + $0xa20] sm:$0xff]
    %v3236 = vld [vmem:[#allocation8 + $0xa28] sm:$0xff]
    %v3237 = vld [vmem:[#allocation8 + $0xa30] sm:$0xff]
    %v3238 = vld [vmem:[#allocation8 + $0xa38] sm:$0xff]
    %v3239 = vld [vmem:[#allocation8 + $0xa40] sm:$0xff]
    %v3240 = vld [vmem:[#allocation8 + $0xa48] sm:$0xff]
    %v3241 = vld [vmem:[#allocation8 + $0xa50] sm:$0xff]
    %v3242 = vld [vmem:[#allocation8 + $0xa58] sm:$0xff]
    %v3243 = vld [vmem:[#allocation8 + $0xa60] sm:$0xff]
    %v3244 = vld [vmem:[#allocation8 + $0xa68] sm:$0xff]
    %v3245 = vld [vmem:[#allocation8 + $0xa70] sm:$0xff]
    %v3246 = vld [vmem:[#allocation8 + $0xa78] sm:$0xff]
    %v3247 = vld [vmem:[#allocation8 + $0xa80] sm:$0xff]
    %v3248 = vld [vmem:[#allocation8 + $0xa88] sm:$0xff]
    %v3249 = vld [vmem:[#allocation8 + $0xa90] sm:$0xff]
    %v3250 = vld [vmem:[#allocation8 + $0xa98] sm:$0xff]
    %v3251 = vld [vmem:[#allocation8 + $0xaa0] sm:$0xff]
    %v3252 = vld [vmem:[#allocation8 + $0xaa8] sm:$0xff]
    %v3253 = vld [vmem:[#allocation8 + $0xab0] sm:$0xff]
    %v3254 = vld [vmem:[#allocation8 + $0xab8] sm:$0xff]
    %v3255 = vld [vmem:[#allocation8 + $0xac0] sm:$0xff]
    %v3256 = vld [vmem:[#allocation8 + $0xac8] sm:$0xff]
    %v3257 = vld [vmem:[#allocation8 + $0xad0] sm:$0xff]
    %v3258 = vld [vmem:[#allocation8 + $0xad8] sm:$0xff]
    %v3259 = vld [vmem:[#allocation8 + $0xae0] sm:$0xff]
    %v3260 = vld [vmem:[#allocation8 + $0xae8] sm:$0xff]
    %v3261 = vld [vmem:[#allocation8 + $0xaf0] sm:$0xff]
    %v3262 = vld [vmem:[#allocation8 + $0xaf8] sm:$0xff]
    %v3263 = vld [vmem:[#allocation8 + $0xb00] sm:$0xff]
    %v3264 = vld [vmem:[#allocation8 + $0xb08] sm:$0xff]
    %v3265 = vld [vmem:[#allocation8 + $0xb10] sm:$0xff]
    %v3266 = vld [vmem:[#allocation8 + $0xb18] sm:$0xff]
    %v3267 = vld [vmem:[#allocation8 + $0xb20] sm:$0xff]
    %v3268 = vld [vmem:[#allocation8 + $0xb28] sm:$0xff]
    %v3269 = vld [vmem:[#allocation8 + $0xb30] sm:$0xff]
    %v3270 = vld [vmem:[#allocation8 + $0xb38] sm:$0xff]
    %v3271 = vld [vmem:[#allocation8 + $0xb40] sm:$0xff]
    %v3272 = vld [vmem:[#allocation8 + $0xb48] sm:$0xff]
    %v3273 = vld [vmem:[#allocation8 + $0xb50] sm:$0xff]
    %v3274 = vld [vmem:[#allocation8 + $0xb58] sm:$0xff]
    %v3275 = vld [vmem:[#allocation8 + $0xb60] sm:$0xff]
    %v3276 = vld [vmem:[#allocation8 + $0xb68] sm:$0xff]
    %v3277 = vld [vmem:[#allocation8 + $0xb70] sm:$0xff]
    %v3278 = vld [vmem:[#allocation8 + $0xb78] sm:$0xff]
    %v3279 = vld [vmem:[#allocation8 + $0xb80] sm:$0xff]
    %v3280 = vld [vmem:[#allocation8 + $0xb88] sm:$0xff]
    %v3281 = vld [vmem:[#allocation8 + $0xb90] sm:$0xff]
    %v3282 = vld [vmem:[#allocation8 + $0xb98] sm:$0xff]
    %v3283 = vld [vmem:[#allocation8 + $0xba0] sm:$0xff]
    %v3284 = vld [vmem:[#allocation8 + $0xba8] sm:$0xff]
    %v3285 = vld [vmem:[#allocation8 + $0xbb0] sm:$0xff]
    %v3286 = vld [vmem:[#allocation8 + $0xbb8] sm:$0xff]
    %v3287 = vld [vmem:[#allocation8 + $0xbc0] sm:$0xff]
    %v3288 = vld [vmem:[#allocation8 + $0xbc8] sm:$0xff]
    %v3289 = vld [vmem:[#allocation8 + $0xbd0] sm:$0xff]
    %v3290 = vld [vmem:[#allocation8 + $0xbd8] sm:$0xff]
    %v3291 = vld [vmem:[#allocation8 + $0xbe0] sm:$0xff]
    %v3292 = vld [vmem:[#allocation8 + $0xbe8] sm:$0xff]
    %v3293 = vld [vmem:[#allocation8 + $0xbf0] sm:$0xff]
    %v3294 = vld [vmem:[#allocation8 + $0xbf8] sm:$0xff]
    %v3295 = vld [vmem:[#allocation8 + $0xc00] sm:$0xff]
    %v3296 = vld [vmem:[#allocation8 + $0xc08] sm:$0xff]
    %v3297 = vld [vmem:[#allocation8 + $0xc10] sm:$0xff]
    %v3298 = vld [vmem:[#allocation8 + $0xc18] sm:$0xff]
    %v3299 = vld [vmem:[#allocation8 + $0xc20] sm:$0xff]
    %v3300 = vld [vmem:[#allocation8 + $0xc28] sm:$0xff]
    %v3301 = vld [vmem:[#allocation8 + $0xc30] sm:$0xff]
    %v3302 = vld [vmem:[#allocation8 + $0xc38] sm:$0xff]
    %v3303 = vld [vmem:[#allocation8 + $0xc40] sm:$0xff]
    %v3304 = vld [vmem:[#allocation8 + $0xc48] sm:$0xff]
    %v3305 = vld [vmem:[#allocation8 + $0xc50] sm:$0xff]
    %v3306 = vld [vmem:[#allocation8 + $0xc58] sm:$0xff]
    %v3307 = vld [vmem:[#allocation8 + $0xc60] sm:$0xff]
    %v3308 = vld [vmem:[#allocation8 + $0xc68] sm:$0xff]
    %v3309 = vld [vmem:[#allocation8 + $0xc70] sm:$0xff]
    %v3310 = vld [vmem:[#allocation8 + $0xc78] sm:$0xff]
    %v3311 = vld [vmem:[#allocation8 + $0xc80] sm:$0xff]
    %v3312 = vld [vmem:[#allocation8 + $0xc88] sm:$0xff]
    %v3313 = vld [vmem:[#allocation8 + $0xc90] sm:$0xff]
    %v3314 = vld [vmem:[#allocation8 + $0xc98] sm:$0xff]
    %v3315 = vld [vmem:[#allocation8 + $0xca0] sm:$0xff]
    %v3316 = vld [vmem:[#allocation8 + $0xca8] sm:$0xff]
    %v3317 = vld [vmem:[#allocation8 + $0xcb0] sm:$0xff]
    %v3318 = vld [vmem:[#allocation8 + $0xcb8] sm:$0xff]
    %v3319 = vld [vmem:[#allocation8 + $0xcc0] sm:$0xff]
    %v3320 = vld [vmem:[#allocation8 + $0xcc8] sm:$0xff]
    %v3321 = vld [vmem:[#allocation8 + $0xcd0] sm:$0xff]
    %v3322 = vld [vmem:[#allocation8 + $0xcd8] sm:$0xff]
    %v3323 = vld [vmem:[#allocation8 + $0xce0] sm:$0xff]
    %v3324 = vld [vmem:[#allocation8 + $0xce8] sm:$0xff]
    %v3325 = vld [vmem:[#allocation8 + $0xcf0] sm:$0xff]
    %v3326 = vld [vmem:[#allocation8 + $0xcf8] sm:$0xff]
    %v3327 = vld [vmem:[#allocation8 + $0xd00] sm:$0xff]
    %v3328 = vld [vmem:[#allocation8 + $0xd08] sm:$0xff]
    %v3329 = vld [vmem:[#allocation8 + $0xd10] sm:$0xff]
    %v3330 = vld [vmem:[#allocation8 + $0xd18] sm:$0xff]
    %v3331 = vld [vmem:[#allocation8 + $0xd20] sm:$0xff]
    %v3332 = vld [vmem:[#allocation8 + $0xd28] sm:$0xff]
    %v3333 = vld [vmem:[#allocation8 + $0xd30] sm:$0xff]
    %v3334 = vld [vmem:[#allocation8 + $0xd38] sm:$0xff]
    %v3335 = vld [vmem:[#allocation8 + $0xd40] sm:$0xff]
    %v3336 = vld [vmem:[#allocation8 + $0xd48] sm:$0xff]
    %v3337 = vld [vmem:[#allocation8 + $0xd50] sm:$0xff]
    %v3338 = vld [vmem:[#allocation8 + $0xd58] sm:$0xff]
    %v3339 = vld [vmem:[#allocation8 + $0xd60] sm:$0xff]
    %v3340 = vld [vmem:[#allocation8 + $0xd68] sm:$0xff]
    %v3341 = vld [vmem:[#allocation8 + $0xd70] sm:$0xff]
    %v3342 = vld [vmem:[#allocation8 + $0xd78] sm:$0xff]
    %v3343 = vld [vmem:[#allocation8 + $0xd80] sm:$0xff]
    %v3344 = vld [vmem:[#allocation8 + $0xd88] sm:$0xff]
    %v3345 = vld [vmem:[#allocation8 + $0xd90] sm:$0xff]
    %v3346 = vld [vmem:[#allocation8 + $0xd98] sm:$0xff]
    %v3347 = vld [vmem:[#allocation8 + $0xda0] sm:$0xff]
    %v3348 = vld [vmem:[#allocation8 + $0xda8] sm:$0xff]
    %v3349 = vld [vmem:[#allocation8 + $0xdb0] sm:$0xff]
    %v3350 = vld [vmem:[#allocation8 + $0xdb8] sm:$0xff]
    %v3351 = vld [vmem:[#allocation8 + $0xdc0] sm:$0xff]
    %v3352 = vld [vmem:[#allocation8 + $0xdc8] sm:$0xff]
    %v3353 = vld [vmem:[#allocation8 + $0xdd0] sm:$0xff]
    %v3354 = vld [vmem:[#allocation8 + $0xdd8] sm:$0xff]
    %v3355 = vld [vmem:[#allocation8 + $0xde0] sm:$0xff]
    %v3356 = vld [vmem:[#allocation8 + $0xde8] sm:$0xff]
    %v3357 = vld [vmem:[#allocation8 + $0xdf0] sm:$0xff]
    %v3358 = vld [vmem:[#allocation8 + $0xdf8] sm:$0xff]
    %v3359 = vld [vmem:[#allocation8 + $0xe00] sm:$0xff]
    %v3360 = vld [vmem:[#allocation8 + $0xe08] sm:$0xff]
    %v3361 = vld [vmem:[#allocation8 + $0xe10] sm:$0xff]
    %v3362 = vld [vmem:[#allocation8 + $0xe18] sm:$0xff]
    %v3363 = vld [vmem:[#allocation8 + $0xe20] sm:$0xff]
    %v3364 = vld [vmem:[#allocation8 + $0xe28] sm:$0xff]
    %v3365 = vld [vmem:[#allocation8 + $0xe30] sm:$0xff]
    %v3366 = vld [vmem:[#allocation8 + $0xe38] sm:$0xff]
    %v3367 = vld [vmem:[#allocation8 + $0xe40] sm:$0xff]
    %v3368 = vld [vmem:[#allocation8 + $0xe48] sm:$0xff]
    %v3369 = vld [vmem:[#allocation8 + $0xe50] sm:$0xff]
    %v3370 = vld [vmem:[#allocation8 + $0xe58] sm:$0xff]
    %v3371 = vld [vmem:[#allocation8 + $0xe60] sm:$0xff]
    %v3372 = vld [vmem:[#allocation8 + $0xe68] sm:$0xff]
    %v3373 = vld [vmem:[#allocation8 + $0xe70] sm:$0xff]
    %v3374 = vld [vmem:[#allocation8 + $0xe78] sm:$0xff]
    %v3375 = vld [vmem:[#allocation8 + $0xe80] sm:$0xff]
    %v3376 = vld [vmem:[#allocation8 + $0xe88] sm:$0xff]
    %v3377 = vld [vmem:[#allocation8 + $0xe90] sm:$0xff]
    %v3378 = vld [vmem:[#allocation8 + $0xe98] sm:$0xff]
    %v3379 = vld [vmem:[#allocation8 + $0xea0] sm:$0xff]
    %v3380 = vld [vmem:[#allocation8 + $0xea8] sm:$0xff]
    %v3381 = vld [vmem:[#allocation8 + $0xeb0] sm:$0xff]
    %v3382 = vld [vmem:[#allocation8 + $0xeb8] sm:$0xff]
    %v3383 = vld [vmem:[#allocation8 + $0xec0] sm:$0xff]
    %v3384 = vld [vmem:[#allocation8 + $0xec8] sm:$0xff]
    %v3385 = vld [vmem:[#allocation8 + $0xed0] sm:$0xff]
    %v3386 = vld [vmem:[#allocation8 + $0xed8] sm:$0xff]
    %v3387 = vld [vmem:[#allocation8 + $0xee0] sm:$0xff]
    %v3388 = vld [vmem:[#allocation8 + $0xee8] sm:$0xff]
    %v3389 = vld [vmem:[#allocation8 + $0xef0] sm:$0xff]
    %v3390 = vld [vmem:[#allocation8 + $0xef8] sm:$0xff]
    %v3391 = vld [vmem:[#allocation8 + $0xf00] sm:$0xff]
    %v3392 = vld [vmem:[#allocation8 + $0xf08] sm:$0xff]
    %v3393 = vld [vmem:[#allocation8 + $0xf10] sm:$0xff]
    %v3394 = vld [vmem:[#allocation8 + $0xf18] sm:$0xff]
    %v3395 = vld [vmem:[#allocation8 + $0xf20] sm:$0xff]
    %v3396 = vld [vmem:[#allocation8 + $0xf28] sm:$0xff]
    %v3397 = vld [vmem:[#allocation8 + $0xf30] sm:$0xff]
    %v3398 = vld [vmem:[#allocation8 + $0xf38] sm:$0xff]
    %v3399 = vld [vmem:[#allocation8 + $0xf40] sm:$0xff]
    %v3400 = vld [vmem:[#allocation8 + $0xf48] sm:$0xff]
    %v3401 = vld [vmem:[#allocation8 + $0xf50] sm:$0xff]
    %v3402 = vld [vmem:[#allocation8 + $0xf58] sm:$0xff]
    %v3403 = vld [vmem:[#allocation8 + $0xf60] sm:$0xff]
    %v3404 = vld [vmem:[#allocation8 + $0xf68] sm:$0xff]
    %v3405 = vld [vmem:[#allocation8 + $0xf70] sm:$0xff]
    %v3406 = vld [vmem:[#allocation8 + $0xf78] sm:$0xff]
    %v3407 = vld [vmem:[#allocation8 + $0xf80] sm:$0xff]
    %v3408 = vld [vmem:[#allocation8 + $0xf88] sm:$0xff]
    %v3409 = vld [vmem:[#allocation8 + $0xf90] sm:$0xff]
    %v3410 = vld [vmem:[#allocation8 + $0xf98] sm:$0xff]
    %v3411 = vld [vmem:[#allocation8 + $0xfa0] sm:$0xff]
    %v3412 = vld [vmem:[#allocation8 + $0xfa8] sm:$0xff]
    %v3413 = vld [vmem:[#allocation8 + $0xfb0] sm:$0xff]
    %v3414 = vld [vmem:[#allocation8 + $0xfb8] sm:$0xff]
    %v3415 = vld [vmem:[#allocation8 + $0xfc0] sm:$0xff]
    %v3416 = vld [vmem:[#allocation8 + $0xfc8] sm:$0xff]
    %v3417 = vld [vmem:[#allocation8 + $0xfd0] sm:$0xff]
    %v3418 = vld [vmem:[#allocation8 + $0xfd8] sm:$0xff]
    %v3419 = vld [vmem:[#allocation8 + $0xfe0] sm:$0xff]
    %v3420 = vld [vmem:[#allocation8 + $0xfe8] sm:$0xff]
    %v3421 = vld [vmem:[#allocation8 + $0xff0] sm:$0xff]
    %v3422 = vld [vmem:[#allocation8 + $0xff8] sm:$0xff]
    %v3423 = vld [vmem:[#allocation8 + $0x1000] sm:$0xff]
    %v3424 = vld [vmem:[#allocation8 + $0x1008] sm:$0xff]
    %v3425 = vld [vmem:[#allocation8 + $0x1010] sm:$0xff]
    %v3426 = vld [vmem:[#allocation8 + $0x1018] sm:$0xff]
    %v3427 = vld [vmem:[#allocation8 + $0x1020] sm:$0xff]
    %v3428 = vld [vmem:[#allocation8 + $0x1028] sm:$0xff]
    %v3429 = vld [vmem:[#allocation8 + $0x1030] sm:$0xff]
    %v3430 = vld [vmem:[#allocation8 + $0x1038] sm:$0xff]
    %v3431 = vld [vmem:[#allocation8 + $0x1040] sm:$0xff]
    %v3432 = vld [vmem:[#allocation8 + $0x1048] sm:$0xff]
    %v3433 = vld [vmem:[#allocation8 + $0x1050] sm:$0xff]
    %v3434 = vld [vmem:[#allocation8 + $0x1058] sm:$0xff]
    %v3435 = vld [vmem:[#allocation8 + $0x1060] sm:$0xff]
    %v3436 = vld [vmem:[#allocation8 + $0x1068] sm:$0xff]
    %v3437 = vld [vmem:[#allocation8 + $0x1070] sm:$0xff]
    %v3438 = vld [vmem:[#allocation8 + $0x1078] sm:$0xff]
    %v3439 = vld [vmem:[#allocation8 + $0x1080] sm:$0xff]
    %v3440 = vld [vmem:[#allocation8 + $0x1088] sm:$0xff]
    %v3441 = vld [vmem:[#allocation8 + $0x1090] sm:$0xff]
    %v3442 = vld [vmem:[#allocation8 + $0x1098] sm:$0xff]
    %v3443 = vld [vmem:[#allocation8 + $0x10a0] sm:$0xff]
    %v3444 = vld [vmem:[#allocation8 + $0x10a8] sm:$0xff]
    %v3445 = vld [vmem:[#allocation8 + $0x10b0] sm:$0xff]
    %v3446 = vld [vmem:[#allocation8 + $0x10b8] sm:$0xff]
    %v3447 = vld [vmem:[#allocation8 + $0x10c0] sm:$0xff]
    %v3448 = vld [vmem:[#allocation8 + $0x10c8] sm:$0xff]
    %v3449 = vld [vmem:[#allocation8 + $0x10d0] sm:$0xff]
    %v3450 = vld [vmem:[#allocation8 + $0x10d8] sm:$0xff]
    %v3451 = vld [vmem:[#allocation8 + $0x10e0] sm:$0xff]
    %v3452 = vld [vmem:[#allocation8 + $0x10e8] sm:$0xff]
    %v3453 = vld [vmem:[#allocation8 + $0x10f0] sm:$0xff]
    %v3454 = vld [vmem:[#allocation8 + $0x10f8] sm:$0xff]
    %v3455 = vld [vmem:[#allocation8 + $0x1100] sm:$0xff]
    %v3456 = vld [vmem:[#allocation8 + $0x1108] sm:$0xff]
    %v3457 = vld [vmem:[#allocation8 + $0x1110] sm:$0xff]
    %v3458 = vld [vmem:[#allocation8 + $0x1118] sm:$0xff]
    %v3459 = vld [vmem:[#allocation8 + $0x1120] sm:$0xff]
    %v3460 = vld [vmem:[#allocation8 + $0x1128] sm:$0xff]
    %v3461 = vld [vmem:[#allocation8 + $0x1130] sm:$0xff]
    %v3462 = vld [vmem:[#allocation8 + $0x1138] sm:$0xff]
    %v3463 = vld [vmem:[#allocation8 + $0x1140] sm:$0xff]
    %v3464 = vld [vmem:[#allocation8 + $0x1148] sm:$0xff]
    %v3465 = vld [vmem:[#allocation8 + $0x1150] sm:$0xff]
    %v3466 = vld [vmem:[#allocation8 + $0x1158] sm:$0xff]
    %v3467 = vld [vmem:[#allocation8 + $0x1160] sm:$0xff]
    %v3468 = vld [vmem:[#allocation8 + $0x1168] sm:$0xff]
    %v3469 = vld [vmem:[#allocation8 + $0x1170] sm:$0xff]
    %v3470 = vld [vmem:[#allocation8 + $0x1178] sm:$0xff]
    %v3471 = vld [vmem:[#allocation8 + $0x1180] sm:$0xff]
    %v3472 = vld [vmem:[#allocation8 + $0x1188] sm:$0xff]
    %v3473 = vld [vmem:[#allocation8 + $0x1190] sm:$0xff]
    %v3474 = vld [vmem:[#allocation8 + $0x1198] sm:$0xff]
    %v3475 = vld [vmem:[#allocation8 + $0x11a0] sm:$0xff]
    %v3476 = vld [vmem:[#allocation8 + $0x11a8] sm:$0xff]
    %v3477 = vld [vmem:[#allocation8 + $0x11b0] sm:$0xff]
    %v3478 = vld [vmem:[#allocation8 + $0x11b8] sm:$0xff]
    %v3479 = vld [vmem:[#allocation8 + $0x11c0] sm:$0xff]
    %v3480 = vld [vmem:[#allocation8 + $0x11c8] sm:$0xff]
    %v3481 = vld [vmem:[#allocation8 + $0x11d0] sm:$0xff]
    %v3482 = vld [vmem:[#allocation8 + $0x11d8] sm:$0xff]
    %v3483 = vld [vmem:[#allocation8 + $0x11e0] sm:$0xff]
    %v3484 = vld [vmem:[#allocation8 + $0x11e8] sm:$0xff]
    %v3485 = vld [vmem:[#allocation8 + $0x11f0] sm:$0xff]
    %v3486 = vld [vmem:[#allocation8 + $0x11f8] sm:$0xff]
    %v3487 = vld [vmem:[#allocation8 + $0x1200] sm:$0xff]
    %v3488 = vld [vmem:[#allocation8 + $0x1208] sm:$0xff]
    %v3489 = vld [vmem:[#allocation8 + $0x1210] sm:$0xff]
    %v3490 = vld [vmem:[#allocation8 + $0x1218] sm:$0xff]
    %v3491 = vld [vmem:[#allocation8 + $0x1220] sm:$0xff]
    %v3492 = vld [vmem:[#allocation8 + $0x1228] sm:$0xff]
    %v3493 = vld [vmem:[#allocation8 + $0x1230] sm:$0xff]
    %v3494 = vld [vmem:[#allocation8 + $0x1238] sm:$0xff]
    %v3495 = vld [vmem:[#allocation8 + $0x1240] sm:$0xff]
    %v3496 = vld [vmem:[#allocation8 + $0x1248] sm:$0xff]
    %v3497 = vld [vmem:[#allocation8 + $0x1250] sm:$0xff]
    %v3498 = vld [vmem:[#allocation8 + $0x1258] sm:$0xff]
    %v3499 = vld [vmem:[#allocation8 + $0x1260] sm:$0xff]
    %v3500 = vld [vmem:[#allocation8 + $0x1268] sm:$0xff]
    %v3501 = vld [vmem:[#allocation8 + $0x1270] sm:$0xff]
    %v3502 = vld [vmem:[#allocation8 + $0x1278] sm:$0xff]
    %v3503 = vld [vmem:[#allocation8 + $0x1280] sm:$0xff]
    %v3504 = vld [vmem:[#allocation8 + $0x1288] sm:$0xff]
    %v3505 = vld [vmem:[#allocation8 + $0x1290] sm:$0xff]
    %v3506 = vld [vmem:[#allocation8 + $0x1298] sm:$0xff]
    %v3507 = vld [vmem:[#allocation8 + $0x12a0] sm:$0xff]
    %v3508 = vld [vmem:[#allocation8 + $0x12a8] sm:$0xff]
    %v3509 = vld [vmem:[#allocation8 + $0x12b0] sm:$0xff]
    %v3510 = vld [vmem:[#allocation8 + $0x12b8] sm:$0xff]
    %v3511 = vld [vmem:[#allocation8 + $0x12c0] sm:$0xff]
    %v3512 = vld [vmem:[#allocation8 + $0x12c8] sm:$0xff]
    %v3513 = vld [vmem:[#allocation8 + $0x12d0] sm:$0xff]
    %v3514 = vld [vmem:[#allocation8 + $0x12d8] sm:$0xff]
    %v3515 = vld [vmem:[#allocation8 + $0x12e0] sm:$0xff]
    %v3516 = vld [vmem:[#allocation8 + $0x12e8] sm:$0xff]
    %v3517 = vld [vmem:[#allocation8 + $0x12f0] sm:$0xff]
    %v3518 = vld [vmem:[#allocation8 + $0x12f8] sm:$0xff]
    %v3519 = vld [vmem:[#allocation8 + $0x1300] sm:$0xff]
    %v3520 = vld [vmem:[#allocation8 + $0x1308] sm:$0xff]
    %v3521 = vld [vmem:[#allocation8 + $0x1310] sm:$0xff]
    %v3522 = vld [vmem:[#allocation8 + $0x1318] sm:$0xff]
    %v3523 = vld [vmem:[#allocation8 + $0x1320] sm:$0xff]
    %v3524 = vld [vmem:[#allocation8 + $0x1328] sm:$0xff]
    %v3525 = vld [vmem:[#allocation8 + $0x1330] sm:$0xff]
    %v3526 = vld [vmem:[#allocation8 + $0x1338] sm:$0xff]
    %v3527 = vld [vmem:[#allocation8 + $0x1340] sm:$0xff]
    %v3528 = vld [vmem:[#allocation8 + $0x1348] sm:$0xff]
    %v3529 = vld [vmem:[#allocation8 + $0x1350] sm:$0xff]
    %v3530 = vld [vmem:[#allocation8 + $0x1358] sm:$0xff]
    %v3531 = vld [vmem:[#allocation8 + $0x1360] sm:$0xff]
    %v3532 = vld [vmem:[#allocation8 + $0x1368] sm:$0xff]
    %v3533 = vld [vmem:[#allocation8 + $0x1370] sm:$0xff]
    %v3534 = vld [vmem:[#allocation8 + $0x1378] sm:$0xff]
    %v3535 = vld [vmem:[#allocation8 + $0x1380] sm:$0xff]
    %v3536 = vld [vmem:[#allocation8 + $0x1388] sm:$0xff]
    %v3537 = vld [vmem:[#allocation8 + $0x1390] sm:$0xff]
    %v3538 = vld [vmem:[#allocation8 + $0x1398] sm:$0xff]
    %v3539 = vld [vmem:[#allocation8 + $0x13a0] sm:$0xff]
    %v3540 = vld [vmem:[#allocation8 + $0x13a8] sm:$0xff]
    %v3541 = vld [vmem:[#allocation8 + $0x13b0] sm:$0xff]
    %v3542 = vld [vmem:[#allocation8 + $0x13b8] sm:$0xff]
    %v3543 = vld [vmem:[#allocation8 + $0x13c0] sm:$0xff]
    %v3544 = vld [vmem:[#allocation8 + $0x13c8] sm:$0xff]
    %v3545 = vld [vmem:[#allocation8 + $0x13d0] sm:$0xff]
    %v3546 = vld [vmem:[#allocation8 + $0x13d8] sm:$0xff]
    %v3547 = vld [vmem:[#allocation8 + $0x13e0] sm:$0xff]
    %v3548 = vld [vmem:[#allocation8 + $0x13e8] sm:$0xff]
    %v3549 = vld [vmem:[#allocation8 + $0x13f0] sm:$0xff]
    %v3550 = vld [vmem:[#allocation8 + $0x13f8] sm:$0xff]
    %v3551 = vld [vmem:[#allocation8 + $0x1400] sm:$0xff]
    %v3552 = vld [vmem:[#allocation8 + $0x1408] sm:$0xff]
    %v3553 = vld [vmem:[#allocation8 + $0x1410] sm:$0xff]
    %v3554 = vld [vmem:[#allocation8 + $0x1418] sm:$0xff]
    %v3555 = vld [vmem:[#allocation8 + $0x1420] sm:$0xff]
    %v3556 = vld [vmem:[#allocation8 + $0x1428] sm:$0xff]
    %v3557 = vld [vmem:[#allocation8 + $0x1430] sm:$0xff]
    %v3558 = vld [vmem:[#allocation8 + $0x1438] sm:$0xff]
    %v3559 = vld [vmem:[#allocation8 + $0x1440] sm:$0xff]
    %v3560 = vld [vmem:[#allocation8 + $0x1448] sm:$0xff]
    %v3561 = vld [vmem:[#allocation8 + $0x1450] sm:$0xff]
    %v3562 = vld [vmem:[#allocation8 + $0x1458] sm:$0xff]
    %v3563 = vld [vmem:[#allocation8 + $0x1460] sm:$0xff]
    %v3564 = vld [vmem:[#allocation8 + $0x1468] sm:$0xff]
    %v3565 = vld [vmem:[#allocation8 + $0x1470] sm:$0xff]
    %v3566 = vld [vmem:[#allocation8 + $0x1478] sm:$0xff]
    %v3567 = vld [vmem:[#allocation8 + $0x1480] sm:$0xff]
    %v3568 = vld [vmem:[#allocation8 + $0x1488] sm:$0xff]
    %v3569 = vld [vmem:[#allocation8 + $0x1490] sm:$0xff]
    %v3570 = vld [vmem:[#allocation8 + $0x1498] sm:$0xff]
    %v3571 = vld [vmem:[#allocation8 + $0x14a0] sm:$0xff]
    %v3572 = vld [vmem:[#allocation8 + $0x14a8] sm:$0xff]
    %v3573 = vld [vmem:[#allocation8 + $0x14b0] sm:$0xff]
    %v3574 = vld [vmem:[#allocation8 + $0x14b8] sm:$0xff]
    %v3575 = vld [vmem:[#allocation8 + $0x14c0] sm:$0xff]
    %v3576 = vld [vmem:[#allocation8 + $0x14c8] sm:$0xff]
    %v3577 = vld [vmem:[#allocation8 + $0x14d0] sm:$0xff]
    %v3578 = vld [vmem:[#allocation8 + $0x14d8] sm:$0xff]
    %v3579 = vld [vmem:[#allocation8 + $0x14e0] sm:$0xff]
    %v3580 = vld [vmem:[#allocation8 + $0x14e8] sm:$0xff]
    %v3581 = vld [vmem:[#allocation8 + $0x14f0] sm:$0xff]
    %v3582 = vld [vmem:[#allocation8 + $0x14f8] sm:$0xff]
    %v3583 = vld [vmem:[#allocation8 + $0x1500] sm:$0xff]
    %v3584 = vld [vmem:[#allocation8 + $0x1508] sm:$0xff]
    %v3585 = vld [vmem:[#allocation8 + $0x1510] sm:$0xff]
    %v3586 = vld [vmem:[#allocation8 + $0x1518] sm:$0xff]
    %v3587 = vld [vmem:[#allocation8 + $0x1520] sm:$0xff]
    %v3588 = vld [vmem:[#allocation8 + $0x1528] sm:$0xff]
    %v3589 = vld [vmem:[#allocation8 + $0x1530] sm:$0xff]
    %v3590 = vld [vmem:[#allocation8 + $0x1538] sm:$0xff]
    %v3591 = vld [vmem:[#allocation8 + $0x1540] sm:$0xff]
    %v3592 = vld [vmem:[#allocation8 + $0x1548] sm:$0xff]
    %v3593 = vld [vmem:[#allocation8 + $0x1550] sm:$0xff]
    %v3594 = vld [vmem:[#allocation8 + $0x1558] sm:$0xff]
    %v3595 = vld [vmem:[#allocation8 + $0x1560] sm:$0xff]
    %v3596 = vld [vmem:[#allocation8 + $0x1568] sm:$0xff]
    %v3597 = vld [vmem:[#allocation8 + $0x1570] sm:$0xff]
    %v3598 = vld [vmem:[#allocation8 + $0x1578] sm:$0xff]
    %v3599 = vld [vmem:[#allocation8 + $0x1580] sm:$0xff]
    %v3600 = vld [vmem:[#allocation8 + $0x1588] sm:$0xff]
    %v3601 = vld [vmem:[#allocation8 + $0x1590] sm:$0xff]
    %v3602 = vld [vmem:[#allocation8 + $0x1598] sm:$0xff]
    %v3603 = vld [vmem:[#allocation8 + $0x15a0] sm:$0xff]
    %v3604 = vld [vmem:[#allocation8 + $0x15a8] sm:$0xff]
    %v3605 = vld [vmem:[#allocation8 + $0x15b0] sm:$0xff]
    %v3606 = vld [vmem:[#allocation8 + $0x15b8] sm:$0xff]
    %v3607 = vld [vmem:[#allocation8 + $0x15c0] sm:$0xff]
    %v3608 = vld [vmem:[#allocation8 + $0x15c8] sm:$0xff]
    %v3609 = vld [vmem:[#allocation8 + $0x15d0] sm:$0xff]
    %v3610 = vld [vmem:[#allocation8 + $0x15d8] sm:$0xff]
    %v3611 = vld [vmem:[#allocation8 + $0x15e0] sm:$0xff]
    %v3612 = vld [vmem:[#allocation8 + $0x15e8] sm:$0xff]
    %v3613 = vld [vmem:[#allocation8 + $0x15f0] sm:$0xff]
    %v3614 = vld [vmem:[#allocation8 + $0x15f8] sm:$0xff]
    %v3615 = vld [vmem:[#allocation8 + $0x1600] sm:$0xff]
    %v3616 = vld [vmem:[#allocation8 + $0x1608] sm:$0xff]
    %v3617 = vld [vmem:[#allocation8 + $0x1610] sm:$0xff]
    %v3618 = vld [vmem:[#allocation8 + $0x1618] sm:$0xff]
    %v3619 = vld [vmem:[#allocation8 + $0x1620] sm:$0xff]
    %v3620 = vld [vmem:[#allocation8 + $0x1628] sm:$0xff]
    %v3621 = vld [vmem:[#allocation8 + $0x1630] sm:$0xff]
    %v3622 = vld [vmem:[#allocation8 + $0x1638] sm:$0xff]
    %v3623 = vld [vmem:[#allocation8 + $0x1640] sm:$0xff]
    %v3624 = vld [vmem:[#allocation8 + $0x1648] sm:$0xff]
    %v3625 = vld [vmem:[#allocation8 + $0x1650] sm:$0xff]
    %v3626 = vld [vmem:[#allocation8 + $0x1658] sm:$0xff]
    %v3627 = vld [vmem:[#allocation8 + $0x1660] sm:$0xff]
    %v3628 = vld [vmem:[#allocation8 + $0x1668] sm:$0xff]
    %v3629 = vld [vmem:[#allocation8 + $0x1670] sm:$0xff]
    %v3630 = vld [vmem:[#allocation8 + $0x1678] sm:$0xff]
    %v3631 = vld [vmem:[#allocation8 + $0x1680] sm:$0xff]
    %v3632 = vld [vmem:[#allocation8 + $0x1688] sm:$0xff]
    %v3633 = vld [vmem:[#allocation8 + $0x1690] sm:$0xff]
    %v3634 = vld [vmem:[#allocation8 + $0x1698] sm:$0xff]
    %v3635 = vld [vmem:[#allocation8 + $0x16a0] sm:$0xff]
    %v3636 = vld [vmem:[#allocation8 + $0x16a8] sm:$0xff]
    %v3637 = vld [vmem:[#allocation8 + $0x16b0] sm:$0xff]
    %v3638 = vld [vmem:[#allocation8 + $0x16b8] sm:$0xff]
    %v3639 = vld [vmem:[#allocation8 + $0x16c0] sm:$0xff]
    %v3640 = vld [vmem:[#allocation8 + $0x16c8] sm:$0xff]
    %v3641 = vld [vmem:[#allocation8 + $0x16d0] sm:$0xff]
    %v3642 = vld [vmem:[#allocation8 + $0x16d8] sm:$0xff]
    %v3643 = vld [vmem:[#allocation8 + $0x16e0] sm:$0xff]
    %v3644 = vld [vmem:[#allocation8 + $0x16e8] sm:$0xff]
    %v3645 = vld [vmem:[#allocation8 + $0x16f0] sm:$0xff]
    %v3646 = vld [vmem:[#allocation8 + $0x16f8] sm:$0xff]
    %v3647 = vld [vmem:[#allocation8 + $0x1700] sm:$0xff]
    %v3648 = vld [vmem:[#allocation8 + $0x1708] sm:$0xff]
    %v3649 = vld [vmem:[#allocation8 + $0x1710] sm:$0xff]
    %v3650 = vld [vmem:[#allocation8 + $0x1718] sm:$0xff]
    %v3651 = vld [vmem:[#allocation8 + $0x1720] sm:$0xff]
    %v3652 = vld [vmem:[#allocation8 + $0x1728] sm:$0xff]
    %v3653 = vld [vmem:[#allocation8 + $0x1730] sm:$0xff]
    %v3654 = vld [vmem:[#allocation8 + $0x1738] sm:$0xff]
    %v3655 = vld [vmem:[#allocation8 + $0x1740] sm:$0xff]
    %v3656 = vld [vmem:[#allocation8 + $0x1748] sm:$0xff]
    %v3657 = vld [vmem:[#allocation8 + $0x1750] sm:$0xff]
    %v3658 = vld [vmem:[#allocation8 + $0x1758] sm:$0xff]
    %v3659 = vld [vmem:[#allocation8 + $0x1760] sm:$0xff]
    %v3660 = vld [vmem:[#allocation8 + $0x1768] sm:$0xff]
    %v3661 = vld [vmem:[#allocation8 + $0x1770] sm:$0xff]
    %v3662 = vld [vmem:[#allocation8 + $0x1778] sm:$0xff]
    %v3663 = vld [vmem:[#allocation8 + $0x1780] sm:$0xff]
    %v3664 = vld [vmem:[#allocation8 + $0x1788] sm:$0xff]
    %v3665 = vld [vmem:[#allocation8 + $0x1790] sm:$0xff]
    %v3666 = vld [vmem:[#allocation8 + $0x1798] sm:$0xff]
    %v3667 = vld [vmem:[#allocation8 + $0x17a0] sm:$0xff]
    %v3668 = vld [vmem:[#allocation8 + $0x17a8] sm:$0xff]
    %v3669 = vld [vmem:[#allocation8 + $0x17b0] sm:$0xff]
    %v3670 = vld [vmem:[#allocation8 + $0x17b8] sm:$0xff]
    %v3671 = vld [vmem:[#allocation8 + $0x17c0] sm:$0xff]
    %v3672 = vld [vmem:[#allocation8 + $0x17c8] sm:$0xff]
    %v3673 = vld [vmem:[#allocation8 + $0x17d0] sm:$0xff]
    %v3674 = vld [vmem:[#allocation8 + $0x17d8] sm:$0xff]
    %v3675 = vld [vmem:[#allocation8 + $0x17e0] sm:$0xff]
    %v3676 = vld [vmem:[#allocation8 + $0x17e8] sm:$0xff]
    %v3677 = vld [vmem:[#allocation8 + $0x17f0] sm:$0xff]
    %v3678 = vld [vmem:[#allocation8 + $0x17f8] sm:$0xff]
    %v3679 = vld [vmem:[#allocation8 + $0x1800] sm:$0xff]
    %v3680 = vld [vmem:[#allocation8 + $0x1808] sm:$0xff]
    %v3681 = vld [vmem:[#allocation8 + $0x1810] sm:$0xff]
    %v3682 = vld [vmem:[#allocation8 + $0x1818] sm:$0xff]
    %v3683 = vld [vmem:[#allocation8 + $0x1820] sm:$0xff]
    %v3684 = vld [vmem:[#allocation8 + $0x1828] sm:$0xff]
    %v3685 = vld [vmem:[#allocation8 + $0x1830] sm:$0xff]
    %v3686 = vld [vmem:[#allocation8 + $0x1838] sm:$0xff]
    %v3687 = vld [vmem:[#allocation8 + $0x1840] sm:$0xff]
    %v3688 = vld [vmem:[#allocation8 + $0x1848] sm:$0xff]
    %v3689 = vld [vmem:[#allocation8 + $0x1850] sm:$0xff]
    %v3690 = vld [vmem:[#allocation8 + $0x1858] sm:$0xff]
    %v3691 = vld [vmem:[#allocation8 + $0x1860] sm:$0xff]
    %v3692 = vld [vmem:[#allocation8 + $0x1868] sm:$0xff]
    %v3693 = vld [vmem:[#allocation8 + $0x1870] sm:$0xff]
    %v3694 = vld [vmem:[#allocation8 + $0x1878] sm:$0xff]
    %v3695 = vld [vmem:[#allocation8 + $0x1880] sm:$0xff]
    %v3696 = vld [vmem:[#allocation8 + $0x1888] sm:$0xff]
    %v3697 = vld [vmem:[#allocation8 + $0x1890] sm:$0xff]
    %v3698 = vld [vmem:[#allocation8 + $0x1898] sm:$0xff]
    %v3699 = vld [vmem:[#allocation8 + $0x18a0] sm:$0xff]
    %v3700 = vld [vmem:[#allocation8 + $0x18a8] sm:$0xff]
    %v3701 = vld [vmem:[#allocation8 + $0x18b0] sm:$0xff]
    %v3702 = vld [vmem:[#allocation8 + $0x18b8] sm:$0xff]
    %v3703 = vld [vmem:[#allocation8 + $0x18c0] sm:$0xff]
    %v3704 = vld [vmem:[#allocation8 + $0x18c8] sm:$0xff]
    %v3705 = vld [vmem:[#allocation8 + $0x18d0] sm:$0xff]
    %v3706 = vld [vmem:[#allocation8 + $0x18d8] sm:$0xff]
    %v3707 = vld [vmem:[#allocation8 + $0x18e0] sm:$0xff]
    %v3708 = vld [vmem:[#allocation8 + $0x18e8] sm:$0xff]
    %v3709 = vld [vmem:[#allocation8 + $0x18f0] sm:$0xff]
    %v3710 = vld [vmem:[#allocation8 + $0x18f8] sm:$0xff]
    %v3711 = vld [vmem:[#allocation8 + $0x1900] sm:$0xff]
    %v3712 = vld [vmem:[#allocation8 + $0x1908] sm:$0xff]
    %v3713 = vld [vmem:[#allocation8 + $0x1910] sm:$0xff]
    %v3714 = vld [vmem:[#allocation8 + $0x1918] sm:$0xff]
    %v3715 = vld [vmem:[#allocation8 + $0x1920] sm:$0xff]
    %v3716 = vld [vmem:[#allocation8 + $0x1928] sm:$0xff]
    %v3717 = vld [vmem:[#allocation8 + $0x1930] sm:$0xff]
    %v3718 = vld [vmem:[#allocation8 + $0x1938] sm:$0xff]
    %v3719 = vld [vmem:[#allocation8 + $0x1940] sm:$0xff]
    %v3720 = vld [vmem:[#allocation8 + $0x1948] sm:$0xff]
    %v3721 = vld [vmem:[#allocation8 + $0x1950] sm:$0xff]
    %v3722 = vld [vmem:[#allocation8 + $0x1958] sm:$0xff]
    %v3723 = vld [vmem:[#allocation8 + $0x1960] sm:$0xff]
    %v3724 = vld [vmem:[#allocation8 + $0x1968] sm:$0xff]
    %v3725 = vld [vmem:[#allocation8 + $0x1970] sm:$0xff]
    %v3726 = vld [vmem:[#allocation8 + $0x1978] sm:$0xff]
    %v3727 = vld [vmem:[#allocation8 + $0x1980] sm:$0xff]
    %v3728 = vld [vmem:[#allocation8 + $0x1988] sm:$0xff]
    %v3729 = vld [vmem:[#allocation8 + $0x1990] sm:$0xff]
    %v3730 = vld [vmem:[#allocation8 + $0x1998] sm:$0xff]
    %v3731 = vld [vmem:[#allocation8 + $0x19a0] sm:$0xff]
    %v3732 = vld [vmem:[#allocation8 + $0x19a8] sm:$0xff]
    %v3733 = vld [vmem:[#allocation8 + $0x19b0] sm:$0xff]
    %v3734 = vld [vmem:[#allocation8 + $0x19b8] sm:$0xff]
    %v3735 = vld [vmem:[#allocation8 + $0x19c0] sm:$0xff]
    %v3736 = vld [vmem:[#allocation8 + $0x19c8] sm:$0xff]
    %v3737 = vld [vmem:[#allocation8 + $0x19d0] sm:$0xff]
    %v3738 = vld [vmem:[#allocation8 + $0x19d8] sm:$0xff]
    %v3739 = vld [vmem:[#allocation8 + $0x19e0] sm:$0xff]
    %v3740 = vld [vmem:[#allocation8 + $0x19e8] sm:$0xff]
    %v3741 = vld [vmem:[#allocation8 + $0x19f0] sm:$0xff]
    %v3742 = vld [vmem:[#allocation8 + $0x19f8] sm:$0xff]
    %v3743 = vld [vmem:[#allocation8 + $0x1a00] sm:$0xff]
    %v3744 = vld [vmem:[#allocation8 + $0x1a08] sm:$0xff]
    %v3745 = vld [vmem:[#allocation8 + $0x1a10] sm:$0xff]
    %v3746 = vld [vmem:[#allocation8 + $0x1a18] sm:$0xff]
    %v3747 = vld [vmem:[#allocation8 + $0x1a20] sm:$0xff]
    %v3748 = vld [vmem:[#allocation8 + $0x1a28] sm:$0xff]
    %v3749 = vld [vmem:[#allocation8 + $0x1a30] sm:$0xff]
    %v3750 = vld [vmem:[#allocation8 + $0x1a38] sm:$0xff]
    %v3751 = vld [vmem:[#allocation8 + $0x1a40] sm:$0xff]
    %v3752 = vld [vmem:[#allocation8 + $0x1a48] sm:$0xff]
    %v3753 = vld [vmem:[#allocation8 + $0x1a50] sm:$0xff]
    %v3754 = vld [vmem:[#allocation8 + $0x1a58] sm:$0xff]
    %v3755 = vld [vmem:[#allocation8 + $0x1a60] sm:$0xff]
    %v3756 = vld [vmem:[#allocation8 + $0x1a68] sm:$0xff]
    %v3757 = vld [vmem:[#allocation8 + $0x1a70] sm:$0xff]
    %v3758 = vld [vmem:[#allocation8 + $0x1a78] sm:$0xff]
    %v3759 = vld [vmem:[#allocation8 + $0x1a80] sm:$0xff]
    %v3760 = vld [vmem:[#allocation8 + $0x1a88] sm:$0xff]
    %v3761 = vld [vmem:[#allocation8 + $0x1a90] sm:$0xff]
    %v3762 = vld [vmem:[#allocation8 + $0x1a98] sm:$0xff]
    %v3763 = vld [vmem:[#allocation8 + $0x1aa0] sm:$0xff]
    %v3764 = vld [vmem:[#allocation8 + $0x1aa8] sm:$0xff]
    %v3765 = vld [vmem:[#allocation8 + $0x1ab0] sm:$0xff]
    %v3766 = vld [vmem:[#allocation8 + $0x1ab8] sm:$0xff]
    %v3767 = vld [vmem:[#allocation8 + $0x1ac0] sm:$0xff]
    %v3768 = vld [vmem:[#allocation8 + $0x1ac8] sm:$0xff]
    %v3769 = vld [vmem:[#allocation8 + $0x1ad0] sm:$0xff]
    %v3770 = vld [vmem:[#allocation8 + $0x1ad8] sm:$0xff]
    %v3771 = vld [vmem:[#allocation8 + $0x1ae0] sm:$0xff]
    %v3772 = vld [vmem:[#allocation8 + $0x1ae8] sm:$0xff]
    %v3773 = vld [vmem:[#allocation8 + $0x1af0] sm:$0xff]
    %v3774 = vld [vmem:[#allocation8 + $0x1af8] sm:$0xff]
    %v3775 = vld [vmem:[#allocation8 + $0x1b00] sm:$0xff]
    %v3776 = vld [vmem:[#allocation8 + $0x1b08] sm:$0xff]
    %v3777 = vld [vmem:[#allocation8 + $0x1b10] sm:$0xff]
    %v3778 = vld [vmem:[#allocation8 + $0x1b18] sm:$0xff]
    %v3779 = vld [vmem:[#allocation8 + $0x1b20] sm:$0xff]
    %v3780 = vld [vmem:[#allocation8 + $0x1b28] sm:$0xff]
    %v3781 = vld [vmem:[#allocation8 + $0x1b30] sm:$0xff]
    %v3782 = vld [vmem:[#allocation8 + $0x1b38] sm:$0xff]
    %v3783 = vld [vmem:[#allocation8 + $0x1b40] sm:$0xff]
    %v3784 = vld [vmem:[#allocation8 + $0x1b48] sm:$0xff]
    %v3785 = vld [vmem:[#allocation8 + $0x1b50] sm:$0xff]
    %v3786 = vld [vmem:[#allocation8 + $0x1b58] sm:$0xff]
    %v3787 = vld [vmem:[#allocation8 + $0x1b60] sm:$0xff]
    %v3788 = vld [vmem:[#allocation8 + $0x1b68] sm:$0xff]
    %v3789 = vld [vmem:[#allocation8 + $0x1b70] sm:$0xff]
    %v3790 = vld [vmem:[#allocation8 + $0x1b78] sm:$0xff]
    %v3791 = vld [vmem:[#allocation8 + $0x1b80] sm:$0xff]
    %v3792 = vld [vmem:[#allocation8 + $0x1b88] sm:$0xff]
    %v3793 = vld [vmem:[#allocation8 + $0x1b90] sm:$0xff]
    %v3794 = vld [vmem:[#allocation8 + $0x1b98] sm:$0xff]
    %v3795 = vld [vmem:[#allocation8 + $0x1ba0] sm:$0xff]
    %v3796 = vld [vmem:[#allocation8 + $0x1ba8] sm:$0xff]
    %v3797 = vld [vmem:[#allocation8 + $0x1bb0] sm:$0xff]
    %v3798 = vld [vmem:[#allocation8 + $0x1bb8] sm:$0xff]
    %v3799 = vld [vmem:[#allocation8 + $0x1bc0] sm:$0xff]
    %v3800 = vld [vmem:[#allocation8 + $0x1bc8] sm:$0xff]
    %v3801 = vld [vmem:[#allocation8 + $0x1bd0] sm:$0xff]
    %v3802 = vld [vmem:[#allocation8 + $0x1bd8] sm:$0xff]
    %v3803 = vld [vmem:[#allocation8 + $0x1be0] sm:$0xff]
    %v3804 = vld [vmem:[#allocation8 + $0x1be8] sm:$0xff]
    %v3805 = vld [vmem:[#allocation8 + $0x1bf0] sm:$0xff]
    %v3806 = vld [vmem:[#allocation8 + $0x1bf8] sm:$0xff]
    %v3807 = vld [vmem:[#allocation8 + $0x1c00] sm:$0xff]
    %v3808 = vld [vmem:[#allocation8 + $0x1c08] sm:$0xff]
    %v3809 = vld [vmem:[#allocation8 + $0x1c10] sm:$0xff]
    %v3810 = vld [vmem:[#allocation8 + $0x1c18] sm:$0xff]
    %v3811 = vld [vmem:[#allocation8 + $0x1c20] sm:$0xff]
    %v3812 = vld [vmem:[#allocation8 + $0x1c28] sm:$0xff]
    %v3813 = vld [vmem:[#allocation8 + $0x1c30] sm:$0xff]
    %v3814 = vld [vmem:[#allocation8 + $0x1c38] sm:$0xff]
    %v3815 = vld [vmem:[#allocation8 + $0x1c40] sm:$0xff]
    %v3816 = vld [vmem:[#allocation8 + $0x1c48] sm:$0xff]
    %v3817 = vld [vmem:[#allocation8 + $0x1c50] sm:$0xff]
    %v3818 = vld [vmem:[#allocation8 + $0x1c58] sm:$0xff]
    %v3819 = vld [vmem:[#allocation8 + $0x1c60] sm:$0xff]
    %v3820 = vld [vmem:[#allocation8 + $0x1c68] sm:$0xff]
    %v3821 = vld [vmem:[#allocation8 + $0x1c70] sm:$0xff]
    %v3822 = vld [vmem:[#allocation8 + $0x1c78] sm:$0xff]
    %v3823 = vld [vmem:[#allocation8 + $0x1c80] sm:$0xff]
    %v3824 = vld [vmem:[#allocation8 + $0x1c88] sm:$0xff]
    %v3825 = vld [vmem:[#allocation8 + $0x1c90] sm:$0xff]
    %v3826 = vld [vmem:[#allocation8 + $0x1c98] sm:$0xff]
    %v3827 = vld [vmem:[#allocation8 + $0x1ca0] sm:$0xff]
    %v3828 = vld [vmem:[#allocation8 + $0x1ca8] sm:$0xff]
    %v3829 = vld [vmem:[#allocation8 + $0x1cb0] sm:$0xff]
    %v3830 = vld [vmem:[#allocation8 + $0x1cb8] sm:$0xff]
    %v3831 = vld [vmem:[#allocation8 + $0x1cc0] sm:$0xff]
    %v3832 = vld [vmem:[#allocation8 + $0x1cc8] sm:$0xff]
    %v3833 = vld [vmem:[#allocation8 + $0x1cd0] sm:$0xff]
    %v3834 = vld [vmem:[#allocation8 + $0x1cd8] sm:$0xff]
    %v3835 = vld [vmem:[#allocation8 + $0x1ce0] sm:$0xff]
    %v3836 = vld [vmem:[#allocation8 + $0x1ce8] sm:$0xff]
    %v3837 = vld [vmem:[#allocation8 + $0x1cf0] sm:$0xff]
    %v3838 = vld [vmem:[#allocation8 + $0x1cf8] sm:$0xff]
    %v3839 = vld [vmem:[#allocation8 + $0x1d00] sm:$0xff]
    %v3840 = vld [vmem:[#allocation8 + $0x1d08] sm:$0xff]
    %v3841 = vld [vmem:[#allocation8 + $0x1d10] sm:$0xff]
    %v3842 = vld [vmem:[#allocation8 + $0x1d18] sm:$0xff]
    %v3843 = vld [vmem:[#allocation8 + $0x1d20] sm:$0xff]
    %v3844 = vld [vmem:[#allocation8 + $0x1d28] sm:$0xff]
    %v3845 = vld [vmem:[#allocation8 + $0x1d30] sm:$0xff]
    %v3846 = vld [vmem:[#allocation8 + $0x1d38] sm:$0xff]
    %v3847 = vld [vmem:[#allocation8 + $0x1d40] sm:$0xff]
    %v3848 = vld [vmem:[#allocation8 + $0x1d48] sm:$0xff]
    %v3849 = vld [vmem:[#allocation8 + $0x1d50] sm:$0xff]
    %v3850 = vld [vmem:[#allocation8 + $0x1d58] sm:$0xff]
    %v3851 = vld [vmem:[#allocation8 + $0x1d60] sm:$0xff]
    %v3852 = vld [vmem:[#allocation8 + $0x1d68] sm:$0xff]
    %v3853 = vld [vmem:[#allocation8 + $0x1d70] sm:$0xff]
    %v3854 = vld [vmem:[#allocation8 + $0x1d78] sm:$0xff]
    %v3855 = vld [vmem:[#allocation8 + $0x1d80] sm:$0xff]
    %v3856 = vld [vmem:[#allocation8 + $0x1d88] sm:$0xff]
    %v3857 = vld [vmem:[#allocation8 + $0x1d90] sm:$0xff]
    %v3858 = vld [vmem:[#allocation8 + $0x1d98] sm:$0xff]
    %v3859 = vld [vmem:[#allocation8 + $0x1da0] sm:$0xff]
    %v3860 = vld [vmem:[#allocation8 + $0x1da8] sm:$0xff]
    %v3861 = vld [vmem:[#allocation8 + $0x1db0] sm:$0xff]
    %v3862 = vld [vmem:[#allocation8 + $0x1db8] sm:$0xff]
    %v3863 = vld [vmem:[#allocation8 + $0x1dc0] sm:$0xff]
    %v3864 = vld [vmem:[#allocation8 + $0x1dc8] sm:$0xff]
    %v3865 = vld [vmem:[#allocation8 + $0x1dd0] sm:$0xff]
    %v3866 = vld [vmem:[#allocation8 + $0x1dd8] sm:$0xff]
    %v3867 = vld [vmem:[#allocation8 + $0x1de0] sm:$0xff]
    %v3868 = vld [vmem:[#allocation8 + $0x1de8] sm:$0xff]
    %v3869 = vld [vmem:[#allocation8 + $0x1df0] sm:$0xff]
    %v3870 = vld [vmem:[#allocation8 + $0x1df8] sm:$0xff]
    %v3871 = vld [vmem:[#allocation8 + $0x1e00] sm:$0xff]
    %v3872 = vld [vmem:[#allocation8 + $0x1e08] sm:$0xff]
    %v3873 = vld [vmem:[#allocation8 + $0x1e10] sm:$0xff]
    %v3874 = vld [vmem:[#allocation8 + $0x1e18] sm:$0xff]
    %v3875 = vld [vmem:[#allocation8 + $0x1e20] sm:$0xff]
    %v3876 = vld [vmem:[#allocation8 + $0x1e28] sm:$0xff]
    %v3877 = vld [vmem:[#allocation8 + $0x1e30] sm:$0xff]
    %v3878 = vld [vmem:[#allocation8 + $0x1e38] sm:$0xff]
    %v3879 = vld [vmem:[#allocation8 + $0x1e40] sm:$0xff]
    %v3880 = vld [vmem:[#allocation8 + $0x1e48] sm:$0xff]
    %v3881 = vld [vmem:[#allocation8 + $0x1e50] sm:$0xff]
    %v3882 = vld [vmem:[#allocation8 + $0x1e58] sm:$0xff]
    %v3883 = vld [vmem:[#allocation8 + $0x1e60] sm:$0xff]
    %v3884 = vld [vmem:[#allocation8 + $0x1e68] sm:$0xff]
    %v3885 = vld [vmem:[#allocation8 + $0x1e70] sm:$0xff]
    %v3886 = vld [vmem:[#allocation8 + $0x1e78] sm:$0xff]
    %v3887 = vld [vmem:[#allocation8 + $0x1e80] sm:$0xff]
    %v3888 = vld [vmem:[#allocation8 + $0x1e88] sm:$0xff]
    %v3889 = vld [vmem:[#allocation8 + $0x1e90] sm:$0xff]
    %v3890 = vld [vmem:[#allocation8 + $0x1e98] sm:$0xff]
    %v3891 = vld [vmem:[#allocation8 + $0x1ea0] sm:$0xff]
    %v3892 = vld [vmem:[#allocation8 + $0x1ea8] sm:$0xff]
    %v3893 = vld [vmem:[#allocation8 + $0x1eb0] sm:$0xff]
    %v3894 = vld [vmem:[#allocation8 + $0x1eb8] sm:$0xff]
    %v3895 = vld [vmem:[#allocation8 + $0x1ec0] sm:$0xff]
    %v3896 = vld [vmem:[#allocation8 + $0x1ec8] sm:$0xff]
    %v3897 = vld [vmem:[#allocation8 + $0x1ed0] sm:$0xff]
    %v3898 = vld [vmem:[#allocation8 + $0x1ed8] sm:$0xff]
    %v3899 = vld [vmem:[#allocation8 + $0x1ee0] sm:$0xff]
    %v3900 = vld [vmem:[#allocation8 + $0x1ee8] sm:$0xff]
    %v3901 = vld [vmem:[#allocation8 + $0x1ef0] sm:$0xff]
    %v3902 = vld [vmem:[#allocation8 + $0x1ef8] sm:$0xff]
    %v3903 = vld [vmem:[#allocation8 + $0x1f00] sm:$0xff]
    %v3904 = vld [vmem:[#allocation8 + $0x1f08] sm:$0xff]
    %v3905 = vld [vmem:[#allocation8 + $0x1f10] sm:$0xff]
    %v3906 = vld [vmem:[#allocation8 + $0x1f18] sm:$0xff]
    %v3907 = vld [vmem:[#allocation8 + $0x1f20] sm:$0xff]
    %v3908 = vld [vmem:[#allocation8 + $0x1f28] sm:$0xff]
    %v3909 = vld [vmem:[#allocation8 + $0x1f30] sm:$0xff]
    %v3910 = vld [vmem:[#allocation8 + $0x1f38] sm:$0xff]
    %v3911 = vld [vmem:[#allocation8 + $0x1f40] sm:$0xff]
    %v3912 = vld [vmem:[#allocation8 + $0x1f48] sm:$0xff]
    %v3913 = vld [vmem:[#allocation8 + $0x1f50] sm:$0xff]
    %v3914 = vld [vmem:[#allocation8 + $0x1f58] sm:$0xff]
    %v3915 = vld [vmem:[#allocation8 + $0x1f60] sm:$0xff]
    %v3916 = vld [vmem:[#allocation8 + $0x1f68] sm:$0xff]
    %v3917 = vld [vmem:[#allocation8 + $0x1f70] sm:$0xff]
    %v3918 = vld [vmem:[#allocation8 + $0x1f78] sm:$0xff]
    %v3919 = vld [vmem:[#allocation8 + $0x1f80] sm:$0xff]
    %v3920 = vld [vmem:[#allocation8 + $0x1f88] sm:$0xff]
    %v3921 = vld [vmem:[#allocation8 + $0x1f90] sm:$0xff]
    %v3922 = vld [vmem:[#allocation8 + $0x1f98] sm:$0xff]
    %v3923 = vld [vmem:[#allocation8 + $0x1fa0] sm:$0xff]
    %v3924 = vld [vmem:[#allocation8 + $0x1fa8] sm:$0xff]
    %v3925 = vld [vmem:[#allocation8 + $0x1fb0] sm:$0xff]
    %v3926 = vld [vmem:[#allocation8 + $0x1fb8] sm:$0xff]
    %v3927 = vld [vmem:[#allocation8 + $0x1fc0] sm:$0xff]
    %v3928 = vld [vmem:[#allocation8 + $0x1fc8] sm:$0xff]
    %v3929 = vld [vmem:[#allocation8 + $0x1fd0] sm:$0xff]
    %v3930 = vld [vmem:[#allocation8 + $0x1fd8] sm:$0xff]
    %v3931 = vld [vmem:[#allocation8 + $0x1fe0] sm:$0xff]
    %v3932 = vld [vmem:[#allocation8 + $0x1fe8] sm:$0xff]
    %v3933 = vld [vmem:[#allocation8 + $0x1ff0] sm:$0xff]
    %v3934 = vld [vmem:[#allocation8 + $0x1ff8] sm:$0xff]
    %v3935 = vld [vmem:[#allocation10] sm:$0xff]
    %v3937 = vlaneseq
    %v3938 = vshrl.u32 %v3937, 7
    %v3939 = vsub.s32 0, %v3938
    %v3940 = vrot.slane %v3935, %v3939
    %v3941 = vlaneseq
    %v3942 = vshrl.u32 %v3941, 7
    %v3943 = vsub.s32 1, %v3942
    %v3944 = vrot.slane %v3935, %v3943
    %v3945 = vlaneseq
    %v3946 = vshrl.u32 %v3945, 7
    %v3947 = vsub.s32 2, %v3946
    %v3948 = vrot.slane %v3935, %v3947
    %v3949 = vlaneseq
    %v3950 = vshrl.u32 %v3949, 7
    %v3951 = vsub.s32 3, %v3950
    %v3952 = vrot.slane %v3935, %v3951
    %v3953 = vlaneseq
    %v3954 = vshrl.u32 %v3953, 7
    %v3955 = vsub.s32 4, %v3954
    %v3956 = vrot.slane %v3935, %v3955
    %v3957 = vlaneseq
    %v3958 = vshrl.u32 %v3957, 7
    %v3959 = vsub.s32 5, %v3958
    %v3960 = vrot.slane %v3935, %v3959
    %v3961 = vlaneseq
    %v3962 = vshrl.u32 %v3961, 7
    %v3963 = vsub.s32 6, %v3962
    %v3964 = vrot.slane %v3935, %v3963
    %v3965 = vlaneseq
    %v3966 = vshrl.u32 %v3965, 7
    %v3967 = vsub.s32 7, %v3966
    %v3968 = vrot.slane %v3935, %v3967
    %v5001 = vunpack.c.l.b16 %v2911
    %v5002 = vunpack.c.h.b16 %v2911
    %v5003 = vunpack.c.l.b16 %v2912
    %v5004 = vunpack.c.h.b16 %v2912
    %v5005 = vunpack.c.l.b16 %v2913
    %v5006 = vunpack.c.h.b16 %v2913
    %v5007 = vunpack.c.l.b16 %v2914
    %v5008 = vunpack.c.h.b16 %v2914
    %v5009 = vunpack.c.l.b16 %v2915
    %v5010 = vunpack.c.h.b16 %v2915
    %v5011 = vunpack.c.l.b16 %v2916
    %v5012 = vunpack.c.h.b16 %v2916
    %v5013 = vunpack.c.l.b16 %v2917
    %v5014 = vunpack.c.h.b16 %v2917
    %v5015 = vunpack.c.l.b16 %v2918
    %v5016 = vunpack.c.h.b16 %v2918
    %v5017 = vunpack.c.l.b16 %v2919
    %v5018 = vunpack.c.h.b16 %v2919
    %v5019 = vunpack.c.l.b16 %v2920
    %v5020 = vunpack.c.h.b16 %v2920
    %v5021 = vunpack.c.l.b16 %v2921
    %v5022 = vunpack.c.h.b16 %v2921
    %v5023 = vunpack.c.l.b16 %v2922
    %v5024 = vunpack.c.h.b16 %v2922
    %v5025 = vunpack.c.l.b16 %v2923
    %v5026 = vunpack.c.h.b16 %v2923
    %v5027 = vunpack.c.l.b16 %v2924
    %v5028 = vunpack.c.h.b16 %v2924
    %v5029 = vunpack.c.l.b16 %v2925
    %v5030 = vunpack.c.h.b16 %v2925
    %v5031 = vunpack.c.l.b16 %v2926
    %v5032 = vunpack.c.h.b16 %v2926
    %v5033 = vunpack.c.l.b16 %v2927
    %v5034 = vunpack.c.h.b16 %v2927
    %v5035 = vunpack.c.l.b16 %v2928
    %v5036 = vunpack.c.h.b16 %v2928
    %v5037 = vunpack.c.l.b16 %v2929
    %v5038 = vunpack.c.h.b16 %v2929
    %v5039 = vunpack.c.l.b16 %v2930
    %v5040 = vunpack.c.h.b16 %v2930
    %v5041 = vunpack.c.l.b16 %v2931
    %v5042 = vunpack.c.h.b16 %v2931
    %v5043 = vunpack.c.l.b16 %v2932
    %v5044 = vunpack.c.h.b16 %v2932
    %v5045 = vunpack.c.l.b16 %v2933
    %v5046 = vunpack.c.h.b16 %v2933
    %v5047 = vunpack.c.l.b16 %v2934
    %v5048 = vunpack.c.h.b16 %v2934
    %v5049 = vunpack.c.l.b16 %v2935
    %v5050 = vunpack.c.h.b16 %v2935
    %v5051 = vunpack.c.l.b16 %v2936
    %v5052 = vunpack.c.h.b16 %v2936
    %v5053 = vunpack.c.l.b16 %v2937
    %v5054 = vunpack.c.h.b16 %v2937
    %v5055 = vunpack.c.l.b16 %v2938
    %v5056 = vunpack.c.h.b16 %v2938
    %v5057 = vunpack.c.l.b16 %v2939
    %v5058 = vunpack.c.h.b16 %v2939
    %v5059 = vunpack.c.l.b16 %v2940
    %v5060 = vunpack.c.h.b16 %v2940
    %v5061 = vunpack.c.l.b16 %v2941
    %v5062 = vunpack.c.h.b16 %v2941
    %v5063 = vunpack.c.l.b16 %v2942
    %v5064 = vunpack.c.h.b16 %v2942
    %v5065 = vunpack.c.l.b16 %v2943
    %v5066 = vunpack.c.h.b16 %v2943
    %v5067 = vunpack.c.l.b16 %v2944
    %v5068 = vunpack.c.h.b16 %v2944
    %v5069 = vunpack.c.l.b16 %v2945
    %v5070 = vunpack.c.h.b16 %v2945
    %v5071 = vunpack.c.l.b16 %v2946
    %v5072 = vunpack.c.h.b16 %v2946
    %v5073 = vunpack.c.l.b16 %v2947
    %v5074 = vunpack.c.h.b16 %v2947
    %v5075 = vunpack.c.l.b16 %v2948
    %v5076 = vunpack.c.h.b16 %v2948
    %v5077 = vunpack.c.l.b16 %v2949
    %v5078 = vunpack.c.h.b16 %v2949
    %v5079 = vunpack.c.l.b16 %v2950
    %v5080 = vunpack.c.h.b16 %v2950
    %v5081 = vunpack.c.l.b16 %v2951
    %v5082 = vunpack.c.h.b16 %v2951
    %v5083 = vunpack.c.l.b16 %v2952
    %v5084 = vunpack.c.h.b16 %v2952
    %v5085 = vunpack.c.l.b16 %v2953
    %v5086 = vunpack.c.h.b16 %v2953
    %v5087 = vunpack.c.l.b16 %v2954
    %v5088 = vunpack.c.h.b16 %v2954
    %v5089 = vunpack.c.l.b16 %v2955
    %v5090 = vunpack.c.h.b16 %v2955
    %v5091 = vunpack.c.l.b16 %v2956
    %v5092 = vunpack.c.h.b16 %v2956
    %v5093 = vunpack.c.l.b16 %v2957
    %v5094 = vunpack.c.h.b16 %v2957
    %v5095 = vunpack.c.l.b16 %v2958
    %v5096 = vunpack.c.h.b16 %v2958
    %v5097 = vunpack.c.l.b16 %v2959
    %v5098 = vunpack.c.h.b16 %v2959
    %v5099 = vunpack.c.l.b16 %v2960
    %v5100 = vunpack.c.h.b16 %v2960
    %v5101 = vunpack.c.l.b16 %v2961
    %v5102 = vunpack.c.h.b16 %v2961
    %v5103 = vunpack.c.l.b16 %v2962
    %v5104 = vunpack.c.h.b16 %v2962
    %v5105 = vunpack.c.l.b16 %v2963
    %v5106 = vunpack.c.h.b16 %v2963
    %v5107 = vunpack.c.l.b16 %v2964
    %v5108 = vunpack.c.h.b16 %v2964
    %v5109 = vunpack.c.l.b16 %v2965
    %v5110 = vunpack.c.h.b16 %v2965
    %v5111 = vunpack.c.l.b16 %v2966
    %v5112 = vunpack.c.h.b16 %v2966
    %v5113 = vunpack.c.l.b16 %v2967
    %v5114 = vunpack.c.h.b16 %v2967
    %v5115 = vunpack.c.l.b16 %v2968
    %v5116 = vunpack.c.h.b16 %v2968
    %v5117 = vunpack.c.l.b16 %v2969
    %v5118 = vunpack.c.h.b16 %v2969
    %v5119 = vunpack.c.l.b16 %v2970
    %v5120 = vunpack.c.h.b16 %v2970
    %v5121 = vunpack.c.l.b16 %v2971
    %v5122 = vunpack.c.h.b16 %v2971
    %v5123 = vunpack.c.l.b16 %v2972
    %v5124 = vunpack.c.h.b16 %v2972
    %v5125 = vunpack.c.l.b16 %v2973
    %v5126 = vunpack.c.h.b16 %v2973
    %v5127 = vunpack.c.l.b16 %v2974
    %v5128 = vunpack.c.h.b16 %v2974
    %v5129 = vunpack.c.l.b16 %v2975
    %v5130 = vunpack.c.h.b16 %v2975
    %v5131 = vunpack.c.l.b16 %v2976
    %v5132 = vunpack.c.h.b16 %v2976
    %v5133 = vunpack.c.l.b16 %v2977
    %v5134 = vunpack.c.h.b16 %v2977
    %v5135 = vunpack.c.l.b16 %v2978
    %v5136 = vunpack.c.h.b16 %v2978
    %v5137 = vunpack.c.l.b16 %v2979
    %v5138 = vunpack.c.h.b16 %v2979
    %v5139 = vunpack.c.l.b16 %v2980
    %v5140 = vunpack.c.h.b16 %v2980
    %v5141 = vunpack.c.l.b16 %v2981
    %v5142 = vunpack.c.h.b16 %v2981
    %v5143 = vunpack.c.l.b16 %v2982
    %v5144 = vunpack.c.h.b16 %v2982
    %v5145 = vunpack.c.l.b16 %v2983
    %v5146 = vunpack.c.h.b16 %v2983
    %v5147 = vunpack.c.l.b16 %v2984
    %v5148 = vunpack.c.h.b16 %v2984
    %v5149 = vunpack.c.l.b16 %v2985
    %v5150 = vunpack.c.h.b16 %v2985
    %v5151 = vunpack.c.l.b16 %v2986
    %v5152 = vunpack.c.h.b16 %v2986
    %v5153 = vunpack.c.l.b16 %v2987
    %v5154 = vunpack.c.h.b16 %v2987
    %v5155 = vunpack.c.l.b16 %v2988
    %v5156 = vunpack.c.h.b16 %v2988
    %v5157 = vunpack.c.l.b16 %v2989
    %v5158 = vunpack.c.h.b16 %v2989
    %v5159 = vunpack.c.l.b16 %v2990
    %v5160 = vunpack.c.h.b16 %v2990
    %v5161 = vunpack.c.l.b16 %v2991
    %v5162 = vunpack.c.h.b16 %v2991
    %v5163 = vunpack.c.l.b16 %v2992
    %v5164 = vunpack.c.h.b16 %v2992
    %v5165 = vunpack.c.l.b16 %v2993
    %v5166 = vunpack.c.h.b16 %v2993
    %v5167 = vunpack.c.l.b16 %v2994
    %v5168 = vunpack.c.h.b16 %v2994
    %v5169 = vunpack.c.l.b16 %v2995
    %v5170 = vunpack.c.h.b16 %v2995
    %v5171 = vunpack.c.l.b16 %v2996
    %v5172 = vunpack.c.h.b16 %v2996
    %v5173 = vunpack.c.l.b16 %v2997
    %v5174 = vunpack.c.h.b16 %v2997
    %v5175 = vunpack.c.l.b16 %v2998
    %v5176 = vunpack.c.h.b16 %v2998
    %v5177 = vunpack.c.l.b16 %v2999
    %v5178 = vunpack.c.h.b16 %v2999
    %v5179 = vunpack.c.l.b16 %v3000
    %v5180 = vunpack.c.h.b16 %v3000
    %v5181 = vunpack.c.l.b16 %v3001
    %v5182 = vunpack.c.h.b16 %v3001
    %v5183 = vunpack.c.l.b16 %v3002
    %v5184 = vunpack.c.h.b16 %v3002
    %v5185 = vunpack.c.l.b16 %v3003
    %v5186 = vunpack.c.h.b16 %v3003
    %v5187 = vunpack.c.l.b16 %v3004
    %v5188 = vunpack.c.h.b16 %v3004
    %v5189 = vunpack.c.l.b16 %v3005
    %v5190 = vunpack.c.h.b16 %v3005
    %v5191 = vunpack.c.l.b16 %v3006
    %v5192 = vunpack.c.h.b16 %v3006
    %v5193 = vunpack.c.l.b16 %v3007
    %v5194 = vunpack.c.h.b16 %v3007
    %v5195 = vunpack.c.l.b16 %v3008
    %v5196 = vunpack.c.h.b16 %v3008
    %v5197 = vunpack.c.l.b16 %v3009
    %v5198 = vunpack.c.h.b16 %v3009
    %v5199 = vunpack.c.l.b16 %v3010
    %v5200 = vunpack.c.h.b16 %v3010
    %v5201 = vunpack.c.l.b16 %v3011
    %v5202 = vunpack.c.h.b16 %v3011
    %v5203 = vunpack.c.l.b16 %v3012
    %v5204 = vunpack.c.h.b16 %v3012
    %v5205 = vunpack.c.l.b16 %v3013
    %v5206 = vunpack.c.h.b16 %v3013
    %v5207 = vunpack.c.l.b16 %v3014
    %v5208 = vunpack.c.h.b16 %v3014
    %v5209 = vunpack.c.l.b16 %v3015
    %v5210 = vunpack.c.h.b16 %v3015
    %v5211 = vunpack.c.l.b16 %v3016
    %v5212 = vunpack.c.h.b16 %v3016
    %v5213 = vunpack.c.l.b16 %v3017
    %v5214 = vunpack.c.h.b16 %v3017
    %v5215 = vunpack.c.l.b16 %v3018
    %v5216 = vunpack.c.h.b16 %v3018
    %v5217 = vunpack.c.l.b16 %v3019
    %v5218 = vunpack.c.h.b16 %v3019
    %v5219 = vunpack.c.l.b16 %v3020
    %v5220 = vunpack.c.h.b16 %v3020
    %v5221 = vunpack.c.l.b16 %v3021
    %v5222 = vunpack.c.h.b16 %v3021
    %v5223 = vunpack.c.l.b16 %v3022
    %v5224 = vunpack.c.h.b16 %v3022
    %v5225 = vunpack.c.l.b16 %v3023
    %v5226 = vunpack.c.h.b16 %v3023
    %v5227 = vunpack.c.l.b16 %v3024
    %v5228 = vunpack.c.h.b16 %v3024
    %v5229 = vunpack.c.l.b16 %v3025
    %v5230 = vunpack.c.h.b16 %v3025
    %v5231 = vunpack.c.l.b16 %v3026
    %v5232 = vunpack.c.h.b16 %v3026
    %v5233 = vunpack.c.l.b16 %v3027
    %v5234 = vunpack.c.h.b16 %v3027
    %v5235 = vunpack.c.l.b16 %v3028
    %v5236 = vunpack.c.h.b16 %v3028
    %v5237 = vunpack.c.l.b16 %v3029
    %v5238 = vunpack.c.h.b16 %v3029
    %v5239 = vunpack.c.l.b16 %v3030
    %v5240 = vunpack.c.h.b16 %v3030
    %v5241 = vunpack.c.l.b16 %v3031
    %v5242 = vunpack.c.h.b16 %v3031
    %v5243 = vunpack.c.l.b16 %v3032
    %v5244 = vunpack.c.h.b16 %v3032
    %v5245 = vunpack.c.l.b16 %v3033
    %v5246 = vunpack.c.h.b16 %v3033
    %v5247 = vunpack.c.l.b16 %v3034
    %v5248 = vunpack.c.h.b16 %v3034
    %v5249 = vunpack.c.l.b16 %v3035
    %v5250 = vunpack.c.h.b16 %v3035
    %v5251 = vunpack.c.l.b16 %v3036
    %v5252 = vunpack.c.h.b16 %v3036
    %v5253 = vunpack.c.l.b16 %v3037
    %v5254 = vunpack.c.h.b16 %v3037
    %v5255 = vunpack.c.l.b16 %v3038
    %v5256 = vunpack.c.h.b16 %v3038
    %v5257 = vunpack.c.l.b16 %v3039
    %v5258 = vunpack.c.h.b16 %v3039
    %v5259 = vunpack.c.l.b16 %v3040
    %v5260 = vunpack.c.h.b16 %v3040
    %v5261 = vunpack.c.l.b16 %v3041
    %v5262 = vunpack.c.h.b16 %v3041
    %v5263 = vunpack.c.l.b16 %v3042
    %v5264 = vunpack.c.h.b16 %v3042
    %v5265 = vunpack.c.l.b16 %v3043
    %v5266 = vunpack.c.h.b16 %v3043
    %v5267 = vunpack.c.l.b16 %v3044
    %v5268 = vunpack.c.h.b16 %v3044
    %v5269 = vunpack.c.l.b16 %v3045
    %v5270 = vunpack.c.h.b16 %v3045
    %v5271 = vunpack.c.l.b16 %v3046
    %v5272 = vunpack.c.h.b16 %v3046
    %v5273 = vunpack.c.l.b16 %v3047
    %v5274 = vunpack.c.h.b16 %v3047
    %v5275 = vunpack.c.l.b16 %v3048
    %v5276 = vunpack.c.h.b16 %v3048
    %v5277 = vunpack.c.l.b16 %v3049
    %v5278 = vunpack.c.h.b16 %v3049
    %v5279 = vunpack.c.l.b16 %v3050
    %v5280 = vunpack.c.h.b16 %v3050
    %v5281 = vunpack.c.l.b16 %v3051
    %v5282 = vunpack.c.h.b16 %v3051
    %v5283 = vunpack.c.l.b16 %v3052
    %v5284 = vunpack.c.h.b16 %v3052
    %v5285 = vunpack.c.l.b16 %v3053
    %v5286 = vunpack.c.h.b16 %v3053
    %v5287 = vunpack.c.l.b16 %v3054
    %v5288 = vunpack.c.h.b16 %v3054
    %v5289 = vunpack.c.l.b16 %v3055
    %v5290 = vunpack.c.h.b16 %v3055
    %v5291 = vunpack.c.l.b16 %v3056
    %v5292 = vunpack.c.h.b16 %v3056
    %v5293 = vunpack.c.l.b16 %v3057
    %v5294 = vunpack.c.h.b16 %v3057
    %v5295 = vunpack.c.l.b16 %v3058
    %v5296 = vunpack.c.h.b16 %v3058
    %v5297 = vunpack.c.l.b16 %v3059
    %v5298 = vunpack.c.h.b16 %v3059
    %v5299 = vunpack.c.l.b16 %v3060
    %v5300 = vunpack.c.h.b16 %v3060
    %v5301 = vunpack.c.l.b16 %v3061
    %v5302 = vunpack.c.h.b16 %v3061
    %v5303 = vunpack.c.l.b16 %v3062
    %v5304 = vunpack.c.h.b16 %v3062
    %v5305 = vunpack.c.l.b16 %v3063
    %v5306 = vunpack.c.h.b16 %v3063
    %v5307 = vunpack.c.l.b16 %v3064
    %v5308 = vunpack.c.h.b16 %v3064
    %v5309 = vunpack.c.l.b16 %v3065
    %v5310 = vunpack.c.h.b16 %v3065
    %v5311 = vunpack.c.l.b16 %v3066
    %v5312 = vunpack.c.h.b16 %v3066
    %v5313 = vunpack.c.l.b16 %v3067
    %v5314 = vunpack.c.h.b16 %v3067
    %v5315 = vunpack.c.l.b16 %v3068
    %v5316 = vunpack.c.h.b16 %v3068
    %v5317 = vunpack.c.l.b16 %v3069
    %v5318 = vunpack.c.h.b16 %v3069
    %v5319 = vunpack.c.l.b16 %v3070
    %v5320 = vunpack.c.h.b16 %v3070
    %v5321 = vunpack.c.l.b16 %v3071
    %v5322 = vunpack.c.h.b16 %v3071
    %v5323 = vunpack.c.l.b16 %v3072
    %v5324 = vunpack.c.h.b16 %v3072
    %v5325 = vunpack.c.l.b16 %v3073
    %v5326 = vunpack.c.h.b16 %v3073
    %v5327 = vunpack.c.l.b16 %v3074
    %v5328 = vunpack.c.h.b16 %v3074
    %v5329 = vunpack.c.l.b16 %v3075
    %v5330 = vunpack.c.h.b16 %v3075
    %v5331 = vunpack.c.l.b16 %v3076
    %v5332 = vunpack.c.h.b16 %v3076
    %v5333 = vunpack.c.l.b16 %v3077
    %v5334 = vunpack.c.h.b16 %v3077
    %v5335 = vunpack.c.l.b16 %v3078
    %v5336 = vunpack.c.h.b16 %v3078
    %v5337 = vunpack.c.l.b16 %v3079
    %v5338 = vunpack.c.h.b16 %v3079
    %v5339 = vunpack.c.l.b16 %v3080
    %v5340 = vunpack.c.h.b16 %v3080
    %v5341 = vunpack.c.l.b16 %v3081
    %v5342 = vunpack.c.h.b16 %v3081
    %v5343 = vunpack.c.l.b16 %v3082
    %v5344 = vunpack.c.h.b16 %v3082
    %v5345 = vunpack.c.l.b16 %v3083
    %v5346 = vunpack.c.h.b16 %v3083
    %v5347 = vunpack.c.l.b16 %v3084
    %v5348 = vunpack.c.h.b16 %v3084
    %v5349 = vunpack.c.l.b16 %v3085
    %v5350 = vunpack.c.h.b16 %v3085
    %v5351 = vunpack.c.l.b16 %v3086
    %v5352 = vunpack.c.h.b16 %v3086
    %v5353 = vunpack.c.l.b16 %v3087
    %v5354 = vunpack.c.h.b16 %v3087
    %v5355 = vunpack.c.l.b16 %v3088
    %v5356 = vunpack.c.h.b16 %v3088
    %v5357 = vunpack.c.l.b16 %v3089
    %v5358 = vunpack.c.h.b16 %v3089
    %v5359 = vunpack.c.l.b16 %v3090
    %v5360 = vunpack.c.h.b16 %v3090
    %v5361 = vunpack.c.l.b16 %v3091
    %v5362 = vunpack.c.h.b16 %v3091
    %v5363 = vunpack.c.l.b16 %v3092
    %v5364 = vunpack.c.h.b16 %v3092
    %v5365 = vunpack.c.l.b16 %v3093
    %v5366 = vunpack.c.h.b16 %v3093
    %v5367 = vunpack.c.l.b16 %v3094
    %v5368 = vunpack.c.h.b16 %v3094
    %v5369 = vunpack.c.l.b16 %v3095
    %v5370 = vunpack.c.h.b16 %v3095
    %v5371 = vunpack.c.l.b16 %v3096
    %v5372 = vunpack.c.h.b16 %v3096
    %v5373 = vunpack.c.l.b16 %v3097
    %v5374 = vunpack.c.h.b16 %v3097
    %v5375 = vunpack.c.l.b16 %v3098
    %v5376 = vunpack.c.h.b16 %v3098
    %v5377 = vunpack.c.l.b16 %v3099
    %v5378 = vunpack.c.h.b16 %v3099
    %v5379 = vunpack.c.l.b16 %v3100
    %v5380 = vunpack.c.h.b16 %v3100
    %v5381 = vunpack.c.l.b16 %v3101
    %v5382 = vunpack.c.h.b16 %v3101
    %v5383 = vunpack.c.l.b16 %v3102
    %v5384 = vunpack.c.h.b16 %v3102
    %v5385 = vunpack.c.l.b16 %v3103
    %v5386 = vunpack.c.h.b16 %v3103
    %v5387 = vunpack.c.l.b16 %v3104
    %v5388 = vunpack.c.h.b16 %v3104
    %v5389 = vunpack.c.l.b16 %v3105
    %v5390 = vunpack.c.h.b16 %v3105
    %v5391 = vunpack.c.l.b16 %v3106
    %v5392 = vunpack.c.h.b16 %v3106
    %v5393 = vunpack.c.l.b16 %v3107
    %v5394 = vunpack.c.h.b16 %v3107
    %v5395 = vunpack.c.l.b16 %v3108
    %v5396 = vunpack.c.h.b16 %v3108
    %v5397 = vunpack.c.l.b16 %v3109
    %v5398 = vunpack.c.h.b16 %v3109
    %v5399 = vunpack.c.l.b16 %v3110
    %v5400 = vunpack.c.h.b16 %v3110
    %v5401 = vunpack.c.l.b16 %v3111
    %v5402 = vunpack.c.h.b16 %v3111
    %v5403 = vunpack.c.l.b16 %v3112
    %v5404 = vunpack.c.h.b16 %v3112
    %v5405 = vunpack.c.l.b16 %v3113
    %v5406 = vunpack.c.h.b16 %v3113
    %v5407 = vunpack.c.l.b16 %v3114
    %v5408 = vunpack.c.h.b16 %v3114
    %v5409 = vunpack.c.l.b16 %v3115
    %v5410 = vunpack.c.h.b16 %v3115
    %v5411 = vunpack.c.l.b16 %v3116
    %v5412 = vunpack.c.h.b16 %v3116
    %v5413 = vunpack.c.l.b16 %v3117
    %v5414 = vunpack.c.h.b16 %v3117
    %v5415 = vunpack.c.l.b16 %v3118
    %v5416 = vunpack.c.h.b16 %v3118
    %v5417 = vunpack.c.l.b16 %v3119
    %v5418 = vunpack.c.h.b16 %v3119
    %v5419 = vunpack.c.l.b16 %v3120
    %v5420 = vunpack.c.h.b16 %v3120
    %v5421 = vunpack.c.l.b16 %v3121
    %v5422 = vunpack.c.h.b16 %v3121
    %v5423 = vunpack.c.l.b16 %v3122
    %v5424 = vunpack.c.h.b16 %v3122
    %v5425 = vunpack.c.l.b16 %v3123
    %v5426 = vunpack.c.h.b16 %v3123
    %v5427 = vunpack.c.l.b16 %v3124
    %v5428 = vunpack.c.h.b16 %v3124
    %v5429 = vunpack.c.l.b16 %v3125
    %v5430 = vunpack.c.h.b16 %v3125
    %v5431 = vunpack.c.l.b16 %v3126
    %v5432 = vunpack.c.h.b16 %v3126
    %v5433 = vunpack.c.l.b16 %v3127
    %v5434 = vunpack.c.h.b16 %v3127
    %v5435 = vunpack.c.l.b16 %v3128
    %v5436 = vunpack.c.h.b16 %v3128
    %v5437 = vunpack.c.l.b16 %v3129
    %v5438 = vunpack.c.h.b16 %v3129
    %v5439 = vunpack.c.l.b16 %v3130
    %v5440 = vunpack.c.h.b16 %v3130
    %v5441 = vunpack.c.l.b16 %v3131
    %v5442 = vunpack.c.h.b16 %v3131
    %v5443 = vunpack.c.l.b16 %v3132
    %v5444 = vunpack.c.h.b16 %v3132
    %v5445 = vunpack.c.l.b16 %v3133
    %v5446 = vunpack.c.h.b16 %v3133
    %v5447 = vunpack.c.l.b16 %v3134
    %v5448 = vunpack.c.h.b16 %v3134
    %v5449 = vunpack.c.l.b16 %v3135
    %v5450 = vunpack.c.h.b16 %v3135
    %v5451 = vunpack.c.l.b16 %v3136
    %v5452 = vunpack.c.h.b16 %v3136
    %v5453 = vunpack.c.l.b16 %v3137
    %v5454 = vunpack.c.h.b16 %v3137
    %v5455 = vunpack.c.l.b16 %v3138
    %v5456 = vunpack.c.h.b16 %v3138
    %v5457 = vunpack.c.l.b16 %v3139
    %v5458 = vunpack.c.h.b16 %v3139
    %v5459 = vunpack.c.l.b16 %v3140
    %v5460 = vunpack.c.h.b16 %v3140
    %v5461 = vunpack.c.l.b16 %v3141
    %v5462 = vunpack.c.h.b16 %v3141
    %v5463 = vunpack.c.l.b16 %v3142
    %v5464 = vunpack.c.h.b16 %v3142
    %v5465 = vunpack.c.l.b16 %v3143
    %v5466 = vunpack.c.h.b16 %v3143
    %v5467 = vunpack.c.l.b16 %v3144
    %v5468 = vunpack.c.h.b16 %v3144
    %v5469 = vunpack.c.l.b16 %v3145
    %v5470 = vunpack.c.h.b16 %v3145
    %v5471 = vunpack.c.l.b16 %v3146
    %v5472 = vunpack.c.h.b16 %v3146
    %v5473 = vunpack.c.l.b16 %v3147
    %v5474 = vunpack.c.h.b16 %v3147
    %v5475 = vunpack.c.l.b16 %v3148
    %v5476 = vunpack.c.h.b16 %v3148
    %v5477 = vunpack.c.l.b16 %v3149
    %v5478 = vunpack.c.h.b16 %v3149
    %v5479 = vunpack.c.l.b16 %v3150
    %v5480 = vunpack.c.h.b16 %v3150
    %v5481 = vunpack.c.l.b16 %v3151
    %v5482 = vunpack.c.h.b16 %v3151
    %v5483 = vunpack.c.l.b16 %v3152
    %v5484 = vunpack.c.h.b16 %v3152
    %v5485 = vunpack.c.l.b16 %v3153
    %v5486 = vunpack.c.h.b16 %v3153
    %v5487 = vunpack.c.l.b16 %v3154
    %v5488 = vunpack.c.h.b16 %v3154
    %v5489 = vunpack.c.l.b16 %v3155
    %v5490 = vunpack.c.h.b16 %v3155
    %v5491 = vunpack.c.l.b16 %v3156
    %v5492 = vunpack.c.h.b16 %v3156
    %v5493 = vunpack.c.l.b16 %v3157
    %v5494 = vunpack.c.h.b16 %v3157
    %v5495 = vunpack.c.l.b16 %v3158
    %v5496 = vunpack.c.h.b16 %v3158
    %v5497 = vunpack.c.l.b16 %v3159
    %v5498 = vunpack.c.h.b16 %v3159
    %v5499 = vunpack.c.l.b16 %v3160
    %v5500 = vunpack.c.h.b16 %v3160
    %v5501 = vunpack.c.l.b16 %v3161
    %v5502 = vunpack.c.h.b16 %v3161
    %v5503 = vunpack.c.l.b16 %v3162
    %v5504 = vunpack.c.h.b16 %v3162
    %v5505 = vunpack.c.l.b16 %v3163
    %v5506 = vunpack.c.h.b16 %v3163
    %v5507 = vunpack.c.l.b16 %v3164
    %v5508 = vunpack.c.h.b16 %v3164
    %v5509 = vunpack.c.l.b16 %v3165
    %v5510 = vunpack.c.h.b16 %v3165
    %v5511 = vunpack.c.l.b16 %v3166
    %v5512 = vunpack.c.h.b16 %v3166
    %v5513 = vunpack.c.l.b16 %v3167
    %v5514 = vunpack.c.h.b16 %v3167
    %v5515 = vunpack.c.l.b16 %v3168
    %v5516 = vunpack.c.h.b16 %v3168
    %v5517 = vunpack.c.l.b16 %v3169
    %v5518 = vunpack.c.h.b16 %v3169
    %v5519 = vunpack.c.l.b16 %v3170
    %v5520 = vunpack.c.h.b16 %v3170
    %v5521 = vunpack.c.l.b16 %v3171
    %v5522 = vunpack.c.h.b16 %v3171
    %v5523 = vunpack.c.l.b16 %v3172
    %v5524 = vunpack.c.h.b16 %v3172
    %v5525 = vunpack.c.l.b16 %v3173
    %v5526 = vunpack.c.h.b16 %v3173
    %v5527 = vunpack.c.l.b16 %v3174
    %v5528 = vunpack.c.h.b16 %v3174
    %v5529 = vunpack.c.l.b16 %v3175
    %v5530 = vunpack.c.h.b16 %v3175
    %v5531 = vunpack.c.l.b16 %v3176
    %v5532 = vunpack.c.h.b16 %v3176
    %v5533 = vunpack.c.l.b16 %v3177
    %v5534 = vunpack.c.h.b16 %v3177
    %v5535 = vunpack.c.l.b16 %v3178
    %v5536 = vunpack.c.h.b16 %v3178
    %v5537 = vunpack.c.l.b16 %v3179
    %v5538 = vunpack.c.h.b16 %v3179
    %v5539 = vunpack.c.l.b16 %v3180
    %v5540 = vunpack.c.h.b16 %v3180
    %v5541 = vunpack.c.l.b16 %v3181
    %v5542 = vunpack.c.h.b16 %v3181
    %v5543 = vunpack.c.l.b16 %v3182
    %v5544 = vunpack.c.h.b16 %v3182
    %v5545 = vunpack.c.l.b16 %v3183
    %v5546 = vunpack.c.h.b16 %v3183
    %v5547 = vunpack.c.l.b16 %v3184
    %v5548 = vunpack.c.h.b16 %v3184
    %v5549 = vunpack.c.l.b16 %v3185
    %v5550 = vunpack.c.h.b16 %v3185
    %v5551 = vunpack.c.l.b16 %v3186
    %v5552 = vunpack.c.h.b16 %v3186
    %v5553 = vunpack.c.l.b16 %v3187
    %v5554 = vunpack.c.h.b16 %v3187
    %v5555 = vunpack.c.l.b16 %v3188
    %v5556 = vunpack.c.h.b16 %v3188
    %v5557 = vunpack.c.l.b16 %v3189
    %v5558 = vunpack.c.h.b16 %v3189
    %v5559 = vunpack.c.l.b16 %v3190
    %v5560 = vunpack.c.h.b16 %v3190
    %v5561 = vunpack.c.l.b16 %v3191
    %v5562 = vunpack.c.h.b16 %v3191
    %v5563 = vunpack.c.l.b16 %v3192
    %v5564 = vunpack.c.h.b16 %v3192
    %v5565 = vunpack.c.l.b16 %v3193
    %v5566 = vunpack.c.h.b16 %v3193
    %v5567 = vunpack.c.l.b16 %v3194
    %v5568 = vunpack.c.h.b16 %v3194
    %v5569 = vunpack.c.l.b16 %v3195
    %v5570 = vunpack.c.h.b16 %v3195
    %v5571 = vunpack.c.l.b16 %v3196
    %v5572 = vunpack.c.h.b16 %v3196
    %v5573 = vunpack.c.l.b16 %v3197
    %v5574 = vunpack.c.h.b16 %v3197
    %v5575 = vunpack.c.l.b16 %v3198
    %v5576 = vunpack.c.h.b16 %v3198
    %v5577 = vunpack.c.l.b16 %v3199
    %v5578 = vunpack.c.h.b16 %v3199
    %v5579 = vunpack.c.l.b16 %v3200
    %v5580 = vunpack.c.h.b16 %v3200
    %v5581 = vunpack.c.l.b16 %v3201
    %v5582 = vunpack.c.h.b16 %v3201
    %v5583 = vunpack.c.l.b16 %v3202
    %v5584 = vunpack.c.h.b16 %v3202
    %v5585 = vunpack.c.l.b16 %v3203
    %v5586 = vunpack.c.h.b16 %v3203
    %v5587 = vunpack.c.l.b16 %v3204
    %v5588 = vunpack.c.h.b16 %v3204
    %v5589 = vunpack.c.l.b16 %v3205
    %v5590 = vunpack.c.h.b16 %v3205
    %v5591 = vunpack.c.l.b16 %v3206
    %v5592 = vunpack.c.h.b16 %v3206
    %v5593 = vunpack.c.l.b16 %v3207
    %v5594 = vunpack.c.h.b16 %v3207
    %v5595 = vunpack.c.l.b16 %v3208
    %v5596 = vunpack.c.h.b16 %v3208
    %v5597 = vunpack.c.l.b16 %v3209
    %v5598 = vunpack.c.h.b16 %v3209
    %v5599 = vunpack.c.l.b16 %v3210
    %v5600 = vunpack.c.h.b16 %v3210
    %v5601 = vunpack.c.l.b16 %v3211
    %v5602 = vunpack.c.h.b16 %v3211
    %v5603 = vunpack.c.l.b16 %v3212
    %v5604 = vunpack.c.h.b16 %v3212
    %v5605 = vunpack.c.l.b16 %v3213
    %v5606 = vunpack.c.h.b16 %v3213
    %v5607 = vunpack.c.l.b16 %v3214
    %v5608 = vunpack.c.h.b16 %v3214
    %v5609 = vunpack.c.l.b16 %v3215
    %v5610 = vunpack.c.h.b16 %v3215
    %v5611 = vunpack.c.l.b16 %v3216
    %v5612 = vunpack.c.h.b16 %v3216
    %v5613 = vunpack.c.l.b16 %v3217
    %v5614 = vunpack.c.h.b16 %v3217
    %v5615 = vunpack.c.l.b16 %v3218
    %v5616 = vunpack.c.h.b16 %v3218
    %v5617 = vunpack.c.l.b16 %v3219
    %v5618 = vunpack.c.h.b16 %v3219
    %v5619 = vunpack.c.l.b16 %v3220
    %v5620 = vunpack.c.h.b16 %v3220
    %v5621 = vunpack.c.l.b16 %v3221
    %v5622 = vunpack.c.h.b16 %v3221
    %v5623 = vunpack.c.l.b16 %v3222
    %v5624 = vunpack.c.h.b16 %v3222
    %v5625 = vunpack.c.l.b16 %v3223
    %v5626 = vunpack.c.h.b16 %v3223
    %v5627 = vunpack.c.l.b16 %v3224
    %v5628 = vunpack.c.h.b16 %v3224
    %v5629 = vunpack.c.l.b16 %v3225
    %v5630 = vunpack.c.h.b16 %v3225
    %v5631 = vunpack.c.l.b16 %v3226
    %v5632 = vunpack.c.h.b16 %v3226
    %v5633 = vunpack.c.l.b16 %v3227
    %v5634 = vunpack.c.h.b16 %v3227
    %v5635 = vunpack.c.l.b16 %v3228
    %v5636 = vunpack.c.h.b16 %v3228
    %v5637 = vunpack.c.l.b16 %v3229
    %v5638 = vunpack.c.h.b16 %v3229
    %v5639 = vunpack.c.l.b16 %v3230
    %v5640 = vunpack.c.h.b16 %v3230
    %v5641 = vunpack.c.l.b16 %v3231
    %v5642 = vunpack.c.h.b16 %v3231
    %v5643 = vunpack.c.l.b16 %v3232
    %v5644 = vunpack.c.h.b16 %v3232
    %v5645 = vunpack.c.l.b16 %v3233
    %v5646 = vunpack.c.h.b16 %v3233
    %v5647 = vunpack.c.l.b16 %v3234
    %v5648 = vunpack.c.h.b16 %v3234
    %v5649 = vunpack.c.l.b16 %v3235
    %v5650 = vunpack.c.h.b16 %v3235
    %v5651 = vunpack.c.l.b16 %v3236
    %v5652 = vunpack.c.h.b16 %v3236
    %v5653 = vunpack.c.l.b16 %v3237
    %v5654 = vunpack.c.h.b16 %v3237
    %v5655 = vunpack.c.l.b16 %v3238
    %v5656 = vunpack.c.h.b16 %v3238
    %v5657 = vunpack.c.l.b16 %v3239
    %v5658 = vunpack.c.h.b16 %v3239
    %v5659 = vunpack.c.l.b16 %v3240
    %v5660 = vunpack.c.h.b16 %v3240
    %v5661 = vunpack.c.l.b16 %v3241
    %v5662 = vunpack.c.h.b16 %v3241
    %v5663 = vunpack.c.l.b16 %v3242
    %v5664 = vunpack.c.h.b16 %v3242
    %v5665 = vunpack.c.l.b16 %v3243
    %v5666 = vunpack.c.h.b16 %v3243
    %v5667 = vunpack.c.l.b16 %v3244
    %v5668 = vunpack.c.h.b16 %v3244
    %v5669 = vunpack.c.l.b16 %v3245
    %v5670 = vunpack.c.h.b16 %v3245
    %v5671 = vunpack.c.l.b16 %v3246
    %v5672 = vunpack.c.h.b16 %v3246
    %v5673 = vunpack.c.l.b16 %v3247
    %v5674 = vunpack.c.h.b16 %v3247
    %v5675 = vunpack.c.l.b16 %v3248
    %v5676 = vunpack.c.h.b16 %v3248
    %v5677 = vunpack.c.l.b16 %v3249
    %v5678 = vunpack.c.h.b16 %v3249
    %v5679 = vunpack.c.l.b16 %v3250
    %v5680 = vunpack.c.h.b16 %v3250
    %v5681 = vunpack.c.l.b16 %v3251
    %v5682 = vunpack.c.h.b16 %v3251
    %v5683 = vunpack.c.l.b16 %v3252
    %v5684 = vunpack.c.h.b16 %v3252
    %v5685 = vunpack.c.l.b16 %v3253
    %v5686 = vunpack.c.h.b16 %v3253
    %v5687 = vunpack.c.l.b16 %v3254
    %v5688 = vunpack.c.h.b16 %v3254
    %v5689 = vunpack.c.l.b16 %v3255
    %v5690 = vunpack.c.h.b16 %v3255
    %v5691 = vunpack.c.l.b16 %v3256
    %v5692 = vunpack.c.h.b16 %v3256
    %v5693 = vunpack.c.l.b16 %v3257
    %v5694 = vunpack.c.h.b16 %v3257
    %v5695 = vunpack.c.l.b16 %v3258
    %v5696 = vunpack.c.h.b16 %v3258
    %v5697 = vunpack.c.l.b16 %v3259
    %v5698 = vunpack.c.h.b16 %v3259
    %v5699 = vunpack.c.l.b16 %v3260
    %v5700 = vunpack.c.h.b16 %v3260
    %v5701 = vunpack.c.l.b16 %v3261
    %v5702 = vunpack.c.h.b16 %v3261
    %v5703 = vunpack.c.l.b16 %v3262
    %v5704 = vunpack.c.h.b16 %v3262
    %v5705 = vunpack.c.l.b16 %v3263
    %v5706 = vunpack.c.h.b16 %v3263
    %v5707 = vunpack.c.l.b16 %v3264
    %v5708 = vunpack.c.h.b16 %v3264
    %v5709 = vunpack.c.l.b16 %v3265
    %v5710 = vunpack.c.h.b16 %v3265
    %v5711 = vunpack.c.l.b16 %v3266
    %v5712 = vunpack.c.h.b16 %v3266
    %v5713 = vunpack.c.l.b16 %v3267
    %v5714 = vunpack.c.h.b16 %v3267
    %v5715 = vunpack.c.l.b16 %v3268
    %v5716 = vunpack.c.h.b16 %v3268
    %v5717 = vunpack.c.l.b16 %v3269
    %v5718 = vunpack.c.h.b16 %v3269
    %v5719 = vunpack.c.l.b16 %v3270
    %v5720 = vunpack.c.h.b16 %v3270
    %v5721 = vunpack.c.l.b16 %v3271
    %v5722 = vunpack.c.h.b16 %v3271
    %v5723 = vunpack.c.l.b16 %v3272
    %v5724 = vunpack.c.h.b16 %v3272
    %v5725 = vunpack.c.l.b16 %v3273
    %v5726 = vunpack.c.h.b16 %v3273
    %v5727 = vunpack.c.l.b16 %v3274
    %v5728 = vunpack.c.h.b16 %v3274
    %v5729 = vunpack.c.l.b16 %v3275
    %v5730 = vunpack.c.h.b16 %v3275
    %v5731 = vunpack.c.l.b16 %v3276
    %v5732 = vunpack.c.h.b16 %v3276
    %v5733 = vunpack.c.l.b16 %v3277
    %v5734 = vunpack.c.h.b16 %v3277
    %v5735 = vunpack.c.l.b16 %v3278
    %v5736 = vunpack.c.h.b16 %v3278
    %v5737 = vunpack.c.l.b16 %v3279
    %v5738 = vunpack.c.h.b16 %v3279
    %v5739 = vunpack.c.l.b16 %v3280
    %v5740 = vunpack.c.h.b16 %v3280
    %v5741 = vunpack.c.l.b16 %v3281
    %v5742 = vunpack.c.h.b16 %v3281
    %v5743 = vunpack.c.l.b16 %v3282
    %v5744 = vunpack.c.h.b16 %v3282
    %v5745 = vunpack.c.l.b16 %v3283
    %v5746 = vunpack.c.h.b16 %v3283
    %v5747 = vunpack.c.l.b16 %v3284
    %v5748 = vunpack.c.h.b16 %v3284
    %v5749 = vunpack.c.l.b16 %v3285
    %v5750 = vunpack.c.h.b16 %v3285
    %v5751 = vunpack.c.l.b16 %v3286
    %v5752 = vunpack.c.h.b16 %v3286
    %v5753 = vunpack.c.l.b16 %v3287
    %v5754 = vunpack.c.h.b16 %v3287
    %v5755 = vunpack.c.l.b16 %v3288
    %v5756 = vunpack.c.h.b16 %v3288
    %v5757 = vunpack.c.l.b16 %v3289
    %v5758 = vunpack.c.h.b16 %v3289
    %v5759 = vunpack.c.l.b16 %v3290
    %v5760 = vunpack.c.h.b16 %v3290
    %v5761 = vunpack.c.l.b16 %v3291
    %v5762 = vunpack.c.h.b16 %v3291
    %v5763 = vunpack.c.l.b16 %v3292
    %v5764 = vunpack.c.h.b16 %v3292
    %v5765 = vunpack.c.l.b16 %v3293
    %v5766 = vunpack.c.h.b16 %v3293
    %v5767 = vunpack.c.l.b16 %v3294
    %v5768 = vunpack.c.h.b16 %v3294
    %v5769 = vunpack.c.l.b16 %v3295
    %v5770 = vunpack.c.h.b16 %v3295
    %v5771 = vunpack.c.l.b16 %v3296
    %v5772 = vunpack.c.h.b16 %v3296
    %v5773 = vunpack.c.l.b16 %v3297
    %v5774 = vunpack.c.h.b16 %v3297
    %v5775 = vunpack.c.l.b16 %v3298
    %v5776 = vunpack.c.h.b16 %v3298
    %v5777 = vunpack.c.l.b16 %v3299
    %v5778 = vunpack.c.h.b16 %v3299
    %v5779 = vunpack.c.l.b16 %v3300
    %v5780 = vunpack.c.h.b16 %v3300
    %v5781 = vunpack.c.l.b16 %v3301
    %v5782 = vunpack.c.h.b16 %v3301
    %v5783 = vunpack.c.l.b16 %v3302
    %v5784 = vunpack.c.h.b16 %v3302
    %v5785 = vunpack.c.l.b16 %v3303
    %v5786 = vunpack.c.h.b16 %v3303
    %v5787 = vunpack.c.l.b16 %v3304
    %v5788 = vunpack.c.h.b16 %v3304
    %v5789 = vunpack.c.l.b16 %v3305
    %v5790 = vunpack.c.h.b16 %v3305
    %v5791 = vunpack.c.l.b16 %v3306
    %v5792 = vunpack.c.h.b16 %v3306
    %v5793 = vunpack.c.l.b16 %v3307
    %v5794 = vunpack.c.h.b16 %v3307
    %v5795 = vunpack.c.l.b16 %v3308
    %v5796 = vunpack.c.h.b16 %v3308
    %v5797 = vunpack.c.l.b16 %v3309
    %v5798 = vunpack.c.h.b16 %v3309
    %v5799 = vunpack.c.l.b16 %v3310
    %v5800 = vunpack.c.h.b16 %v3310
    %v5801 = vunpack.c.l.b16 %v3311
    %v5802 = vunpack.c.h.b16 %v3311
    %v5803 = vunpack.c.l.b16 %v3312
    %v5804 = vunpack.c.h.b16 %v3312
    %v5805 = vunpack.c.l.b16 %v3313
    %v5806 = vunpack.c.h.b16 %v3313
    %v5807 = vunpack.c.l.b16 %v3314
    %v5808 = vunpack.c.h.b16 %v3314
    %v5809 = vunpack.c.l.b16 %v3315
    %v5810 = vunpack.c.h.b16 %v3315
    %v5811 = vunpack.c.l.b16 %v3316
    %v5812 = vunpack.c.h.b16 %v3316
    %v5813 = vunpack.c.l.b16 %v3317
    %v5814 = vunpack.c.h.b16 %v3317
    %v5815 = vunpack.c.l.b16 %v3318
    %v5816 = vunpack.c.h.b16 %v3318
    %v5817 = vunpack.c.l.b16 %v3319
    %v5818 = vunpack.c.h.b16 %v3319
    %v5819 = vunpack.c.l.b16 %v3320
    %v5820 = vunpack.c.h.b16 %v3320
    %v5821 = vunpack.c.l.b16 %v3321
    %v5822 = vunpack.c.h.b16 %v3321
    %v5823 = vunpack.c.l.b16 %v3322
    %v5824 = vunpack.c.h.b16 %v3322
    %v5825 = vunpack.c.l.b16 %v3323
    %v5826 = vunpack.c.h.b16 %v3323
    %v5827 = vunpack.c.l.b16 %v3324
    %v5828 = vunpack.c.h.b16 %v3324
    %v5829 = vunpack.c.l.b16 %v3325
    %v5830 = vunpack.c.h.b16 %v3325
    %v5831 = vunpack.c.l.b16 %v3326
    %v5832 = vunpack.c.h.b16 %v3326
    %v5833 = vunpack.c.l.b16 %v3327
    %v5834 = vunpack.c.h.b16 %v3327
    %v5835 = vunpack.c.l.b16 %v3328
    %v5836 = vunpack.c.h.b16 %v3328
    %v5837 = vunpack.c.l.b16 %v3329
    %v5838 = vunpack.c.h.b16 %v3329
    %v5839 = vunpack.c.l.b16 %v3330
    %v5840 = vunpack.c.h.b16 %v3330
    %v5841 = vunpack.c.l.b16 %v3331
    %v5842 = vunpack.c.h.b16 %v3331
    %v5843 = vunpack.c.l.b16 %v3332
    %v5844 = vunpack.c.h.b16 %v3332
    %v5845 = vunpack.c.l.b16 %v3333
    %v5846 = vunpack.c.h.b16 %v3333
    %v5847 = vunpack.c.l.b16 %v3334
    %v5848 = vunpack.c.h.b16 %v3334
    %v5849 = vunpack.c.l.b16 %v3335
    %v5850 = vunpack.c.h.b16 %v3335
    %v5851 = vunpack.c.l.b16 %v3336
    %v5852 = vunpack.c.h.b16 %v3336
    %v5853 = vunpack.c.l.b16 %v3337
    %v5854 = vunpack.c.h.b16 %v3337
    %v5855 = vunpack.c.l.b16 %v3338
    %v5856 = vunpack.c.h.b16 %v3338
    %v5857 = vunpack.c.l.b16 %v3339
    %v5858 = vunpack.c.h.b16 %v3339
    %v5859 = vunpack.c.l.b16 %v3340
    %v5860 = vunpack.c.h.b16 %v3340
    %v5861 = vunpack.c.l.b16 %v3341
    %v5862 = vunpack.c.h.b16 %v3341
    %v5863 = vunpack.c.l.b16 %v3342
    %v5864 = vunpack.c.h.b16 %v3342
    %v5865 = vunpack.c.l.b16 %v3343
    %v5866 = vunpack.c.h.b16 %v3343
    %v5867 = vunpack.c.l.b16 %v3344
    %v5868 = vunpack.c.h.b16 %v3344
    %v5869 = vunpack.c.l.b16 %v3345
    %v5870 = vunpack.c.h.b16 %v3345
    %v5871 = vunpack.c.l.b16 %v3346
    %v5872 = vunpack.c.h.b16 %v3346
    %v5873 = vunpack.c.l.b16 %v3347
    %v5874 = vunpack.c.h.b16 %v3347
    %v5875 = vunpack.c.l.b16 %v3348
    %v5876 = vunpack.c.h.b16 %v3348
    %v5877 = vunpack.c.l.b16 %v3349
    %v5878 = vunpack.c.h.b16 %v3349
    %v5879 = vunpack.c.l.b16 %v3350
    %v5880 = vunpack.c.h.b16 %v3350
    %v5881 = vunpack.c.l.b16 %v3351
    %v5882 = vunpack.c.h.b16 %v3351
    %v5883 = vunpack.c.l.b16 %v3352
    %v5884 = vunpack.c.h.b16 %v3352
    %v5885 = vunpack.c.l.b16 %v3353
    %v5886 = vunpack.c.h.b16 %v3353
    %v5887 = vunpack.c.l.b16 %v3354
    %v5888 = vunpack.c.h.b16 %v3354
    %v5889 = vunpack.c.l.b16 %v3355
    %v5890 = vunpack.c.h.b16 %v3355
    %v5891 = vunpack.c.l.b16 %v3356
    %v5892 = vunpack.c.h.b16 %v3356
    %v5893 = vunpack.c.l.b16 %v3357
    %v5894 = vunpack.c.h.b16 %v3357
    %v5895 = vunpack.c.l.b16 %v3358
    %v5896 = vunpack.c.h.b16 %v3358
    %v5897 = vunpack.c.l.b16 %v3359
    %v5898 = vunpack.c.h.b16 %v3359
    %v5899 = vunpack.c.l.b16 %v3360
    %v5900 = vunpack.c.h.b16 %v3360
    %v5901 = vunpack.c.l.b16 %v3361
    %v5902 = vunpack.c.h.b16 %v3361
    %v5903 = vunpack.c.l.b16 %v3362
    %v5904 = vunpack.c.h.b16 %v3362
    %v5905 = vunpack.c.l.b16 %v3363
    %v5906 = vunpack.c.h.b16 %v3363
    %v5907 = vunpack.c.l.b16 %v3364
    %v5908 = vunpack.c.h.b16 %v3364
    %v5909 = vunpack.c.l.b16 %v3365
    %v5910 = vunpack.c.h.b16 %v3365
    %v5911 = vunpack.c.l.b16 %v3366
    %v5912 = vunpack.c.h.b16 %v3366
    %v5913 = vunpack.c.l.b16 %v3367
    %v5914 = vunpack.c.h.b16 %v3367
    %v5915 = vunpack.c.l.b16 %v3368
    %v5916 = vunpack.c.h.b16 %v3368
    %v5917 = vunpack.c.l.b16 %v3369
    %v5918 = vunpack.c.h.b16 %v3369
    %v5919 = vunpack.c.l.b16 %v3370
    %v5920 = vunpack.c.h.b16 %v3370
    %v5921 = vunpack.c.l.b16 %v3371
    %v5922 = vunpack.c.h.b16 %v3371
    %v5923 = vunpack.c.l.b16 %v3372
    %v5924 = vunpack.c.h.b16 %v3372
    %v5925 = vunpack.c.l.b16 %v3373
    %v5926 = vunpack.c.h.b16 %v3373
    %v5927 = vunpack.c.l.b16 %v3374
    %v5928 = vunpack.c.h.b16 %v3374
    %v5929 = vunpack.c.l.b16 %v3375
    %v5930 = vunpack.c.h.b16 %v3375
    %v5931 = vunpack.c.l.b16 %v3376
    %v5932 = vunpack.c.h.b16 %v3376
    %v5933 = vunpack.c.l.b16 %v3377
    %v5934 = vunpack.c.h.b16 %v3377
    %v5935 = vunpack.c.l.b16 %v3378
    %v5936 = vunpack.c.h.b16 %v3378
    %v5937 = vunpack.c.l.b16 %v3379
    %v5938 = vunpack.c.h.b16 %v3379
    %v5939 = vunpack.c.l.b16 %v3380
    %v5940 = vunpack.c.h.b16 %v3380
    %v5941 = vunpack.c.l.b16 %v3381
    %v5942 = vunpack.c.h.b16 %v3381
    %v5943 = vunpack.c.l.b16 %v3382
    %v5944 = vunpack.c.h.b16 %v3382
    %v5945 = vunpack.c.l.b16 %v3383
    %v5946 = vunpack.c.h.b16 %v3383
    %v5947 = vunpack.c.l.b16 %v3384
    %v5948 = vunpack.c.h.b16 %v3384
    %v5949 = vunpack.c.l.b16 %v3385
    %v5950 = vunpack.c.h.b16 %v3385
    %v5951 = vunpack.c.l.b16 %v3386
    %v5952 = vunpack.c.h.b16 %v3386
    %v5953 = vunpack.c.l.b16 %v3387
    %v5954 = vunpack.c.h.b16 %v3387
    %v5955 = vunpack.c.l.b16 %v3388
    %v5956 = vunpack.c.h.b16 %v3388
    %v5957 = vunpack.c.l.b16 %v3389
    %v5958 = vunpack.c.h.b16 %v3389
    %v5959 = vunpack.c.l.b16 %v3390
    %v5960 = vunpack.c.h.b16 %v3390
    %v5961 = vunpack.c.l.b16 %v3391
    %v5962 = vunpack.c.h.b16 %v3391
    %v5963 = vunpack.c.l.b16 %v3392
    %v5964 = vunpack.c.h.b16 %v3392
    %v5965 = vunpack.c.l.b16 %v3393
    %v5966 = vunpack.c.h.b16 %v3393
    %v5967 = vunpack.c.l.b16 %v3394
    %v5968 = vunpack.c.h.b16 %v3394
    %v5969 = vunpack.c.l.b16 %v3395
    %v5970 = vunpack.c.h.b16 %v3395
    %v5971 = vunpack.c.l.b16 %v3396
    %v5972 = vunpack.c.h.b16 %v3396
    %v5973 = vunpack.c.l.b16 %v3397
    %v5974 = vunpack.c.h.b16 %v3397
    %v5975 = vunpack.c.l.b16 %v3398
    %v5976 = vunpack.c.h.b16 %v3398
    %v5977 = vunpack.c.l.b16 %v3399
    %v5978 = vunpack.c.h.b16 %v3399
    %v5979 = vunpack.c.l.b16 %v3400
    %v5980 = vunpack.c.h.b16 %v3400
    %v5981 = vunpack.c.l.b16 %v3401
    %v5982 = vunpack.c.h.b16 %v3401
    %v5983 = vunpack.c.l.b16 %v3402
    %v5984 = vunpack.c.h.b16 %v3402
    %v5985 = vunpack.c.l.b16 %v3403
    %v5986 = vunpack.c.h.b16 %v3403
    %v5987 = vunpack.c.l.b16 %v3404
    %v5988 = vunpack.c.h.b16 %v3404
    %v5989 = vunpack.c.l.b16 %v3405
    %v5990 = vunpack.c.h.b16 %v3405
    %v5991 = vunpack.c.l.b16 %v3406
    %v5992 = vunpack.c.h.b16 %v3406
    %v5993 = vunpack.c.l.b16 %v3407
    %v5994 = vunpack.c.h.b16 %v3407
    %v5995 = vunpack.c.l.b16 %v3408
    %v5996 = vunpack.c.h.b16 %v3408
    %v5997 = vunpack.c.l.b16 %v3409
    %v5998 = vunpack.c.h.b16 %v3409
    %v5999 = vunpack.c.l.b16 %v3410
    %v6000 = vunpack.c.h.b16 %v3410
    %v6001 = vunpack.c.l.b16 %v3411
    %v6002 = vunpack.c.h.b16 %v3411
    %v6003 = vunpack.c.l.b16 %v3412
    %v6004 = vunpack.c.h.b16 %v3412
    %v6005 = vunpack.c.l.b16 %v3413
    %v6006 = vunpack.c.h.b16 %v3413
    %v6007 = vunpack.c.l.b16 %v3414
    %v6008 = vunpack.c.h.b16 %v3414
    %v6009 = vunpack.c.l.b16 %v3415
    %v6010 = vunpack.c.h.b16 %v3415
    %v6011 = vunpack.c.l.b16 %v3416
    %v6012 = vunpack.c.h.b16 %v3416
    %v6013 = vunpack.c.l.b16 %v3417
    %v6014 = vunpack.c.h.b16 %v3417
    %v6015 = vunpack.c.l.b16 %v3418
    %v6016 = vunpack.c.h.b16 %v3418
    %v6017 = vunpack.c.l.b16 %v3419
    %v6018 = vunpack.c.h.b16 %v3419
    %v6019 = vunpack.c.l.b16 %v3420
    %v6020 = vunpack.c.h.b16 %v3420
    %v6021 = vunpack.c.l.b16 %v3421
    %v6022 = vunpack.c.h.b16 %v3421
    %v6023 = vunpack.c.l.b16 %v3422
    %v6024 = vunpack.c.h.b16 %v3422
    %v6025 = vunpack.c.l.b16 %v3423
    %v6026 = vunpack.c.h.b16 %v3423
    %v6027 = vunpack.c.l.b16 %v3424
    %v6028 = vunpack.c.h.b16 %v3424
    %v6029 = vunpack.c.l.b16 %v3425
    %v6030 = vunpack.c.h.b16 %v3425
    %v6031 = vunpack.c.l.b16 %v3426
    %v6032 = vunpack.c.h.b16 %v3426
    %v6033 = vunpack.c.l.b16 %v3427
    %v6034 = vunpack.c.h.b16 %v3427
    %v6035 = vunpack.c.l.b16 %v3428
    %v6036 = vunpack.c.h.b16 %v3428
    %v6037 = vunpack.c.l.b16 %v3429
    %v6038 = vunpack.c.h.b16 %v3429
    %v6039 = vunpack.c.l.b16 %v3430
    %v6040 = vunpack.c.h.b16 %v3430
    %v6041 = vunpack.c.l.b16 %v3431
    %v6042 = vunpack.c.h.b16 %v3431
    %v6043 = vunpack.c.l.b16 %v3432
    %v6044 = vunpack.c.h.b16 %v3432
    %v6045 = vunpack.c.l.b16 %v3433
    %v6046 = vunpack.c.h.b16 %v3433
    %v6047 = vunpack.c.l.b16 %v3434
    %v6048 = vunpack.c.h.b16 %v3434
    %v6049 = vunpack.c.l.b16 %v3435
    %v6050 = vunpack.c.h.b16 %v3435
    %v6051 = vunpack.c.l.b16 %v3436
    %v6052 = vunpack.c.h.b16 %v3436
    %v6053 = vunpack.c.l.b16 %v3437
    %v6054 = vunpack.c.h.b16 %v3437
    %v6055 = vunpack.c.l.b16 %v3438
    %v6056 = vunpack.c.h.b16 %v3438
    %v6057 = vunpack.c.l.b16 %v3439
    %v6058 = vunpack.c.h.b16 %v3439
    %v6059 = vunpack.c.l.b16 %v3440
    %v6060 = vunpack.c.h.b16 %v3440
    %v6061 = vunpack.c.l.b16 %v3441
    %v6062 = vunpack.c.h.b16 %v3441
    %v6063 = vunpack.c.l.b16 %v3442
    %v6064 = vunpack.c.h.b16 %v3442
    %v6065 = vunpack.c.l.b16 %v3443
    %v6066 = vunpack.c.h.b16 %v3443
    %v6067 = vunpack.c.l.b16 %v3444
    %v6068 = vunpack.c.h.b16 %v3444
    %v6069 = vunpack.c.l.b16 %v3445
    %v6070 = vunpack.c.h.b16 %v3445
    %v6071 = vunpack.c.l.b16 %v3446
    %v6072 = vunpack.c.h.b16 %v3446
    %v6073 = vunpack.c.l.b16 %v3447
    %v6074 = vunpack.c.h.b16 %v3447
    %v6075 = vunpack.c.l.b16 %v3448
    %v6076 = vunpack.c.h.b16 %v3448
    %v6077 = vunpack.c.l.b16 %v3449
    %v6078 = vunpack.c.h.b16 %v3449
    %v6079 = vunpack.c.l.b16 %v3450
    %v6080 = vunpack.c.h.b16 %v3450
    %v6081 = vunpack.c.l.b16 %v3451
    %v6082 = vunpack.c.h.b16 %v3451
    %v6083 = vunpack.c.l.b16 %v3452
    %v6084 = vunpack.c.h.b16 %v3452
    %v6085 = vunpack.c.l.b16 %v3453
    %v6086 = vunpack.c.h.b16 %v3453
    %v6087 = vunpack.c.l.b16 %v3454
    %v6088 = vunpack.c.h.b16 %v3454
    %v6089 = vunpack.c.l.b16 %v3455
    %v6090 = vunpack.c.h.b16 %v3455
    %v6091 = vunpack.c.l.b16 %v3456
    %v6092 = vunpack.c.h.b16 %v3456
    %v6093 = vunpack.c.l.b16 %v3457
    %v6094 = vunpack.c.h.b16 %v3457
    %v6095 = vunpack.c.l.b16 %v3458
    %v6096 = vunpack.c.h.b16 %v3458
    %v6097 = vunpack.c.l.b16 %v3459
    %v6098 = vunpack.c.h.b16 %v3459
    %v6099 = vunpack.c.l.b16 %v3460
    %v6100 = vunpack.c.h.b16 %v3460
    %v6101 = vunpack.c.l.b16 %v3461
    %v6102 = vunpack.c.h.b16 %v3461
    %v6103 = vunpack.c.l.b16 %v3462
    %v6104 = vunpack.c.h.b16 %v3462
    %v6105 = vunpack.c.l.b16 %v3463
    %v6106 = vunpack.c.h.b16 %v3463
    %v6107 = vunpack.c.l.b16 %v3464
    %v6108 = vunpack.c.h.b16 %v3464
    %v6109 = vunpack.c.l.b16 %v3465
    %v6110 = vunpack.c.h.b16 %v3465
    %v6111 = vunpack.c.l.b16 %v3466
    %v6112 = vunpack.c.h.b16 %v3466
    %v6113 = vunpack.c.l.b16 %v3467
    %v6114 = vunpack.c.h.b16 %v3467
    %v6115 = vunpack.c.l.b16 %v3468
    %v6116 = vunpack.c.h.b16 %v3468
    %v6117 = vunpack.c.l.b16 %v3469
    %v6118 = vunpack.c.h.b16 %v3469
    %v6119 = vunpack.c.l.b16 %v3470
    %v6120 = vunpack.c.h.b16 %v3470
    %v6121 = vunpack.c.l.b16 %v3471
    %v6122 = vunpack.c.h.b16 %v3471
    %v6123 = vunpack.c.l.b16 %v3472
    %v6124 = vunpack.c.h.b16 %v3472
    %v6125 = vunpack.c.l.b16 %v3473
    %v6126 = vunpack.c.h.b16 %v3473
    %v6127 = vunpack.c.l.b16 %v3474
    %v6128 = vunpack.c.h.b16 %v3474
    %v6129 = vunpack.c.l.b16 %v3475
    %v6130 = vunpack.c.h.b16 %v3475
    %v6131 = vunpack.c.l.b16 %v3476
    %v6132 = vunpack.c.h.b16 %v3476
    %v6133 = vunpack.c.l.b16 %v3477
    %v6134 = vunpack.c.h.b16 %v3477
    %v6135 = vunpack.c.l.b16 %v3478
    %v6136 = vunpack.c.h.b16 %v3478
    %v6137 = vunpack.c.l.b16 %v3479
    %v6138 = vunpack.c.h.b16 %v3479
    %v6139 = vunpack.c.l.b16 %v3480
    %v6140 = vunpack.c.h.b16 %v3480
    %v6141 = vunpack.c.l.b16 %v3481
    %v6142 = vunpack.c.h.b16 %v3481
    %v6143 = vunpack.c.l.b16 %v3482
    %v6144 = vunpack.c.h.b16 %v3482
    %v6145 = vunpack.c.l.b16 %v3483
    %v6146 = vunpack.c.h.b16 %v3483
    %v6147 = vunpack.c.l.b16 %v3484
    %v6148 = vunpack.c.h.b16 %v3484
    %v6149 = vunpack.c.l.b16 %v3485
    %v6150 = vunpack.c.h.b16 %v3485
    %v6151 = vunpack.c.l.b16 %v3486
    %v6152 = vunpack.c.h.b16 %v3486
    %v6153 = vunpack.c.l.b16 %v3487
    %v6154 = vunpack.c.h.b16 %v3487
    %v6155 = vunpack.c.l.b16 %v3488
    %v6156 = vunpack.c.h.b16 %v3488
    %v6157 = vunpack.c.l.b16 %v3489
    %v6158 = vunpack.c.h.b16 %v3489
    %v6159 = vunpack.c.l.b16 %v3490
    %v6160 = vunpack.c.h.b16 %v3490
    %v6161 = vunpack.c.l.b16 %v3491
    %v6162 = vunpack.c.h.b16 %v3491
    %v6163 = vunpack.c.l.b16 %v3492
    %v6164 = vunpack.c.h.b16 %v3492
    %v6165 = vunpack.c.l.b16 %v3493
    %v6166 = vunpack.c.h.b16 %v3493
    %v6167 = vunpack.c.l.b16 %v3494
    %v6168 = vunpack.c.h.b16 %v3494
    %v6169 = vunpack.c.l.b16 %v3495
    %v6170 = vunpack.c.h.b16 %v3495
    %v6171 = vunpack.c.l.b16 %v3496
    %v6172 = vunpack.c.h.b16 %v3496
    %v6173 = vunpack.c.l.b16 %v3497
    %v6174 = vunpack.c.h.b16 %v3497
    %v6175 = vunpack.c.l.b16 %v3498
    %v6176 = vunpack.c.h.b16 %v3498
    %v6177 = vunpack.c.l.b16 %v3499
    %v6178 = vunpack.c.h.b16 %v3499
    %v6179 = vunpack.c.l.b16 %v3500
    %v6180 = vunpack.c.h.b16 %v3500
    %v6181 = vunpack.c.l.b16 %v3501
    %v6182 = vunpack.c.h.b16 %v3501
    %v6183 = vunpack.c.l.b16 %v3502
    %v6184 = vunpack.c.h.b16 %v3502
    %v6185 = vunpack.c.l.b16 %v3503
    %v6186 = vunpack.c.h.b16 %v3503
    %v6187 = vunpack.c.l.b16 %v3504
    %v6188 = vunpack.c.h.b16 %v3504
    %v6189 = vunpack.c.l.b16 %v3505
    %v6190 = vunpack.c.h.b16 %v3505
    %v6191 = vunpack.c.l.b16 %v3506
    %v6192 = vunpack.c.h.b16 %v3506
    %v6193 = vunpack.c.l.b16 %v3507
    %v6194 = vunpack.c.h.b16 %v3507
    %v6195 = vunpack.c.l.b16 %v3508
    %v6196 = vunpack.c.h.b16 %v3508
    %v6197 = vunpack.c.l.b16 %v3509
    %v6198 = vunpack.c.h.b16 %v3509
    %v6199 = vunpack.c.l.b16 %v3510
    %v6200 = vunpack.c.h.b16 %v3510
    %v6201 = vunpack.c.l.b16 %v3511
    %v6202 = vunpack.c.h.b16 %v3511
    %v6203 = vunpack.c.l.b16 %v3512
    %v6204 = vunpack.c.h.b16 %v3512
    %v6205 = vunpack.c.l.b16 %v3513
    %v6206 = vunpack.c.h.b16 %v3513
    %v6207 = vunpack.c.l.b16 %v3514
    %v6208 = vunpack.c.h.b16 %v3514
    %v6209 = vunpack.c.l.b16 %v3515
    %v6210 = vunpack.c.h.b16 %v3515
    %v6211 = vunpack.c.l.b16 %v3516
    %v6212 = vunpack.c.h.b16 %v3516
    %v6213 = vunpack.c.l.b16 %v3517
    %v6214 = vunpack.c.h.b16 %v3517
    %v6215 = vunpack.c.l.b16 %v3518
    %v6216 = vunpack.c.h.b16 %v3518
    %v6217 = vunpack.c.l.b16 %v3519
    %v6218 = vunpack.c.h.b16 %v3519
    %v6219 = vunpack.c.l.b16 %v3520
    %v6220 = vunpack.c.h.b16 %v3520
    %v6221 = vunpack.c.l.b16 %v3521
    %v6222 = vunpack.c.h.b16 %v3521
    %v6223 = vunpack.c.l.b16 %v3522
    %v6224 = vunpack.c.h.b16 %v3522
    %v6225 = vunpack.c.l.b16 %v3523
    %v6226 = vunpack.c.h.b16 %v3523
    %v6227 = vunpack.c.l.b16 %v3524
    %v6228 = vunpack.c.h.b16 %v3524
    %v6229 = vunpack.c.l.b16 %v3525
    %v6230 = vunpack.c.h.b16 %v3525
    %v6231 = vunpack.c.l.b16 %v3526
    %v6232 = vunpack.c.h.b16 %v3526
    %v6233 = vunpack.c.l.b16 %v3527
    %v6234 = vunpack.c.h.b16 %v3527
    %v6235 = vunpack.c.l.b16 %v3528
    %v6236 = vunpack.c.h.b16 %v3528
    %v6237 = vunpack.c.l.b16 %v3529
    %v6238 = vunpack.c.h.b16 %v3529
    %v6239 = vunpack.c.l.b16 %v3530
    %v6240 = vunpack.c.h.b16 %v3530
    %v6241 = vunpack.c.l.b16 %v3531
    %v6242 = vunpack.c.h.b16 %v3531
    %v6243 = vunpack.c.l.b16 %v3532
    %v6244 = vunpack.c.h.b16 %v3532
    %v6245 = vunpack.c.l.b16 %v3533
    %v6246 = vunpack.c.h.b16 %v3533
    %v6247 = vunpack.c.l.b16 %v3534
    %v6248 = vunpack.c.h.b16 %v3534
    %v6249 = vunpack.c.l.b16 %v3535
    %v6250 = vunpack.c.h.b16 %v3535
    %v6251 = vunpack.c.l.b16 %v3536
    %v6252 = vunpack.c.h.b16 %v3536
    %v6253 = vunpack.c.l.b16 %v3537
    %v6254 = vunpack.c.h.b16 %v3537
    %v6255 = vunpack.c.l.b16 %v3538
    %v6256 = vunpack.c.h.b16 %v3538
    %v6257 = vunpack.c.l.b16 %v3539
    %v6258 = vunpack.c.h.b16 %v3539
    %v6259 = vunpack.c.l.b16 %v3540
    %v6260 = vunpack.c.h.b16 %v3540
    %v6261 = vunpack.c.l.b16 %v3541
    %v6262 = vunpack.c.h.b16 %v3541
    %v6263 = vunpack.c.l.b16 %v3542
    %v6264 = vunpack.c.h.b16 %v3542
    %v6265 = vunpack.c.l.b16 %v3543
    %v6266 = vunpack.c.h.b16 %v3543
    %v6267 = vunpack.c.l.b16 %v3544
    %v6268 = vunpack.c.h.b16 %v3544
    %v6269 = vunpack.c.l.b16 %v3545
    %v6270 = vunpack.c.h.b16 %v3545
    %v6271 = vunpack.c.l.b16 %v3546
    %v6272 = vunpack.c.h.b16 %v3546
    %v6273 = vunpack.c.l.b16 %v3547
    %v6274 = vunpack.c.h.b16 %v3547
    %v6275 = vunpack.c.l.b16 %v3548
    %v6276 = vunpack.c.h.b16 %v3548
    %v6277 = vunpack.c.l.b16 %v3549
    %v6278 = vunpack.c.h.b16 %v3549
    %v6279 = vunpack.c.l.b16 %v3550
    %v6280 = vunpack.c.h.b16 %v3550
    %v6281 = vunpack.c.l.b16 %v3551
    %v6282 = vunpack.c.h.b16 %v3551
    %v6283 = vunpack.c.l.b16 %v3552
    %v6284 = vunpack.c.h.b16 %v3552
    %v6285 = vunpack.c.l.b16 %v3553
    %v6286 = vunpack.c.h.b16 %v3553
    %v6287 = vunpack.c.l.b16 %v3554
    %v6288 = vunpack.c.h.b16 %v3554
    %v6289 = vunpack.c.l.b16 %v3555
    %v6290 = vunpack.c.h.b16 %v3555
    %v6291 = vunpack.c.l.b16 %v3556
    %v6292 = vunpack.c.h.b16 %v3556
    %v6293 = vunpack.c.l.b16 %v3557
    %v6294 = vunpack.c.h.b16 %v3557
    %v6295 = vunpack.c.l.b16 %v3558
    %v6296 = vunpack.c.h.b16 %v3558
    %v6297 = vunpack.c.l.b16 %v3559
    %v6298 = vunpack.c.h.b16 %v3559
    %v6299 = vunpack.c.l.b16 %v3560
    %v6300 = vunpack.c.h.b16 %v3560
    %v6301 = vunpack.c.l.b16 %v3561
    %v6302 = vunpack.c.h.b16 %v3561
    %v6303 = vunpack.c.l.b16 %v3562
    %v6304 = vunpack.c.h.b16 %v3562
    %v6305 = vunpack.c.l.b16 %v3563
    %v6306 = vunpack.c.h.b16 %v3563
    %v6307 = vunpack.c.l.b16 %v3564
    %v6308 = vunpack.c.h.b16 %v3564
    %v6309 = vunpack.c.l.b16 %v3565
    %v6310 = vunpack.c.h.b16 %v3565
    %v6311 = vunpack.c.l.b16 %v3566
    %v6312 = vunpack.c.h.b16 %v3566
    %v6313 = vunpack.c.l.b16 %v3567
    %v6314 = vunpack.c.h.b16 %v3567
    %v6315 = vunpack.c.l.b16 %v3568
    %v6316 = vunpack.c.h.b16 %v3568
    %v6317 = vunpack.c.l.b16 %v3569
    %v6318 = vunpack.c.h.b16 %v3569
    %v6319 = vunpack.c.l.b16 %v3570
    %v6320 = vunpack.c.h.b16 %v3570
    %v6321 = vunpack.c.l.b16 %v3571
    %v6322 = vunpack.c.h.b16 %v3571
    %v6323 = vunpack.c.l.b16 %v3572
    %v6324 = vunpack.c.h.b16 %v3572
    %v6325 = vunpack.c.l.b16 %v3573
    %v6326 = vunpack.c.h.b16 %v3573
    %v6327 = vunpack.c.l.b16 %v3574
    %v6328 = vunpack.c.h.b16 %v3574
    %v6329 = vunpack.c.l.b16 %v3575
    %v6330 = vunpack.c.h.b16 %v3575
    %v6331 = vunpack.c.l.b16 %v3576
    %v6332 = vunpack.c.h.b16 %v3576
    %v6333 = vunpack.c.l.b16 %v3577
    %v6334 = vunpack.c.h.b16 %v3577
    %v6335 = vunpack.c.l.b16 %v3578
    %v6336 = vunpack.c.h.b16 %v3578
    %v6337 = vunpack.c.l.b16 %v3579
    %v6338 = vunpack.c.h.b16 %v3579
    %v6339 = vunpack.c.l.b16 %v3580
    %v6340 = vunpack.c.h.b16 %v3580
    %v6341 = vunpack.c.l.b16 %v3581
    %v6342 = vunpack.c.h.b16 %v3581
    %v6343 = vunpack.c.l.b16 %v3582
    %v6344 = vunpack.c.h.b16 %v3582
    %v6345 = vunpack.c.l.b16 %v3583
    %v6346 = vunpack.c.h.b16 %v3583
    %v6347 = vunpack.c.l.b16 %v3584
    %v6348 = vunpack.c.h.b16 %v3584
    %v6349 = vunpack.c.l.b16 %v3585
    %v6350 = vunpack.c.h.b16 %v3585
    %v6351 = vunpack.c.l.b16 %v3586
    %v6352 = vunpack.c.h.b16 %v3586
    %v6353 = vunpack.c.l.b16 %v3587
    %v6354 = vunpack.c.h.b16 %v3587
    %v6355 = vunpack.c.l.b16 %v3588
    %v6356 = vunpack.c.h.b16 %v3588
    %v6357 = vunpack.c.l.b16 %v3589
    %v6358 = vunpack.c.h.b16 %v3589
    %v6359 = vunpack.c.l.b16 %v3590
    %v6360 = vunpack.c.h.b16 %v3590
    %v6361 = vunpack.c.l.b16 %v3591
    %v6362 = vunpack.c.h.b16 %v3591
    %v6363 = vunpack.c.l.b16 %v3592
    %v6364 = vunpack.c.h.b16 %v3592
    %v6365 = vunpack.c.l.b16 %v3593
    %v6366 = vunpack.c.h.b16 %v3593
    %v6367 = vunpack.c.l.b16 %v3594
    %v6368 = vunpack.c.h.b16 %v3594
    %v6369 = vunpack.c.l.b16 %v3595
    %v6370 = vunpack.c.h.b16 %v3595
    %v6371 = vunpack.c.l.b16 %v3596
    %v6372 = vunpack.c.h.b16 %v3596
    %v6373 = vunpack.c.l.b16 %v3597
    %v6374 = vunpack.c.h.b16 %v3597
    %v6375 = vunpack.c.l.b16 %v3598
    %v6376 = vunpack.c.h.b16 %v3598
    %v6377 = vunpack.c.l.b16 %v3599
    %v6378 = vunpack.c.h.b16 %v3599
    %v6379 = vunpack.c.l.b16 %v3600
    %v6380 = vunpack.c.h.b16 %v3600
    %v6381 = vunpack.c.l.b16 %v3601
    %v6382 = vunpack.c.h.b16 %v3601
    %v6383 = vunpack.c.l.b16 %v3602
    %v6384 = vunpack.c.h.b16 %v3602
    %v6385 = vunpack.c.l.b16 %v3603
    %v6386 = vunpack.c.h.b16 %v3603
    %v6387 = vunpack.c.l.b16 %v3604
    %v6388 = vunpack.c.h.b16 %v3604
    %v6389 = vunpack.c.l.b16 %v3605
    %v6390 = vunpack.c.h.b16 %v3605
    %v6391 = vunpack.c.l.b16 %v3606
    %v6392 = vunpack.c.h.b16 %v3606
    %v6393 = vunpack.c.l.b16 %v3607
    %v6394 = vunpack.c.h.b16 %v3607
    %v6395 = vunpack.c.l.b16 %v3608
    %v6396 = vunpack.c.h.b16 %v3608
    %v6397 = vunpack.c.l.b16 %v3609
    %v6398 = vunpack.c.h.b16 %v3609
    %v6399 = vunpack.c.l.b16 %v3610
    %v6400 = vunpack.c.h.b16 %v3610
    %v6401 = vunpack.c.l.b16 %v3611
    %v6402 = vunpack.c.h.b16 %v3611
    %v6403 = vunpack.c.l.b16 %v3612
    %v6404 = vunpack.c.h.b16 %v3612
    %v6405 = vunpack.c.l.b16 %v3613
    %v6406 = vunpack.c.h.b16 %v3613
    %v6407 = vunpack.c.l.b16 %v3614
    %v6408 = vunpack.c.h.b16 %v3614
    %v6409 = vunpack.c.l.b16 %v3615
    %v6410 = vunpack.c.h.b16 %v3615
    %v6411 = vunpack.c.l.b16 %v3616
    %v6412 = vunpack.c.h.b16 %v3616
    %v6413 = vunpack.c.l.b16 %v3617
    %v6414 = vunpack.c.h.b16 %v3617
    %v6415 = vunpack.c.l.b16 %v3618
    %v6416 = vunpack.c.h.b16 %v3618
    %v6417 = vunpack.c.l.b16 %v3619
    %v6418 = vunpack.c.h.b16 %v3619
    %v6419 = vunpack.c.l.b16 %v3620
    %v6420 = vunpack.c.h.b16 %v3620
    %v6421 = vunpack.c.l.b16 %v3621
    %v6422 = vunpack.c.h.b16 %v3621
    %v6423 = vunpack.c.l.b16 %v3622
    %v6424 = vunpack.c.h.b16 %v3622
    %v6425 = vunpack.c.l.b16 %v3623
    %v6426 = vunpack.c.h.b16 %v3623
    %v6427 = vunpack.c.l.b16 %v3624
    %v6428 = vunpack.c.h.b16 %v3624
    %v6429 = vunpack.c.l.b16 %v3625
    %v6430 = vunpack.c.h.b16 %v3625
    %v6431 = vunpack.c.l.b16 %v3626
    %v6432 = vunpack.c.h.b16 %v3626
    %v6433 = vunpack.c.l.b16 %v3627
    %v6434 = vunpack.c.h.b16 %v3627
    %v6435 = vunpack.c.l.b16 %v3628
    %v6436 = vunpack.c.h.b16 %v3628
    %v6437 = vunpack.c.l.b16 %v3629
    %v6438 = vunpack.c.h.b16 %v3629
    %v6439 = vunpack.c.l.b16 %v3630
    %v6440 = vunpack.c.h.b16 %v3630
    %v6441 = vunpack.c.l.b16 %v3631
    %v6442 = vunpack.c.h.b16 %v3631
    %v6443 = vunpack.c.l.b16 %v3632
    %v6444 = vunpack.c.h.b16 %v3632
    %v6445 = vunpack.c.l.b16 %v3633
    %v6446 = vunpack.c.h.b16 %v3633
    %v6447 = vunpack.c.l.b16 %v3634
    %v6448 = vunpack.c.h.b16 %v3634
    %v6449 = vunpack.c.l.b16 %v3635
    %v6450 = vunpack.c.h.b16 %v3635
    %v6451 = vunpack.c.l.b16 %v3636
    %v6452 = vunpack.c.h.b16 %v3636
    %v6453 = vunpack.c.l.b16 %v3637
    %v6454 = vunpack.c.h.b16 %v3637
    %v6455 = vunpack.c.l.b16 %v3638
    %v6456 = vunpack.c.h.b16 %v3638
    %v6457 = vunpack.c.l.b16 %v3639
    %v6458 = vunpack.c.h.b16 %v3639
    %v6459 = vunpack.c.l.b16 %v3640
    %v6460 = vunpack.c.h.b16 %v3640
    %v6461 = vunpack.c.l.b16 %v3641
    %v6462 = vunpack.c.h.b16 %v3641
    %v6463 = vunpack.c.l.b16 %v3642
    %v6464 = vunpack.c.h.b16 %v3642
    %v6465 = vunpack.c.l.b16 %v3643
    %v6466 = vunpack.c.h.b16 %v3643
    %v6467 = vunpack.c.l.b16 %v3644
    %v6468 = vunpack.c.h.b16 %v3644
    %v6469 = vunpack.c.l.b16 %v3645
    %v6470 = vunpack.c.h.b16 %v3645
    %v6471 = vunpack.c.l.b16 %v3646
    %v6472 = vunpack.c.h.b16 %v3646
    %v6473 = vunpack.c.l.b16 %v3647
    %v6474 = vunpack.c.h.b16 %v3647
    %v6475 = vunpack.c.l.b16 %v3648
    %v6476 = vunpack.c.h.b16 %v3648
    %v6477 = vunpack.c.l.b16 %v3649
    %v6478 = vunpack.c.h.b16 %v3649
    %v6479 = vunpack.c.l.b16 %v3650
    %v6480 = vunpack.c.h.b16 %v3650
    %v6481 = vunpack.c.l.b16 %v3651
    %v6482 = vunpack.c.h.b16 %v3651
    %v6483 = vunpack.c.l.b16 %v3652
    %v6484 = vunpack.c.h.b16 %v3652
    %v6485 = vunpack.c.l.b16 %v3653
    %v6486 = vunpack.c.h.b16 %v3653
    %v6487 = vunpack.c.l.b16 %v3654
    %v6488 = vunpack.c.h.b16 %v3654
    %v6489 = vunpack.c.l.b16 %v3655
    %v6490 = vunpack.c.h.b16 %v3655
    %v6491 = vunpack.c.l.b16 %v3656
    %v6492 = vunpack.c.h.b16 %v3656
    %v6493 = vunpack.c.l.b16 %v3657
    %v6494 = vunpack.c.h.b16 %v3657
    %v6495 = vunpack.c.l.b16 %v3658
    %v6496 = vunpack.c.h.b16 %v3658
    %v6497 = vunpack.c.l.b16 %v3659
    %v6498 = vunpack.c.h.b16 %v3659
    %v6499 = vunpack.c.l.b16 %v3660
    %v6500 = vunpack.c.h.b16 %v3660
    %v6501 = vunpack.c.l.b16 %v3661
    %v6502 = vunpack.c.h.b16 %v3661
    %v6503 = vunpack.c.l.b16 %v3662
    %v6504 = vunpack.c.h.b16 %v3662
    %v6505 = vunpack.c.l.b16 %v3663
    %v6506 = vunpack.c.h.b16 %v3663
    %v6507 = vunpack.c.l.b16 %v3664
    %v6508 = vunpack.c.h.b16 %v3664
    %v6509 = vunpack.c.l.b16 %v3665
    %v6510 = vunpack.c.h.b16 %v3665
    %v6511 = vunpack.c.l.b16 %v3666
    %v6512 = vunpack.c.h.b16 %v3666
    %v6513 = vunpack.c.l.b16 %v3667
    %v6514 = vunpack.c.h.b16 %v3667
    %v6515 = vunpack.c.l.b16 %v3668
    %v6516 = vunpack.c.h.b16 %v3668
    %v6517 = vunpack.c.l.b16 %v3669
    %v6518 = vunpack.c.h.b16 %v3669
    %v6519 = vunpack.c.l.b16 %v3670
    %v6520 = vunpack.c.h.b16 %v3670
    %v6521 = vunpack.c.l.b16 %v3671
    %v6522 = vunpack.c.h.b16 %v3671
    %v6523 = vunpack.c.l.b16 %v3672
    %v6524 = vunpack.c.h.b16 %v3672
    %v6525 = vunpack.c.l.b16 %v3673
    %v6526 = vunpack.c.h.b16 %v3673
    %v6527 = vunpack.c.l.b16 %v3674
    %v6528 = vunpack.c.h.b16 %v3674
    %v6529 = vunpack.c.l.b16 %v3675
    %v6530 = vunpack.c.h.b16 %v3675
    %v6531 = vunpack.c.l.b16 %v3676
    %v6532 = vunpack.c.h.b16 %v3676
    %v6533 = vunpack.c.l.b16 %v3677
    %v6534 = vunpack.c.h.b16 %v3677
    %v6535 = vunpack.c.l.b16 %v3678
    %v6536 = vunpack.c.h.b16 %v3678
    %v6537 = vunpack.c.l.b16 %v3679
    %v6538 = vunpack.c.h.b16 %v3679
    %v6539 = vunpack.c.l.b16 %v3680
    %v6540 = vunpack.c.h.b16 %v3680
    %v6541 = vunpack.c.l.b16 %v3681
    %v6542 = vunpack.c.h.b16 %v3681
    %v6543 = vunpack.c.l.b16 %v3682
    %v6544 = vunpack.c.h.b16 %v3682
    %v6545 = vunpack.c.l.b16 %v3683
    %v6546 = vunpack.c.h.b16 %v3683
    %v6547 = vunpack.c.l.b16 %v3684
    %v6548 = vunpack.c.h.b16 %v3684
    %v6549 = vunpack.c.l.b16 %v3685
    %v6550 = vunpack.c.h.b16 %v3685
    %v6551 = vunpack.c.l.b16 %v3686
    %v6552 = vunpack.c.h.b16 %v3686
    %v6553 = vunpack.c.l.b16 %v3687
    %v6554 = vunpack.c.h.b16 %v3687
    %v6555 = vunpack.c.l.b16 %v3688
    %v6556 = vunpack.c.h.b16 %v3688
    %v6557 = vunpack.c.l.b16 %v3689
    %v6558 = vunpack.c.h.b16 %v3689
    %v6559 = vunpack.c.l.b16 %v3690
    %v6560 = vunpack.c.h.b16 %v3690
    %v6561 = vunpack.c.l.b16 %v3691
    %v6562 = vunpack.c.h.b16 %v3691
    %v6563 = vunpack.c.l.b16 %v3692
    %v6564 = vunpack.c.h.b16 %v3692
    %v6565 = vunpack.c.l.b16 %v3693
    %v6566 = vunpack.c.h.b16 %v3693
    %v6567 = vunpack.c.l.b16 %v3694
    %v6568 = vunpack.c.h.b16 %v3694
    %v6569 = vunpack.c.l.b16 %v3695
    %v6570 = vunpack.c.h.b16 %v3695
    %v6571 = vunpack.c.l.b16 %v3696
    %v6572 = vunpack.c.h.b16 %v3696
    %v6573 = vunpack.c.l.b16 %v3697
    %v6574 = vunpack.c.h.b16 %v3697
    %v6575 = vunpack.c.l.b16 %v3698
    %v6576 = vunpack.c.h.b16 %v3698
    %v6577 = vunpack.c.l.b16 %v3699
    %v6578 = vunpack.c.h.b16 %v3699
    %v6579 = vunpack.c.l.b16 %v3700
    %v6580 = vunpack.c.h.b16 %v3700
    %v6581 = vunpack.c.l.b16 %v3701
    %v6582 = vunpack.c.h.b16 %v3701
    %v6583 = vunpack.c.l.b16 %v3702
    %v6584 = vunpack.c.h.b16 %v3702
    %v6585 = vunpack.c.l.b16 %v3703
    %v6586 = vunpack.c.h.b16 %v3703
    %v6587 = vunpack.c.l.b16 %v3704
    %v6588 = vunpack.c.h.b16 %v3704
    %v6589 = vunpack.c.l.b16 %v3705
    %v6590 = vunpack.c.h.b16 %v3705
    %v6591 = vunpack.c.l.b16 %v3706
    %v6592 = vunpack.c.h.b16 %v3706
    %v6593 = vunpack.c.l.b16 %v3707
    %v6594 = vunpack.c.h.b16 %v3707
    %v6595 = vunpack.c.l.b16 %v3708
    %v6596 = vunpack.c.h.b16 %v3708
    %v6597 = vunpack.c.l.b16 %v3709
    %v6598 = vunpack.c.h.b16 %v3709
    %v6599 = vunpack.c.l.b16 %v3710
    %v6600 = vunpack.c.h.b16 %v3710
    %v6601 = vunpack.c.l.b16 %v3711
    %v6602 = vunpack.c.h.b16 %v3711
    %v6603 = vunpack.c.l.b16 %v3712
    %v6604 = vunpack.c.h.b16 %v3712
    %v6605 = vunpack.c.l.b16 %v3713
    %v6606 = vunpack.c.h.b16 %v3713
    %v6607 = vunpack.c.l.b16 %v3714
    %v6608 = vunpack.c.h.b16 %v3714
    %v6609 = vunpack.c.l.b16 %v3715
    %v6610 = vunpack.c.h.b16 %v3715
    %v6611 = vunpack.c.l.b16 %v3716
    %v6612 = vunpack.c.h.b16 %v3716
    %v6613 = vunpack.c.l.b16 %v3717
    %v6614 = vunpack.c.h.b16 %v3717
    %v6615 = vunpack.c.l.b16 %v3718
    %v6616 = vunpack.c.h.b16 %v3718
    %v6617 = vunpack.c.l.b16 %v3719
    %v6618 = vunpack.c.h.b16 %v3719
    %v6619 = vunpack.c.l.b16 %v3720
    %v6620 = vunpack.c.h.b16 %v3720
    %v6621 = vunpack.c.l.b16 %v3721
    %v6622 = vunpack.c.h.b16 %v3721
    %v6623 = vunpack.c.l.b16 %v3722
    %v6624 = vunpack.c.h.b16 %v3722
    %v6625 = vunpack.c.l.b16 %v3723
    %v6626 = vunpack.c.h.b16 %v3723
    %v6627 = vunpack.c.l.b16 %v3724
    %v6628 = vunpack.c.h.b16 %v3724
    %v6629 = vunpack.c.l.b16 %v3725
    %v6630 = vunpack.c.h.b16 %v3725
    %v6631 = vunpack.c.l.b16 %v3726
    %v6632 = vunpack.c.h.b16 %v3726
    %v6633 = vunpack.c.l.b16 %v3727
    %v6634 = vunpack.c.h.b16 %v3727
    %v6635 = vunpack.c.l.b16 %v3728
    %v6636 = vunpack.c.h.b16 %v3728
    %v6637 = vunpack.c.l.b16 %v3729
    %v6638 = vunpack.c.h.b16 %v3729
    %v6639 = vunpack.c.l.b16 %v3730
    %v6640 = vunpack.c.h.b16 %v3730
    %v6641 = vunpack.c.l.b16 %v3731
    %v6642 = vunpack.c.h.b16 %v3731
    %v6643 = vunpack.c.l.b16 %v3732
    %v6644 = vunpack.c.h.b16 %v3732
    %v6645 = vunpack.c.l.b16 %v3733
    %v6646 = vunpack.c.h.b16 %v3733
    %v6647 = vunpack.c.l.b16 %v3734
    %v6648 = vunpack.c.h.b16 %v3734
    %v6649 = vunpack.c.l.b16 %v3735
    %v6650 = vunpack.c.h.b16 %v3735
    %v6651 = vunpack.c.l.b16 %v3736
    %v6652 = vunpack.c.h.b16 %v3736
    %v6653 = vunpack.c.l.b16 %v3737
    %v6654 = vunpack.c.h.b16 %v3737
    %v6655 = vunpack.c.l.b16 %v3738
    %v6656 = vunpack.c.h.b16 %v3738
    %v6657 = vunpack.c.l.b16 %v3739
    %v6658 = vunpack.c.h.b16 %v3739
    %v6659 = vunpack.c.l.b16 %v3740
    %v6660 = vunpack.c.h.b16 %v3740
    %v6661 = vunpack.c.l.b16 %v3741
    %v6662 = vunpack.c.h.b16 %v3741
    %v6663 = vunpack.c.l.b16 %v3742
    %v6664 = vunpack.c.h.b16 %v3742
    %v6665 = vunpack.c.l.b16 %v3743
    %v6666 = vunpack.c.h.b16 %v3743
    %v6667 = vunpack.c.l.b16 %v3744
    %v6668 = vunpack.c.h.b16 %v3744
    %v6669 = vunpack.c.l.b16 %v3745
    %v6670 = vunpack.c.h.b16 %v3745
    %v6671 = vunpack.c.l.b16 %v3746
    %v6672 = vunpack.c.h.b16 %v3746
    %v6673 = vunpack.c.l.b16 %v3747
    %v6674 = vunpack.c.h.b16 %v3747
    %v6675 = vunpack.c.l.b16 %v3748
    %v6676 = vunpack.c.h.b16 %v3748
    %v6677 = vunpack.c.l.b16 %v3749
    %v6678 = vunpack.c.h.b16 %v3749
    %v6679 = vunpack.c.l.b16 %v3750
    %v6680 = vunpack.c.h.b16 %v3750
    %v6681 = vunpack.c.l.b16 %v3751
    %v6682 = vunpack.c.h.b16 %v3751
    %v6683 = vunpack.c.l.b16 %v3752
    %v6684 = vunpack.c.h.b16 %v3752
    %v6685 = vunpack.c.l.b16 %v3753
    %v6686 = vunpack.c.h.b16 %v3753
    %v6687 = vunpack.c.l.b16 %v3754
    %v6688 = vunpack.c.h.b16 %v3754
    %v6689 = vunpack.c.l.b16 %v3755
    %v6690 = vunpack.c.h.b16 %v3755
    %v6691 = vunpack.c.l.b16 %v3756
    %v6692 = vunpack.c.h.b16 %v3756
    %v6693 = vunpack.c.l.b16 %v3757
    %v6694 = vunpack.c.h.b16 %v3757
    %v6695 = vunpack.c.l.b16 %v3758
    %v6696 = vunpack.c.h.b16 %v3758
    %v6697 = vunpack.c.l.b16 %v3759
    %v6698 = vunpack.c.h.b16 %v3759
    %v6699 = vunpack.c.l.b16 %v3760
    %v6700 = vunpack.c.h.b16 %v3760
    %v6701 = vunpack.c.l.b16 %v3761
    %v6702 = vunpack.c.h.b16 %v3761
    %v6703 = vunpack.c.l.b16 %v3762
    %v6704 = vunpack.c.h.b16 %v3762
    %v6705 = vunpack.c.l.b16 %v3763
    %v6706 = vunpack.c.h.b16 %v3763
    %v6707 = vunpack.c.l.b16 %v3764
    %v6708 = vunpack.c.h.b16 %v3764
    %v6709 = vunpack.c.l.b16 %v3765
    %v6710 = vunpack.c.h.b16 %v3765
    %v6711 = vunpack.c.l.b16 %v3766
    %v6712 = vunpack.c.h.b16 %v3766
    %v6713 = vunpack.c.l.b16 %v3767
    %v6714 = vunpack.c.h.b16 %v3767
    %v6715 = vunpack.c.l.b16 %v3768
    %v6716 = vunpack.c.h.b16 %v3768
    %v6717 = vunpack.c.l.b16 %v3769
    %v6718 = vunpack.c.h.b16 %v3769
    %v6719 = vunpack.c.l.b16 %v3770
    %v6720 = vunpack.c.h.b16 %v3770
    %v6721 = vunpack.c.l.b16 %v3771
    %v6722 = vunpack.c.h.b16 %v3771
    %v6723 = vunpack.c.l.b16 %v3772
    %v6724 = vunpack.c.h.b16 %v3772
    %v6725 = vunpack.c.l.b16 %v3773
    %v6726 = vunpack.c.h.b16 %v3773
    %v6727 = vunpack.c.l.b16 %v3774
    %v6728 = vunpack.c.h.b16 %v3774
    %v6729 = vunpack.c.l.b16 %v3775
    %v6730 = vunpack.c.h.b16 %v3775
    %v6731 = vunpack.c.l.b16 %v3776
    %v6732 = vunpack.c.h.b16 %v3776
    %v6733 = vunpack.c.l.b16 %v3777
    %v6734 = vunpack.c.h.b16 %v3777
    %v6735 = vunpack.c.l.b16 %v3778
    %v6736 = vunpack.c.h.b16 %v3778
    %v6737 = vunpack.c.l.b16 %v3779
    %v6738 = vunpack.c.h.b16 %v3779
    %v6739 = vunpack.c.l.b16 %v3780
    %v6740 = vunpack.c.h.b16 %v3780
    %v6741 = vunpack.c.l.b16 %v3781
    %v6742 = vunpack.c.h.b16 %v3781
    %v6743 = vunpack.c.l.b16 %v3782
    %v6744 = vunpack.c.h.b16 %v3782
    %v6745 = vunpack.c.l.b16 %v3783
    %v6746 = vunpack.c.h.b16 %v3783
    %v6747 = vunpack.c.l.b16 %v3784
    %v6748 = vunpack.c.h.b16 %v3784
    %v6749 = vunpack.c.l.b16 %v3785
    %v6750 = vunpack.c.h.b16 %v3785
    %v6751 = vunpack.c.l.b16 %v3786
    %v6752 = vunpack.c.h.b16 %v3786
    %v6753 = vunpack.c.l.b16 %v3787
    %v6754 = vunpack.c.h.b16 %v3787
    %v6755 = vunpack.c.l.b16 %v3788
    %v6756 = vunpack.c.h.b16 %v3788
    %v6757 = vunpack.c.l.b16 %v3789
    %v6758 = vunpack.c.h.b16 %v3789
    %v6759 = vunpack.c.l.b16 %v3790
    %v6760 = vunpack.c.h.b16 %v3790
    %v6761 = vunpack.c.l.b16 %v3791
    %v6762 = vunpack.c.h.b16 %v3791
    %v6763 = vunpack.c.l.b16 %v3792
    %v6764 = vunpack.c.h.b16 %v3792
    %v6765 = vunpack.c.l.b16 %v3793
    %v6766 = vunpack.c.h.b16 %v3793
    %v6767 = vunpack.c.l.b16 %v3794
    %v6768 = vunpack.c.h.b16 %v3794
    %v6769 = vunpack.c.l.b16 %v3795
    %v6770 = vunpack.c.h.b16 %v3795
    %v6771 = vunpack.c.l.b16 %v3796
    %v6772 = vunpack.c.h.b16 %v3796
    %v6773 = vunpack.c.l.b16 %v3797
    %v6774 = vunpack.c.h.b16 %v3797
    %v6775 = vunpack.c.l.b16 %v3798
    %v6776 = vunpack.c.h.b16 %v3798
    %v6777 = vunpack.c.l.b16 %v3799
    %v6778 = vunpack.c.h.b16 %v3799
    %v6779 = vunpack.c.l.b16 %v3800
    %v6780 = vunpack.c.h.b16 %v3800
    %v6781 = vunpack.c.l.b16 %v3801
    %v6782 = vunpack.c.h.b16 %v3801
    %v6783 = vunpack.c.l.b16 %v3802
    %v6784 = vunpack.c.h.b16 %v3802
    %v6785 = vunpack.c.l.b16 %v3803
    %v6786 = vunpack.c.h.b16 %v3803
    %v6787 = vunpack.c.l.b16 %v3804
    %v6788 = vunpack.c.h.b16 %v3804
    %v6789 = vunpack.c.l.b16 %v3805
    %v6790 = vunpack.c.h.b16 %v3805
    %v6791 = vunpack.c.l.b16 %v3806
    %v6792 = vunpack.c.h.b16 %v3806
    %v6793 = vunpack.c.l.b16 %v3807
    %v6794 = vunpack.c.h.b16 %v3807
    %v6795 = vunpack.c.l.b16 %v3808
    %v6796 = vunpack.c.h.b16 %v3808
    %v6797 = vunpack.c.l.b16 %v3809
    %v6798 = vunpack.c.h.b16 %v3809
    %v6799 = vunpack.c.l.b16 %v3810
    %v6800 = vunpack.c.h.b16 %v3810
    %v6801 = vunpack.c.l.b16 %v3811
    %v6802 = vunpack.c.h.b16 %v3811
    %v6803 = vunpack.c.l.b16 %v3812
    %v6804 = vunpack.c.h.b16 %v3812
    %v6805 = vunpack.c.l.b16 %v3813
    %v6806 = vunpack.c.h.b16 %v3813
    %v6807 = vunpack.c.l.b16 %v3814
    %v6808 = vunpack.c.h.b16 %v3814
    %v6809 = vunpack.c.l.b16 %v3815
    %v6810 = vunpack.c.h.b16 %v3815
    %v6811 = vunpack.c.l.b16 %v3816
    %v6812 = vunpack.c.h.b16 %v3816
    %v6813 = vunpack.c.l.b16 %v3817
    %v6814 = vunpack.c.h.b16 %v3817
    %v6815 = vunpack.c.l.b16 %v3818
    %v6816 = vunpack.c.h.b16 %v3818
    %v6817 = vunpack.c.l.b16 %v3819
    %v6818 = vunpack.c.h.b16 %v3819
    %v6819 = vunpack.c.l.b16 %v3820
    %v6820 = vunpack.c.h.b16 %v3820
    %v6821 = vunpack.c.l.b16 %v3821
    %v6822 = vunpack.c.h.b16 %v3821
    %v6823 = vunpack.c.l.b16 %v3822
    %v6824 = vunpack.c.h.b16 %v3822
    %v6825 = vunpack.c.l.b16 %v3823
    %v6826 = vunpack.c.h.b16 %v3823
    %v6827 = vunpack.c.l.b16 %v3824
    %v6828 = vunpack.c.h.b16 %v3824
    %v6829 = vunpack.c.l.b16 %v3825
    %v6830 = vunpack.c.h.b16 %v3825
    %v6831 = vunpack.c.l.b16 %v3826
    %v6832 = vunpack.c.h.b16 %v3826
    %v6833 = vunpack.c.l.b16 %v3827
    %v6834 = vunpack.c.h.b16 %v3827
    %v6835 = vunpack.c.l.b16 %v3828
    %v6836 = vunpack.c.h.b16 %v3828
    %v6837 = vunpack.c.l.b16 %v3829
    %v6838 = vunpack.c.h.b16 %v3829
    %v6839 = vunpack.c.l.b16 %v3830
    %v6840 = vunpack.c.h.b16 %v3830
    %v6841 = vunpack.c.l.b16 %v3831
    %v6842 = vunpack.c.h.b16 %v3831
    %v6843 = vunpack.c.l.b16 %v3832
    %v6844 = vunpack.c.h.b16 %v3832
    %v6845 = vunpack.c.l.b16 %v3833
    %v6846 = vunpack.c.h.b16 %v3833
    %v6847 = vunpack.c.l.b16 %v3834
    %v6848 = vunpack.c.h.b16 %v3834
    %v6849 = vunpack.c.l.b16 %v3835
    %v6850 = vunpack.c.h.b16 %v3835
    %v6851 = vunpack.c.l.b16 %v3836
    %v6852 = vunpack.c.h.b16 %v3836
    %v6853 = vunpack.c.l.b16 %v3837
    %v6854 = vunpack.c.h.b16 %v3837
    %v6855 = vunpack.c.l.b16 %v3838
    %v6856 = vunpack.c.h.b16 %v3838
    %v6857 = vunpack.c.l.b16 %v3839
    %v6858 = vunpack.c.h.b16 %v3839
    %v6859 = vunpack.c.l.b16 %v3840
    %v6860 = vunpack.c.h.b16 %v3840
    %v6861 = vunpack.c.l.b16 %v3841
    %v6862 = vunpack.c.h.b16 %v3841
    %v6863 = vunpack.c.l.b16 %v3842
    %v6864 = vunpack.c.h.b16 %v3842
    %v6865 = vunpack.c.l.b16 %v3843
    %v6866 = vunpack.c.h.b16 %v3843
    %v6867 = vunpack.c.l.b16 %v3844
    %v6868 = vunpack.c.h.b16 %v3844
    %v6869 = vunpack.c.l.b16 %v3845
    %v6870 = vunpack.c.h.b16 %v3845
    %v6871 = vunpack.c.l.b16 %v3846
    %v6872 = vunpack.c.h.b16 %v3846
    %v6873 = vunpack.c.l.b16 %v3847
    %v6874 = vunpack.c.h.b16 %v3847
    %v6875 = vunpack.c.l.b16 %v3848
    %v6876 = vunpack.c.h.b16 %v3848
    %v6877 = vunpack.c.l.b16 %v3849
    %v6878 = vunpack.c.h.b16 %v3849
    %v6879 = vunpack.c.l.b16 %v3850
    %v6880 = vunpack.c.h.b16 %v3850
    %v6881 = vunpack.c.l.b16 %v3851
    %v6882 = vunpack.c.h.b16 %v3851
    %v6883 = vunpack.c.l.b16 %v3852
    %v6884 = vunpack.c.h.b16 %v3852
    %v6885 = vunpack.c.l.b16 %v3853
    %v6886 = vunpack.c.h.b16 %v3853
    %v6887 = vunpack.c.l.b16 %v3854
    %v6888 = vunpack.c.h.b16 %v3854
    %v6889 = vunpack.c.l.b16 %v3855
    %v6890 = vunpack.c.h.b16 %v3855
    %v6891 = vunpack.c.l.b16 %v3856
    %v6892 = vunpack.c.h.b16 %v3856
    %v6893 = vunpack.c.l.b16 %v3857
    %v6894 = vunpack.c.h.b16 %v3857
    %v6895 = vunpack.c.l.b16 %v3858
    %v6896 = vunpack.c.h.b16 %v3858
    %v6897 = vunpack.c.l.b16 %v3859
    %v6898 = vunpack.c.h.b16 %v3859
    %v6899 = vunpack.c.l.b16 %v3860
    %v6900 = vunpack.c.h.b16 %v3860
    %v6901 = vunpack.c.l.b16 %v3861
    %v6902 = vunpack.c.h.b16 %v3861
    %v6903 = vunpack.c.l.b16 %v3862
    %v6904 = vunpack.c.h.b16 %v3862
    %v6905 = vunpack.c.l.b16 %v3863
    %v6906 = vunpack.c.h.b16 %v3863
    %v6907 = vunpack.c.l.b16 %v3864
    %v6908 = vunpack.c.h.b16 %v3864
    %v6909 = vunpack.c.l.b16 %v3865
    %v6910 = vunpack.c.h.b16 %v3865
    %v6911 = vunpack.c.l.b16 %v3866
    %v6912 = vunpack.c.h.b16 %v3866
    %v6913 = vunpack.c.l.b16 %v3867
    %v6914 = vunpack.c.h.b16 %v3867
    %v6915 = vunpack.c.l.b16 %v3868
    %v6916 = vunpack.c.h.b16 %v3868
    %v6917 = vunpack.c.l.b16 %v3869
    %v6918 = vunpack.c.h.b16 %v3869
    %v6919 = vunpack.c.l.b16 %v3870
    %v6920 = vunpack.c.h.b16 %v3870
    %v6921 = vunpack.c.l.b16 %v3871
    %v6922 = vunpack.c.h.b16 %v3871
    %v6923 = vunpack.c.l.b16 %v3872
    %v6924 = vunpack.c.h.b16 %v3872
    %v6925 = vunpack.c.l.b16 %v3873
    %v6926 = vunpack.c.h.b16 %v3873
    %v6927 = vunpack.c.l.b16 %v3874
    %v6928 = vunpack.c.h.b16 %v3874
    %v6929 = vunpack.c.l.b16 %v3875
    %v6930 = vunpack.c.h.b16 %v3875
    %v6931 = vunpack.c.l.b16 %v3876
    %v6932 = vunpack.c.h.b16 %v3876
    %v6933 = vunpack.c.l.b16 %v3877
    %v6934 = vunpack.c.h.b16 %v3877
    %v6935 = vunpack.c.l.b16 %v3878
    %v6936 = vunpack.c.h.b16 %v3878
    %v6937 = vunpack.c.l.b16 %v3879
    %v6938 = vunpack.c.h.b16 %v3879
    %v6939 = vunpack.c.l.b16 %v3880
    %v6940 = vunpack.c.h.b16 %v3880
    %v6941 = vunpack.c.l.b16 %v3881
    %v6942 = vunpack.c.h.b16 %v3881
    %v6943 = vunpack.c.l.b16 %v3882
    %v6944 = vunpack.c.h.b16 %v3882
    %v6945 = vunpack.c.l.b16 %v3883
    %v6946 = vunpack.c.h.b16 %v3883
    %v6947 = vunpack.c.l.b16 %v3884
    %v6948 = vunpack.c.h.b16 %v3884
    %v6949 = vunpack.c.l.b16 %v3885
    %v6950 = vunpack.c.h.b16 %v3885
    %v6951 = vunpack.c.l.b16 %v3886
    %v6952 = vunpack.c.h.b16 %v3886
    %v6953 = vunpack.c.l.b16 %v3887
    %v6954 = vunpack.c.h.b16 %v3887
    %v6955 = vunpack.c.l.b16 %v3888
    %v6956 = vunpack.c.h.b16 %v3888
    %v6957 = vunpack.c.l.b16 %v3889
    %v6958 = vunpack.c.h.b16 %v3889
    %v6959 = vunpack.c.l.b16 %v3890
    %v6960 = vunpack.c.h.b16 %v3890
    %v6961 = vunpack.c.l.b16 %v3891
    %v6962 = vunpack.c.h.b16 %v3891
    %v6963 = vunpack.c.l.b16 %v3892
    %v6964 = vunpack.c.h.b16 %v3892
    %v6965 = vunpack.c.l.b16 %v3893
    %v6966 = vunpack.c.h.b16 %v3893
    %v6967 = vunpack.c.l.b16 %v3894
    %v6968 = vunpack.c.h.b16 %v3894
    %v6969 = vunpack.c.l.b16 %v3895
    %v6970 = vunpack.c.h.b16 %v3895
    %v6971 = vunpack.c.l.b16 %v3896
    %v6972 = vunpack.c.h.b16 %v3896
    %v6973 = vunpack.c.l.b16 %v3897
    %v6974 = vunpack.c.h.b16 %v3897
    %v6975 = vunpack.c.l.b16 %v3898
    %v6976 = vunpack.c.h.b16 %v3898
    %v6977 = vunpack.c.l.b16 %v3899
    %v6978 = vunpack.c.h.b16 %v3899
    %v6979 = vunpack.c.l.b16 %v3900
    %v6980 = vunpack.c.h.b16 %v3900
    %v6981 = vunpack.c.l.b16 %v3901
    %v6982 = vunpack.c.h.b16 %v3901
    %v6983 = vunpack.c.l.b16 %v3902
    %v6984 = vunpack.c.h.b16 %v3902
    %v6985 = vunpack.c.l.b16 %v3903
    %v6986 = vunpack.c.h.b16 %v3903
    %v6987 = vunpack.c.l.b16 %v3904
    %v6988 = vunpack.c.h.b16 %v3904
    %v6989 = vunpack.c.l.b16 %v3905
    %v6990 = vunpack.c.h.b16 %v3905
    %v6991 = vunpack.c.l.b16 %v3906
    %v6992 = vunpack.c.h.b16 %v3906
    %v6993 = vunpack.c.l.b16 %v3907
    %v6994 = vunpack.c.h.b16 %v3907
    %v6995 = vunpack.c.l.b16 %v3908
    %v6996 = vunpack.c.h.b16 %v3908
    %v6997 = vunpack.c.l.b16 %v3909
    %v6998 = vunpack.c.h.b16 %v3909
    %v6999 = vunpack.c.l.b16 %v3910
    %v7000 = vunpack.c.h.b16 %v3910
    %v7001 = vunpack.c.l.b16 %v3911
    %v7002 = vunpack.c.h.b16 %v3911
    %v7003 = vunpack.c.l.b16 %v3912
    %v7004 = vunpack.c.h.b16 %v3912
    %v7005 = vunpack.c.l.b16 %v3913
    %v7006 = vunpack.c.h.b16 %v3913
    %v7007 = vunpack.c.l.b16 %v3914
    %v7008 = vunpack.c.h.b16 %v3914
    %v7009 = vunpack.c.l.b16 %v3915
    %v7010 = vunpack.c.h.b16 %v3915
    %v7011 = vunpack.c.l.b16 %v3916
    %v7012 = vunpack.c.h.b16 %v3916
    %v7013 = vunpack.c.l.b16 %v3917
    %v7014 = vunpack.c.h.b16 %v3917
    %v7015 = vunpack.c.l.b16 %v3918
    %v7016 = vunpack.c.h.b16 %v3918
    %v7017 = vunpack.c.l.b16 %v3919
    %v7018 = vunpack.c.h.b16 %v3919
    %v7019 = vunpack.c.l.b16 %v3920
    %v7020 = vunpack.c.h.b16 %v3920
    %v7021 = vunpack.c.l.b16 %v3921
    %v7022 = vunpack.c.h.b16 %v3921
    %v7023 = vunpack.c.l.b16 %v3922
    %v7024 = vunpack.c.h.b16 %v3922
    %v7025 = vunpack.c.l.b16 %v3923
    %v7026 = vunpack.c.h.b16 %v3923
    %v7027 = vunpack.c.l.b16 %v3924
    %v7028 = vunpack.c.h.b16 %v3924
    %v7029 = vunpack.c.l.b16 %v3925
    %v7030 = vunpack.c.h.b16 %v3925
    %v7031 = vunpack.c.l.b16 %v3926
    %v7032 = vunpack.c.h.b16 %v3926
    %v7033 = vunpack.c.l.b16 %v3927
    %v7034 = vunpack.c.h.b16 %v3927
    %v7035 = vunpack.c.l.b16 %v3928
    %v7036 = vunpack.c.h.b16 %v3928
    %v7037 = vunpack.c.l.b16 %v3929
    %v7038 = vunpack.c.h.b16 %v3929
    %v7039 = vunpack.c.l.b16 %v3930
    %v7040 = vunpack.c.h.b16 %v3930
    %v7041 = vunpack.c.l.b16 %v3931
    %v7042 = vunpack.c.h.b16 %v3931
    %v7043 = vunpack.c.l.b16 %v3932
    %v7044 = vunpack.c.h.b16 %v3932
    %v7045 = vunpack.c.l.b16 %v3933
    %v7046 = vunpack.c.h.b16 %v3933
    %v7047 = vunpack.c.l.b16 %v3934
    %v7048 = vunpack.c.h.b16 %v3934
    %v7049 = vpack.c.b16 %v5009, %v5001
    %v7050 = vpack.c.b16 %v5010, %v5002
    %v7051 = vpack.c.b16 %v5011, %v5003
    %v7052 = vpack.c.b16 %v5012, %v5004
    %v7053 = vpack.c.b16 %v5013, %v5005
    %v7054 = vpack.c.b16 %v5014, %v5006
    %v7055 = vpack.c.b16 %v5015, %v5007
    %v7056 = vpack.c.b16 %v5016, %v5008
    %v7057 = vpack.c.b16 %v5025, %v5017
    %v7058 = vpack.c.b16 %v5026, %v5018
    %v7059 = vpack.c.b16 %v5027, %v5019
    %v7060 = vpack.c.b16 %v5028, %v5020
    %v7061 = vpack.c.b16 %v5029, %v5021
    %v7062 = vpack.c.b16 %v5030, %v5022
    %v7063 = vpack.c.b16 %v5031, %v5023
    %v7064 = vpack.c.b16 %v5032, %v5024
    %v7065 = vpack.c.b16 %v5041, %v5033
    %v7066 = vpack.c.b16 %v5042, %v5034
    %v7067 = vpack.c.b16 %v5043, %v5035
    %v7068 = vpack.c.b16 %v5044, %v5036
    %v7069 = vpack.c.b16 %v5045, %v5037
    %v7070 = vpack.c.b16 %v5046, %v5038
    %v7071 = vpack.c.b16 %v5047, %v5039
    %v7072 = vpack.c.b16 %v5048, %v5040
    %v7073 = vpack.c.b16 %v5057, %v5049
    %v7074 = vpack.c.b16 %v5058, %v5050
    %v7075 = vpack.c.b16 %v5059, %v5051
    %v7076 = vpack.c.b16 %v5060, %v5052
    %v7077 = vpack.c.b16 %v5061, %v5053
    %v7078 = vpack.c.b16 %v5062, %v5054
    %v7079 = vpack.c.b16 %v5063, %v5055
    %v7080 = vpack.c.b16 %v5064, %v5056
    %v7081 = vpack.c.b16 %v5073, %v5065
    %v7082 = vpack.c.b16 %v5074, %v5066
    %v7083 = vpack.c.b16 %v5075, %v5067
    %v7084 = vpack.c.b16 %v5076, %v5068
    %v7085 = vpack.c.b16 %v5077, %v5069
    %v7086 = vpack.c.b16 %v5078, %v5070
    %v7087 = vpack.c.b16 %v5079, %v5071
    %v7088 = vpack.c.b16 %v5080, %v5072
    %v7089 = vpack.c.b16 %v5089, %v5081
    %v7090 = vpack.c.b16 %v5090, %v5082
    %v7091 = vpack.c.b16 %v5091, %v5083
    %v7092 = vpack.c.b16 %v5092, %v5084
    %v7093 = vpack.c.b16 %v5093, %v5085
    %v7094 = vpack.c.b16 %v5094, %v5086
    %v7095 = vpack.c.b16 %v5095, %v5087
    %v7096 = vpack.c.b16 %v5096, %v5088
    %v7097 = vpack.c.b16 %v5105, %v5097
    %v7098 = vpack.c.b16 %v5106, %v5098
    %v7099 = vpack.c.b16 %v5107, %v5099
    %v7100 = vpack.c.b16 %v5108, %v5100
    %v7101 = vpack.c.b16 %v5109, %v5101
    %v7102 = vpack.c.b16 %v5110, %v5102
    %v7103 = vpack.c.b16 %v5111, %v5103
    %v7104 = vpack.c.b16 %v5112, %v5104
    %v7105 = vpack.c.b16 %v5121, %v5113
    %v7106 = vpack.c.b16 %v5122, %v5114
    %v7107 = vpack.c.b16 %v5123, %v5115
    %v7108 = vpack.c.b16 %v5124, %v5116
    %v7109 = vpack.c.b16 %v5125, %v5117
    %v7110 = vpack.c.b16 %v5126, %v5118
    %v7111 = vpack.c.b16 %v5127, %v5119
    %v7112 = vpack.c.b16 %v5128, %v5120
    %v7113 = vpack.c.b16 %v5137, %v5129
    %v7114 = vpack.c.b16 %v5138, %v5130
    %v7115 = vpack.c.b16 %v5139, %v5131
    %v7116 = vpack.c.b16 %v5140, %v5132
    %v7117 = vpack.c.b16 %v5141, %v5133
    %v7118 = vpack.c.b16 %v5142, %v5134
    %v7119 = vpack.c.b16 %v5143, %v5135
    %v7120 = vpack.c.b16 %v5144, %v5136
    %v7121 = vpack.c.b16 %v5153, %v5145
    %v7122 = vpack.c.b16 %v5154, %v5146
    %v7123 = vpack.c.b16 %v5155, %v5147
    %v7124 = vpack.c.b16 %v5156, %v5148
    %v7125 = vpack.c.b16 %v5157, %v5149
    %v7126 = vpack.c.b16 %v5158, %v5150
    %v7127 = vpack.c.b16 %v5159, %v5151
    %v7128 = vpack.c.b16 %v5160, %v5152
    %v7129 = vpack.c.b16 %v5169, %v5161
    %v7130 = vpack.c.b16 %v5170, %v5162
    %v7131 = vpack.c.b16 %v5171, %v5163
    %v7132 = vpack.c.b16 %v5172, %v5164
    %v7133 = vpack.c.b16 %v5173, %v5165
    %v7134 = vpack.c.b16 %v5174, %v5166
    %v7135 = vpack.c.b16 %v5175, %v5167
    %v7136 = vpack.c.b16 %v5176, %v5168
    %v7137 = vpack.c.b16 %v5185, %v5177
    %v7138 = vpack.c.b16 %v5186, %v5178
    %v7139 = vpack.c.b16 %v5187, %v5179
    %v7140 = vpack.c.b16 %v5188, %v5180
    %v7141 = vpack.c.b16 %v5189, %v5181
    %v7142 = vpack.c.b16 %v5190, %v5182
    %v7143 = vpack.c.b16 %v5191, %v5183
    %v7144 = vpack.c.b16 %v5192, %v5184
    %v7145 = vpack.c.b16 %v5201, %v5193
    %v7146 = vpack.c.b16 %v5202, %v5194
    %v7147 = vpack.c.b16 %v5203, %v5195
    %v7148 = vpack.c.b16 %v5204, %v5196
    %v7149 = vpack.c.b16 %v5205, %v5197
    %v7150 = vpack.c.b16 %v5206, %v5198
    %v7151 = vpack.c.b16 %v5207, %v5199
    %v7152 = vpack.c.b16 %v5208, %v5200
    %v7153 = vpack.c.b16 %v5217, %v5209
    %v7154 = vpack.c.b16 %v5218, %v5210
    %v7155 = vpack.c.b16 %v5219, %v5211
    %v7156 = vpack.c.b16 %v5220, %v5212
    %v7157 = vpack.c.b16 %v5221, %v5213
    %v7158 = vpack.c.b16 %v5222, %v5214
    %v7159 = vpack.c.b16 %v5223, %v5215
    %v7160 = vpack.c.b16 %v5224, %v5216
    %v7161 = vpack.c.b16 %v5233, %v5225
    %v7162 = vpack.c.b16 %v5234, %v5226
    %v7163 = vpack.c.b16 %v5235, %v5227
    %v7164 = vpack.c.b16 %v5236, %v5228
    %v7165 = vpack.c.b16 %v5237, %v5229
    %v7166 = vpack.c.b16 %v5238, %v5230
    %v7167 = vpack.c.b16 %v5239, %v5231
    %v7168 = vpack.c.b16 %v5240, %v5232
    %v7169 = vpack.c.b16 %v5249, %v5241
    %v7170 = vpack.c.b16 %v5250, %v5242
    %v7171 = vpack.c.b16 %v5251, %v5243
    %v7172 = vpack.c.b16 %v5252, %v5244
    %v7173 = vpack.c.b16 %v5253, %v5245
    %v7174 = vpack.c.b16 %v5254, %v5246
    %v7175 = vpack.c.b16 %v5255, %v5247
    %v7176 = vpack.c.b16 %v5256, %v5248
    %v7177 = vpack.c.b16 %v5265, %v5257
    %v7178 = vpack.c.b16 %v5266, %v5258
    %v7179 = vpack.c.b16 %v5267, %v5259
    %v7180 = vpack.c.b16 %v5268, %v5260
    %v7181 = vpack.c.b16 %v5269, %v5261
    %v7182 = vpack.c.b16 %v5270, %v5262
    %v7183 = vpack.c.b16 %v5271, %v5263
    %v7184 = vpack.c.b16 %v5272, %v5264
    %v7185 = vpack.c.b16 %v5281, %v5273
    %v7186 = vpack.c.b16 %v5282, %v5274
    %v7187 = vpack.c.b16 %v5283, %v5275
    %v7188 = vpack.c.b16 %v5284, %v5276
    %v7189 = vpack.c.b16 %v5285, %v5277
    %v7190 = vpack.c.b16 %v5286, %v5278
    %v7191 = vpack.c.b16 %v5287, %v5279
    %v7192 = vpack.c.b16 %v5288, %v5280
    %v7193 = vpack.c.b16 %v5297, %v5289
    %v7194 = vpack.c.b16 %v5298, %v5290
    %v7195 = vpack.c.b16 %v5299, %v5291
    %v7196 = vpack.c.b16 %v5300, %v5292
    %v7197 = vpack.c.b16 %v5301, %v5293
    %v7198 = vpack.c.b16 %v5302, %v5294
    %v7199 = vpack.c.b16 %v5303, %v5295
    %v7200 = vpack.c.b16 %v5304, %v5296
    %v7201 = vpack.c.b16 %v5313, %v5305
    %v7202 = vpack.c.b16 %v5314, %v5306
    %v7203 = vpack.c.b16 %v5315, %v5307
    %v7204 = vpack.c.b16 %v5316, %v5308
    %v7205 = vpack.c.b16 %v5317, %v5309
    %v7206 = vpack.c.b16 %v5318, %v5310
    %v7207 = vpack.c.b16 %v5319, %v5311
    %v7208 = vpack.c.b16 %v5320, %v5312
    %v7209 = vpack.c.b16 %v5329, %v5321
    %v7210 = vpack.c.b16 %v5330, %v5322
    %v7211 = vpack.c.b16 %v5331, %v5323
    %v7212 = vpack.c.b16 %v5332, %v5324
    %v7213 = vpack.c.b16 %v5333, %v5325
    %v7214 = vpack.c.b16 %v5334, %v5326
    %v7215 = vpack.c.b16 %v5335, %v5327
    %v7216 = vpack.c.b16 %v5336, %v5328
    %v7217 = vpack.c.b16 %v5345, %v5337
    %v7218 = vpack.c.b16 %v5346, %v5338
    %v7219 = vpack.c.b16 %v5347, %v5339
    %v7220 = vpack.c.b16 %v5348, %v5340
    %v7221 = vpack.c.b16 %v5349, %v5341
    %v7222 = vpack.c.b16 %v5350, %v5342
    %v7223 = vpack.c.b16 %v5351, %v5343
    %v7224 = vpack.c.b16 %v5352, %v5344
    %v7225 = vpack.c.b16 %v5361, %v5353
    %v7226 = vpack.c.b16 %v5362, %v5354
    %v7227 = vpack.c.b16 %v5363, %v5355
    %v7228 = vpack.c.b16 %v5364, %v5356
    %v7229 = vpack.c.b16 %v5365, %v5357
    %v7230 = vpack.c.b16 %v5366, %v5358
    %v7231 = vpack.c.b16 %v5367, %v5359
    %v7232 = vpack.c.b16 %v5368, %v5360
    %v7233 = vpack.c.b16 %v5377, %v5369
    %v7234 = vpack.c.b16 %v5378, %v5370
    %v7235 = vpack.c.b16 %v5379, %v5371
    %v7236 = vpack.c.b16 %v5380, %v5372
    %v7237 = vpack.c.b16 %v5381, %v5373
    %v7238 = vpack.c.b16 %v5382, %v5374
    %v7239 = vpack.c.b16 %v5383, %v5375
    %v7240 = vpack.c.b16 %v5384, %v5376
    %v7241 = vpack.c.b16 %v5393, %v5385
    %v7242 = vpack.c.b16 %v5394, %v5386
    %v7243 = vpack.c.b16 %v5395, %v5387
    %v7244 = vpack.c.b16 %v5396, %v5388
    %v7245 = vpack.c.b16 %v5397, %v5389
    %v7246 = vpack.c.b16 %v5398, %v5390
    %v7247 = vpack.c.b16 %v5399, %v5391
    %v7248 = vpack.c.b16 %v5400, %v5392
    %v7249 = vpack.c.b16 %v5409, %v5401
    %v7250 = vpack.c.b16 %v5410, %v5402
    %v7251 = vpack.c.b16 %v5411, %v5403
    %v7252 = vpack.c.b16 %v5412, %v5404
    %v7253 = vpack.c.b16 %v5413, %v5405
    %v7254 = vpack.c.b16 %v5414, %v5406
    %v7255 = vpack.c.b16 %v5415, %v5407
    %v7256 = vpack.c.b16 %v5416, %v5408
    %v7257 = vpack.c.b16 %v5425, %v5417
    %v7258 = vpack.c.b16 %v5426, %v5418
    %v7259 = vpack.c.b16 %v5427, %v5419
    %v7260 = vpack.c.b16 %v5428, %v5420
    %v7261 = vpack.c.b16 %v5429, %v5421
    %v7262 = vpack.c.b16 %v5430, %v5422
    %v7263 = vpack.c.b16 %v5431, %v5423
    %v7264 = vpack.c.b16 %v5432, %v5424
    %v7265 = vpack.c.b16 %v5441, %v5433
    %v7266 = vpack.c.b16 %v5442, %v5434
    %v7267 = vpack.c.b16 %v5443, %v5435
    %v7268 = vpack.c.b16 %v5444, %v5436
    %v7269 = vpack.c.b16 %v5445, %v5437
    %v7270 = vpack.c.b16 %v5446, %v5438
    %v7271 = vpack.c.b16 %v5447, %v5439
    %v7272 = vpack.c.b16 %v5448, %v5440
    %v7273 = vpack.c.b16 %v5457, %v5449
    %v7274 = vpack.c.b16 %v5458, %v5450
    %v7275 = vpack.c.b16 %v5459, %v5451
    %v7276 = vpack.c.b16 %v5460, %v5452
    %v7277 = vpack.c.b16 %v5461, %v5453
    %v7278 = vpack.c.b16 %v5462, %v5454
    %v7279 = vpack.c.b16 %v5463, %v5455
    %v7280 = vpack.c.b16 %v5464, %v5456
    %v7281 = vpack.c.b16 %v5473, %v5465
    %v7282 = vpack.c.b16 %v5474, %v5466
    %v7283 = vpack.c.b16 %v5475, %v5467
    %v7284 = vpack.c.b16 %v5476, %v5468
    %v7285 = vpack.c.b16 %v5477, %v5469
    %v7286 = vpack.c.b16 %v5478, %v5470
    %v7287 = vpack.c.b16 %v5479, %v5471
    %v7288 = vpack.c.b16 %v5480, %v5472
    %v7289 = vpack.c.b16 %v5489, %v5481
    %v7290 = vpack.c.b16 %v5490, %v5482
    %v7291 = vpack.c.b16 %v5491, %v5483
    %v7292 = vpack.c.b16 %v5492, %v5484
    %v7293 = vpack.c.b16 %v5493, %v5485
    %v7294 = vpack.c.b16 %v5494, %v5486
    %v7295 = vpack.c.b16 %v5495, %v5487
    %v7296 = vpack.c.b16 %v5496, %v5488
    %v7297 = vpack.c.b16 %v5505, %v5497
    %v7298 = vpack.c.b16 %v5506, %v5498
    %v7299 = vpack.c.b16 %v5507, %v5499
    %v7300 = vpack.c.b16 %v5508, %v5500
    %v7301 = vpack.c.b16 %v5509, %v5501
    %v7302 = vpack.c.b16 %v5510, %v5502
    %v7303 = vpack.c.b16 %v5511, %v5503
    %v7304 = vpack.c.b16 %v5512, %v5504
    %v7305 = vpack.c.b16 %v5521, %v5513
    %v7306 = vpack.c.b16 %v5522, %v5514
    %v7307 = vpack.c.b16 %v5523, %v5515
    %v7308 = vpack.c.b16 %v5524, %v5516
    %v7309 = vpack.c.b16 %v5525, %v5517
    %v7310 = vpack.c.b16 %v5526, %v5518
    %v7311 = vpack.c.b16 %v5527, %v5519
    %v7312 = vpack.c.b16 %v5528, %v5520
    %v7313 = vpack.c.b16 %v5537, %v5529
    %v7314 = vpack.c.b16 %v5538, %v5530
    %v7315 = vpack.c.b16 %v5539, %v5531
    %v7316 = vpack.c.b16 %v5540, %v5532
    %v7317 = vpack.c.b16 %v5541, %v5533
    %v7318 = vpack.c.b16 %v5542, %v5534
    %v7319 = vpack.c.b16 %v5543, %v5535
    %v7320 = vpack.c.b16 %v5544, %v5536
    %v7321 = vpack.c.b16 %v5553, %v5545
    %v7322 = vpack.c.b16 %v5554, %v5546
    %v7323 = vpack.c.b16 %v5555, %v5547
    %v7324 = vpack.c.b16 %v5556, %v5548
    %v7325 = vpack.c.b16 %v5557, %v5549
    %v7326 = vpack.c.b16 %v5558, %v5550
    %v7327 = vpack.c.b16 %v5559, %v5551
    %v7328 = vpack.c.b16 %v5560, %v5552
    %v7329 = vpack.c.b16 %v5569, %v5561
    %v7330 = vpack.c.b16 %v5570, %v5562
    %v7331 = vpack.c.b16 %v5571, %v5563
    %v7332 = vpack.c.b16 %v5572, %v5564
    %v7333 = vpack.c.b16 %v5573, %v5565
    %v7334 = vpack.c.b16 %v5574, %v5566
    %v7335 = vpack.c.b16 %v5575, %v5567
    %v7336 = vpack.c.b16 %v5576, %v5568
    %v7337 = vpack.c.b16 %v5585, %v5577
    %v7338 = vpack.c.b16 %v5586, %v5578
    %v7339 = vpack.c.b16 %v5587, %v5579
    %v7340 = vpack.c.b16 %v5588, %v5580
    %v7341 = vpack.c.b16 %v5589, %v5581
    %v7342 = vpack.c.b16 %v5590, %v5582
    %v7343 = vpack.c.b16 %v5591, %v5583
    %v7344 = vpack.c.b16 %v5592, %v5584
    %v7345 = vpack.c.b16 %v5601, %v5593
    %v7346 = vpack.c.b16 %v5602, %v5594
    %v7347 = vpack.c.b16 %v5603, %v5595
    %v7348 = vpack.c.b16 %v5604, %v5596
    %v7349 = vpack.c.b16 %v5605, %v5597
    %v7350 = vpack.c.b16 %v5606, %v5598
    %v7351 = vpack.c.b16 %v5607, %v5599
    %v7352 = vpack.c.b16 %v5608, %v5600
    %v7353 = vpack.c.b16 %v5617, %v5609
    %v7354 = vpack.c.b16 %v5618, %v5610
    %v7355 = vpack.c.b16 %v5619, %v5611
    %v7356 = vpack.c.b16 %v5620, %v5612
    %v7357 = vpack.c.b16 %v5621, %v5613
    %v7358 = vpack.c.b16 %v5622, %v5614
    %v7359 = vpack.c.b16 %v5623, %v5615
    %v7360 = vpack.c.b16 %v5624, %v5616
    %v7361 = vpack.c.b16 %v5633, %v5625
    %v7362 = vpack.c.b16 %v5634, %v5626
    %v7363 = vpack.c.b16 %v5635, %v5627
    %v7364 = vpack.c.b16 %v5636, %v5628
    %v7365 = vpack.c.b16 %v5637, %v5629
    %v7366 = vpack.c.b16 %v5638, %v5630
    %v7367 = vpack.c.b16 %v5639, %v5631
    %v7368 = vpack.c.b16 %v5640, %v5632
    %v7369 = vpack.c.b16 %v5649, %v5641
    %v7370 = vpack.c.b16 %v5650, %v5642
    %v7371 = vpack.c.b16 %v5651, %v5643
    %v7372 = vpack.c.b16 %v5652, %v5644
    %v7373 = vpack.c.b16 %v5653, %v5645
    %v7374 = vpack.c.b16 %v5654, %v5646
    %v7375 = vpack.c.b16 %v5655, %v5647
    %v7376 = vpack.c.b16 %v5656, %v5648
    %v7377 = vpack.c.b16 %v5665, %v5657
    %v7378 = vpack.c.b16 %v5666, %v5658
    %v7379 = vpack.c.b16 %v5667, %v5659
    %v7380 = vpack.c.b16 %v5668, %v5660
    %v7381 = vpack.c.b16 %v5669, %v5661
    %v7382 = vpack.c.b16 %v5670, %v5662
    %v7383 = vpack.c.b16 %v5671, %v5663
    %v7384 = vpack.c.b16 %v5672, %v5664
    %v7385 = vpack.c.b16 %v5681, %v5673
    %v7386 = vpack.c.b16 %v5682, %v5674
    %v7387 = vpack.c.b16 %v5683, %v5675
    %v7388 = vpack.c.b16 %v5684, %v5676
    %v7389 = vpack.c.b16 %v5685, %v5677
    %v7390 = vpack.c.b16 %v5686, %v5678
    %v7391 = vpack.c.b16 %v5687, %v5679
    %v7392 = vpack.c.b16 %v5688, %v5680
    %v7393 = vpack.c.b16 %v5697, %v5689
    %v7394 = vpack.c.b16 %v5698, %v5690
    %v7395 = vpack.c.b16 %v5699, %v5691
    %v7396 = vpack.c.b16 %v5700, %v5692
    %v7397 = vpack.c.b16 %v5701, %v5693
    %v7398 = vpack.c.b16 %v5702, %v5694
    %v7399 = vpack.c.b16 %v5703, %v5695
    %v7400 = vpack.c.b16 %v5704, %v5696
    %v7401 = vpack.c.b16 %v5713, %v5705
    %v7402 = vpack.c.b16 %v5714, %v5706
    %v7403 = vpack.c.b16 %v5715, %v5707
    %v7404 = vpack.c.b16 %v5716, %v5708
    %v7405 = vpack.c.b16 %v5717, %v5709
    %v7406 = vpack.c.b16 %v5718, %v5710
    %v7407 = vpack.c.b16 %v5719, %v5711
    %v7408 = vpack.c.b16 %v5720, %v5712
    %v7409 = vpack.c.b16 %v5729, %v5721
    %v7410 = vpack.c.b16 %v5730, %v5722
    %v7411 = vpack.c.b16 %v5731, %v5723
    %v7412 = vpack.c.b16 %v5732, %v5724
    %v7413 = vpack.c.b16 %v5733, %v5725
    %v7414 = vpack.c.b16 %v5734, %v5726
    %v7415 = vpack.c.b16 %v5735, %v5727
    %v7416 = vpack.c.b16 %v5736, %v5728
    %v7417 = vpack.c.b16 %v5745, %v5737
    %v7418 = vpack.c.b16 %v5746, %v5738
    %v7419 = vpack.c.b16 %v5747, %v5739
    %v7420 = vpack.c.b16 %v5748, %v5740
    %v7421 = vpack.c.b16 %v5749, %v5741
    %v7422 = vpack.c.b16 %v5750, %v5742
    %v7423 = vpack.c.b16 %v5751, %v5743
    %v7424 = vpack.c.b16 %v5752, %v5744
    %v7425 = vpack.c.b16 %v5761, %v5753
    %v7426 = vpack.c.b16 %v5762, %v5754
    %v7427 = vpack.c.b16 %v5763, %v5755
    %v7428 = vpack.c.b16 %v5764, %v5756
    %v7429 = vpack.c.b16 %v5765, %v5757
    %v7430 = vpack.c.b16 %v5766, %v5758
    %v7431 = vpack.c.b16 %v5767, %v5759
    %v7432 = vpack.c.b16 %v5768, %v5760
    %v7433 = vpack.c.b16 %v5777, %v5769
    %v7434 = vpack.c.b16 %v5778, %v5770
    %v7435 = vpack.c.b16 %v5779, %v5771
    %v7436 = vpack.c.b16 %v5780, %v5772
    %v7437 = vpack.c.b16 %v5781, %v5773
    %v7438 = vpack.c.b16 %v5782, %v5774
    %v7439 = vpack.c.b16 %v5783, %v5775
    %v7440 = vpack.c.b16 %v5784, %v5776
    %v7441 = vpack.c.b16 %v5793, %v5785
    %v7442 = vpack.c.b16 %v5794, %v5786
    %v7443 = vpack.c.b16 %v5795, %v5787
    %v7444 = vpack.c.b16 %v5796, %v5788
    %v7445 = vpack.c.b16 %v5797, %v5789
    %v7446 = vpack.c.b16 %v5798, %v5790
    %v7447 = vpack.c.b16 %v5799, %v5791
    %v7448 = vpack.c.b16 %v5800, %v5792
    %v7449 = vpack.c.b16 %v5809, %v5801
    %v7450 = vpack.c.b16 %v5810, %v5802
    %v7451 = vpack.c.b16 %v5811, %v5803
    %v7452 = vpack.c.b16 %v5812, %v5804
    %v7453 = vpack.c.b16 %v5813, %v5805
    %v7454 = vpack.c.b16 %v5814, %v5806
    %v7455 = vpack.c.b16 %v5815, %v5807
    %v7456 = vpack.c.b16 %v5816, %v5808
    %v7457 = vpack.c.b16 %v5825, %v5817
    %v7458 = vpack.c.b16 %v5826, %v5818
    %v7459 = vpack.c.b16 %v5827, %v5819
    %v7460 = vpack.c.b16 %v5828, %v5820
    %v7461 = vpack.c.b16 %v5829, %v5821
    %v7462 = vpack.c.b16 %v5830, %v5822
    %v7463 = vpack.c.b16 %v5831, %v5823
    %v7464 = vpack.c.b16 %v5832, %v5824
    %v7465 = vpack.c.b16 %v5841, %v5833
    %v7466 = vpack.c.b16 %v5842, %v5834
    %v7467 = vpack.c.b16 %v5843, %v5835
    %v7468 = vpack.c.b16 %v5844, %v5836
    %v7469 = vpack.c.b16 %v5845, %v5837
    %v7470 = vpack.c.b16 %v5846, %v5838
    %v7471 = vpack.c.b16 %v5847, %v5839
    %v7472 = vpack.c.b16 %v5848, %v5840
    %v7473 = vpack.c.b16 %v5857, %v5849
    %v7474 = vpack.c.b16 %v5858, %v5850
    %v7475 = vpack.c.b16 %v5859, %v5851
    %v7476 = vpack.c.b16 %v5860, %v5852
    %v7477 = vpack.c.b16 %v5861, %v5853
    %v7478 = vpack.c.b16 %v5862, %v5854
    %v7479 = vpack.c.b16 %v5863, %v5855
    %v7480 = vpack.c.b16 %v5864, %v5856
    %v7481 = vpack.c.b16 %v5873, %v5865
    %v7482 = vpack.c.b16 %v5874, %v5866
    %v7483 = vpack.c.b16 %v5875, %v5867
    %v7484 = vpack.c.b16 %v5876, %v5868
    %v7485 = vpack.c.b16 %v5877, %v5869
    %v7486 = vpack.c.b16 %v5878, %v5870
    %v7487 = vpack.c.b16 %v5879, %v5871
    %v7488 = vpack.c.b16 %v5880, %v5872
    %v7489 = vpack.c.b16 %v5889, %v5881
    %v7490 = vpack.c.b16 %v5890, %v5882
    %v7491 = vpack.c.b16 %v5891, %v5883
    %v7492 = vpack.c.b16 %v5892, %v5884
    %v7493 = vpack.c.b16 %v5893, %v5885
    %v7494 = vpack.c.b16 %v5894, %v5886
    %v7495 = vpack.c.b16 %v5895, %v5887
    %v7496 = vpack.c.b16 %v5896, %v5888
    %v7497 = vpack.c.b16 %v5905, %v5897
    %v7498 = vpack.c.b16 %v5906, %v5898
    %v7499 = vpack.c.b16 %v5907, %v5899
    %v7500 = vpack.c.b16 %v5908, %v5900
    %v7501 = vpack.c.b16 %v5909, %v5901
    %v7502 = vpack.c.b16 %v5910, %v5902
    %v7503 = vpack.c.b16 %v5911, %v5903
    %v7504 = vpack.c.b16 %v5912, %v5904
    %v7505 = vpack.c.b16 %v5921, %v5913
    %v7506 = vpack.c.b16 %v5922, %v5914
    %v7507 = vpack.c.b16 %v5923, %v5915
    %v7508 = vpack.c.b16 %v5924, %v5916
    %v7509 = vpack.c.b16 %v5925, %v5917
    %v7510 = vpack.c.b16 %v5926, %v5918
    %v7511 = vpack.c.b16 %v5927, %v5919
    %v7512 = vpack.c.b16 %v5928, %v5920
    %v7513 = vpack.c.b16 %v5937, %v5929
    %v7514 = vpack.c.b16 %v5938, %v5930
    %v7515 = vpack.c.b16 %v5939, %v5931
    %v7516 = vpack.c.b16 %v5940, %v5932
    %v7517 = vpack.c.b16 %v5941, %v5933
    %v7518 = vpack.c.b16 %v5942, %v5934
    %v7519 = vpack.c.b16 %v5943, %v5935
    %v7520 = vpack.c.b16 %v5944, %v5936
    %v7521 = vpack.c.b16 %v5953, %v5945
    %v7522 = vpack.c.b16 %v5954, %v5946
    %v7523 = vpack.c.b16 %v5955, %v5947
    %v7524 = vpack.c.b16 %v5956, %v5948
    %v7525 = vpack.c.b16 %v5957, %v5949
    %v7526 = vpack.c.b16 %v5958, %v5950
    %v7527 = vpack.c.b16 %v5959, %v5951
    %v7528 = vpack.c.b16 %v5960, %v5952
    %v7529 = vpack.c.b16 %v5969, %v5961
    %v7530 = vpack.c.b16 %v5970, %v5962
    %v7531 = vpack.c.b16 %v5971, %v5963
    %v7532 = vpack.c.b16 %v5972, %v5964
    %v7533 = vpack.c.b16 %v5973, %v5965
    %v7534 = vpack.c.b16 %v5974, %v5966
    %v7535 = vpack.c.b16 %v5975, %v5967
    %v7536 = vpack.c.b16 %v5976, %v5968
    %v7537 = vpack.c.b16 %v5985, %v5977
    %v7538 = vpack.c.b16 %v5986, %v5978
    %v7539 = vpack.c.b16 %v5987, %v5979
    %v7540 = vpack.c.b16 %v5988, %v5980
    %v7541 = vpack.c.b16 %v5989, %v5981
    %v7542 = vpack.c.b16 %v5990, %v5982
    %v7543 = vpack.c.b16 %v5991, %v5983
    %v7544 = vpack.c.b16 %v5992, %v5984
    %v7545 = vpack.c.b16 %v6001, %v5993
    %v7546 = vpack.c.b16 %v6002, %v5994
    %v7547 = vpack.c.b16 %v6003, %v5995
    %v7548 = vpack.c.b16 %v6004, %v5996
    %v7549 = vpack.c.b16 %v6005, %v5997
    %v7550 = vpack.c.b16 %v6006, %v5998
    %v7551 = vpack.c.b16 %v6007, %v5999
    %v7552 = vpack.c.b16 %v6008, %v6000
    %v7553 = vpack.c.b16 %v6017, %v6009
    %v7554 = vpack.c.b16 %v6018, %v6010
    %v7555 = vpack.c.b16 %v6019, %v6011
    %v7556 = vpack.c.b16 %v6020, %v6012
    %v7557 = vpack.c.b16 %v6021, %v6013
    %v7558 = vpack.c.b16 %v6022, %v6014
    %v7559 = vpack.c.b16 %v6023, %v6015
    %v7560 = vpack.c.b16 %v6024, %v6016
    %v7561 = vpack.c.b16 %v6033, %v6025
    %v7562 = vpack.c.b16 %v6034, %v6026
    %v7563 = vpack.c.b16 %v6035, %v6027
    %v7564 = vpack.c.b16 %v6036, %v6028
    %v7565 = vpack.c.b16 %v6037, %v6029
    %v7566 = vpack.c.b16 %v6038, %v6030
    %v7567 = vpack.c.b16 %v6039, %v6031
    %v7568 = vpack.c.b16 %v6040, %v6032
    %v7569 = vpack.c.b16 %v6049, %v6041
    %v7570 = vpack.c.b16 %v6050, %v6042
    %v7571 = vpack.c.b16 %v6051, %v6043
    %v7572 = vpack.c.b16 %v6052, %v6044
    %v7573 = vpack.c.b16 %v6053, %v6045
    %v7574 = vpack.c.b16 %v6054, %v6046
    %v7575 = vpack.c.b16 %v6055, %v6047
    %v7576 = vpack.c.b16 %v6056, %v6048
    %v7577 = vpack.c.b16 %v6065, %v6057
    %v7578 = vpack.c.b16 %v6066, %v6058
    %v7579 = vpack.c.b16 %v6067, %v6059
    %v7580 = vpack.c.b16 %v6068, %v6060
    %v7581 = vpack.c.b16 %v6069, %v6061
    %v7582 = vpack.c.b16 %v6070, %v6062
    %v7583 = vpack.c.b16 %v6071, %v6063
    %v7584 = vpack.c.b16 %v6072, %v6064
    %v7585 = vpack.c.b16 %v6081, %v6073
    %v7586 = vpack.c.b16 %v6082, %v6074
    %v7587 = vpack.c.b16 %v6083, %v6075
    %v7588 = vpack.c.b16 %v6084, %v6076
    %v7589 = vpack.c.b16 %v6085, %v6077
    %v7590 = vpack.c.b16 %v6086, %v6078
    %v7591 = vpack.c.b16 %v6087, %v6079
    %v7592 = vpack.c.b16 %v6088, %v6080
    %v7593 = vpack.c.b16 %v6097, %v6089
    %v7594 = vpack.c.b16 %v6098, %v6090
    %v7595 = vpack.c.b16 %v6099, %v6091
    %v7596 = vpack.c.b16 %v6100, %v6092
    %v7597 = vpack.c.b16 %v6101, %v6093
    %v7598 = vpack.c.b16 %v6102, %v6094
    %v7599 = vpack.c.b16 %v6103, %v6095
    %v7600 = vpack.c.b16 %v6104, %v6096
    %v7601 = vpack.c.b16 %v6113, %v6105
    %v7602 = vpack.c.b16 %v6114, %v6106
    %v7603 = vpack.c.b16 %v6115, %v6107
    %v7604 = vpack.c.b16 %v6116, %v6108
    %v7605 = vpack.c.b16 %v6117, %v6109
    %v7606 = vpack.c.b16 %v6118, %v6110
    %v7607 = vpack.c.b16 %v6119, %v6111
    %v7608 = vpack.c.b16 %v6120, %v6112
    %v7609 = vpack.c.b16 %v6129, %v6121
    %v7610 = vpack.c.b16 %v6130, %v6122
    %v7611 = vpack.c.b16 %v6131, %v6123
    %v7612 = vpack.c.b16 %v6132, %v6124
    %v7613 = vpack.c.b16 %v6133, %v6125
    %v7614 = vpack.c.b16 %v6134, %v6126
    %v7615 = vpack.c.b16 %v6135, %v6127
    %v7616 = vpack.c.b16 %v6136, %v6128
    %v7617 = vpack.c.b16 %v6145, %v6137
    %v7618 = vpack.c.b16 %v6146, %v6138
    %v7619 = vpack.c.b16 %v6147, %v6139
    %v7620 = vpack.c.b16 %v6148, %v6140
    %v7621 = vpack.c.b16 %v6149, %v6141
    %v7622 = vpack.c.b16 %v6150, %v6142
    %v7623 = vpack.c.b16 %v6151, %v6143
    %v7624 = vpack.c.b16 %v6152, %v6144
    %v7625 = vpack.c.b16 %v6161, %v6153
    %v7626 = vpack.c.b16 %v6162, %v6154
    %v7627 = vpack.c.b16 %v6163, %v6155
    %v7628 = vpack.c.b16 %v6164, %v6156
    %v7629 = vpack.c.b16 %v6165, %v6157
    %v7630 = vpack.c.b16 %v6166, %v6158
    %v7631 = vpack.c.b16 %v6167, %v6159
    %v7632 = vpack.c.b16 %v6168, %v6160
    %v7633 = vpack.c.b16 %v6177, %v6169
    %v7634 = vpack.c.b16 %v6178, %v6170
    %v7635 = vpack.c.b16 %v6179, %v6171
    %v7636 = vpack.c.b16 %v6180, %v6172
    %v7637 = vpack.c.b16 %v6181, %v6173
    %v7638 = vpack.c.b16 %v6182, %v6174
    %v7639 = vpack.c.b16 %v6183, %v6175
    %v7640 = vpack.c.b16 %v6184, %v6176
    %v7641 = vpack.c.b16 %v6193, %v6185
    %v7642 = vpack.c.b16 %v6194, %v6186
    %v7643 = vpack.c.b16 %v6195, %v6187
    %v7644 = vpack.c.b16 %v6196, %v6188
    %v7645 = vpack.c.b16 %v6197, %v6189
    %v7646 = vpack.c.b16 %v6198, %v6190
    %v7647 = vpack.c.b16 %v6199, %v6191
    %v7648 = vpack.c.b16 %v6200, %v6192
    %v7649 = vpack.c.b16 %v6209, %v6201
    %v7650 = vpack.c.b16 %v6210, %v6202
    %v7651 = vpack.c.b16 %v6211, %v6203
    %v7652 = vpack.c.b16 %v6212, %v6204
    %v7653 = vpack.c.b16 %v6213, %v6205
    %v7654 = vpack.c.b16 %v6214, %v6206
    %v7655 = vpack.c.b16 %v6215, %v6207
    %v7656 = vpack.c.b16 %v6216, %v6208
    %v7657 = vpack.c.b16 %v6225, %v6217
    %v7658 = vpack.c.b16 %v6226, %v6218
    %v7659 = vpack.c.b16 %v6227, %v6219
    %v7660 = vpack.c.b16 %v6228, %v6220
    %v7661 = vpack.c.b16 %v6229, %v6221
    %v7662 = vpack.c.b16 %v6230, %v6222
    %v7663 = vpack.c.b16 %v6231, %v6223
    %v7664 = vpack.c.b16 %v6232, %v6224
    %v7665 = vpack.c.b16 %v6241, %v6233
    %v7666 = vpack.c.b16 %v6242, %v6234
    %v7667 = vpack.c.b16 %v6243, %v6235
    %v7668 = vpack.c.b16 %v6244, %v6236
    %v7669 = vpack.c.b16 %v6245, %v6237
    %v7670 = vpack.c.b16 %v6246, %v6238
    %v7671 = vpack.c.b16 %v6247, %v6239
    %v7672 = vpack.c.b16 %v6248, %v6240
    %v7673 = vpack.c.b16 %v6257, %v6249
    %v7674 = vpack.c.b16 %v6258, %v6250
    %v7675 = vpack.c.b16 %v6259, %v6251
    %v7676 = vpack.c.b16 %v6260, %v6252
    %v7677 = vpack.c.b16 %v6261, %v6253
    %v7678 = vpack.c.b16 %v6262, %v6254
    %v7679 = vpack.c.b16 %v6263, %v6255
    %v7680 = vpack.c.b16 %v6264, %v6256
    %v7681 = vpack.c.b16 %v6273, %v6265
    %v7682 = vpack.c.b16 %v6274, %v6266
    %v7683 = vpack.c.b16 %v6275, %v6267
    %v7684 = vpack.c.b16 %v6276, %v6268
    %v7685 = vpack.c.b16 %v6277, %v6269
    %v7686 = vpack.c.b16 %v6278, %v6270
    %v7687 = vpack.c.b16 %v6279, %v6271
    %v7688 = vpack.c.b16 %v6280, %v6272
    %v7689 = vpack.c.b16 %v6289, %v6281
    %v7690 = vpack.c.b16 %v6290, %v6282
    %v7691 = vpack.c.b16 %v6291, %v6283
    %v7692 = vpack.c.b16 %v6292, %v6284
    %v7693 = vpack.c.b16 %v6293, %v6285
    %v7694 = vpack.c.b16 %v6294, %v6286
    %v7695 = vpack.c.b16 %v6295, %v6287
    %v7696 = vpack.c.b16 %v6296, %v6288
    %v7697 = vpack.c.b16 %v6305, %v6297
    %v7698 = vpack.c.b16 %v6306, %v6298
    %v7699 = vpack.c.b16 %v6307, %v6299
    %v7700 = vpack.c.b16 %v6308, %v6300
    %v7701 = vpack.c.b16 %v6309, %v6301
    %v7702 = vpack.c.b16 %v6310, %v6302
    %v7703 = vpack.c.b16 %v6311, %v6303
    %v7704 = vpack.c.b16 %v6312, %v6304
    %v7705 = vpack.c.b16 %v6321, %v6313
    %v7706 = vpack.c.b16 %v6322, %v6314
    %v7707 = vpack.c.b16 %v6323, %v6315
    %v7708 = vpack.c.b16 %v6324, %v6316
    %v7709 = vpack.c.b16 %v6325, %v6317
    %v7710 = vpack.c.b16 %v6326, %v6318
    %v7711 = vpack.c.b16 %v6327, %v6319
    %v7712 = vpack.c.b16 %v6328, %v6320
    %v7713 = vpack.c.b16 %v6337, %v6329
    %v7714 = vpack.c.b16 %v6338, %v6330
    %v7715 = vpack.c.b16 %v6339, %v6331
    %v7716 = vpack.c.b16 %v6340, %v6332
    %v7717 = vpack.c.b16 %v6341, %v6333
    %v7718 = vpack.c.b16 %v6342, %v6334
    %v7719 = vpack.c.b16 %v6343, %v6335
    %v7720 = vpack.c.b16 %v6344, %v6336
    %v7721 = vpack.c.b16 %v6353, %v6345
    %v7722 = vpack.c.b16 %v6354, %v6346
    %v7723 = vpack.c.b16 %v6355, %v6347
    %v7724 = vpack.c.b16 %v6356, %v6348
    %v7725 = vpack.c.b16 %v6357, %v6349
    %v7726 = vpack.c.b16 %v6358, %v6350
    %v7727 = vpack.c.b16 %v6359, %v6351
    %v7728 = vpack.c.b16 %v6360, %v6352
    %v7729 = vpack.c.b16 %v6369, %v6361
    %v7730 = vpack.c.b16 %v6370, %v6362
    %v7731 = vpack.c.b16 %v6371, %v6363
    %v7732 = vpack.c.b16 %v6372, %v6364
    %v7733 = vpack.c.b16 %v6373, %v6365
    %v7734 = vpack.c.b16 %v6374, %v6366
    %v7735 = vpack.c.b16 %v6375, %v6367
    %v7736 = vpack.c.b16 %v6376, %v6368
    %v7737 = vpack.c.b16 %v6385, %v6377
    %v7738 = vpack.c.b16 %v6386, %v6378
    %v7739 = vpack.c.b16 %v6387, %v6379
    %v7740 = vpack.c.b16 %v6388, %v6380
    %v7741 = vpack.c.b16 %v6389, %v6381
    %v7742 = vpack.c.b16 %v6390, %v6382
    %v7743 = vpack.c.b16 %v6391, %v6383
    %v7744 = vpack.c.b16 %v6392, %v6384
    %v7745 = vpack.c.b16 %v6401, %v6393
    %v7746 = vpack.c.b16 %v6402, %v6394
    %v7747 = vpack.c.b16 %v6403, %v6395
    %v7748 = vpack.c.b16 %v6404, %v6396
    %v7749 = vpack.c.b16 %v6405, %v6397
    %v7750 = vpack.c.b16 %v6406, %v6398
    %v7751 = vpack.c.b16 %v6407, %v6399
    %v7752 = vpack.c.b16 %v6408, %v6400
    %v7753 = vpack.c.b16 %v6417, %v6409
    %v7754 = vpack.c.b16 %v6418, %v6410
    %v7755 = vpack.c.b16 %v6419, %v6411
    %v7756 = vpack.c.b16 %v6420, %v6412
    %v7757 = vpack.c.b16 %v6421, %v6413
    %v7758 = vpack.c.b16 %v6422, %v6414
    %v7759 = vpack.c.b16 %v6423, %v6415
    %v7760 = vpack.c.b16 %v6424, %v6416
    %v7761 = vpack.c.b16 %v6433, %v6425
    %v7762 = vpack.c.b16 %v6434, %v6426
    %v7763 = vpack.c.b16 %v6435, %v6427
    %v7764 = vpack.c.b16 %v6436, %v6428
    %v7765 = vpack.c.b16 %v6437, %v6429
    %v7766 = vpack.c.b16 %v6438, %v6430
    %v7767 = vpack.c.b16 %v6439, %v6431
    %v7768 = vpack.c.b16 %v6440, %v6432
    %v7769 = vpack.c.b16 %v6449, %v6441
    %v7770 = vpack.c.b16 %v6450, %v6442
    %v7771 = vpack.c.b16 %v6451, %v6443
    %v7772 = vpack.c.b16 %v6452, %v6444
    %v7773 = vpack.c.b16 %v6453, %v6445
    %v7774 = vpack.c.b16 %v6454, %v6446
    %v7775 = vpack.c.b16 %v6455, %v6447
    %v7776 = vpack.c.b16 %v6456, %v6448
    %v7777 = vpack.c.b16 %v6465, %v6457
    %v7778 = vpack.c.b16 %v6466, %v6458
    %v7779 = vpack.c.b16 %v6467, %v6459
    %v7780 = vpack.c.b16 %v6468, %v6460
    %v7781 = vpack.c.b16 %v6469, %v6461
    %v7782 = vpack.c.b16 %v6470, %v6462
    %v7783 = vpack.c.b16 %v6471, %v6463
    %v7784 = vpack.c.b16 %v6472, %v6464
    %v7785 = vpack.c.b16 %v6481, %v6473
    %v7786 = vpack.c.b16 %v6482, %v6474
    %v7787 = vpack.c.b16 %v6483, %v6475
    %v7788 = vpack.c.b16 %v6484, %v6476
    %v7789 = vpack.c.b16 %v6485, %v6477
    %v7790 = vpack.c.b16 %v6486, %v6478
    %v7791 = vpack.c.b16 %v6487, %v6479
    %v7792 = vpack.c.b16 %v6488, %v6480
    %v7793 = vpack.c.b16 %v6497, %v6489
    %v7794 = vpack.c.b16 %v6498, %v6490
    %v7795 = vpack.c.b16 %v6499, %v6491
    %v7796 = vpack.c.b16 %v6500, %v6492
    %v7797 = vpack.c.b16 %v6501, %v6493
    %v7798 = vpack.c.b16 %v6502, %v6494
    %v7799 = vpack.c.b16 %v6503, %v6495
    %v7800 = vpack.c.b16 %v6504, %v6496
    %v7801 = vpack.c.b16 %v6513, %v6505
    %v7802 = vpack.c.b16 %v6514, %v6506
    %v7803 = vpack.c.b16 %v6515, %v6507
    %v7804 = vpack.c.b16 %v6516, %v6508
    %v7805 = vpack.c.b16 %v6517, %v6509
    %v7806 = vpack.c.b16 %v6518, %v6510
    %v7807 = vpack.c.b16 %v6519, %v6511
    %v7808 = vpack.c.b16 %v6520, %v6512
    %v7809 = vpack.c.b16 %v6529, %v6521
    %v7810 = vpack.c.b16 %v6530, %v6522
    %v7811 = vpack.c.b16 %v6531, %v6523
    %v7812 = vpack.c.b16 %v6532, %v6524
    %v7813 = vpack.c.b16 %v6533, %v6525
    %v7814 = vpack.c.b16 %v6534, %v6526
    %v7815 = vpack.c.b16 %v6535, %v6527
    %v7816 = vpack.c.b16 %v6536, %v6528
    %v7817 = vpack.c.b16 %v6545, %v6537
    %v7818 = vpack.c.b16 %v6546, %v6538
    %v7819 = vpack.c.b16 %v6547, %v6539
    %v7820 = vpack.c.b16 %v6548, %v6540
    %v7821 = vpack.c.b16 %v6549, %v6541
    %v7822 = vpack.c.b16 %v6550, %v6542
    %v7823 = vpack.c.b16 %v6551, %v6543
    %v7824 = vpack.c.b16 %v6552, %v6544
    %v7825 = vpack.c.b16 %v6561, %v6553
    %v7826 = vpack.c.b16 %v6562, %v6554
    %v7827 = vpack.c.b16 %v6563, %v6555
    %v7828 = vpack.c.b16 %v6564, %v6556
    %v7829 = vpack.c.b16 %v6565, %v6557
    %v7830 = vpack.c.b16 %v6566, %v6558
    %v7831 = vpack.c.b16 %v6567, %v6559
    %v7832 = vpack.c.b16 %v6568, %v6560
    %v7833 = vpack.c.b16 %v6577, %v6569
    %v7834 = vpack.c.b16 %v6578, %v6570
    %v7835 = vpack.c.b16 %v6579, %v6571
    %v7836 = vpack.c.b16 %v6580, %v6572
    %v7837 = vpack.c.b16 %v6581, %v6573
    %v7838 = vpack.c.b16 %v6582, %v6574
    %v7839 = vpack.c.b16 %v6583, %v6575
    %v7840 = vpack.c.b16 %v6584, %v6576
    %v7841 = vpack.c.b16 %v6593, %v6585
    %v7842 = vpack.c.b16 %v6594, %v6586
    %v7843 = vpack.c.b16 %v6595, %v6587
    %v7844 = vpack.c.b16 %v6596, %v6588
    %v7845 = vpack.c.b16 %v6597, %v6589
    %v7846 = vpack.c.b16 %v6598, %v6590
    %v7847 = vpack.c.b16 %v6599, %v6591
    %v7848 = vpack.c.b16 %v6600, %v6592
    %v7849 = vpack.c.b16 %v6609, %v6601
    %v7850 = vpack.c.b16 %v6610, %v6602
    %v7851 = vpack.c.b16 %v6611, %v6603
    %v7852 = vpack.c.b16 %v6612, %v6604
    %v7853 = vpack.c.b16 %v6613, %v6605
    %v7854 = vpack.c.b16 %v6614, %v6606
    %v7855 = vpack.c.b16 %v6615, %v6607
    %v7856 = vpack.c.b16 %v6616, %v6608
    %v7857 = vpack.c.b16 %v6625, %v6617
    %v7858 = vpack.c.b16 %v6626, %v6618
    %v7859 = vpack.c.b16 %v6627, %v6619
    %v7860 = vpack.c.b16 %v6628, %v6620
    %v7861 = vpack.c.b16 %v6629, %v6621
    %v7862 = vpack.c.b16 %v6630, %v6622
    %v7863 = vpack.c.b16 %v6631, %v6623
    %v7864 = vpack.c.b16 %v6632, %v6624
    %v7865 = vpack.c.b16 %v6641, %v6633
    %v7866 = vpack.c.b16 %v6642, %v6634
    %v7867 = vpack.c.b16 %v6643, %v6635
    %v7868 = vpack.c.b16 %v6644, %v6636
    %v7869 = vpack.c.b16 %v6645, %v6637
    %v7870 = vpack.c.b16 %v6646, %v6638
    %v7871 = vpack.c.b16 %v6647, %v6639
    %v7872 = vpack.c.b16 %v6648, %v6640
    %v7873 = vpack.c.b16 %v6657, %v6649
    %v7874 = vpack.c.b16 %v6658, %v6650
    %v7875 = vpack.c.b16 %v6659, %v6651
    %v7876 = vpack.c.b16 %v6660, %v6652
    %v7877 = vpack.c.b16 %v6661, %v6653
    %v7878 = vpack.c.b16 %v6662, %v6654
    %v7879 = vpack.c.b16 %v6663, %v6655
    %v7880 = vpack.c.b16 %v6664, %v6656
    %v7881 = vpack.c.b16 %v6673, %v6665
    %v7882 = vpack.c.b16 %v6674, %v6666
    %v7883 = vpack.c.b16 %v6675, %v6667
    %v7884 = vpack.c.b16 %v6676, %v6668
    %v7885 = vpack.c.b16 %v6677, %v6669
    %v7886 = vpack.c.b16 %v6678, %v6670
    %v7887 = vpack.c.b16 %v6679, %v6671
    %v7888 = vpack.c.b16 %v6680, %v6672
    %v7889 = vpack.c.b16 %v6689, %v6681
    %v7890 = vpack.c.b16 %v6690, %v6682
    %v7891 = vpack.c.b16 %v6691, %v6683
    %v7892 = vpack.c.b16 %v6692, %v6684
    %v7893 = vpack.c.b16 %v6693, %v6685
    %v7894 = vpack.c.b16 %v6694, %v6686
    %v7895 = vpack.c.b16 %v6695, %v6687
    %v7896 = vpack.c.b16 %v6696, %v6688
    %v7897 = vpack.c.b16 %v6705, %v6697
    %v7898 = vpack.c.b16 %v6706, %v6698
    %v7899 = vpack.c.b16 %v6707, %v6699
    %v7900 = vpack.c.b16 %v6708, %v6700
    %v7901 = vpack.c.b16 %v6709, %v6701
    %v7902 = vpack.c.b16 %v6710, %v6702
    %v7903 = vpack.c.b16 %v6711, %v6703
    %v7904 = vpack.c.b16 %v6712, %v6704
    %v7905 = vpack.c.b16 %v6721, %v6713
    %v7906 = vpack.c.b16 %v6722, %v6714
    %v7907 = vpack.c.b16 %v6723, %v6715
    %v7908 = vpack.c.b16 %v6724, %v6716
    %v7909 = vpack.c.b16 %v6725, %v6717
    %v7910 = vpack.c.b16 %v6726, %v6718
    %v7911 = vpack.c.b16 %v6727, %v6719
    %v7912 = vpack.c.b16 %v6728, %v6720
    %v7913 = vpack.c.b16 %v6737, %v6729
    %v7914 = vpack.c.b16 %v6738, %v6730
    %v7915 = vpack.c.b16 %v6739, %v6731
    %v7916 = vpack.c.b16 %v6740, %v6732
    %v7917 = vpack.c.b16 %v6741, %v6733
    %v7918 = vpack.c.b16 %v6742, %v6734
    %v7919 = vpack.c.b16 %v6743, %v6735
    %v7920 = vpack.c.b16 %v6744, %v6736
    %v7921 = vpack.c.b16 %v6753, %v6745
    %v7922 = vpack.c.b16 %v6754, %v6746
    %v7923 = vpack.c.b16 %v6755, %v6747
    %v7924 = vpack.c.b16 %v6756, %v6748
    %v7925 = vpack.c.b16 %v6757, %v6749
    %v7926 = vpack.c.b16 %v6758, %v6750
    %v7927 = vpack.c.b16 %v6759, %v6751
    %v7928 = vpack.c.b16 %v6760, %v6752
    %v7929 = vpack.c.b16 %v6769, %v6761
    %v7930 = vpack.c.b16 %v6770, %v6762
    %v7931 = vpack.c.b16 %v6771, %v6763
    %v7932 = vpack.c.b16 %v6772, %v6764
    %v7933 = vpack.c.b16 %v6773, %v6765
    %v7934 = vpack.c.b16 %v6774, %v6766
    %v7935 = vpack.c.b16 %v6775, %v6767
    %v7936 = vpack.c.b16 %v6776, %v6768
    %v7937 = vpack.c.b16 %v6785, %v6777
    %v7938 = vpack.c.b16 %v6786, %v6778
    %v7939 = vpack.c.b16 %v6787, %v6779
    %v7940 = vpack.c.b16 %v6788, %v6780
    %v7941 = vpack.c.b16 %v6789, %v6781
    %v7942 = vpack.c.b16 %v6790, %v6782
    %v7943 = vpack.c.b16 %v6791, %v6783
    %v7944 = vpack.c.b16 %v6792, %v6784
    %v7945 = vpack.c.b16 %v6801, %v6793
    %v7946 = vpack.c.b16 %v6802, %v6794
    %v7947 = vpack.c.b16 %v6803, %v6795
    %v7948 = vpack.c.b16 %v6804, %v6796
    %v7949 = vpack.c.b16 %v6805, %v6797
    %v7950 = vpack.c.b16 %v6806, %v6798
    %v7951 = vpack.c.b16 %v6807, %v6799
    %v7952 = vpack.c.b16 %v6808, %v6800
    %v7953 = vpack.c.b16 %v6817, %v6809
    %v7954 = vpack.c.b16 %v6818, %v6810
    %v7955 = vpack.c.b16 %v6819, %v6811
    %v7956 = vpack.c.b16 %v6820, %v6812
    %v7957 = vpack.c.b16 %v6821, %v6813
    %v7958 = vpack.c.b16 %v6822, %v6814
    %v7959 = vpack.c.b16 %v6823, %v6815
    %v7960 = vpack.c.b16 %v6824, %v6816
    %v7961 = vpack.c.b16 %v6833, %v6825
    %v7962 = vpack.c.b16 %v6834, %v6826
    %v7963 = vpack.c.b16 %v6835, %v6827
    %v7964 = vpack.c.b16 %v6836, %v6828
    %v7965 = vpack.c.b16 %v6837, %v6829
    %v7966 = vpack.c.b16 %v6838, %v6830
    %v7967 = vpack.c.b16 %v6839, %v6831
    %v7968 = vpack.c.b16 %v6840, %v6832
    %v7969 = vpack.c.b16 %v6849, %v6841
    %v7970 = vpack.c.b16 %v6850, %v6842
    %v7971 = vpack.c.b16 %v6851, %v6843
    %v7972 = vpack.c.b16 %v6852, %v6844
    %v7973 = vpack.c.b16 %v6853, %v6845
    %v7974 = vpack.c.b16 %v6854, %v6846
    %v7975 = vpack.c.b16 %v6855, %v6847
    %v7976 = vpack.c.b16 %v6856, %v6848
    %v7977 = vpack.c.b16 %v6865, %v6857
    %v7978 = vpack.c.b16 %v6866, %v6858
    %v7979 = vpack.c.b16 %v6867, %v6859
    %v7980 = vpack.c.b16 %v6868, %v6860
    %v7981 = vpack.c.b16 %v6869, %v6861
    %v7982 = vpack.c.b16 %v6870, %v6862
    %v7983 = vpack.c.b16 %v6871, %v6863
    %v7984 = vpack.c.b16 %v6872, %v6864
    %v7985 = vpack.c.b16 %v6881, %v6873
    %v7986 = vpack.c.b16 %v6882, %v6874
    %v7987 = vpack.c.b16 %v6883, %v6875
    %v7988 = vpack.c.b16 %v6884, %v6876
    %v7989 = vpack.c.b16 %v6885, %v6877
    %v7990 = vpack.c.b16 %v6886, %v6878
    %v7991 = vpack.c.b16 %v6887, %v6879
    %v7992 = vpack.c.b16 %v6888, %v6880
    %v7993 = vpack.c.b16 %v6897, %v6889
    %v7994 = vpack.c.b16 %v6898, %v6890
    %v7995 = vpack.c.b16 %v6899, %v6891
    %v7996 = vpack.c.b16 %v6900, %v6892
    %v7997 = vpack.c.b16 %v6901, %v6893
    %v7998 = vpack.c.b16 %v6902, %v6894
    %v7999 = vpack.c.b16 %v6903, %v6895
    %v8000 = vpack.c.b16 %v6904, %v6896
    %v8001 = vpack.c.b16 %v6913, %v6905
    %v8002 = vpack.c.b16 %v6914, %v6906
    %v8003 = vpack.c.b16 %v6915, %v6907
    %v8004 = vpack.c.b16 %v6916, %v6908
    %v8005 = vpack.c.b16 %v6917, %v6909
    %v8006 = vpack.c.b16 %v6918, %v6910
    %v8007 = vpack.c.b16 %v6919, %v6911
    %v8008 = vpack.c.b16 %v6920, %v6912
    %v8009 = vpack.c.b16 %v6929, %v6921
    %v8010 = vpack.c.b16 %v6930, %v6922
    %v8011 = vpack.c.b16 %v6931, %v6923
    %v8012 = vpack.c.b16 %v6932, %v6924
    %v8013 = vpack.c.b16 %v6933, %v6925
    %v8014 = vpack.c.b16 %v6934, %v6926
    %v8015 = vpack.c.b16 %v6935, %v6927
    %v8016 = vpack.c.b16 %v6936, %v6928
    %v8017 = vpack.c.b16 %v6945, %v6937
    %v8018 = vpack.c.b16 %v6946, %v6938
    %v8019 = vpack.c.b16 %v6947, %v6939
    %v8020 = vpack.c.b16 %v6948, %v6940
    %v8021 = vpack.c.b16 %v6949, %v6941
    %v8022 = vpack.c.b16 %v6950, %v6942
    %v8023 = vpack.c.b16 %v6951, %v6943
    %v8024 = vpack.c.b16 %v6952, %v6944
    %v8025 = vpack.c.b16 %v6961, %v6953
    %v8026 = vpack.c.b16 %v6962, %v6954
    %v8027 = vpack.c.b16 %v6963, %v6955
    %v8028 = vpack.c.b16 %v6964, %v6956
    %v8029 = vpack.c.b16 %v6965, %v6957
    %v8030 = vpack.c.b16 %v6966, %v6958
    %v8031 = vpack.c.b16 %v6967, %v6959
    %v8032 = vpack.c.b16 %v6968, %v6960
    %v8033 = vpack.c.b16 %v6977, %v6969
    %v8034 = vpack.c.b16 %v6978, %v6970
    %v8035 = vpack.c.b16 %v6979, %v6971
    %v8036 = vpack.c.b16 %v6980, %v6972
    %v8037 = vpack.c.b16 %v6981, %v6973
    %v8038 = vpack.c.b16 %v6982, %v6974
    %v8039 = vpack.c.b16 %v6983, %v6975
    %v8040 = vpack.c.b16 %v6984, %v6976
    %v8041 = vpack.c.b16 %v6993, %v6985
    %v8042 = vpack.c.b16 %v6994, %v6986
    %v8043 = vpack.c.b16 %v6995, %v6987
    %v8044 = vpack.c.b16 %v6996, %v6988
    %v8045 = vpack.c.b16 %v6997, %v6989
    %v8046 = vpack.c.b16 %v6998, %v6990
    %v8047 = vpack.c.b16 %v6999, %v6991
    %v8048 = vpack.c.b16 %v7000, %v6992
    %v8049 = vpack.c.b16 %v7009, %v7001
    %v8050 = vpack.c.b16 %v7010, %v7002
    %v8051 = vpack.c.b16 %v7011, %v7003
    %v8052 = vpack.c.b16 %v7012, %v7004
    %v8053 = vpack.c.b16 %v7013, %v7005
    %v8054 = vpack.c.b16 %v7014, %v7006
    %v8055 = vpack.c.b16 %v7015, %v7007
    %v8056 = vpack.c.b16 %v7016, %v7008
    %v8057 = vpack.c.b16 %v7025, %v7017
    %v8058 = vpack.c.b16 %v7026, %v7018
    %v8059 = vpack.c.b16 %v7027, %v7019
    %v8060 = vpack.c.b16 %v7028, %v7020
    %v8061 = vpack.c.b16 %v7029, %v7021
    %v8062 = vpack.c.b16 %v7030, %v7022
    %v8063 = vpack.c.b16 %v7031, %v7023
    %v8064 = vpack.c.b16 %v7032, %v7024
    %v8065 = vpack.c.b16 %v7041, %v7033
    %v8066 = vpack.c.b16 %v7042, %v7034
    %v8067 = vpack.c.b16 %v7043, %v7035
    %v8068 = vpack.c.b16 %v7044, %v7036
    %v8069 = vpack.c.b16 %v7045, %v7037
    %v8070 = vpack.c.b16 %v7046, %v7038
    %v8071 = vpack.c.b16 %v7047, %v7039
    %v8072 = vpack.c.b16 %v7048, %v7040
    %9097 = vmatprep.subr.bf16.mxu0 %v7050
    %9098 = vmatpush1.bf16.msra.mxu0 %v7049
    %9099 = vmatprep.subr.bf16.mxu0 %v7058
    %9100 = vmatpush1.bf16.msra.mxu0 %v7057
    %9101 = vmatprep.subr.bf16.mxu0 %v7066
    %9102 = vmatpush1.bf16.msra.mxu0 %v7065
    %9103 = vmatprep.subr.bf16.mxu0 %v7074
    %9104 = vmatpush1.bf16.msra.mxu0 %v7073
    %9105 = vmatprep.subr.bf16.mxu0 %v7082
    %9106 = vmatpush1.bf16.msra.mxu0 %v7081
    %9107 = vmatprep.subr.bf16.mxu0 %v7090
    %9108 = vmatpush1.bf16.msra.mxu0 %v7089
    %9109 = vmatprep.subr.bf16.mxu0 %v7098
    %9110 = vmatpush1.bf16.msra.mxu0 %v7097
    %9111 = vmatprep.subr.bf16.mxu0 %v7106
    %9112 = vmatpush1.bf16.msra.mxu0 %v7105
    %9113 = vmatprep.subr.bf16.mxu0 %v7114
    %9114 = vmatpush1.bf16.msra.mxu0 %v7113
    %9115 = vmatprep.subr.bf16.mxu0 %v7122
    %9116 = vmatpush1.bf16.msra.mxu0 %v7121
    %9117 = vmatprep.subr.bf16.mxu0 %v7130
    %9118 = vmatpush1.bf16.msra.mxu0 %v7129
    %9119 = vmatprep.subr.bf16.mxu0 %v7138
    %9120 = vmatpush1.bf16.msra.mxu0 %v7137
    %9121 = vmatprep.subr.bf16.mxu0 %v7146
    %9122 = vmatpush1.bf16.msra.mxu0 %v7145
    %9123 = vmatprep.subr.bf16.mxu0 %v7154
    %9124 = vmatpush1.bf16.msra.mxu0 %v7153
    %9125 = vmatprep.subr.bf16.mxu0 %v7162
    %9126 = vmatpush1.bf16.msra.mxu0 %v7161
    %9127 = vmatprep.subr.bf16.mxu0 %v7170
    %9128 = vmatpush1.bf16.msra.mxu0 %v7169
    %9129 = vmatprep.mubr.bf16.mxu0 %v2896
    %9130 = vmatmul.mubr.bf16.gmra.mrb[0].mxu0 %v2895
    %v9131 = vpop.f32.mrb[0].mxu0
    %v9132 = vadd.f32 %v3940, %v9131
    %v9133 = vpop.f32.mrb[0].mxu0
    %v9134 = vadd.f32 %v3944, %v9133
    %v9135 = vpop.f32.mrb[0].mxu0
    %v9136 = vadd.f32 %v3940, %v9135
    %v9137 = vpop.f32.mrb[0].mxu0
    %v9138 = vadd.f32 %v3944, %v9137
    %9139 = vdwg.mxu0
    %9140 = vmatprep.subr.bf16.mxu0 %v7178
    %9141 = vmatpush1.bf16.msra.mxu0 %v7177
    %9142 = vmatprep.subr.bf16.mxu0 %v7186
    %9143 = vmatpush1.bf16.msra.mxu0 %v7185
    %9144 = vmatprep.subr.bf16.mxu0 %v7194
    %9145 = vmatpush1.bf16.msra.mxu0 %v7193
    %9146 = vmatprep.subr.bf16.mxu0 %v7202
    %9147 = vmatpush1.bf16.msra.mxu0 %v7201
    %9148 = vmatprep.subr.bf16.mxu0 %v7210
    %9149 = vmatpush1.bf16.msra.mxu0 %v7209
    %9150 = vmatprep.subr.bf16.mxu0 %v7218
    %9151 = vmatpush1.bf16.msra.mxu0 %v7217
    %9152 = vmatprep.subr.bf16.mxu0 %v7226
    %9153 = vmatpush1.bf16.msra.mxu0 %v7225
    %9154 = vmatprep.subr.bf16.mxu0 %v7234
    %9155 = vmatpush1.bf16.msra.mxu0 %v7233
    %9156 = vmatprep.subr.bf16.mxu0 %v7242
    %9157 = vmatpush1.bf16.msra.mxu0 %v7241
    %9158 = vmatprep.subr.bf16.mxu0 %v7250
    %9159 = vmatpush1.bf16.msra.mxu0 %v7249
    %9160 = vmatprep.subr.bf16.mxu0 %v7258
    %9161 = vmatpush1.bf16.msra.mxu0 %v7257
    %9162 = vmatprep.subr.bf16.mxu0 %v7266
    %9163 = vmatpush1.bf16.msra.mxu0 %v7265
    %9164 = vmatprep.subr.bf16.mxu0 %v7274
    %9165 = vmatpush1.bf16.msra.mxu0 %v7273
    %9166 = vmatprep.subr.bf16.mxu0 %v7282
    %9167 = vmatpush1.bf16.msra.mxu0 %v7281
    %9168 = vmatprep.subr.bf16.mxu0 %v7290
    %9169 = vmatpush1.bf16.msra.mxu0 %v7289
    %9170 = vmatprep.subr.bf16.mxu0 %v7298
    %9171 = vmatpush1.bf16.msra.mxu0 %v7297
    %9172 = vmatprep.mubr.bf16.mxu0 %v2898
    %9173 = vmatmul.mubr.bf16.gmra.mrb[0].mxu0 %v2897
    %v9174 = vpop.f32.mrb[0].mxu0
    %v9175 = vadd.f32 %v9132, %v9174
    %v9176 = vpop.f32.mrb[0].mxu0
    %v9177 = vadd.f32 %v9134, %v9176
    %v9178 = vpop.f32.mrb[0].mxu0
    %v9179 = vadd.f32 %v9136, %v9178
    %v9180 = vpop.f32.mrb[0].mxu0
    %v9181 = vadd.f32 %v9138, %v9180
    %9182 = vdwg.mxu0
    %9183 = vmatprep.subr.bf16.mxu0 %v7306
    %9184 = vmatpush1.bf16.msra.mxu0 %v7305
    %9185 = vmatprep.subr.bf16.mxu0 %v7314
    %9186 = vmatpush1.bf16.msra.mxu0 %v7313
    %9187 = vmatprep.subr.bf16.mxu0 %v7322
    %9188 = vmatpush1.bf16.msra.mxu0 %v7321
    %9189 = vmatprep.subr.bf16.mxu0 %v7330
    %9190 = vmatpush1.bf16.msra.mxu0 %v7329
    %9191 = vmatprep.subr.bf16.mxu0 %v7338
    %9192 = vmatpush1.bf16.msra.mxu0 %v7337
    %9193 = vmatprep.subr.bf16.mxu0 %v7346
    %9194 = vmatpush1.bf16.msra.mxu0 %v7345
    %9195 = vmatprep.subr.bf16.mxu0 %v7354
    %9196 = vmatpush1.bf16.msra.mxu0 %v7353
    %9197 = vmatprep.subr.bf16.mxu0 %v7362
    %9198 = vmatpush1.bf16.msra.mxu0 %v7361
    %9199 = vmatprep.subr.bf16.mxu0 %v7370
    %9200 = vmatpush1.bf16.msra.mxu0 %v7369
    %9201 = vmatprep.subr.bf16.mxu0 %v7378
    %9202 = vmatpush1.bf16.msra.mxu0 %v7377
    %9203 = vmatprep.subr.bf16.mxu0 %v7386
    %9204 = vmatpush1.bf16.msra.mxu0 %v7385
    %9205 = vmatprep.subr.bf16.mxu0 %v7394
    %9206 = vmatpush1.bf16.msra.mxu0 %v7393
    %9207 = vmatprep.subr.bf16.mxu0 %v7402
    %9208 = vmatpush1.bf16.msra.mxu0 %v7401
    %9209 = vmatprep.subr.bf16.mxu0 %v7410
    %9210 = vmatpush1.bf16.msra.mxu0 %v7409
    %9211 = vmatprep.subr.bf16.mxu0 %v7418
    %9212 = vmatpush1.bf16.msra.mxu0 %v7417
    %9213 = vmatprep.subr.bf16.mxu0 %v7426
    %9214 = vmatpush1.bf16.msra.mxu0 %v7425
    %9215 = vmatprep.mubr.bf16.mxu0 %v2900
    %9216 = vmatmul.mubr.bf16.gmra.mrb[0].mxu0 %v2899
    %v9217 = vpop.f32.mrb[0].mxu0
    %v9218 = vadd.f32 %v9175, %v9217
    %v9219 = vpop.f32.mrb[0].mxu0
    %v9220 = vadd.f32 %v9177, %v9219
    %v9221 = vpop.f32.mrb[0].mxu0
    %v9222 = vadd.f32 %v9179, %v9221
    %v9223 = vpop.f32.mrb[0].mxu0
    %v9224 = vadd.f32 %v9181, %v9223
    %9225 = vdwg.mxu0
    %9226 = vmatprep.subr.bf16.mxu0 %v7434
    %9227 = vmatpush1.bf16.msra.mxu0 %v7433
    %9228 = vmatprep.subr.bf16.mxu0 %v7442
    %9229 = vmatpush1.bf16.msra.mxu0 %v7441
    %9230 = vmatprep.subr.bf16.mxu0 %v7450
    %9231 = vmatpush1.bf16.msra.mxu0 %v7449
    %9232 = vmatprep.subr.bf16.mxu0 %v7458
    %9233 = vmatpush1.bf16.msra.mxu0 %v7457
    %9234 = vmatprep.subr.bf16.mxu0 %v7466
    %9235 = vmatpush1.bf16.msra.mxu0 %v7465
    %9236 = vmatprep.subr.bf16.mxu0 %v7474
    %9237 = vmatpush1.bf16.msra.mxu0 %v7473
    %9238 = vmatprep.subr.bf16.mxu0 %v7482
    %9239 = vmatpush1.bf16.msra.mxu0 %v7481
    %9240 = vmatprep.subr.bf16.mxu0 %v7490
    %9241 = vmatpush1.bf16.msra.mxu0 %v7489
    %9242 = vmatprep.subr.bf16.mxu0 %v7498
    %9243 = vmatpush1.bf16.msra.mxu0 %v7497
    %9244 = vmatprep.subr.bf16.mxu0 %v7506
    %9245 = vmatpush1.bf16.msra.mxu0 %v7505
    %9246 = vmatprep.subr.bf16.mxu0 %v7514
    %9247 = vmatpush1.bf16.msra.mxu0 %v7513
    %9248 = vmatprep.subr.bf16.mxu0 %v7522
    %9249 = vmatpush1.bf16.msra.mxu0 %v7521
    %9250 = vmatprep.subr.bf16.mxu0 %v7530
    %9251 = vmatpush1.bf16.msra.mxu0 %v7529
    %9252 = vmatprep.subr.bf16.mxu0 %v7538
    %9253 = vmatpush1.bf16.msra.mxu0 %v7537
    %9254 = vmatprep.subr.bf16.mxu0 %v7546
    %9255 = vmatpush1.bf16.msra.mxu0 %v7545
    %9256 = vmatprep.subr.bf16.mxu0 %v7554
    %9257 = vmatpush1.bf16.msra.mxu0 %v7553
    %9258 = vmatprep.mubr.bf16.mxu0 %v2902
    %9259 = vmatmul.mubr.bf16.gmra.mrb[0].mxu0 %v2901
    %v9260 = vpop.f32.mrb[0].mxu0
    %v9261 = vadd.f32 %v9218, %v9260
    %v9262 = vpop.f32.mrb[0].mxu0
    %v9263 = vadd.f32 %v9220, %v9262
    %v9264 = vpop.f32.mrb[0].mxu0
    %v9265 = vadd.f32 %v9222, %v9264
    %v9266 = vpop.f32.mrb[0].mxu0
    %v9267 = vadd.f32 %v9224, %v9266
    %9268 = vdwg.mxu0
    %9269 = vmatprep.subr.bf16.mxu0 %v7562
    %9270 = vmatpush1.bf16.msra.mxu0 %v7561
    %9271 = vmatprep.subr.bf16.mxu0 %v7570
    %9272 = vmatpush1.bf16.msra.mxu0 %v7569
    %9273 = vmatprep.subr.bf16.mxu0 %v7578
    %9274 = vmatpush1.bf16.msra.mxu0 %v7577
    %9275 = vmatprep.subr.bf16.mxu0 %v7586
    %9276 = vmatpush1.bf16.msra.mxu0 %v7585
    %9277 = vmatprep.subr.bf16.mxu0 %v7594
    %9278 = vmatpush1.bf16.msra.mxu0 %v7593
    %9279 = vmatprep.subr.bf16.mxu0 %v7602
    %9280 = vmatpush1.bf16.msra.mxu0 %v7601
    %9281 = vmatprep.subr.bf16.mxu0 %v7610
    %9282 = vmatpush1.bf16.msra.mxu0 %v7609
    %9283 = vmatprep.subr.bf16.mxu0 %v7618
    %9284 = vmatpush1.bf16.msra.mxu0 %v7617
    %9285 = vmatprep.subr.bf16.mxu0 %v7626
    %9286 = vmatpush1.bf16.msra.mxu0 %v7625
    %9287 = vmatprep.subr.bf16.mxu0 %v7634
    %9288 = vmatpush1.bf16.msra.mxu0 %v7633
    %9289 = vmatprep.subr.bf16.mxu0 %v7642
    %9290 = vmatpush1.bf16.msra.mxu0 %v7641
    %9291 = vmatprep.subr.bf16.mxu0 %v7650
    %9292 = vmatpush1.bf16.msra.mxu0 %v7649
    %9293 = vmatprep.subr.bf16.mxu0 %v7658
    %9294 = vmatpush1.bf16.msra.mxu0 %v7657
    %9295 = vmatprep.subr.bf16.mxu0 %v7666
    %9296 = vmatpush1.bf16.msra.mxu0 %v7665
    %9297 = vmatprep.subr.bf16.mxu0 %v7674
    %9298 = vmatpush1.bf16.msra.mxu0 %v7673
    %9299 = vmatprep.subr.bf16.mxu0 %v7682
    %9300 = vmatpush1.bf16.msra.mxu0 %v7681
    %9301 = vmatprep.mubr.bf16.mxu0 %v2904
    %9302 = vmatmul.mubr.bf16.gmra.mrb[0].mxu0 %v2903
    %v9303 = vpop.f32.mrb[0].mxu0
    %v9304 = vadd.f32 %v9261, %v9303
    %v9305 = vpop.f32.mrb[0].mxu0
    %v9306 = vadd.f32 %v9263, %v9305
    %v9307 = vpop.f32.mrb[0].mxu0
    %v9308 = vadd.f32 %v9265, %v9307
    %v9309 = vpop.f32.mrb[0].mxu0
    %v9310 = vadd.f32 %v9267, %v9309
    %9311 = vdwg.mxu0
    %9312 = vmatprep.subr.bf16.mxu0 %v7690
    %9313 = vmatpush1.bf16.msra.mxu0 %v7689
    %9314 = vmatprep.subr.bf16.mxu0 %v7698
    %9315 = vmatpush1.bf16.msra.mxu0 %v7697
    %9316 = vmatprep.subr.bf16.mxu0 %v7706
    %9317 = vmatpush1.bf16.msra.mxu0 %v7705
    %9318 = vmatprep.subr.bf16.mxu0 %v7714
    %9319 = vmatpush1.bf16.msra.mxu0 %v7713
    %9320 = vmatprep.subr.bf16.mxu0 %v7722
    %9321 = vmatpush1.bf16.msra.mxu0 %v7721
    %9322 = vmatprep.subr.bf16.mxu0 %v7730
    %9323 = vmatpush1.bf16.msra.mxu0 %v7729
    %9324 = vmatprep.subr.bf16.mxu0 %v7738
    %9325 = vmatpush1.bf16.msra.mxu0 %v7737
    %9326 = vmatprep.subr.bf16.mxu0 %v7746
    %9327 = vmatpush1.bf16.msra.mxu0 %v7745
    %9328 = vmatprep.subr.bf16.mxu0 %v7754
    %9329 = vmatpush1.bf16.msra.mxu0 %v7753
    %9330 = vmatprep.subr.bf16.mxu0 %v7762
    %9331 = vmatpush1.bf16.msra.mxu0 %v7761
    %9332 = vmatprep.subr.bf16.mxu0 %v7770
    %9333 = vmatpush1.bf16.msra.mxu0 %v7769
    %9334 = vmatprep.subr.bf16.mxu0 %v7778
    %9335 = vmatpush1.bf16.msra.mxu0 %v7777
    %9336 = vmatprep.subr.bf16.mxu0 %v7786
    %9337 = vmatpush1.bf16.msra.mxu0 %v7785
    %9338 = vmatprep.subr.bf16.mxu0 %v7794
    %9339 = vmatpush1.bf16.msra.mxu0 %v7793
    %9340 = vmatprep.subr.bf16.mxu0 %v7802
    %9341 = vmatpush1.bf16.msra.mxu0 %v7801
    %9342 = vmatprep.subr.bf16.mxu0 %v7810
    %9343 = vmatpush1.bf16.msra.mxu0 %v7809
    %9344 = vmatprep.mubr.bf16.mxu0 %v2906
    %9345 = vmatmul.mubr.bf16.gmra.mrb[0].mxu0 %v2905
    %v9346 = vpop.f32.mrb[0].mxu0
    %v9347 = vadd.f32 %v9304, %v9346
    %v9348 = vpop.f32.mrb[0].mxu0
    %v9349 = vadd.f32 %v9306, %v9348
    %v9350 = vpop.f32.mrb[0].mxu0
    %v9351 = vadd.f32 %v9308, %v9350
    %v9352 = vpop.f32.mrb[0].mxu0
    %v9353 = vadd.f32 %v9310, %v9352
    %9354 = vdwg.mxu0
    %9355 = vmatprep.subr.bf16.mxu0 %v7818
    %9356 = vmatpush1.bf16.msra.mxu0 %v7817
    %9357 = vmatprep.subr.bf16.mxu0 %v7826
    %9358 = vmatpush1.bf16.msra.mxu0 %v7825
    %9359 = vmatprep.subr.bf16.mxu0 %v7834
    %9360 = vmatpush1.bf16.msra.mxu0 %v7833
    %9361 = vmatprep.subr.bf16.mxu0 %v7842
    %9362 = vmatpush1.bf16.msra.mxu0 %v7841
    %9363 = vmatprep.subr.bf16.mxu0 %v7850
    %9364 = vmatpush1.bf16.msra.mxu0 %v7849
    %9365 = vmatprep.subr.bf16.mxu0 %v7858
    %9366 = vmatpush1.bf16.msra.mxu0 %v7857
    %9367 = vmatprep.subr.bf16.mxu0 %v7866
    %9368 = vmatpush1.bf16.msra.mxu0 %v7865
    %9369 = vmatprep.subr.bf16.mxu0 %v7874
    %9370 = vmatpush1.bf16.msra.mxu0 %v7873
    %9371 = vmatprep.subr.bf16.mxu0 %v7882
    %9372 = vmatpush1.bf16.msra.mxu0 %v7881
    %9373 = vmatprep.subr.bf16.mxu0 %v7890
    %9374 = vmatpush1.bf16.msra.mxu0 %v7889
    %9375 = vmatprep.subr.bf16.mxu0 %v7898
    %9376 = vmatpush1.bf16.msra.mxu0 %v7897
    %9377 = vmatprep.subr.bf16.mxu0 %v7906
    %9378 = vmatpush1.bf16.msra.mxu0 %v7905
    %9379 = vmatprep.subr.bf16.mxu0 %v7914
    %9380 = vmatpush1.bf16.msra.mxu0 %v7913
    %9381 = vmatprep.subr.bf16.mxu0 %v7922
    %9382 = vmatpush1.bf16.msra.mxu0 %v7921
    %9383 = vmatprep.subr.bf16.mxu0 %v7930
    %9384 = vmatpush1.bf16.msra.mxu0 %v7929
    %9385 = vmatprep.subr.bf16.mxu0 %v7938
    %9386 = vmatpush1.bf16.msra.mxu0 %v7937
    %9387 = vmatprep.mubr.bf16.mxu0 %v2908
    %9388 = vmatmul.mubr.bf16.gmra.mrb[0].mxu0 %v2907
    %v9389 = vpop.f32.mrb[0].mxu0
    %v9390 = vadd.f32 %v9347, %v9389
    %v9391 = vpop.f32.mrb[0].mxu0
    %v9392 = vadd.f32 %v9349, %v9391
    %v9393 = vpop.f32.mrb[0].mxu0
    %v9394 = vadd.f32 %v9351, %v9393
    %v9395 = vpop.f32.mrb[0].mxu0
    %v9396 = vadd.f32 %v9353, %v9395
    %9397 = vdwg.mxu0
    %9398 = vmatprep.subr.bf16.mxu0 %v7946
    %9399 = vmatpush1.bf16.msra.mxu0 %v7945
    %9400 = vmatprep.subr.bf16.mxu0 %v7954
    %9401 = vmatpush1.bf16.msra.mxu0 %v7953
    %9402 = vmatprep.subr.bf16.mxu0 %v7962
    %9403 = vmatpush1.bf16.msra.mxu0 %v7961
    %9404 = vmatprep.subr.bf16.mxu0 %v7970
    %9405 = vmatpush1.bf16.msra.mxu0 %v7969
    %9406 = vmatprep.subr.bf16.mxu0 %v7978
    %9407 = vmatpush1.bf16.msra.mxu0 %v7977
    %9408 = vmatprep.subr.bf16.mxu0 %v7986
    %9409 = vmatpush1.bf16.msra.mxu0 %v7985
    %9410 = vmatprep.subr.bf16.mxu0 %v7994
    %9411 = vmatpush1.bf16.msra.mxu0 %v7993
    %9412 = vmatprep.subr.bf16.mxu0 %v8002
    %9413 = vmatpush1.bf16.msra.mxu0 %v8001
    %9414 = vmatprep.subr.bf16.mxu0 %v8010
    %9415 = vmatpush1.bf16.msra.mxu0 %v8009
    %9416 = vmatprep.subr.bf16.mxu0 %v8018
    %9417 = vmatpush1.bf16.msra.mxu0 %v8017
    %9418 = vmatprep.subr.bf16.mxu0 %v8026
    %9419 = vmatpush1.bf16.msra.mxu0 %v8025
    %9420 = vmatprep.subr.bf16.mxu0 %v8034
    %9421 = vmatpush1.bf16.msra.mxu0 %v8033
    %9422 = vmatprep.subr.bf16.mxu0 %v8042
    %9423 = vmatpush1.bf16.msra.mxu0 %v8041
    %9424 = vmatprep.subr.bf16.mxu0 %v8050
    %9425 = vmatpush1.bf16.msra.mxu0 %v8049
    %9426 = vmatprep.subr.bf16.mxu0 %v8058
    %9427 = vmatpush1.bf16.msra.mxu0 %v8057
    %9428 = vmatprep.subr.bf16.mxu0 %v8066
    %9429 = vmatpush1.bf16.msra.mxu0 %v8065
    %9430 = vmatprep.mubr.bf16.mxu0 %v2910
    %9431 = vmatmul.mubr.bf16.gmra.mrb[0].mxu0 %v2909
    %v9432 = vpop.f32.mrb[0].mxu0
    %v9433 = vadd.f32 %v9390, %v9432
    %v9434 = vpop.f32.mrb[0].mxu0
    %v9435 = vadd.f32 %v9392, %v9434
    %v9436 = vpop.f32.mrb[0].mxu0
    %v9437 = vadd.f32 %v9394, %v9436
    %v9438 = vpop.f32.mrb[0].mxu0
    %v9439 = vadd.f32 %v9396, %v9438
    %9440 = vdwg.mxu0
    %9441 = vmatprep.subr.bf16.mxu0 %v7052
    %9442 = vmatpush1.bf16.msra.mxu0 %v7051
    %9443 = vmatprep.subr.bf16.mxu0 %v7060
    %9444 = vmatpush1.bf16.msra.mxu0 %v7059
    %9445 = vmatprep.subr.bf16.mxu0 %v7068
    %9446 = vmatpush1.bf16.msra.mxu0 %v7067
    %9447 = vmatprep.subr.bf16.mxu0 %v7076
    %9448 = vmatpush1.bf16.msra.mxu0 %v7075
    %9449 = vmatprep.subr.bf16.mxu0 %v7084
    %9450 = vmatpush1.bf16.msra.mxu0 %v7083
    %9451 = vmatprep.subr.bf16.mxu0 %v7092
    %9452 = vmatpush1.bf16.msra.mxu0 %v7091
    %9453 = vmatprep.subr.bf16.mxu0 %v7100
    %9454 = vmatpush1.bf16.msra.mxu0 %v7099
    %9455 = vmatprep.subr.bf16.mxu0 %v7108
    %9456 = vmatpush1.bf16.msra.mxu0 %v7107
    %9457 = vmatprep.subr.bf16.mxu0 %v7116
    %9458 = vmatpush1.bf16.msra.mxu0 %v7115
    %9459 = vmatprep.subr.bf16.mxu0 %v7124
    %9460 = vmatpush1.bf16.msra.mxu0 %v7123
    %9461 = vmatprep.subr.bf16.mxu0 %v7132
    %9462 = vmatpush1.bf16.msra.mxu0 %v7131
    %9463 = vmatprep.subr.bf16.mxu0 %v7140
    %9464 = vmatpush1.bf16.msra.mxu0 %v7139
    %9465 = vmatprep.subr.bf16.mxu0 %v7148
    %9466 = vmatpush1.bf16.msra.mxu0 %v7147
    %9467 = vmatprep.subr.bf16.mxu0 %v7156
    %9468 = vmatpush1.bf16.msra.mxu0 %v7155
    %9469 = vmatprep.subr.bf16.mxu0 %v7164
    %9470 = vmatpush1.bf16.msra.mxu0 %v7163
    %9471 = vmatprep.subr.bf16.mxu0 %v7172
    %9472 = vmatpush1.bf16.msra.mxu0 %v7171
    %9473 = vmatprep.mubr.bf16.mxu0 %v2896
    %9474 = vmatmul.mubr.bf16.gmra.mrb[0].mxu0 %v2895
    %v9475 = vpop.f32.mrb[0].mxu0
    %v9476 = vadd.f32 %v3948, %v9475
    %v9477 = vpop.f32.mrb[0].mxu0
    %v9478 = vadd.f32 %v3952, %v9477
    %v9479 = vpop.f32.mrb[0].mxu0
    %v9480 = vadd.f32 %v3948, %v9479
    %v9481 = vpop.f32.mrb[0].mxu0
    %v9482 = vadd.f32 %v3952, %v9481
    %9483 = vdwg.mxu0
    %9484 = vmatprep.subr.bf16.mxu0 %v7180
    %9485 = vmatpush1.bf16.msra.mxu0 %v7179
    %9486 = vmatprep.subr.bf16.mxu0 %v7188
    %9487 = vmatpush1.bf16.msra.mxu0 %v7187
    %9488 = vmatprep.subr.bf16.mxu0 %v7196
    %9489 = vmatpush1.bf16.msra.mxu0 %v7195
    %9490 = vmatprep.subr.bf16.mxu0 %v7204
    %9491 = vmatpush1.bf16.msra.mxu0 %v7203
    %9492 = vmatprep.subr.bf16.mxu0 %v7212
    %9493 = vmatpush1.bf16.msra.mxu0 %v7211
    %9494 = vmatprep.subr.bf16.mxu0 %v7220
    %9495 = vmatpush1.bf16.msra.mxu0 %v7219
    %9496 = vmatprep.subr.bf16.mxu0 %v7228
    %9497 = vmatpush1.bf16.msra.mxu0 %v7227
    %9498 = vmatprep.subr.bf16.mxu0 %v7236
    %9499 = vmatpush1.bf16.msra.mxu0 %v7235
    %9500 = vmatprep.subr.bf16.mxu0 %v7244
    %9501 = vmatpush1.bf16.msra.mxu0 %v7243
    %9502 = vmatprep.subr.bf16.mxu0 %v7252
    %9503 = vmatpush1.bf16.msra.mxu0 %v7251
    %9504 = vmatprep.subr.bf16.mxu0 %v7260
    %9505 = vmatpush1.bf16.msra.mxu0 %v7259
    %9506 = vmatprep.subr.bf16.mxu0 %v7268
    %9507 = vmatpush1.bf16.msra.mxu0 %v7267
    %9508 = vmatprep.subr.bf16.mxu0 %v7276
    %9509 = vmatpush1.bf16.msra.mxu0 %v7275
    %9510 = vmatprep.subr.bf16.mxu0 %v7284
    %9511 = vmatpush1.bf16.msra.mxu0 %v7283
    %9512 = vmatprep.subr.bf16.mxu0 %v7292
    %9513 = vmatpush1.bf16.msra.mxu0 %v7291
    %9514 = vmatprep.subr.bf16.mxu0 %v7300
    %9515 = vmatpush1.bf16.msra.mxu0 %v7299
    %9516 = vmatprep.mubr.bf16.mxu0 %v2898
    %9517 = vmatmul.mubr.bf16.gmra.mrb[0].mxu0 %v2897
    %v9518 = vpop.f32.mrb[0].mxu0
    %v9519 = vadd.f32 %v9476, %v9518
    %v9520 = vpop.f32.mrb[0].mxu0
    %v9521 = vadd.f32 %v9478, %v9520
    %v9522 = vpop.f32.mrb[0].mxu0
    %v9523 = vadd.f32 %v9480, %v9522
    %v9524 = vpop.f32.mrb[0].mxu0
    %v9525 = vadd.f32 %v9482, %v9524
    %9526 = vdwg.mxu0
    %9527 = vmatprep.subr.bf16.mxu0 %v7308
    %9528 = vmatpush1.bf16.msra.mxu0 %v7307
    %9529 = vmatprep.subr.bf16.mxu0 %v7316
    %9530 = vmatpush1.bf16.msra.mxu0 %v7315
    %9531 = vmatprep.subr.bf16.mxu0 %v7324
    %9532 = vmatpush1.bf16.msra.mxu0 %v7323
    %9533 = vmatprep.subr.bf16.mxu0 %v7332
    %9534 = vmatpush1.bf16.msra.mxu0 %v7331
    %9535 = vmatprep.subr.bf16.mxu0 %v7340
    %9536 = vmatpush1.bf16.msra.mxu0 %v7339
    %9537 = vmatprep.subr.bf16.mxu0 %v7348
    %9538 = vmatpush1.bf16.msra.mxu0 %v7347
    %9539 = vmatprep.subr.bf16.mxu0 %v7356
    %9540 = vmatpush1.bf16.msra.mxu0 %v7355
    %9541 = vmatprep.subr.bf16.mxu0 %v7364
    %9542 = vmatpush1.bf16.msra.mxu0 %v7363
    %9543 = vmatprep.subr.bf16.mxu0 %v7372
    %9544 = vmatpush1.bf16.msra.mxu0 %v7371
    %9545 = vmatprep.subr.bf16.mxu0 %v7380
    %9546 = vmatpush1.bf16.msra.mxu0 %v7379
    %9547 = vmatprep.subr.bf16.mxu0 %v7388
    %9548 = vmatpush1.bf16.msra.mxu0 %v7387
    %9549 = vmatprep.subr.bf16.mxu0 %v7396
    %9550 = vmatpush1.bf16.msra.mxu0 %v7395
    %9551 = vmatprep.subr.bf16.mxu0 %v7404
    %9552 = vmatpush1.bf16.msra.mxu0 %v7403
    %9553 = vmatprep.subr.bf16.mxu0 %v7412
    %9554 = vmatpush1.bf16.msra.mxu0 %v7411
    %9555 = vmatprep.subr.bf16.mxu0 %v7420
    %9556 = vmatpush1.bf16.msra.mxu0 %v7419
    %9557 = vmatprep.subr.bf16.mxu0 %v7428
    %9558 = vmatpush1.bf16.msra.mxu0 %v7427
    %9559 = vmatprep.mubr.bf16.mxu0 %v2900
    %9560 = vmatmul.mubr.bf16.gmra.mrb[0].mxu0 %v2899
    %v9561 = vpop.f32.mrb[0].mxu0
    %v9562 = vadd.f32 %v9519, %v9561
    %v9563 = vpop.f32.mrb[0].mxu0
    %v9564 = vadd.f32 %v9521, %v9563
    %v9565 = vpop.f32.mrb[0].mxu0
    %v9566 = vadd.f32 %v9523, %v9565
    %v9567 = vpop.f32.mrb[0].mxu0
    %v9568 = vadd.f32 %v9525, %v9567
    %9569 = vdwg.mxu0
    %9570 = vmatprep.subr.bf16.mxu0 %v7436
    %9571 = vmatpush1.bf16.msra.mxu0 %v7435
    %9572 = vmatprep.subr.bf16.mxu0 %v7444
    %9573 = vmatpush1.bf16.msra.mxu0 %v7443
    %9574 = vmatprep.subr.bf16.mxu0 %v7452
    %9575 = vmatpush1.bf16.msra.mxu0 %v7451
    %9576 = vmatprep.subr.bf16.mxu0 %v7460
    %9577 = vmatpush1.bf16.msra.mxu0 %v7459
    %9578 = vmatprep.subr.bf16.mxu0 %v7468
    %9579 = vmatpush1.bf16.msra.mxu0 %v7467
    %9580 = vmatprep.subr.bf16.mxu0 %v7476
    %9581 = vmatpush1.bf16.msra.mxu0 %v7475
    %9582 = vmatprep.subr.bf16.mxu0 %v7484
    %9583 = vmatpush1.bf16.msra.mxu0 %v7483
    %9584 = vmatprep.subr.bf16.mxu0 %v7492
    %9585 = vmatpush1.bf16.msra.mxu0 %v7491
    %9586 = vmatprep.subr.bf16.mxu0 %v7500
    %9587 = vmatpush1.bf16.msra.mxu0 %v7499
    %9588 = vmatprep.subr.bf16.mxu0 %v7508
    %9589 = vmatpush1.bf16.msra.mxu0 %v7507
    %9590 = vmatprep.subr.bf16.mxu0 %v7516
    %9591 = vmatpush1.bf16.msra.mxu0 %v7515
    %9592 = vmatprep.subr.bf16.mxu0 %v7524
    %9593 = vmatpush1.bf16.msra.mxu0 %v7523
    %9594 = vmatprep.subr.bf16.mxu0 %v7532
    %9595 = vmatpush1.bf16.msra.mxu0 %v7531
    %9596 = vmatprep.subr.bf16.mxu0 %v7540
    %9597 = vmatpush1.bf16.msra.mxu0 %v7539
    %9598 = vmatprep.subr.bf16.mxu0 %v7548
    %9599 = vmatpush1.bf16.msra.mxu0 %v7547
    %9600 = vmatprep.subr.bf16.mxu0 %v7556
    %9601 = vmatpush1.bf16.msra.mxu0 %v7555
    %9602 = vmatprep.mubr.bf16.mxu0 %v2902
    %9603 = vmatmul.mubr.bf16.gmra.mrb[0].mxu0 %v2901
    %v9604 = vpop.f32.mrb[0].mxu0
    %v9605 = vadd.f32 %v9562, %v9604
    %v9606 = vpop.f32.mrb[0].mxu0
    %v9607 = vadd.f32 %v9564, %v9606
    %v9608 = vpop.f32.mrb[0].mxu0
    %v9609 = vadd.f32 %v9566, %v9608
    %v9610 = vpop.f32.mrb[0].mxu0
    %v9611 = vadd.f32 %v9568, %v9610
    %9612 = vdwg.mxu0
    %9613 = vmatprep.subr.bf16.mxu0 %v7564
    %9614 = vmatpush1.bf16.msra.mxu0 %v7563
    %9615 = vmatprep.subr.bf16.mxu0 %v7572
    %9616 = vmatpush1.bf16.msra.mxu0 %v7571
    %9617 = vmatprep.subr.bf16.mxu0 %v7580
    %9618 = vmatpush1.bf16.msra.mxu0 %v7579
    %9619 = vmatprep.subr.bf16.mxu0 %v7588
    %9620 = vmatpush1.bf16.msra.mxu0 %v7587
    %9621 = vmatprep.subr.bf16.mxu0 %v7596
    %9622 = vmatpush1.bf16.msra.mxu0 %v7595
    %9623 = vmatprep.subr.bf16.mxu0 %v7604
    %9624 = vmatpush1.bf16.msra.mxu0 %v7603
    %9625 = vmatprep.subr.bf16.mxu0 %v7612
    %9626 = vmatpush1.bf16.msra.mxu0 %v7611
    %9627 = vmatprep.subr.bf16.mxu0 %v7620
    %9628 = vmatpush1.bf16.msra.mxu0 %v7619
    %9629 = vmatprep.subr.bf16.mxu0 %v7628
    %9630 = vmatpush1.bf16.msra.mxu0 %v7627
    %9631 = vmatprep.subr.bf16.mxu0 %v7636
    %9632 = vmatpush1.bf16.msra.mxu0 %v7635
    %9633 = vmatprep.subr.bf16.mxu0 %v7644
    %9634 = vmatpush1.bf16.msra.mxu0 %v7643
    %9635 = vmatprep.subr.bf16.mxu0 %v7652
    %9636 = vmatpush1.bf16.msra.mxu0 %v7651
    %9637 = vmatprep.subr.bf16.mxu0 %v7660
    %9638 = vmatpush1.bf16.msra.mxu0 %v7659
    %9639 = vmatprep.subr.bf16.mxu0 %v7668
    %9640 = vmatpush1.bf16.msra.mxu0 %v7667
    %9641 = vmatprep.subr.bf16.mxu0 %v7676
    %9642 = vmatpush1.bf16.msra.mxu0 %v7675
    %9643 = vmatprep.subr.bf16.mxu0 %v7684
    %9644 = vmatpush1.bf16.msra.mxu0 %v7683
    %9645 = vmatprep.mubr.bf16.mxu0 %v2904
    %9646 = vmatmul.mubr.bf16.gmra.mrb[0].mxu0 %v2903
    %v9647 = vpop.f32.mrb[0].mxu0
    %v9648 = vadd.f32 %v9605, %v9647
    %v9649 = vpop.f32.mrb[0].mxu0
    %v9650 = vadd.f32 %v9607, %v9649
    %v9651 = vpop.f32.mrb[0].mxu0
    %v9652 = vadd.f32 %v9609, %v9651
    %v9653 = vpop.f32.mrb[0].mxu0
    %v9654 = vadd.f32 %v9611, %v9653
    %9655 = vdwg.mxu0
    %9656 = vmatprep.subr.bf16.mxu0 %v7692
    %9657 = vmatpush1.bf16.msra.mxu0 %v7691
    %9658 = vmatprep.subr.bf16.mxu0 %v7700
    %9659 = vmatpush1.bf16.msra.mxu0 %v7699
    %9660 = vmatprep.subr.bf16.mxu0 %v7708
    %9661 = vmatpush1.bf16.msra.mxu0 %v7707
    %9662 = vmatprep.subr.bf16.mxu0 %v7716
    %9663 = vmatpush1.bf16.msra.mxu0 %v7715
    %9664 = vmatprep.subr.bf16.mxu0 %v7724
    %9665 = vmatpush1.bf16.msra.mxu0 %v7723
    %9666 = vmatprep.subr.bf16.mxu0 %v7732
    %9667 = vmatpush1.bf16.msra.mxu0 %v7731
    %9668 = vmatprep.subr.bf16.mxu0 %v7740
    %9669 = vmatpush1.bf16.msra.mxu0 %v7739
    %9670 = vmatprep.subr.bf16.mxu0 %v7748
    %9671 = vmatpush1.bf16.msra.mxu0 %v7747
    %9672 = vmatprep.subr.bf16.mxu0 %v7756
    %9673 = vmatpush1.bf16.msra.mxu0 %v7755
    %9674 = vmatprep.subr.bf16.mxu0 %v7764
    %9675 = vmatpush1.bf16.msra.mxu0 %v7763
    %9676 = vmatprep.subr.bf16.mxu0 %v7772
    %9677 = vmatpush1.bf16.msra.mxu0 %v7771
    %9678 = vmatprep.subr.bf16.mxu0 %v7780
    %9679 = vmatpush1.bf16.msra.mxu0 %v7779
    %9680 = vmatprep.subr.bf16.mxu0 %v7788
    %9681 = vmatpush1.bf16.msra.mxu0 %v7787
    %9682 = vmatprep.subr.bf16.mxu0 %v7796
    %9683 = vmatpush1.bf16.msra.mxu0 %v7795
    %9684 = vmatprep.subr.bf16.mxu0 %v7804
    %9685 = vmatpush1.bf16.msra.mxu0 %v7803
    %9686 = vmatprep.subr.bf16.mxu0 %v7812
    %9687 = vmatpush1.bf16.msra.mxu0 %v7811
    %9688 = vmatprep.mubr.bf16.mxu0 %v2906
    %9689 = vmatmul.mubr.bf16.gmra.mrb[0].mxu0 %v2905
    %v9690 = vpop.f32.mrb[0].mxu0
    %v9691 = vadd.f32 %v9648, %v9690
    %v9692 = vpop.f32.mrb[0].mxu0
    %v9693 = vadd.f32 %v9650, %v9692
    %v9694 = vpop.f32.mrb[0].mxu0
    %v9695 = vadd.f32 %v9652, %v9694
    %v9696 = vpop.f32.mrb[0].mxu0
    %v9697 = vadd.f32 %v9654, %v9696
    %9698 = vdwg.mxu0
    %9699 = vmatprep.subr.bf16.mxu0 %v7820
    %9700 = vmatpush1.bf16.msra.mxu0 %v7819
    %9701 = vmatprep.subr.bf16.mxu0 %v7828
    %9702 = vmatpush1.bf16.msra.mxu0 %v7827
    %9703 = vmatprep.subr.bf16.mxu0 %v7836
    %9704 = vmatpush1.bf16.msra.mxu0 %v7835
    %9705 = vmatprep.subr.bf16.mxu0 %v7844
    %9706 = vmatpush1.bf16.msra.mxu0 %v7843
    %9707 = vmatprep.subr.bf16.mxu0 %v7852
    %9708 = vmatpush1.bf16.msra.mxu0 %v7851
    %9709 = vmatprep.subr.bf16.mxu0 %v7860
    %9710 = vmatpush1.bf16.msra.mxu0 %v7859
    %9711 = vmatprep.subr.bf16.mxu0 %v7868
    %9712 = vmatpush1.bf16.msra.mxu0 %v7867
    %9713 = vmatprep.subr.bf16.mxu0 %v7876
    %9714 = vmatpush1.bf16.msra.mxu0 %v7875
    %9715 = vmatprep.subr.bf16.mxu0 %v7884
    %9716 = vmatpush1.bf16.msra.mxu0 %v7883
    %9717 = vmatprep.subr.bf16.mxu0 %v7892
    %9718 = vmatpush1.bf16.msra.mxu0 %v7891
    %9719 = vmatprep.subr.bf16.mxu0 %v7900
    %9720 = vmatpush1.bf16.msra.mxu0 %v7899
    %9721 = vmatprep.subr.bf16.mxu0 %v7908
    %9722 = vmatpush1.bf16.msra.mxu0 %v7907
    %9723 = vmatprep.subr.bf16.mxu0 %v7916
    %9724 = vmatpush1.bf16.msra.mxu0 %v7915
    %9725 = vmatprep.subr.bf16.mxu0 %v7924
    %9726 = vmatpush1.bf16.msra.mxu0 %v7923
    %9727 = vmatprep.subr.bf16.mxu0 %v7932
    %9728 = vmatpush1.bf16.msra.mxu0 %v7931
    %9729 = vmatprep.subr.bf16.mxu0 %v7940
    %9730 = vmatpush1.bf16.msra.mxu0 %v7939
    %9731 = vmatprep.mubr.bf16.mxu0 %v2908
    %9732 = vmatmul.mubr.bf16.gmra.mrb[0].mxu0 %v2907
    %v9733 = vpop.f32.mrb[0].mxu0
    %v9734 = vadd.f32 %v9691, %v9733
    %v9735 = vpop.f32.mrb[0].mxu0
    %v9736 = vadd.f32 %v9693, %v9735
    %v9737 = vpop.f32.mrb[0].mxu0
    %v9738 = vadd.f32 %v9695, %v9737
    %v9739 = vpop.f32.mrb[0].mxu0
    %v9740 = vadd.f32 %v9697, %v9739
    %9741 = vdwg.mxu0
    %9742 = vmatprep.subr.bf16.mxu0 %v7948
    %9743 = vmatpush1.bf16.msra.mxu0 %v7947
    %9744 = vmatprep.subr.bf16.mxu0 %v7956
    %9745 = vmatpush1.bf16.msra.mxu0 %v7955
    %9746 = vmatprep.subr.bf16.mxu0 %v7964
    %9747 = vmatpush1.bf16.msra.mxu0 %v7963
    %9748 = vmatprep.subr.bf16.mxu0 %v7972
    %9749 = vmatpush1.bf16.msra.mxu0 %v7971
    %9750 = vmatprep.subr.bf16.mxu0 %v7980
    %9751 = vmatpush1.bf16.msra.mxu0 %v7979
    %9752 = vmatprep.subr.bf16.mxu0 %v7988
    %9753 = vmatpush1.bf16.msra.mxu0 %v7987
    %9754 = vmatprep.subr.bf16.mxu0 %v7996
    %9755 = vmatpush1.bf16.msra.mxu0 %v7995
    %9756 = vmatprep.subr.bf16.mxu0 %v8004
    %9757 = vmatpush1.bf16.msra.mxu0 %v8003
    %9758 = vmatprep.subr.bf16.mxu0 %v8012
    %9759 = vmatpush1.bf16.msra.mxu0 %v8011
    %9760 = vmatprep.subr.bf16.mxu0 %v8020
    %9761 = vmatpush1.bf16.msra.mxu0 %v8019
    %9762 = vmatprep.subr.bf16.mxu0 %v8028
    %9763 = vmatpush1.bf16.msra.mxu0 %v8027
    %9764 = vmatprep.subr.bf16.mxu0 %v8036
    %9765 = vmatpush1.bf16.msra.mxu0 %v8035
    %9766 = vmatprep.subr.bf16.mxu0 %v8044
    %9767 = vmatpush1.bf16.msra.mxu0 %v8043
    %9768 = vmatprep.subr.bf16.mxu0 %v8052
    %9769 = vmatpush1.bf16.msra.mxu0 %v8051
    %9770 = vmatprep.subr.bf16.mxu0 %v8060
    %9771 = vmatpush1.bf16.msra.mxu0 %v8059
    %9772 = vmatprep.subr.bf16.mxu0 %v8068
    %9773 = vmatpush1.bf16.msra.mxu0 %v8067
    %9774 = vmatprep.mubr.bf16.mxu0 %v2910
    %9775 = vmatmul.mubr.bf16.gmra.mrb[0].mxu0 %v2909
    %v9776 = vpop.f32.mrb[0].mxu0
    %v9777 = vadd.f32 %v9734, %v9776
    %v9778 = vpop.f32.mrb[0].mxu0
    %v9779 = vadd.f32 %v9736, %v9778
    %v9780 = vpop.f32.mrb[0].mxu0
    %v9781 = vadd.f32 %v9738, %v9780
    %v9782 = vpop.f32.mrb[0].mxu0
    %v9783 = vadd.f32 %v9740, %v9782
    %9784 = vdwg.mxu0
    %9785 = vmatprep.subr.bf16.mxu0 %v7054
    %9786 = vmatpush1.bf16.msra.mxu0 %v7053
    %9787 = vmatprep.subr.bf16.mxu0 %v7062
    %9788 = vmatpush1.bf16.msra.mxu0 %v7061
    %9789 = vmatprep.subr.bf16.mxu0 %v7070
    %9790 = vmatpush1.bf16.msra.mxu0 %v7069
    %9791 = vmatprep.subr.bf16.mxu0 %v7078
    %9792 = vmatpush1.bf16.msra.mxu0 %v7077
    %9793 = vmatprep.subr.bf16.mxu0 %v7086
    %9794 = vmatpush1.bf16.msra.mxu0 %v7085
    %9795 = vmatprep.subr.bf16.mxu0 %v7094
    %9796 = vmatpush1.bf16.msra.mxu0 %v7093
    %9797 = vmatprep.subr.bf16.mxu0 %v7102
    %9798 = vmatpush1.bf16.msra.mxu0 %v7101
    %9799 = vmatprep.subr.bf16.mxu0 %v7110
    %9800 = vmatpush1.bf16.msra.mxu0 %v7109
    %9801 = vmatprep.subr.bf16.mxu0 %v7118
    %9802 = vmatpush1.bf16.msra.mxu0 %v7117
    %9803 = vmatprep.subr.bf16.mxu0 %v7126
    %9804 = vmatpush1.bf16.msra.mxu0 %v7125
    %9805 = vmatprep.subr.bf16.mxu0 %v7134
    %9806 = vmatpush1.bf16.msra.mxu0 %v7133
    %9807 = vmatprep.subr.bf16.mxu0 %v7142
    %9808 = vmatpush1.bf16.msra.mxu0 %v7141
    %9809 = vmatprep.subr.bf16.mxu0 %v7150
    %9810 = vmatpush1.bf16.msra.mxu0 %v7149
    %9811 = vmatprep.subr.bf16.mxu0 %v7158
    %9812 = vmatpush1.bf16.msra.mxu0 %v7157
    %9813 = vmatprep.subr.bf16.mxu0 %v7166
    %9814 = vmatpush1.bf16.msra.mxu0 %v7165
    %9815 = vmatprep.subr.bf16.mxu0 %v7174
    %9816 = vmatpush1.bf16.msra.mxu0 %v7173
    %9817 = vmatprep.mubr.bf16.mxu0 %v2896
    %9818 = vmatmul.mubr.bf16.gmra.mrb[0].mxu0 %v2895
    %v9819 = vpop.f32.mrb[0].mxu0
    %v9820 = vadd.f32 %v3956, %v9819
    %v9821 = vpop.f32.mrb[0].mxu0
    %v9822 = vadd.f32 %v3960, %v9821
    %v9823 = vpop.f32.mrb[0].mxu0
    %v9824 = vadd.f32 %v3956, %v9823
    %v9825 = vpop.f32.mrb[0].mxu0
    %v9826 = vadd.f32 %v3960, %v9825
    %9827 = vdwg.mxu0
    %9828 = vmatprep.subr.bf16.mxu0 %v7182
    %9829 = vmatpush1.bf16.msra.mxu0 %v7181
    %9830 = vmatprep.subr.bf16.mxu0 %v7190
    %9831 = vmatpush1.bf16.msra.mxu0 %v7189
    %9832 = vmatprep.subr.bf16.mxu0 %v7198
    %9833 = vmatpush1.bf16.msra.mxu0 %v7197
    %9834 = vmatprep.subr.bf16.mxu0 %v7206
    %9835 = vmatpush1.bf16.msra.mxu0 %v7205
    %9836 = vmatprep.subr.bf16.mxu0 %v7214
    %9837 = vmatpush1.bf16.msra.mxu0 %v7213
    %9838 = vmatprep.subr.bf16.mxu0 %v7222
    %9839 = vmatpush1.bf16.msra.mxu0 %v7221
    %9840 = vmatprep.subr.bf16.mxu0 %v7230
    %9841 = vmatpush1.bf16.msra.mxu0 %v7229
    %9842 = vmatprep.subr.bf16.mxu0 %v7238
    %9843 = vmatpush1.bf16.msra.mxu0 %v7237
    %9844 = vmatprep.subr.bf16.mxu0 %v7246
    %9845 = vmatpush1.bf16.msra.mxu0 %v7245
    %9846 = vmatprep.subr.bf16.mxu0 %v7254
    %9847 = vmatpush1.bf16.msra.mxu0 %v7253
    %9848 = vmatprep.subr.bf16.mxu0 %v7262
    %9849 = vmatpush1.bf16.msra.mxu0 %v7261
    %9850 = vmatprep.subr.bf16.mxu0 %v7270
    %9851 = vmatpush1.bf16.msra.mxu0 %v7269
    %9852 = vmatprep.subr.bf16.mxu0 %v7278
    %9853 = vmatpush1.bf16.msra.mxu0 %v7277
    %9854 = vmatprep.subr.bf16.mxu0 %v7286
    %9855 = vmatpush1.bf16.msra.mxu0 %v7285
    %9856 = vmatprep.subr.bf16.mxu0 %v7294
    %9857 = vmatpush1.bf16.msra.mxu0 %v7293
    %9858 = vmatprep.subr.bf16.mxu0 %v7302
    %9859 = vmatpush1.bf16.msra.mxu0 %v7301
    %9860 = vmatprep.mubr.bf16.mxu0 %v2898
    %9861 = vmatmul.mubr.bf16.gmra.mrb[0].mxu0 %v2897
    %v9862 = vpop.f32.mrb[0].mxu0
    %v9863 = vadd.f32 %v9820, %v9862
    %v9864 = vpop.f32.mrb[0].mxu0
    %v9865 = vadd.f32 %v9822, %v9864
    %v9866 = vpop.f32.mrb[0].mxu0
    %v9867 = vadd.f32 %v9824, %v9866
    %v9868 = vpop.f32.mrb[0].mxu0
    %v9869 = vadd.f32 %v9826, %v9868
    %9870 = vdwg.mxu0
    %9871 = vmatprep.subr.bf16.mxu0 %v7310
    %9872 = vmatpush1.bf16.msra.mxu0 %v7309
    %9873 = vmatprep.subr.bf16.mxu0 %v7318
    %9874 = vmatpush1.bf16.msra.mxu0 %v7317
    %9875 = vmatprep.subr.bf16.mxu0 %v7326
    %9876 = vmatpush1.bf16.msra.mxu0 %v7325
    %9877 = vmatprep.subr.bf16.mxu0 %v7334
    %9878 = vmatpush1.bf16.msra.mxu0 %v7333
    %9879 = vmatprep.subr.bf16.mxu0 %v7342
    %9880 = vmatpush1.bf16.msra.mxu0 %v7341
    %9881 = vmatprep.subr.bf16.mxu0 %v7350
    %9882 = vmatpush1.bf16.msra.mxu0 %v7349
    %9883 = vmatprep.subr.bf16.mxu0 %v7358
    %9884 = vmatpush1.bf16.msra.mxu0 %v7357
    %9885 = vmatprep.subr.bf16.mxu0 %v7366
    %9886 = vmatpush1.bf16.msra.mxu0 %v7365
    %9887 = vmatprep.subr.bf16.mxu0 %v7374
    %9888 = vmatpush1.bf16.msra.mxu0 %v7373
    %9889 = vmatprep.subr.bf16.mxu0 %v7382
    %9890 = vmatpush1.bf16.msra.mxu0 %v7381
    %9891 = vmatprep.subr.bf16.mxu0 %v7390
    %9892 = vmatpush1.bf16.msra.mxu0 %v7389
    %9893 = vmatprep.subr.bf16.mxu0 %v7398
    %9894 = vmatpush1.bf16.msra.mxu0 %v7397
    %9895 = vmatprep.subr.bf16.mxu0 %v7406
    %9896 = vmatpush1.bf16.msra.mxu0 %v7405
    %9897 = vmatprep.subr.bf16.mxu0 %v7414
    %9898 = vmatpush1.bf16.msra.mxu0 %v7413
    %9899 = vmatprep.subr.bf16.mxu0 %v7422
    %9900 = vmatpush1.bf16.msra.mxu0 %v7421
    %9901 = vmatprep.subr.bf16.mxu0 %v7430
    %9902 = vmatpush1.bf16.msra.mxu0 %v7429
    %9903 = vmatprep.mubr.bf16.mxu0 %v2900
    %9904 = vmatmul.mubr.bf16.gmra.mrb[0].mxu0 %v2899
    %v9905 = vpop.f32.mrb[0].mxu0
    %v9906 = vadd.f32 %v9863, %v9905
    %v9907 = vpop.f32.mrb[0].mxu0
    %v9908 = vadd.f32 %v9865, %v9907
    %v9909 = vpop.f32.mrb[0].mxu0
    %v9910 = vadd.f32 %v9867, %v9909
    %v9911 = vpop.f32.mrb[0].mxu0
    %v9912 = vadd.f32 %v9869, %v9911
    %9913 = vdwg.mxu0
    %9914 = vmatprep.subr.bf16.mxu0 %v7438
    %9915 = vmatpush1.bf16.msra.mxu0 %v7437
    %9916 = vmatprep.subr.bf16.mxu0 %v7446
    %9917 = vmatpush1.bf16.msra.mxu0 %v7445
    %9918 = vmatprep.subr.bf16.mxu0 %v7454
    %9919 = vmatpush1.bf16.msra.mxu0 %v7453
    %9920 = vmatprep.subr.bf16.mxu0 %v7462
    %9921 = vmatpush1.bf16.msra.mxu0 %v7461
    %9922 = vmatprep.subr.bf16.mxu0 %v7470
    %9923 = vmatpush1.bf16.msra.mxu0 %v7469
    %9924 = vmatprep.subr.bf16.mxu0 %v7478
    %9925 = vmatpush1.bf16.msra.mxu0 %v7477
    %9926 = vmatprep.subr.bf16.mxu0 %v7486
    %9927 = vmatpush1.bf16.msra.mxu0 %v7485
    %9928 = vmatprep.subr.bf16.mxu0 %v7494
    %9929 = vmatpush1.bf16.msra.mxu0 %v7493
    %9930 = vmatprep.subr.bf16.mxu0 %v7502
    %9931 = vmatpush1.bf16.msra.mxu0 %v7501
    %9932 = vmatprep.subr.bf16.mxu0 %v7510
    %9933 = vmatpush1.bf16.msra.mxu0 %v7509
    %9934 = vmatprep.subr.bf16.mxu0 %v7518
    %9935 = vmatpush1.bf16.msra.mxu0 %v7517
    %9936 = vmatprep.subr.bf16.mxu0 %v7526
    %9937 = vmatpush1.bf16.msra.mxu0 %v7525
    %9938 = vmatprep.subr.bf16.mxu0 %v7534
    %9939 = vmatpush1.bf16.msra.mxu0 %v7533
    %9940 = vmatprep.subr.bf16.mxu0 %v7542
    %9941 = vmatpush1.bf16.msra.mxu0 %v7541
    %9942 = vmatprep.subr.bf16.mxu0 %v7550
    %9943 = vmatpush1.bf16.msra.mxu0 %v7549
    %9944 = vmatprep.subr.bf16.mxu0 %v7558
    %9945 = vmatpush1.bf16.msra.mxu0 %v7557
    %9946 = vmatprep.mubr.bf16.mxu0 %v2902
    %9947 = vmatmul.mubr.bf16.gmra.mrb[0].mxu0 %v2901
    %v9948 = vpop.f32.mrb[0].mxu0
    %v9949 = vadd.f32 %v9906, %v9948
    %v9950 = vpop.f32.mrb[0].mxu0
    %v9951 = vadd.f32 %v9908, %v9950
    %v9952 = vpop.f32.mrb[0].mxu0
    %v9953 = vadd.f32 %v9910, %v9952
    %v9954 = vpop.f32.mrb[0].mxu0
    %v9955 = vadd.f32 %v9912, %v9954
    %9956 = vdwg.mxu0
    %9957 = vmatprep.subr.bf16.mxu0 %v7566
    %9958 = vmatpush1.bf16.msra.mxu0 %v7565
    %9959 = vmatprep.subr.bf16.mxu0 %v7574
    %9960 = vmatpush1.bf16.msra.mxu0 %v7573
    %9961 = vmatprep.subr.bf16.mxu0 %v7582
    %9962 = vmatpush1.bf16.msra.mxu0 %v7581
    %9963 = vmatprep.subr.bf16.mxu0 %v7590
    %9964 = vmatpush1.bf16.msra.mxu0 %v7589
    %9965 = vmatprep.subr.bf16.mxu0 %v7598
    %9966 = vmatpush1.bf16.msra.mxu0 %v7597
    %9967 = vmatprep.subr.bf16.mxu0 %v7606
    %9968 = vmatpush1.bf16.msra.mxu0 %v7605
    %9969 = vmatprep.subr.bf16.mxu0 %v7614
    %9970 = vmatpush1.bf16.msra.mxu0 %v7613
    %9971 = vmatprep.subr.bf16.mxu0 %v7622
    %9972 = vmatpush1.bf16.msra.mxu0 %v7621
    %9973 = vmatprep.subr.bf16.mxu0 %v7630
    %9974 = vmatpush1.bf16.msra.mxu0 %v7629
    %9975 = vmatprep.subr.bf16.mxu0 %v7638
    %9976 = vmatpush1.bf16.msra.mxu0 %v7637
    %9977 = vmatprep.subr.bf16.mxu0 %v7646
    %9978 = vmatpush1.bf16.msra.mxu0 %v7645
    %9979 = vmatprep.subr.bf16.mxu0 %v7654
    %9980 = vmatpush1.bf16.msra.mxu0 %v7653
    %9981 = vmatprep.subr.bf16.mxu0 %v7662
    %9982 = vmatpush1.bf16.msra.mxu0 %v7661
    %9983 = vmatprep.subr.bf16.mxu0 %v7670
    %9984 = vmatpush1.bf16.msra.mxu0 %v7669
    %9985 = vmatprep.subr.bf16.mxu0 %v7678
    %9986 = vmatpush1.bf16.msra.mxu0 %v7677
    %9987 = vmatprep.subr.bf16.mxu0 %v7686
    %9988 = vmatpush1.bf16.msra.mxu0 %v7685
    %9989 = vmatprep.mubr.bf16.mxu0 %v2904
    %9990 = vmatmul.mubr.bf16.gmra.mrb[0].mxu0 %v2903
    %v9991 = vpop.f32.mrb[0].mxu0
    %v9992 = vadd.f32 %v9949, %v9991
    %v9993 = vpop.f32.mrb[0].mxu0
    %v9994 = vadd.f32 %v9951, %v9993
    %v9995 = vpop.f32.mrb[0].mxu0
    %v9996 = vadd.f32 %v9953, %v9995
    %v9997 = vpop.f32.mrb[0].mxu0
    %v9998 = vadd.f32 %v9955, %v9997
    %9999 = vdwg.mxu0
    %10000 = vmatprep.subr.bf16.mxu0 %v7694
    %10001 = vmatpush1.bf16.msra.mxu0 %v7693
    %10002 = vmatprep.subr.bf16.mxu0 %v7702
    %10003 = vmatpush1.bf16.msra.mxu0 %v7701
    %10004 = vmatprep.subr.bf16.mxu0 %v7710
    %10005 = vmatpush1.bf16.msra.mxu0 %v7709
    %10006 = vmatprep.subr.bf16.mxu0 %v7718
    %10007 = vmatpush1.bf16.msra.mxu0 %v7717
    %10008 = vmatprep.subr.bf16.mxu0 %v7726
    %10009 = vmatpush1.bf16.msra.mxu0 %v7725
    %10010 = vmatprep.subr.bf16.mxu0 %v7734
    %10011 = vmatpush1.bf16.msra.mxu0 %v7733
    %10012 = vmatprep.subr.bf16.mxu0 %v7742
    %10013 = vmatpush1.bf16.msra.mxu0 %v7741
    %10014 = vmatprep.subr.bf16.mxu0 %v7750
    %10015 = vmatpush1.bf16.msra.mxu0 %v7749
    %10016 = vmatprep.subr.bf16.mxu0 %v7758
    %10017 = vmatpush1.bf16.msra.mxu0 %v7757
    %10018 = vmatprep.subr.bf16.mxu0 %v7766
    %10019 = vmatpush1.bf16.msra.mxu0 %v7765
    %10020 = vmatprep.subr.bf16.mxu0 %v7774
    %10021 = vmatpush1.bf16.msra.mxu0 %v7773
    %10022 = vmatprep.subr.bf16.mxu0 %v7782
    %10023 = vmatpush1.bf16.msra.mxu0 %v7781
    %10024 = vmatprep.subr.bf16.mxu0 %v7790
    %10025 = vmatpush1.bf16.msra.mxu0 %v7789
    %10026 = vmatprep.subr.bf16.mxu0 %v7798
    %10027 = vmatpush1.bf16.msra.mxu0 %v7797
    %10028 = vmatprep.subr.bf16.mxu0 %v7806
    %10029 = vmatpush1.bf16.msra.mxu0 %v7805
    %10030 = vmatprep.subr.bf16.mxu0 %v7814
    %10031 = vmatpush1.bf16.msra.mxu0 %v7813
    %10032 = vmatprep.mubr.bf16.mxu0 %v2906
    %10033 = vmatmul.mubr.bf16.gmra.mrb[0].mxu0 %v2905
    %v10034 = vpop.f32.mrb[0].mxu0
    %v10035 = vadd.f32 %v9992, %v10034
    %v10036 = vpop.f32.mrb[0].mxu0
    %v10037 = vadd.f32 %v9994, %v10036
    %v10038 = vpop.f32.mrb[0].mxu0
    %v10039 = vadd.f32 %v9996, %v10038
    %v10040 = vpop.f32.mrb[0].mxu0
    %v10041 = vadd.f32 %v9998, %v10040
    %10042 = vdwg.mxu0
    %10043 = vmatprep.subr.bf16.mxu0 %v7822
    %10044 = vmatpush1.bf16.msra.mxu0 %v7821
    %10045 = vmatprep.subr.bf16.mxu0 %v7830
    %10046 = vmatpush1.bf16.msra.mxu0 %v7829
    %10047 = vmatprep.subr.bf16.mxu0 %v7838
    %10048 = vmatpush1.bf16.msra.mxu0 %v7837
    %10049 = vmatprep.subr.bf16.mxu0 %v7846
    %10050 = vmatpush1.bf16.msra.mxu0 %v7845
    %10051 = vmatprep.subr.bf16.mxu0 %v7854
    %10052 = vmatpush1.bf16.msra.mxu0 %v7853
    %10053 = vmatprep.subr.bf16.mxu0 %v7862
    %10054 = vmatpush1.bf16.msra.mxu0 %v7861
    %10055 = vmatprep.subr.bf16.mxu0 %v7870
    %10056 = vmatpush1.bf16.msra.mxu0 %v7869
    %10057 = vmatprep.subr.bf16.mxu0 %v7878
    %10058 = vmatpush1.bf16.msra.mxu0 %v7877
    %10059 = vmatprep.subr.bf16.mxu0 %v7886
    %10060 = vmatpush1.bf16.msra.mxu0 %v7885
    %10061 = vmatprep.subr.bf16.mxu0 %v7894
    %10062 = vmatpush1.bf16.msra.mxu0 %v7893
    %10063 = vmatprep.subr.bf16.mxu0 %v7902
    %10064 = vmatpush1.bf16.msra.mxu0 %v7901
    %10065 = vmatprep.subr.bf16.mxu0 %v7910
    %10066 = vmatpush1.bf16.msra.mxu0 %v7909
    %10067 = vmatprep.subr.bf16.mxu0 %v7918
    %10068 = vmatpush1.bf16.msra.mxu0 %v7917
    %10069 = vmatprep.subr.bf16.mxu0 %v7926
    %10070 = vmatpush1.bf16.msra.mxu0 %v7925
    %10071 = vmatprep.subr.bf16.mxu0 %v7934
    %10072 = vmatpush1.bf16.msra.mxu0 %v7933
    %10073 = vmatprep.subr.bf16.mxu0 %v7942
    %10074 = vmatpush1.bf16.msra.mxu0 %v7941
    %10075 = vmatprep.mubr.bf16.mxu0 %v2908
    %10076 = vmatmul.mubr.bf16.gmra.mrb[0].mxu0 %v2907
    %v10077 = vpop.f32.mrb[0].mxu0
    %v10078 = vadd.f32 %v10035, %v10077
    %v10079 = vpop.f32.mrb[0].mxu0
    %v10080 = vadd.f32 %v10037, %v10079
    %v10081 = vpop.f32.mrb[0].mxu0
    %v10082 = vadd.f32 %v10039, %v10081
    %v10083 = vpop.f32.mrb[0].mxu0
    %v10084 = vadd.f32 %v10041, %v10083
    %10085 = vdwg.mxu0
    %10086 = vmatprep.subr.bf16.mxu0 %v7950
    %10087 = vmatpush1.bf16.msra.mxu0 %v7949
    %10088 = vmatprep.subr.bf16.mxu0 %v7958
    %10089 = vmatpush1.bf16.msra.mxu0 %v7957
    %10090 = vmatprep.subr.bf16.mxu0 %v7966
    %10091 = vmatpush1.bf16.msra.mxu0 %v7965
    %10092 = vmatprep.subr.bf16.mxu0 %v7974
    %10093 = vmatpush1.bf16.msra.mxu0 %v7973
    %10094 = vmatprep.subr.bf16.mxu0 %v7982
    %10095 = vmatpush1.bf16.msra.mxu0 %v7981
    %10096 = vmatprep.subr.bf16.mxu0 %v7990
    %10097 = vmatpush1.bf16.msra.mxu0 %v7989
    %10098 = vmatprep.subr.bf16.mxu0 %v7998
    %10099 = vmatpush1.bf16.msra.mxu0 %v7997
    %10100 = vmatprep.subr.bf16.mxu0 %v8006
    %10101 = vmatpush1.bf16.msra.mxu0 %v8005
    %10102 = vmatprep.subr.bf16.mxu0 %v8014
    %10103 = vmatpush1.bf16.msra.mxu0 %v8013
    %10104 = vmatprep.subr.bf16.mxu0 %v8022
    %10105 = vmatpush1.bf16.msra.mxu0 %v8021
    %10106 = vmatprep.subr.bf16.mxu0 %v8030
    %10107 = vmatpush1.bf16.msra.mxu0 %v8029
    %10108 = vmatprep.subr.bf16.mxu0 %v8038
    %10109 = vmatpush1.bf16.msra.mxu0 %v8037
    %10110 = vmatprep.subr.bf16.mxu0 %v8046
    %10111 = vmatpush1.bf16.msra.mxu0 %v8045
    %10112 = vmatprep.subr.bf16.mxu0 %v8054
    %10113 = vmatpush1.bf16.msra.mxu0 %v8053
    %10114 = vmatprep.subr.bf16.mxu0 %v8062
    %10115 = vmatpush1.bf16.msra.mxu0 %v8061
    %10116 = vmatprep.subr.bf16.mxu0 %v8070
    %10117 = vmatpush1.bf16.msra.mxu0 %v8069
    %10118 = vmatprep.mubr.bf16.mxu0 %v2910
    %10119 = vmatmul.mubr.bf16.gmra.mrb[0].mxu0 %v2909
    %v10120 = vpop.f32.mrb[0].mxu0
    %v10121 = vadd.f32 %v10078, %v10120
    %v10122 = vpop.f32.mrb[0].mxu0
    %v10123 = vadd.f32 %v10080, %v10122
    %v10124 = vpop.f32.mrb[0].mxu0
    %v10125 = vadd.f32 %v10082, %v10124
    %v10126 = vpop.f32.mrb[0].mxu0
    %v10127 = vadd.f32 %v10084, %v10126
    %10128 = vdwg.mxu0
    %10129 = vmatprep.subr.bf16.mxu0 %v7056
    %10130 = vmatpush1.bf16.msra.mxu0 %v7055
    %10131 = vmatprep.subr.bf16.mxu0 %v7064
    %10132 = vmatpush1.bf16.msra.mxu0 %v7063
    %10133 = vmatprep.subr.bf16.mxu0 %v7072
    %10134 = vmatpush1.bf16.msra.mxu0 %v7071
    %10135 = vmatprep.subr.bf16.mxu0 %v7080
    %10136 = vmatpush1.bf16.msra.mxu0 %v7079
    %10137 = vmatprep.subr.bf16.mxu0 %v7088
    %10138 = vmatpush1.bf16.msra.mxu0 %v7087
    %10139 = vmatprep.subr.bf16.mxu0 %v7096
    %10140 = vmatpush1.bf16.msra.mxu0 %v7095
    %10141 = vmatprep.subr.bf16.mxu0 %v7104
    %10142 = vmatpush1.bf16.msra.mxu0 %v7103
    %10143 = vmatprep.subr.bf16.mxu0 %v7112
    %10144 = vmatpush1.bf16.msra.mxu0 %v7111
    %10145 = vmatprep.subr.bf16.mxu0 %v7120
    %10146 = vmatpush1.bf16.msra.mxu0 %v7119
    %10147 = vmatprep.subr.bf16.mxu0 %v7128
    %10148 = vmatpush1.bf16.msra.mxu0 %v7127
    %10149 = vmatprep.subr.bf16.mxu0 %v7136
    %10150 = vmatpush1.bf16.msra.mxu0 %v7135
    %10151 = vmatprep.subr.bf16.mxu0 %v7144
    %10152 = vmatpush1.bf16.msra.mxu0 %v7143
    %10153 = vmatprep.subr.bf16.mxu0 %v7152
    %10154 = vmatpush1.bf16.msra.mxu0 %v7151
    %10155 = vmatprep.subr.bf16.mxu0 %v7160
    %10156 = vmatpush1.bf16.msra.mxu0 %v7159
    %10157 = vmatprep.subr.bf16.mxu0 %v7168
    %10158 = vmatpush1.bf16.msra.mxu0 %v7167
    %10159 = vmatprep.subr.bf16.mxu0 %v7176
    %10160 = vmatpush1.bf16.msra.mxu0 %v7175
    %10161 = vmatprep.mubr.bf16.mxu0 %v2896
    %10162 = vmatmul.mubr.bf16.gmra.mrb[0].mxu0 %v2895
    %v10163 = vpop.f32.mrb[0].mxu0
    %v10164 = vadd.f32 %v3964, %v10163
    %v10165 = vpop.f32.mrb[0].mxu0
    %v10166 = vadd.f32 %v3968, %v10165
    %v10167 = vpop.f32.mrb[0].mxu0
    %v10168 = vadd.f32 %v3964, %v10167
    %v10169 = vpop.f32.mrb[0].mxu0
    %v10170 = vadd.f32 %v3968, %v10169
    %10171 = vdwg.mxu0
    %10172 = vmatprep.subr.bf16.mxu0 %v7184
    %10173 = vmatpush1.bf16.msra.mxu0 %v7183
    %10174 = vmatprep.subr.bf16.mxu0 %v7192
    %10175 = vmatpush1.bf16.msra.mxu0 %v7191
    %10176 = vmatprep.subr.bf16.mxu0 %v7200
    %10177 = vmatpush1.bf16.msra.mxu0 %v7199
    %10178 = vmatprep.subr.bf16.mxu0 %v7208
    %10179 = vmatpush1.bf16.msra.mxu0 %v7207
    %10180 = vmatprep.subr.bf16.mxu0 %v7216
    %10181 = vmatpush1.bf16.msra.mxu0 %v7215
    %10182 = vmatprep.subr.bf16.mxu0 %v7224
    %10183 = vmatpush1.bf16.msra.mxu0 %v7223
    %10184 = vmatprep.subr.bf16.mxu0 %v7232
    %10185 = vmatpush1.bf16.msra.mxu0 %v7231
    %10186 = vmatprep.subr.bf16.mxu0 %v7240
    %10187 = vmatpush1.bf16.msra.mxu0 %v7239
    %10188 = vmatprep.subr.bf16.mxu0 %v7248
    %10189 = vmatpush1.bf16.msra.mxu0 %v7247
    %10190 = vmatprep.subr.bf16.mxu0 %v7256
    %10191 = vmatpush1.bf16.msra.mxu0 %v7255
    %10192 = vmatprep.subr.bf16.mxu0 %v7264
    %10193 = vmatpush1.bf16.msra.mxu0 %v7263
    %10194 = vmatprep.subr.bf16.mxu0 %v7272
    %10195 = vmatpush1.bf16.msra.mxu0 %v7271
    %10196 = vmatprep.subr.bf16.mxu0 %v7280
    %10197 = vmatpush1.bf16.msra.mxu0 %v7279
    %10198 = vmatprep.subr.bf16.mxu0 %v7288
    %10199 = vmatpush1.bf16.msra.mxu0 %v7287
    %10200 = vmatprep.subr.bf16.mxu0 %v7296
    %10201 = vmatpush1.bf16.msra.mxu0 %v7295
    %10202 = vmatprep.subr.bf16.mxu0 %v7304
    %10203 = vmatpush1.bf16.msra.mxu0 %v7303
    %10204 = vmatprep.mubr.bf16.mxu0 %v2898
    %10205 = vmatmul.mubr.bf16.gmra.mrb[0].mxu0 %v2897
    %v10206 = vpop.f32.mrb[0].mxu0
    %v10207 = vadd.f32 %v10164, %v10206
    %v10208 = vpop.f32.mrb[0].mxu0
    %v10209 = vadd.f32 %v10166, %v10208
    %v10210 = vpop.f32.mrb[0].mxu0
    %v10211 = vadd.f32 %v10168, %v10210
    %v10212 = vpop.f32.mrb[0].mxu0
    %v10213 = vadd.f32 %v10170, %v10212
    %10214 = vdwg.mxu0
    %10215 = vmatprep.subr.bf16.mxu0 %v7312
    %10216 = vmatpush1.bf16.msra.mxu0 %v7311
    %10217 = vmatprep.subr.bf16.mxu0 %v7320
    %10218 = vmatpush1.bf16.msra.mxu0 %v7319
    %10219 = vmatprep.subr.bf16.mxu0 %v7328
    %10220 = vmatpush1.bf16.msra.mxu0 %v7327
    %10221 = vmatprep.subr.bf16.mxu0 %v7336
    %10222 = vmatpush1.bf16.msra.mxu0 %v7335
    %10223 = vmatprep.subr.bf16.mxu0 %v7344
    %10224 = vmatpush1.bf16.msra.mxu0 %v7343
    %10225 = vmatprep.subr.bf16.mxu0 %v7352
    %10226 = vmatpush1.bf16.msra.mxu0 %v7351
    %10227 = vmatprep.subr.bf16.mxu0 %v7360
    %10228 = vmatpush1.bf16.msra.mxu0 %v7359
    %10229 = vmatprep.subr.bf16.mxu0 %v7368
    %10230 = vmatpush1.bf16.msra.mxu0 %v7367
    %10231 = vmatprep.subr.bf16.mxu0 %v7376
    %10232 = vmatpush1.bf16.msra.mxu0 %v7375
    %10233 = vmatprep.subr.bf16.mxu0 %v7384
    %10234 = vmatpush1.bf16.msra.mxu0 %v7383
    %10235 = vmatprep.subr.bf16.mxu0 %v7392
    %10236 = vmatpush1.bf16.msra.mxu0 %v7391
    %10237 = vmatprep.subr.bf16.mxu0 %v7400
    %10238 = vmatpush1.bf16.msra.mxu0 %v7399
    %10239 = vmatprep.subr.bf16.mxu0 %v7408
    %10240 = vmatpush1.bf16.msra.mxu0 %v7407
    %10241 = vmatprep.subr.bf16.mxu0 %v7416
    %10242 = vmatpush1.bf16.msra.mxu0 %v7415
    %10243 = vmatprep.subr.bf16.mxu0 %v7424
    %10244 = vmatpush1.bf16.msra.mxu0 %v7423
    %10245 = vmatprep.subr.bf16.mxu0 %v7432
    %10246 = vmatpush1.bf16.msra.mxu0 %v7431
    %10247 = vmatprep.mubr.bf16.mxu0 %v2900
    %10248 = vmatmul.mubr.bf16.gmra.mrb[0].mxu0 %v2899
    %v10249 = vpop.f32.mrb[0].mxu0
    %v10250 = vadd.f32 %v10207, %v10249
    %v10251 = vpop.f32.mrb[0].mxu0
    %v10252 = vadd.f32 %v10209, %v10251
    %v10253 = vpop.f32.mrb[0].mxu0
    %v10254 = vadd.f32 %v10211, %v10253
    %v10255 = vpop.f32.mrb[0].mxu0
    %v10256 = vadd.f32 %v10213, %v10255
    %10257 = vdwg.mxu0
    %10258 = vmatprep.subr.bf16.mxu0 %v7440
    %10259 = vmatpush1.bf16.msra.mxu0 %v7439
    %10260 = vmatprep.subr.bf16.mxu0 %v7448
    %10261 = vmatpush1.bf16.msra.mxu0 %v7447
    %10262 = vmatprep.subr.bf16.mxu0 %v7456
    %10263 = vmatpush1.bf16.msra.mxu0 %v7455
    %10264 = vmatprep.subr.bf16.mxu0 %v7464
    %10265 = vmatpush1.bf16.msra.mxu0 %v7463
    %10266 = vmatprep.subr.bf16.mxu0 %v7472
    %10267 = vmatpush1.bf16.msra.mxu0 %v7471
    %10268 = vmatprep.subr.bf16.mxu0 %v7480
    %10269 = vmatpush1.bf16.msra.mxu0 %v7479
    %10270 = vmatprep.subr.bf16.mxu0 %v7488
    %10271 = vmatpush1.bf16.msra.mxu0 %v7487
    %10272 = vmatprep.subr.bf16.mxu0 %v7496
    %10273 = vmatpush1.bf16.msra.mxu0 %v7495
    %10274 = vmatprep.subr.bf16.mxu0 %v7504
    %10275 = vmatpush1.bf16.msra.mxu0 %v7503
    %10276 = vmatprep.subr.bf16.mxu0 %v7512
    %10277 = vmatpush1.bf16.msra.mxu0 %v7511
    %10278 = vmatprep.subr.bf16.mxu0 %v7520
    %10279 = vmatpush1.bf16.msra.mxu0 %v7519
    %10280 = vmatprep.subr.bf16.mxu0 %v7528
    %10281 = vmatpush1.bf16.msra.mxu0 %v7527
    %10282 = vmatprep.subr.bf16.mxu0 %v7536
    %10283 = vmatpush1.bf16.msra.mxu0 %v7535
    %10284 = vmatprep.subr.bf16.mxu0 %v7544
    %10285 = vmatpush1.bf16.msra.mxu0 %v7543
    %10286 = vmatprep.subr.bf16.mxu0 %v7552
    %10287 = vmatpush1.bf16.msra.mxu0 %v7551
    %10288 = vmatprep.subr.bf16.mxu0 %v7560
    %10289 = vmatpush1.bf16.msra.mxu0 %v7559
    %10290 = vmatprep.mubr.bf16.mxu0 %v2902
    %10291 = vmatmul.mubr.bf16.gmra.mrb[0].mxu0 %v2901
    %v10292 = vpop.f32.mrb[0].mxu0
    %v10293 = vadd.f32 %v10250, %v10292
    %v10294 = vpop.f32.mrb[0].mxu0
    %v10295 = vadd.f32 %v10252, %v10294
    %v10296 = vpop.f32.mrb[0].mxu0
    %v10297 = vadd.f32 %v10254, %v10296
    %v10298 = vpop.f32.mrb[0].mxu0
    %v10299 = vadd.f32 %v10256, %v10298
    %10300 = vdwg.mxu0
    %10301 = vmatprep.subr.bf16.mxu0 %v7568
    %10302 = vmatpush1.bf16.msra.mxu0 %v7567
    %10303 = vmatprep.subr.bf16.mxu0 %v7576
    %10304 = vmatpush1.bf16.msra.mxu0 %v7575
    %10305 = vmatprep.subr.bf16.mxu0 %v7584
    %10306 = vmatpush1.bf16.msra.mxu0 %v7583
    %10307 = vmatprep.subr.bf16.mxu0 %v7592
    %10308 = vmatpush1.bf16.msra.mxu0 %v7591
    %10309 = vmatprep.subr.bf16.mxu0 %v7600
    %10310 = vmatpush1.bf16.msra.mxu0 %v7599
    %10311 = vmatprep.subr.bf16.mxu0 %v7608
    %10312 = vmatpush1.bf16.msra.mxu0 %v7607
    %10313 = vmatprep.subr.bf16.mxu0 %v7616
    %10314 = vmatpush1.bf16.msra.mxu0 %v7615
    %10315 = vmatprep.subr.bf16.mxu0 %v7624
    %10316 = vmatpush1.bf16.msra.mxu0 %v7623
    %10317 = vmatprep.subr.bf16.mxu0 %v7632
    %10318 = vmatpush1.bf16.msra.mxu0 %v7631
    %10319 = vmatprep.subr.bf16.mxu0 %v7640
    %10320 = vmatpush1.bf16.msra.mxu0 %v7639
    %10321 = vmatprep.subr.bf16.mxu0 %v7648
    %10322 = vmatpush1.bf16.msra.mxu0 %v7647
    %10323 = vmatprep.subr.bf16.mxu0 %v7656
    %10324 = vmatpush1.bf16.msra.mxu0 %v7655
    %10325 = vmatprep.subr.bf16.mxu0 %v7664
    %10326 = vmatpush1.bf16.msra.mxu0 %v7663
    %10327 = vmatprep.subr.bf16.mxu0 %v7672
    %10328 = vmatpush1.bf16.msra.mxu0 %v7671
    %10329 = vmatprep.subr.bf16.mxu0 %v7680
    %10330 = vmatpush1.bf16.msra.mxu0 %v7679
    %10331 = vmatprep.subr.bf16.mxu0 %v7688
    %10332 = vmatpush1.bf16.msra.mxu0 %v7687
    %10333 = vmatprep.mubr.bf16.mxu0 %v2904
    %10334 = vmatmul.mubr.bf16.gmra.mrb[0].mxu0 %v2903
    %v10335 = vpop.f32.mrb[0].mxu0
    %v10336 = vadd.f32 %v10293, %v10335
    %v10337 = vpop.f32.mrb[0].mxu0
    %v10338 = vadd.f32 %v10295, %v10337
    %v10339 = vpop.f32.mrb[0].mxu0
    %v10340 = vadd.f32 %v10297, %v10339
    %v10341 = vpop.f32.mrb[0].mxu0
    %v10342 = vadd.f32 %v10299, %v10341
    %10343 = vdwg.mxu0
    %10344 = vmatprep.subr.bf16.mxu0 %v7696
    %10345 = vmatpush1.bf16.msra.mxu0 %v7695
    %10346 = vmatprep.subr.bf16.mxu0 %v7704
    %10347 = vmatpush1.bf16.msra.mxu0 %v7703
    %10348 = vmatprep.subr.bf16.mxu0 %v7712
    %10349 = vmatpush1.bf16.msra.mxu0 %v7711
    %10350 = vmatprep.subr.bf16.mxu0 %v7720
    %10351 = vmatpush1.bf16.msra.mxu0 %v7719
    %10352 = vmatprep.subr.bf16.mxu0 %v7728
    %10353 = vmatpush1.bf16.msra.mxu0 %v7727
    %10354 = vmatprep.subr.bf16.mxu0 %v7736
    %10355 = vmatpush1.bf16.msra.mxu0 %v7735
    %10356 = vmatprep.subr.bf16.mxu0 %v7744
    %10357 = vmatpush1.bf16.msra.mxu0 %v7743
    %10358 = vmatprep.subr.bf16.mxu0 %v7752
    %10359 = vmatpush1.bf16.msra.mxu0 %v7751
    %10360 = vmatprep.subr.bf16.mxu0 %v7760
    %10361 = vmatpush1.bf16.msra.mxu0 %v7759
    %10362 = vmatprep.subr.bf16.mxu0 %v7768
    %10363 = vmatpush1.bf16.msra.mxu0 %v7767
    %10364 = vmatprep.subr.bf16.mxu0 %v7776
    %10365 = vmatpush1.bf16.msra.mxu0 %v7775
    %10366 = vmatprep.subr.bf16.mxu0 %v7784
    %10367 = vmatpush1.bf16.msra.mxu0 %v7783
    %10368 = vmatprep.subr.bf16.mxu0 %v7792
    %10369 = vmatpush1.bf16.msra.mxu0 %v7791
    %10370 = vmatprep.subr.bf16.mxu0 %v7800
    %10371 = vmatpush1.bf16.msra.mxu0 %v7799
    %10372 = vmatprep.subr.bf16.mxu0 %v7808
    %10373 = vmatpush1.bf16.msra.mxu0 %v7807
    %10374 = vmatprep.subr.bf16.mxu0 %v7816
    %10375 = vmatpush1.bf16.msra.mxu0 %v7815
    %10376 = vmatprep.mubr.bf16.mxu0 %v2906
    %10377 = vmatmul.mubr.bf16.gmra.mrb[0].mxu0 %v2905
    %v10378 = vpop.f32.mrb[0].mxu0
    %v10379 = vadd.f32 %v10336, %v10378
    %v10380 = vpop.f32.mrb[0].mxu0
    %v10381 = vadd.f32 %v10338, %v10380
    %v10382 = vpop.f32.mrb[0].mxu0
    %v10383 = vadd.f32 %v10340, %v10382
    %v10384 = vpop.f32.mrb[0].mxu0
    %v10385 = vadd.f32 %v10342, %v10384
    %10386 = vdwg.mxu0
    %10387 = vmatprep.subr.bf16.mxu0 %v7824
    %10388 = vmatpush1.bf16.msra.mxu0 %v7823
    %10389 = vmatprep.subr.bf16.mxu0 %v7832
    %10390 = vmatpush1.bf16.msra.mxu0 %v7831
    %10391 = vmatprep.subr.bf16.mxu0 %v7840
    %10392 = vmatpush1.bf16.msra.mxu0 %v7839
    %10393 = vmatprep.subr.bf16.mxu0 %v7848
    %10394 = vmatpush1.bf16.msra.mxu0 %v7847
    %10395 = vmatprep.subr.bf16.mxu0 %v7856
    %10396 = vmatpush1.bf16.msra.mxu0 %v7855
    %10397 = vmatprep.subr.bf16.mxu0 %v7864
    %10398 = vmatpush1.bf16.msra.mxu0 %v7863
    %10399 = vmatprep.subr.bf16.mxu0 %v7872
    %10400 = vmatpush1.bf16.msra.mxu0 %v7871
    %10401 = vmatprep.subr.bf16.mxu0 %v7880
    %10402 = vmatpush1.bf16.msra.mxu0 %v7879
    %10403 = vmatprep.subr.bf16.mxu0 %v7888
    %10404 = vmatpush1.bf16.msra.mxu0 %v7887
    %10405 = vmatprep.subr.bf16.mxu0 %v7896
    %10406 = vmatpush1.bf16.msra.mxu0 %v7895
    %10407 = vmatprep.subr.bf16.mxu0 %v7904
    %10408 = vmatpush1.bf16.msra.mxu0 %v7903
    %10409 = vmatprep.subr.bf16.mxu0 %v7912
    %10410 = vmatpush1.bf16.msra.mxu0 %v7911
    %10411 = vmatprep.subr.bf16.mxu0 %v7920
    %10412 = vmatpush1.bf16.msra.mxu0 %v7919
    %10413 = vmatprep.subr.bf16.mxu0 %v7928
    %10414 = vmatpush1.bf16.msra.mxu0 %v7927
    %10415 = vmatprep.subr.bf16.mxu0 %v7936
    %10416 = vmatpush1.bf16.msra.mxu0 %v7935
    %10417 = vmatprep.subr.bf16.mxu0 %v7944
    %10418 = vmatpush1.bf16.msra.mxu0 %v7943
    %10419 = vmatprep.mubr.bf16.mxu0 %v2908
    %10420 = vmatmul.mubr.bf16.gmra.mrb[0].mxu0 %v2907
    %v10421 = vpop.f32.mrb[0].mxu0
    %v10422 = vadd.f32 %v10379, %v10421
    %v10423 = vpop.f32.mrb[0].mxu0
    %v10424 = vadd.f32 %v10381, %v10423
    %v10425 = vpop.f32.mrb[0].mxu0
    %v10426 = vadd.f32 %v10383, %v10425
    %v10427 = vpop.f32.mrb[0].mxu0
    %v10428 = vadd.f32 %v10385, %v10427
    %10429 = vdwg.mxu0
    %10430 = vmatprep.subr.bf16.mxu0 %v7952
    %10431 = vmatpush1.bf16.msra.mxu0 %v7951
    %10432 = vmatprep.subr.bf16.mxu0 %v7960
    %10433 = vmatpush1.bf16.msra.mxu0 %v7959
    %10434 = vmatprep.subr.bf16.mxu0 %v7968
    %10435 = vmatpush1.bf16.msra.mxu0 %v7967
    %10436 = vmatprep.subr.bf16.mxu0 %v7976
    %10437 = vmatpush1.bf16.msra.mxu0 %v7975
    %10438 = vmatprep.subr.bf16.mxu0 %v7984
    %10439 = vmatpush1.bf16.msra.mxu0 %v7983
    %10440 = vmatprep.subr.bf16.mxu0 %v7992
    %10441 = vmatpush1.bf16.msra.mxu0 %v7991
    %10442 = vmatprep.subr.bf16.mxu0 %v8000
    %10443 = vmatpush1.bf16.msra.mxu0 %v7999
    %10444 = vmatprep.subr.bf16.mxu0 %v8008
    %10445 = vmatpush1.bf16.msra.mxu0 %v8007
    %10446 = vmatprep.subr.bf16.mxu0 %v8016
    %10447 = vmatpush1.bf16.msra.mxu0 %v8015
    %10448 = vmatprep.subr.bf16.mxu0 %v8024
    %10449 = vmatpush1.bf16.msra.mxu0 %v8023
    %10450 = vmatprep.subr.bf16.mxu0 %v8032
    %10451 = vmatpush1.bf16.msra.mxu0 %v8031
    %10452 = vmatprep.subr.bf16.mxu0 %v8040
    %10453 = vmatpush1.bf16.msra.mxu0 %v8039
    %10454 = vmatprep.subr.bf16.mxu0 %v8048
    %10455 = vmatpush1.bf16.msra.mxu0 %v8047
    %10456 = vmatprep.subr.bf16.mxu0 %v8056
    %10457 = vmatpush1.bf16.msra.mxu0 %v8055
    %10458 = vmatprep.subr.bf16.mxu0 %v8064
    %10459 = vmatpush1.bf16.msra.mxu0 %v8063
    %10460 = vmatprep.subr.bf16.mxu0 %v8072
    %10461 = vmatpush1.bf16.msra.mxu0 %v8071
    %10462 = vmatprep.mubr.bf16.mxu0 %v2910
    %10463 = vmatmul.mubr.bf16.gmra.mrb[0].mxu0 %v2909
    %v10464 = vpop.f32.mrb[0].mxu0
    %v10465 = vadd.f32 %v10422, %v10464
    %v10466 = vpop.f32.mrb[0].mxu0
    %v10467 = vadd.f32 %v10424, %v10466
    %v10468 = vpop.f32.mrb[0].mxu0
    %v10469 = vadd.f32 %v10426, %v10468
    %v10470 = vpop.f32.mrb[0].mxu0
    %v10471 = vadd.f32 %v10428, %v10470
    %10472 = vdwg.mxu0
    %v10473 = vmax.f32 %v9433, 0.0
    %v10474 = vmax.f32 %v9435, 0.0
    %v10475 = vmax.f32 %v9777, 0.0
    %v10476 = vmax.f32 %v9779, 0.0
    %v10477 = vmax.f32 %v10121, 0.0
    %v10478 = vmax.f32 %v10123, 0.0
    %v10479 = vmax.f32 %v10465, 0.0
    %v10480 = vmax.f32 %v10467, 0.0
    %v10481 = vmax.f32 %v9437, 0.0
    %v10482 = vmax.f32 %v9439, 0.0
    %v10483 = vmax.f32 %v9781, 0.0
    %v10484 = vmax.f32 %v9783, 0.0
    %v10485 = vmax.f32 %v10125, 0.0
    %v10486 = vmax.f32 %v10127, 0.0
    %v10487 = vmax.f32 %v10469, 0.0
    %v10488 = vmax.f32 %v10471, 0.0
    %v10489 = vpack.c.bf16 %v10481, %v10473
    %v10490 = vpack.c.bf16 %v10482, %v10474
    %v10491 = vpack.c.bf16 %v10483, %v10475
    %v10492 = vpack.c.bf16 %v10484, %v10476
    %v10493 = vpack.c.bf16 %v10485, %v10477
    %v10494 = vpack.c.bf16 %v10486, %v10478
    %v10495 = vpack.c.bf16 %v10487, %v10479
    %v10496 = vpack.c.bf16 %v10488, %v10480
    %v10497 = vld [vmem:[#allocation11] sm:$0xff]
    %v10498 = vld [vmem:[#allocation11 + $0x8] sm:$0xff]
    %v10499 = vld [vmem:[#allocation11 + $0x10] sm:$0xff]
    %v10500 = vld [vmem:[#allocation11 + $0x18] sm:$0xff]
    %v10501 = vld [vmem:[#allocation11 + $0x20] sm:$0xff]
    %v10502 = vld [vmem:[#allocation11 + $0x28] sm:$0xff]
    %v10503 = vld [vmem:[#allocation11 + $0x30] sm:$0xff]
    %v10504 = vld [vmem:[#allocation11 + $0x38] sm:$0xff]
    %v10505 = vld [vmem:[#allocation11 + $0x40] sm:$0xff]
    %v10506 = vld [vmem:[#allocation11 + $0x48] sm:$0xff]
    %v10507 = vld [vmem:[#allocation11 + $0x50] sm:$0xff]
    %v10508 = vld [vmem:[#allocation11 + $0x58] sm:$0xff]
    %v10509 = vld [vmem:[#allocation11 + $0x60] sm:$0xff]
    %v10510 = vld [vmem:[#allocation11 + $0x68] sm:$0xff]
    %v10511 = vld [vmem:[#allocation11 + $0x70] sm:$0xff]
    %v10512 = vld [vmem:[#allocation11 + $0x78] sm:$0xff]
    %v10513 = vld [vmem:[#allocation11 + $0x80] sm:$0xff]
    %v10514 = vld [vmem:[#allocation11 + $0x88] sm:$0xff]
    %v10515 = vld [vmem:[#allocation11 + $0x90] sm:$0xff]
    %v10516 = vld [vmem:[#allocation11 + $0x98] sm:$0xff]
    %v10517 = vld [vmem:[#allocation11 + $0xa0] sm:$0xff]
    %v10518 = vld [vmem:[#allocation11 + $0xa8] sm:$0xff]
    %v10519 = vld [vmem:[#allocation11 + $0xb0] sm:$0xff]
    %v10520 = vld [vmem:[#allocation11 + $0xb8] sm:$0xff]
    %v10521 = vld [vmem:[#allocation11 + $0xc0] sm:$0xff]
    %v10522 = vld [vmem:[#allocation11 + $0xc8] sm:$0xff]
    %v10523 = vld [vmem:[#allocation11 + $0xd0] sm:$0xff]
    %v10524 = vld [vmem:[#allocation11 + $0xd8] sm:$0xff]
    %v10525 = vld [vmem:[#allocation11 + $0xe0] sm:$0xff]
    %v10526 = vld [vmem:[#allocation11 + $0xe8] sm:$0xff]
    %v10527 = vld [vmem:[#allocation11 + $0xf0] sm:$0xff]
    %v10528 = vld [vmem:[#allocation11 + $0xf8] sm:$0xff]
    %v10529 = vld [vmem:[#allocation11 + $0x100] sm:$0xff]
    %v10530 = vld [vmem:[#allocation11 + $0x108] sm:$0xff]
    %v10531 = vld [vmem:[#allocation11 + $0x110] sm:$0xff]
    %v10532 = vld [vmem:[#allocation11 + $0x118] sm:$0xff]
    %v10533 = vld [vmem:[#allocation11 + $0x120] sm:$0xff]
    %v10534 = vld [vmem:[#allocation11 + $0x128] sm:$0xff]
    %v10535 = vld [vmem:[#allocation11 + $0x130] sm:$0xff]
    %v10536 = vld [vmem:[#allocation11 + $0x138] sm:$0xff]
    %v10537 = vld [vmem:[#allocation11 + $0x140] sm:$0xff]
    %v10538 = vld [vmem:[#allocation11 + $0x148] sm:$0xff]
    %v10539 = vld [vmem:[#allocation11 + $0x150] sm:$0xff]
    %v10540 = vld [vmem:[#allocation11 + $0x158] sm:$0xff]
    %v10541 = vld [vmem:[#allocation11 + $0x160] sm:$0xff]
    %v10542 = vld [vmem:[#allocation11 + $0x168] sm:$0xff]
    %v10543 = vld [vmem:[#allocation11 + $0x170] sm:$0xff]
    %v10544 = vld [vmem:[#allocation11 + $0x178] sm:$0xff]
    %v10545 = vld [vmem:[#allocation11 + $0x180] sm:$0xff]
    %v10546 = vld [vmem:[#allocation11 + $0x188] sm:$0xff]
    %v10547 = vld [vmem:[#allocation11 + $0x190] sm:$0xff]
    %v10548 = vld [vmem:[#allocation11 + $0x198] sm:$0xff]
    %v10549 = vld [vmem:[#allocation11 + $0x1a0] sm:$0xff]
    %v10550 = vld [vmem:[#allocation11 + $0x1a8] sm:$0xff]
    %v10551 = vld [vmem:[#allocation11 + $0x1b0] sm:$0xff]
    %v10552 = vld [vmem:[#allocation11 + $0x1b8] sm:$0xff]
    %v10553 = vld [vmem:[#allocation11 + $0x1c0] sm:$0xff]
    %v10554 = vld [vmem:[#allocation11 + $0x1c8] sm:$0xff]
    %v10555 = vld [vmem:[#allocation11 + $0x1d0] sm:$0xff]
    %v10556 = vld [vmem:[#allocation11 + $0x1d8] sm:$0xff]
    %v10557 = vld [vmem:[#allocation11 + $0x1e0] sm:$0xff]
    %v10558 = vld [vmem:[#allocation11 + $0x1e8] sm:$0xff]
    %v10559 = vld [vmem:[#allocation11 + $0x1f0] sm:$0xff]
    %v10560 = vld [vmem:[#allocation11 + $0x1f8] sm:$0xff]
    %v10561 = vld [vmem:[#allocation11 + $0x200] sm:$0xff]
    %v10562 = vld [vmem:[#allocation11 + $0x208] sm:$0xff]
    %v10563 = vld [vmem:[#allocation11 + $0x210] sm:$0xff]
    %v10564 = vld [vmem:[#allocation11 + $0x218] sm:$0xff]
    %v10565 = vld [vmem:[#allocation11 + $0x220] sm:$0xff]
    %v10566 = vld [vmem:[#allocation11 + $0x228] sm:$0xff]
    %v10567 = vld [vmem:[#allocation11 + $0x230] sm:$0xff]
    %v10568 = vld [vmem:[#allocation11 + $0x238] sm:$0xff]
    %v10569 = vld [vmem:[#allocation11 + $0x240] sm:$0xff]
    %v10570 = vld [vmem:[#allocation11 + $0x248] sm:$0xff]
    %v10571 = vld [vmem:[#allocation11 + $0x250] sm:$0xff]
    %v10572 = vld [vmem:[#allocation11 + $0x258] sm:$0xff]
    %v10573 = vld [vmem:[#allocation11 + $0x260] sm:$0xff]
    %v10574 = vld [vmem:[#allocation11 + $0x268] sm:$0xff]
    %v10575 = vld [vmem:[#allocation11 + $0x270] sm:$0xff]
    %v10576 = vld [vmem:[#allocation11 + $0x278] sm:$0xff]
    %v10577 = vld [vmem:[#allocation11 + $0x280] sm:$0xff]
    %v10578 = vld [vmem:[#allocation11 + $0x288] sm:$0xff]
    %v10579 = vld [vmem:[#allocation11 + $0x290] sm:$0xff]
    %v10580 = vld [vmem:[#allocation11 + $0x298] sm:$0xff]
    %v10581 = vld [vmem:[#allocation11 + $0x2a0] sm:$0xff]
    %v10582 = vld [vmem:[#allocation11 + $0x2a8] sm:$0xff]
    %v10583 = vld [vmem:[#allocation11 + $0x2b0] sm:$0xff]
    %v10584 = vld [vmem:[#allocation11 + $0x2b8] sm:$0xff]
    %v10585 = vld [vmem:[#allocation11 + $0x2c0] sm:$0xff]
    %v10586 = vld [vmem:[#allocation11 + $0x2c8] sm:$0xff]
    %v10587 = vld [vmem:[#allocation11 + $0x2d0] sm:$0xff]
    %v10588 = vld [vmem:[#allocation11 + $0x2d8] sm:$0xff]
    %v10589 = vld [vmem:[#allocation11 + $0x2e0] sm:$0xff]
    %v10590 = vld [vmem:[#allocation11 + $0x2e8] sm:$0xff]
    %v10591 = vld [vmem:[#allocation11 + $0x2f0] sm:$0xff]
    %v10592 = vld [vmem:[#allocation11 + $0x2f8] sm:$0xff]
    %v10593 = vld [vmem:[#allocation11 + $0x300] sm:$0xff]
    %v10594 = vld [vmem:[#allocation11 + $0x308] sm:$0xff]
    %v10595 = vld [vmem:[#allocation11 + $0x310] sm:$0xff]
    %v10596 = vld [vmem:[#allocation11 + $0x318] sm:$0xff]
    %v10597 = vld [vmem:[#allocation11 + $0x320] sm:$0xff]
    %v10598 = vld [vmem:[#allocation11 + $0x328] sm:$0xff]
    %v10599 = vld [vmem:[#allocation11 + $0x330] sm:$0xff]
    %v10600 = vld [vmem:[#allocation11 + $0x338] sm:$0xff]
    %v10601 = vld [vmem:[#allocation11 + $0x340] sm:$0xff]
    %v10602 = vld [vmem:[#allocation11 + $0x348] sm:$0xff]
    %v10603 = vld [vmem:[#allocation11 + $0x350] sm:$0xff]
    %v10604 = vld [vmem:[#allocation11 + $0x358] sm:$0xff]
    %v10605 = vld [vmem:[#allocation11 + $0x360] sm:$0xff]
    %v10606 = vld [vmem:[#allocation11 + $0x368] sm:$0xff]
    %v10607 = vld [vmem:[#allocation11 + $0x370] sm:$0xff]
    %v10608 = vld [vmem:[#allocation11 + $0x378] sm:$0xff]
    %v10609 = vld [vmem:[#allocation11 + $0x380] sm:$0xff]
    %v10610 = vld [vmem:[#allocation11 + $0x388] sm:$0xff]
    %v10611 = vld [vmem:[#allocation11 + $0x390] sm:$0xff]
    %v10612 = vld [vmem:[#allocation11 + $0x398] sm:$0xff]
    %v10613 = vld [vmem:[#allocation11 + $0x3a0] sm:$0xff]
    %v10614 = vld [vmem:[#allocation11 + $0x3a8] sm:$0xff]
    %v10615 = vld [vmem:[#allocation11 + $0x3b0] sm:$0xff]
    %v10616 = vld [vmem:[#allocation11 + $0x3b8] sm:$0xff]
    %v10617 = vld [vmem:[#allocation11 + $0x3c0] sm:$0xff]
    %v10618 = vld [vmem:[#allocation11 + $0x3c8] sm:$0xff]
    %v10619 = vld [vmem:[#allocation11 + $0x3d0] sm:$0xff]
    %v10620 = vld [vmem:[#allocation11 + $0x3d8] sm:$0xff]
    %v10621 = vld [vmem:[#allocation11 + $0x3e0] sm:$0xff]
    %v10622 = vld [vmem:[#allocation11 + $0x3e8] sm:$0xff]
    %v10623 = vld [vmem:[#allocation11 + $0x3f0] sm:$0xff]
    %v10624 = vld [vmem:[#allocation11 + $0x3f8] sm:$0xff]
    %v10625 = vld [vmem:[#allocation13] sm:$0x3]
    %v10627 = vlaneseq
    %v10628 = vshrl.u32 %v10627, 7
    %v10629 = vsub.s32 0, %v10628
    %v10630 = vrot.slane %v10625, %v10629
    %v10631 = vlaneseq
    %v10632 = vshrl.u32 %v10631, 7
    %v10633 = vsub.s32 1, %v10632
    %v10634 = vrot.slane %v10625, %v10633
    %v10765 = vunpack.c.l.b16 %v10497
    %v10766 = vunpack.c.h.b16 %v10497
    %v10767 = vunpack.c.l.b16 %v10498
    %v10768 = vunpack.c.h.b16 %v10498
    %v10769 = vunpack.c.l.b16 %v10499
    %v10770 = vunpack.c.h.b16 %v10499
    %v10771 = vunpack.c.l.b16 %v10500
    %v10772 = vunpack.c.h.b16 %v10500
    %v10773 = vunpack.c.l.b16 %v10501
    %v10774 = vunpack.c.h.b16 %v10501
    %v10775 = vunpack.c.l.b16 %v10502
    %v10776 = vunpack.c.h.b16 %v10502
    %v10777 = vunpack.c.l.b16 %v10503
    %v10778 = vunpack.c.h.b16 %v10503
    %v10779 = vunpack.c.l.b16 %v10504
    %v10780 = vunpack.c.h.b16 %v10504
    %v10781 = vunpack.c.l.b16 %v10505
    %v10782 = vunpack.c.h.b16 %v10505
    %v10783 = vunpack.c.l.b16 %v10506
    %v10784 = vunpack.c.h.b16 %v10506
    %v10785 = vunpack.c.l.b16 %v10507
    %v10786 = vunpack.c.h.b16 %v10507
    %v10787 = vunpack.c.l.b16 %v10508
    %v10788 = vunpack.c.h.b16 %v10508
    %v10789 = vunpack.c.l.b16 %v10509
    %v10790 = vunpack.c.h.b16 %v10509
    %v10791 = vunpack.c.l.b16 %v10510
    %v10792 = vunpack.c.h.b16 %v10510
    %v10793 = vunpack.c.l.b16 %v10511
    %v10794 = vunpack.c.h.b16 %v10511
    %v10795 = vunpack.c.l.b16 %v10512
    %v10796 = vunpack.c.h.b16 %v10512
    %v10797 = vunpack.c.l.b16 %v10513
    %v10798 = vunpack.c.h.b16 %v10513
    %v10799 = vunpack.c.l.b16 %v10514
    %v10800 = vunpack.c.h.b16 %v10514
    %v10801 = vunpack.c.l.b16 %v10515
    %v10802 = vunpack.c.h.b16 %v10515
    %v10803 = vunpack.c.l.b16 %v10516
    %v10804 = vunpack.c.h.b16 %v10516
    %v10805 = vunpack.c.l.b16 %v10517
    %v10806 = vunpack.c.h.b16 %v10517
    %v10807 = vunpack.c.l.b16 %v10518
    %v10808 = vunpack.c.h.b16 %v10518
    %v10809 = vunpack.c.l.b16 %v10519
    %v10810 = vunpack.c.h.b16 %v10519
    %v10811 = vunpack.c.l.b16 %v10520
    %v10812 = vunpack.c.h.b16 %v10520
    %v10813 = vunpack.c.l.b16 %v10521
    %v10814 = vunpack.c.h.b16 %v10521
    %v10815 = vunpack.c.l.b16 %v10522
    %v10816 = vunpack.c.h.b16 %v10522
    %v10817 = vunpack.c.l.b16 %v10523
    %v10818 = vunpack.c.h.b16 %v10523
    %v10819 = vunpack.c.l.b16 %v10524
    %v10820 = vunpack.c.h.b16 %v10524
    %v10821 = vunpack.c.l.b16 %v10525
    %v10822 = vunpack.c.h.b16 %v10525
    %v10823 = vunpack.c.l.b16 %v10526
    %v10824 = vunpack.c.h.b16 %v10526
    %v10825 = vunpack.c.l.b16 %v10527
    %v10826 = vunpack.c.h.b16 %v10527
    %v10827 = vunpack.c.l.b16 %v10528
    %v10828 = vunpack.c.h.b16 %v10528
    %v10829 = vunpack.c.l.b16 %v10529
    %v10830 = vunpack.c.h.b16 %v10529
    %v10831 = vunpack.c.l.b16 %v10530
    %v10832 = vunpack.c.h.b16 %v10530
    %v10833 = vunpack.c.l.b16 %v10531
    %v10834 = vunpack.c.h.b16 %v10531
    %v10835 = vunpack.c.l.b16 %v10532
    %v10836 = vunpack.c.h.b16 %v10532
    %v10837 = vunpack.c.l.b16 %v10533
    %v10838 = vunpack.c.h.b16 %v10533
    %v10839 = vunpack.c.l.b16 %v10534
    %v10840 = vunpack.c.h.b16 %v10534
    %v10841 = vunpack.c.l.b16 %v10535
    %v10842 = vunpack.c.h.b16 %v10535
    %v10843 = vunpack.c.l.b16 %v10536
    %v10844 = vunpack.c.h.b16 %v10536
    %v10845 = vunpack.c.l.b16 %v10537
    %v10846 = vunpack.c.h.b16 %v10537
    %v10847 = vunpack.c.l.b16 %v10538
    %v10848 = vunpack.c.h.b16 %v10538
    %v10849 = vunpack.c.l.b16 %v10539
    %v10850 = vunpack.c.h.b16 %v10539
    %v10851 = vunpack.c.l.b16 %v10540
    %v10852 = vunpack.c.h.b16 %v10540
    %v10853 = vunpack.c.l.b16 %v10541
    %v10854 = vunpack.c.h.b16 %v10541
    %v10855 = vunpack.c.l.b16 %v10542
    %v10856 = vunpack.c.h.b16 %v10542
    %v10857 = vunpack.c.l.b16 %v10543
    %v10858 = vunpack.c.h.b16 %v10543
    %v10859 = vunpack.c.l.b16 %v10544
    %v10860 = vunpack.c.h.b16 %v10544
    %v10861 = vunpack.c.l.b16 %v10545
    %v10862 = vunpack.c.h.b16 %v10545
    %v10863 = vunpack.c.l.b16 %v10546
    %v10864 = vunpack.c.h.b16 %v10546
    %v10865 = vunpack.c.l.b16 %v10547
    %v10866 = vunpack.c.h.b16 %v10547
    %v10867 = vunpack.c.l.b16 %v10548
    %v10868 = vunpack.c.h.b16 %v10548
    %v10869 = vunpack.c.l.b16 %v10549
    %v10870 = vunpack.c.h.b16 %v10549
    %v10871 = vunpack.c.l.b16 %v10550
    %v10872 = vunpack.c.h.b16 %v10550
    %v10873 = vunpack.c.l.b16 %v10551
    %v10874 = vunpack.c.h.b16 %v10551
    %v10875 = vunpack.c.l.b16 %v10552
    %v10876 = vunpack.c.h.b16 %v10552
    %v10877 = vunpack.c.l.b16 %v10553
    %v10878 = vunpack.c.h.b16 %v10553
    %v10879 = vunpack.c.l.b16 %v10554
    %v10880 = vunpack.c.h.b16 %v10554
    %v10881 = vunpack.c.l.b16 %v10555
    %v10882 = vunpack.c.h.b16 %v10555
    %v10883 = vunpack.c.l.b16 %v10556
    %v10884 = vunpack.c.h.b16 %v10556
    %v10885 = vunpack.c.l.b16 %v10557
    %v10886 = vunpack.c.h.b16 %v10557
    %v10887 = vunpack.c.l.b16 %v10558
    %v10888 = vunpack.c.h.b16 %v10558
    %v10889 = vunpack.c.l.b16 %v10559
    %v10890 = vunpack.c.h.b16 %v10559
    %v10891 = vunpack.c.l.b16 %v10560
    %v10892 = vunpack.c.h.b16 %v10560
    %v10893 = vunpack.c.l.b16 %v10561
    %v10894 = vunpack.c.h.b16 %v10561
    %v10895 = vunpack.c.l.b16 %v10562
    %v10896 = vunpack.c.h.b16 %v10562
    %v10897 = vunpack.c.l.b16 %v10563
    %v10898 = vunpack.c.h.b16 %v10563
    %v10899 = vunpack.c.l.b16 %v10564
    %v10900 = vunpack.c.h.b16 %v10564
    %v10901 = vunpack.c.l.b16 %v10565
    %v10902 = vunpack.c.h.b16 %v10565
    %v10903 = vunpack.c.l.b16 %v10566
    %v10904 = vunpack.c.h.b16 %v10566
    %v10905 = vunpack.c.l.b16 %v10567
    %v10906 = vunpack.c.h.b16 %v10567
    %v10907 = vunpack.c.l.b16 %v10568
    %v10908 = vunpack.c.h.b16 %v10568
    %v10909 = vunpack.c.l.b16 %v10569
    %v10910 = vunpack.c.h.b16 %v10569
    %v10911 = vunpack.c.l.b16 %v10570
    %v10912 = vunpack.c.h.b16 %v10570
    %v10913 = vunpack.c.l.b16 %v10571
    %v10914 = vunpack.c.h.b16 %v10571
    %v10915 = vunpack.c.l.b16 %v10572
    %v10916 = vunpack.c.h.b16 %v10572
    %v10917 = vunpack.c.l.b16 %v10573
    %v10918 = vunpack.c.h.b16 %v10573
    %v10919 = vunpack.c.l.b16 %v10574
    %v10920 = vunpack.c.h.b16 %v10574
    %v10921 = vunpack.c.l.b16 %v10575
    %v10922 = vunpack.c.h.b16 %v10575
    %v10923 = vunpack.c.l.b16 %v10576
    %v10924 = vunpack.c.h.b16 %v10576
    %v10925 = vunpack.c.l.b16 %v10577
    %v10926 = vunpack.c.h.b16 %v10577
    %v10927 = vunpack.c.l.b16 %v10578
    %v10928 = vunpack.c.h.b16 %v10578
    %v10929 = vunpack.c.l.b16 %v10579
    %v10930 = vunpack.c.h.b16 %v10579
    %v10931 = vunpack.c.l.b16 %v10580
    %v10932 = vunpack.c.h.b16 %v10580
    %v10933 = vunpack.c.l.b16 %v10581
    %v10934 = vunpack.c.h.b16 %v10581
    %v10935 = vunpack.c.l.b16 %v10582
    %v10936 = vunpack.c.h.b16 %v10582
    %v10937 = vunpack.c.l.b16 %v10583
    %v10938 = vunpack.c.h.b16 %v10583
    %v10939 = vunpack.c.l.b16 %v10584
    %v10940 = vunpack.c.h.b16 %v10584
    %v10941 = vunpack.c.l.b16 %v10585
    %v10942 = vunpack.c.h.b16 %v10585
    %v10943 = vunpack.c.l.b16 %v10586
    %v10944 = vunpack.c.h.b16 %v10586
    %v10945 = vunpack.c.l.b16 %v10587
    %v10946 = vunpack.c.h.b16 %v10587
    %v10947 = vunpack.c.l.b16 %v10588
    %v10948 = vunpack.c.h.b16 %v10588
    %v10949 = vunpack.c.l.b16 %v10589
    %v10950 = vunpack.c.h.b16 %v10589
    %v10951 = vunpack.c.l.b16 %v10590
    %v10952 = vunpack.c.h.b16 %v10590
    %v10953 = vunpack.c.l.b16 %v10591
    %v10954 = vunpack.c.h.b16 %v10591
    %v10955 = vunpack.c.l.b16 %v10592
    %v10956 = vunpack.c.h.b16 %v10592
    %v10957 = vunpack.c.l.b16 %v10593
    %v10958 = vunpack.c.h.b16 %v10593
    %v10959 = vunpack.c.l.b16 %v10594
    %v10960 = vunpack.c.h.b16 %v10594
    %v10961 = vunpack.c.l.b16 %v10595
    %v10962 = vunpack.c.h.b16 %v10595
    %v10963 = vunpack.c.l.b16 %v10596
    %v10964 = vunpack.c.h.b16 %v10596
    %v10965 = vunpack.c.l.b16 %v10597
    %v10966 = vunpack.c.h.b16 %v10597
    %v10967 = vunpack.c.l.b16 %v10598
    %v10968 = vunpack.c.h.b16 %v10598
    %v10969 = vunpack.c.l.b16 %v10599
    %v10970 = vunpack.c.h.b16 %v10599
    %v10971 = vunpack.c.l.b16 %v10600
    %v10972 = vunpack.c.h.b16 %v10600
    %v10973 = vunpack.c.l.b16 %v10601
    %v10974 = vunpack.c.h.b16 %v10601
    %v10975 = vunpack.c.l.b16 %v10602
    %v10976 = vunpack.c.h.b16 %v10602
    %v10977 = vunpack.c.l.b16 %v10603
    %v10978 = vunpack.c.h.b16 %v10603
    %v10979 = vunpack.c.l.b16 %v10604
    %v10980 = vunpack.c.h.b16 %v10604
    %v10981 = vunpack.c.l.b16 %v10605
    %v10982 = vunpack.c.h.b16 %v10605
    %v10983 = vunpack.c.l.b16 %v10606
    %v10984 = vunpack.c.h.b16 %v10606
    %v10985 = vunpack.c.l.b16 %v10607
    %v10986 = vunpack.c.h.b16 %v10607
    %v10987 = vunpack.c.l.b16 %v10608
    %v10988 = vunpack.c.h.b16 %v10608
    %v10989 = vunpack.c.l.b16 %v10609
    %v10990 = vunpack.c.h.b16 %v10609
    %v10991 = vunpack.c.l.b16 %v10610
    %v10992 = vunpack.c.h.b16 %v10610
    %v10993 = vunpack.c.l.b16 %v10611
    %v10994 = vunpack.c.h.b16 %v10611
    %v10995 = vunpack.c.l.b16 %v10612
    %v10996 = vunpack.c.h.b16 %v10612
    %v10997 = vunpack.c.l.b16 %v10613
    %v10998 = vunpack.c.h.b16 %v10613
    %v10999 = vunpack.c.l.b16 %v10614
    %v11000 = vunpack.c.h.b16 %v10614
    %v11001 = vunpack.c.l.b16 %v10615
    %v11002 = vunpack.c.h.b16 %v10615
    %v11003 = vunpack.c.l.b16 %v10616
    %v11004 = vunpack.c.h.b16 %v10616
    %v11005 = vunpack.c.l.b16 %v10617
    %v11006 = vunpack.c.h.b16 %v10617
    %v11007 = vunpack.c.l.b16 %v10618
    %v11008 = vunpack.c.h.b16 %v10618
    %v11009 = vunpack.c.l.b16 %v10619
    %v11010 = vunpack.c.h.b16 %v10619
    %v11011 = vunpack.c.l.b16 %v10620
    %v11012 = vunpack.c.h.b16 %v10620
    %v11013 = vunpack.c.l.b16 %v10621
    %v11014 = vunpack.c.h.b16 %v10621
    %v11015 = vunpack.c.l.b16 %v10622
    %v11016 = vunpack.c.h.b16 %v10622
    %v11017 = vunpack.c.l.b16 %v10623
    %v11018 = vunpack.c.h.b16 %v10623
    %v11019 = vunpack.c.l.b16 %v10624
    %v11020 = vunpack.c.h.b16 %v10624
    %v11021 = vpack.c.b16 %v10767, %v10765
    %v11022 = vpack.c.b16 %v10768, %v10766
    %v11023 = vpack.c.b16 %v10771, %v10769
    %v11024 = vpack.c.b16 %v10772, %v10770
    %v11025 = vpack.c.b16 %v10775, %v10773
    %v11026 = vpack.c.b16 %v10776, %v10774
    %v11027 = vpack.c.b16 %v10779, %v10777
    %v11028 = vpack.c.b16 %v10780, %v10778
    %v11029 = vpack.c.b16 %v10783, %v10781
    %v11030 = vpack.c.b16 %v10784, %v10782
    %v11031 = vpack.c.b16 %v10787, %v10785
    %v11032 = vpack.c.b16 %v10788, %v10786
    %v11033 = vpack.c.b16 %v10791, %v10789
    %v11034 = vpack.c.b16 %v10792, %v10790
    %v11035 = vpack.c.b16 %v10795, %v10793
    %v11036 = vpack.c.b16 %v10796, %v10794
    %v11037 = vpack.c.b16 %v10799, %v10797
    %v11038 = vpack.c.b16 %v10800, %v10798
    %v11039 = vpack.c.b16 %v10803, %v10801
    %v11040 = vpack.c.b16 %v10804, %v10802
    %v11041 = vpack.c.b16 %v10807, %v10805
    %v11042 = vpack.c.b16 %v10808, %v10806
    %v11043 = vpack.c.b16 %v10811, %v10809
    %v11044 = vpack.c.b16 %v10812, %v10810
    %v11045 = vpack.c.b16 %v10815, %v10813
    %v11046 = vpack.c.b16 %v10816, %v10814
    %v11047 = vpack.c.b16 %v10819, %v10817
    %v11048 = vpack.c.b16 %v10820, %v10818
    %v11049 = vpack.c.b16 %v10823, %v10821
    %v11050 = vpack.c.b16 %v10824, %v10822
    %v11051 = vpack.c.b16 %v10827, %v10825
    %v11052 = vpack.c.b16 %v10828, %v10826
    %v11053 = vpack.c.b16 %v10831, %v10829
    %v11054 = vpack.c.b16 %v10832, %v10830
    %v11055 = vpack.c.b16 %v10835, %v10833
    %v11056 = vpack.c.b16 %v10836, %v10834
    %v11057 = vpack.c.b16 %v10839, %v10837
    %v11058 = vpack.c.b16 %v10840, %v10838
    %v11059 = vpack.c.b16 %v10843, %v10841
    %v11060 = vpack.c.b16 %v10844, %v10842
    %v11061 = vpack.c.b16 %v10847, %v10845
    %v11062 = vpack.c.b16 %v10848, %v10846
    %v11063 = vpack.c.b16 %v10851, %v10849
    %v11064 = vpack.c.b16 %v10852, %v10850
    %v11065 = vpack.c.b16 %v10855, %v10853
    %v11066 = vpack.c.b16 %v10856, %v10854
    %v11067 = vpack.c.b16 %v10859, %v10857
    %v11068 = vpack.c.b16 %v10860, %v10858
    %v11069 = vpack.c.b16 %v10863, %v10861
    %v11070 = vpack.c.b16 %v10864, %v10862
    %v11071 = vpack.c.b16 %v10867, %v10865
    %v11072 = vpack.c.b16 %v10868, %v10866
    %v11073 = vpack.c.b16 %v10871, %v10869
    %v11074 = vpack.c.b16 %v10872, %v10870
    %v11075 = vpack.c.b16 %v10875, %v10873
    %v11076 = vpack.c.b16 %v10876, %v10874
    %v11077 = vpack.c.b16 %v10879, %v10877
    %v11078 = vpack.c.b16 %v10880, %v10878
    %v11079 = vpack.c.b16 %v10883, %v10881
    %v11080 = vpack.c.b16 %v10884, %v10882
    %v11081 = vpack.c.b16 %v10887, %v10885
    %v11082 = vpack.c.b16 %v10888, %v10886
    %v11083 = vpack.c.b16 %v10891, %v10889
    %v11084 = vpack.c.b16 %v10892, %v10890
    %v11085 = vpack.c.b16 %v10895, %v10893
    %v11086 = vpack.c.b16 %v10896, %v10894
    %v11087 = vpack.c.b16 %v10899, %v10897
    %v11088 = vpack.c.b16 %v10900, %v10898
    %v11089 = vpack.c.b16 %v10903, %v10901
    %v11090 = vpack.c.b16 %v10904, %v10902
    %v11091 = vpack.c.b16 %v10907, %v10905
    %v11092 = vpack.c.b16 %v10908, %v10906
    %v11093 = vpack.c.b16 %v10911, %v10909
    %v11094 = vpack.c.b16 %v10912, %v10910
    %v11095 = vpack.c.b16 %v10915, %v10913
    %v11096 = vpack.c.b16 %v10916, %v10914
    %v11097 = vpack.c.b16 %v10919, %v10917
    %v11098 = vpack.c.b16 %v10920, %v10918
    %v11099 = vpack.c.b16 %v10923, %v10921
    %v11100 = vpack.c.b16 %v10924, %v10922
    %v11101 = vpack.c.b16 %v10927, %v10925
    %v11102 = vpack.c.b16 %v10928, %v10926
    %v11103 = vpack.c.b16 %v10931, %v10929
    %v11104 = vpack.c.b16 %v10932, %v10930
    %v11105 = vpack.c.b16 %v10935, %v10933
    %v11106 = vpack.c.b16 %v10936, %v10934
    %v11107 = vpack.c.b16 %v10939, %v10937
    %v11108 = vpack.c.b16 %v10940, %v10938
    %v11109 = vpack.c.b16 %v10943, %v10941
    %v11110 = vpack.c.b16 %v10944, %v10942
    %v11111 = vpack.c.b16 %v10947, %v10945
    %v11112 = vpack.c.b16 %v10948, %v10946
    %v11113 = vpack.c.b16 %v10951, %v10949
    %v11114 = vpack.c.b16 %v10952, %v10950
    %v11115 = vpack.c.b16 %v10955, %v10953
    %v11116 = vpack.c.b16 %v10956, %v10954
    %v11117 = vpack.c.b16 %v10959, %v10957
    %v11118 = vpack.c.b16 %v10960, %v10958
    %v11119 = vpack.c.b16 %v10963, %v10961
    %v11120 = vpack.c.b16 %v10964, %v10962
    %v11121 = vpack.c.b16 %v10967, %v10965
    %v11122 = vpack.c.b16 %v10968, %v10966
    %v11123 = vpack.c.b16 %v10971, %v10969
    %v11124 = vpack.c.b16 %v10972, %v10970
    %v11125 = vpack.c.b16 %v10975, %v10973
    %v11126 = vpack.c.b16 %v10976, %v10974
    %v11127 = vpack.c.b16 %v10979, %v10977
    %v11128 = vpack.c.b16 %v10980, %v10978
    %v11129 = vpack.c.b16 %v10983, %v10981
    %v11130 = vpack.c.b16 %v10984, %v10982
    %v11131 = vpack.c.b16 %v10987, %v10985
    %v11132 = vpack.c.b16 %v10988, %v10986
    %v11133 = vpack.c.b16 %v10991, %v10989
    %v11134 = vpack.c.b16 %v10992, %v10990
    %v11135 = vpack.c.b16 %v10995, %v10993
    %v11136 = vpack.c.b16 %v10996, %v10994
    %v11137 = vpack.c.b16 %v10999, %v10997
    %v11138 = vpack.c.b16 %v11000, %v10998
    %v11139 = vpack.c.b16 %v11003, %v11001
    %v11140 = vpack.c.b16 %v11004, %v11002
    %v11141 = vpack.c.b16 %v11007, %v11005
    %v11142 = vpack.c.b16 %v11008, %v11006
    %v11143 = vpack.c.b16 %v11011, %v11009
    %v11144 = vpack.c.b16 %v11012, %v11010
    %v11145 = vpack.c.b16 %v11015, %v11013
    %v11146 = vpack.c.b16 %v11016, %v11014
    %v11147 = vpack.c.b16 %v11019, %v11017
    %v11148 = vpack.c.b16 %v11020, %v11018
    %11277 = vmatprep.subr.bf16.mxu0 %v11022
    %11278 = vmatpush1.bf16.msra.mxu0 %v11021
    %11279 = vmatprep.subr.bf16.mxu0 %v11024
    %11280 = vmatpush1.bf16.msra.mxu0 %v11023
    %11281 = vmatprep.subr.bf16.mxu0 %v11026
    %11282 = vmatpush1.bf16.msra.mxu0 %v11025
    %11283 = vmatprep.subr.bf16.mxu0 %v11028
    %11284 = vmatpush1.bf16.msra.mxu0 %v11027
    %11285 = vmatprep.subr.bf16.mxu0 %v11030
    %11286 = vmatpush1.bf16.msra.mxu0 %v11029
    %11287 = vmatprep.subr.bf16.mxu0 %v11032
    %11288 = vmatpush1.bf16.msra.mxu0 %v11031
    %11289 = vmatprep.subr.bf16.mxu0 %v11034
    %11290 = vmatpush1.bf16.msra.mxu0 %v11033
    %11291 = vmatprep.subr.bf16.mxu0 %v11036
    %11292 = vmatpush1.bf16.msra.mxu0 %v11035
    %11293 = vmatprep.subr.bf16.mxu0 %v11038
    %11294 = vmatpush1.bf16.msra.mxu0 %v11037
    %11295 = vmatprep.subr.bf16.mxu0 %v11040
    %11296 = vmatpush1.bf16.msra.mxu0 %v11039
    %11297 = vmatprep.subr.bf16.mxu0 %v11042
    %11298 = vmatpush1.bf16.msra.mxu0 %v11041
    %11299 = vmatprep.subr.bf16.mxu0 %v11044
    %11300 = vmatpush1.bf16.msra.mxu0 %v11043
    %11301 = vmatprep.subr.bf16.mxu0 %v11046
    %11302 = vmatpush1.bf16.msra.mxu0 %v11045
    %11303 = vmatprep.subr.bf16.mxu0 %v11048
    %11304 = vmatpush1.bf16.msra.mxu0 %v11047
    %11305 = vmatprep.subr.bf16.mxu0 %v11050
    %11306 = vmatpush1.bf16.msra.mxu0 %v11049
    %11307 = vmatprep.subr.bf16.mxu0 %v11052
    %11308 = vmatpush1.bf16.msra.mxu0 %v11051
    %11309 = vmatprep.mubr.bf16.mxu0 %v10490
    %11310 = vmatmul.mubr.bf16.gmra.mrb[0].mxu0 %v10489
    %v11311 = vpop.f32.mrb[0].mxu0
    %v11312 = vadd.f32 %v10630, %v11311
    %v11313 = vpop.f32.mrb[0].mxu0
    %v11314 = vadd.f32 %v10634, %v11313
    %v11315 = vpop.f32.mrb[0].mxu0
    %v11316 = vadd.f32 %v10630, %v11315
    %v11317 = vpop.f32.mrb[0].mxu0
    %v11318 = vadd.f32 %v10634, %v11317
    %11319 = vdwg.mxu0
    %11320 = vmatprep.subr.bf16.mxu0 %v11054
    %11321 = vmatpush1.bf16.msra.mxu0 %v11053
    %11322 = vmatprep.subr.bf16.mxu0 %v11056
    %11323 = vmatpush1.bf16.msra.mxu0 %v11055
    %11324 = vmatprep.subr.bf16.mxu0 %v11058
    %11325 = vmatpush1.bf16.msra.mxu0 %v11057
    %11326 = vmatprep.subr.bf16.mxu0 %v11060
    %11327 = vmatpush1.bf16.msra.mxu0 %v11059
    %11328 = vmatprep.subr.bf16.mxu0 %v11062
    %11329 = vmatpush1.bf16.msra.mxu0 %v11061
    %11330 = vmatprep.subr.bf16.mxu0 %v11064
    %11331 = vmatpush1.bf16.msra.mxu0 %v11063
    %11332 = vmatprep.subr.bf16.mxu0 %v11066
    %11333 = vmatpush1.bf16.msra.mxu0 %v11065
    %11334 = vmatprep.subr.bf16.mxu0 %v11068
    %11335 = vmatpush1.bf16.msra.mxu0 %v11067
    %11336 = vmatprep.subr.bf16.mxu0 %v11070
    %11337 = vmatpush1.bf16.msra.mxu0 %v11069
    %11338 = vmatprep.subr.bf16.mxu0 %v11072
    %11339 = vmatpush1.bf16.msra.mxu0 %v11071
    %11340 = vmatprep.subr.bf16.mxu0 %v11074
    %11341 = vmatpush1.bf16.msra.mxu0 %v11073
    %11342 = vmatprep.subr.bf16.mxu0 %v11076
    %11343 = vmatpush1.bf16.msra.mxu0 %v11075
    %11344 = vmatprep.subr.bf16.mxu0 %v11078
    %11345 = vmatpush1.bf16.msra.mxu0 %v11077
    %11346 = vmatprep.subr.bf16.mxu0 %v11080
    %11347 = vmatpush1.bf16.msra.mxu0 %v11079
    %11348 = vmatprep.subr.bf16.mxu0 %v11082
    %11349 = vmatpush1.bf16.msra.mxu0 %v11081
    %11350 = vmatprep.subr.bf16.mxu0 %v11084
    %11351 = vmatpush1.bf16.msra.mxu0 %v11083
    %11352 = vmatprep.mubr.bf16.mxu0 %v10492
    %11353 = vmatmul.mubr.bf16.gmra.mrb[0].mxu0 %v10491
    %v11354 = vpop.f32.mrb[0].mxu0
    %v11355 = vadd.f32 %v11312, %v11354
    %v11356 = vpop.f32.mrb[0].mxu0
    %v11357 = vadd.f32 %v11314, %v11356
    %v11358 = vpop.f32.mrb[0].mxu0
    %v11359 = vadd.f32 %v11316, %v11358
    %v11360 = vpop.f32.mrb[0].mxu0
    %v11361 = vadd.f32 %v11318, %v11360
    %11362 = vdwg.mxu0
    %11363 = vmatprep.subr.bf16.mxu0 %v11086
    %11364 = vmatpush1.bf16.msra.mxu0 %v11085
    %11365 = vmatprep.subr.bf16.mxu0 %v11088
    %11366 = vmatpush1.bf16.msra.mxu0 %v11087
    %11367 = vmatprep.subr.bf16.mxu0 %v11090
    %11368 = vmatpush1.bf16.msra.mxu0 %v11089
    %11369 = vmatprep.subr.bf16.mxu0 %v11092
    %11370 = vmatpush1.bf16.msra.mxu0 %v11091
    %11371 = vmatprep.subr.bf16.mxu0 %v11094
    %11372 = vmatpush1.bf16.msra.mxu0 %v11093
    %11373 = vmatprep.subr.bf16.mxu0 %v11096
    %11374 = vmatpush1.bf16.msra.mxu0 %v11095
    %11375 = vmatprep.subr.bf16.mxu0 %v11098
    %11376 = vmatpush1.bf16.msra.mxu0 %v11097
    %11377 = vmatprep.subr.bf16.mxu0 %v11100
    %11378 = vmatpush1.bf16.msra.mxu0 %v11099
    %11379 = vmatprep.subr.bf16.mxu0 %v11102
    %11380 = vmatpush1.bf16.msra.mxu0 %v11101
    %11381 = vmatprep.subr.bf16.mxu0 %v11104
    %11382 = vmatpush1.bf16.msra.mxu0 %v11103
    %11383 = vmatprep.subr.bf16.mxu0 %v11106
    %11384 = vmatpush1.bf16.msra.mxu0 %v11105
    %11385 = vmatprep.subr.bf16.mxu0 %v11108
    %11386 = vmatpush1.bf16.msra.mxu0 %v11107
    %11387 = vmatprep.subr.bf16.mxu0 %v11110
    %11388 = vmatpush1.bf16.msra.mxu0 %v11109
    %11389 = vmatprep.subr.bf16.mxu0 %v11112
    %11390 = vmatpush1.bf16.msra.mxu0 %v11111
    %11391 = vmatprep.subr.bf16.mxu0 %v11114
    %11392 = vmatpush1.bf16.msra.mxu0 %v11113
    %11393 = vmatprep.subr.bf16.mxu0 %v11116
    %11394 = vmatpush1.bf16.msra.mxu0 %v11115
    %11395 = vmatprep.mubr.bf16.mxu0 %v10494
    %11396 = vmatmul.mubr.bf16.gmra.mrb[0].mxu0 %v10493
    %v11397 = vpop.f32.mrb[0].mxu0
    %v11398 = vadd.f32 %v11355, %v11397
    %v11399 = vpop.f32.mrb[0].mxu0
    %v11400 = vadd.f32 %v11357, %v11399
    %v11401 = vpop.f32.mrb[0].mxu0
    %v11402 = vadd.f32 %v11359, %v11401
    %v11403 = vpop.f32.mrb[0].mxu0
    %v11404 = vadd.f32 %v11361, %v11403
    %11405 = vdwg.mxu0
    %11406 = vmatprep.subr.bf16.mxu0 %v11118
    %11407 = vmatpush1.bf16.msra.mxu0 %v11117
    %11408 = vmatprep.subr.bf16.mxu0 %v11120
    %11409 = vmatpush1.bf16.msra.mxu0 %v11119
    %11410 = vmatprep.subr.bf16.mxu0 %v11122
    %11411 = vmatpush1.bf16.msra.mxu0 %v11121
    %11412 = vmatprep.subr.bf16.mxu0 %v11124
    %11413 = vmatpush1.bf16.msra.mxu0 %v11123
    %11414 = vmatprep.subr.bf16.mxu0 %v11126
    %11415 = vmatpush1.bf16.msra.mxu0 %v11125
    %11416 = vmatprep.subr.bf16.mxu0 %v11128
    %11417 = vmatpush1.bf16.msra.mxu0 %v11127
    %11418 = vmatprep.subr.bf16.mxu0 %v11130
    %11419 = vmatpush1.bf16.msra.mxu0 %v11129
    %11420 = vmatprep.subr.bf16.mxu0 %v11132
    %11421 = vmatpush1.bf16.msra.mxu0 %v11131
    %11422 = vmatprep.subr.bf16.mxu0 %v11134
    %11423 = vmatpush1.bf16.msra.mxu0 %v11133
    %11424 = vmatprep.subr.bf16.mxu0 %v11136
    %11425 = vmatpush1.bf16.msra.mxu0 %v11135
    %11426 = vmatprep.subr.bf16.mxu0 %v11138
    %11427 = vmatpush1.bf16.msra.mxu0 %v11137
    %11428 = vmatprep.subr.bf16.mxu0 %v11140
    %11429 = vmatpush1.bf16.msra.mxu0 %v11139
    %11430 = vmatprep.subr.bf16.mxu0 %v11142
    %11431 = vmatpush1.bf16.msra.mxu0 %v11141
    %11432 = vmatprep.subr.bf16.mxu0 %v11144
    %11433 = vmatpush1.bf16.msra.mxu0 %v11143
    %11434 = vmatprep.subr.bf16.mxu0 %v11146
    %11435 = vmatpush1.bf16.msra.mxu0 %v11145
    %11436 = vmatprep.subr.bf16.mxu0 %v11148
    %11437 = vmatpush1.bf16.msra.mxu0 %v11147
    %11438 = vmatprep.mubr.bf16.mxu0 %v10496
    %11439 = vmatmul.mubr.bf16.gmra.mrb[0].mxu0 %v10495
    %v11440 = vpop.f32.mrb[0].mxu0
    %v11441 = vadd.f32 %v11398, %v11440
    %v11442 = vpop.f32.mrb[0].mxu0
    %v11443 = vadd.f32 %v11400, %v11442
    %v11444 = vpop.f32.mrb[0].mxu0
    %v11445 = vadd.f32 %v11402, %v11444
    %v11446 = vpop.f32.mrb[0].mxu0
    %v11447 = vadd.f32 %v11404, %v11446
    %11448 = vdwg.mxu0
    %v11449 = vmax.f32 %v11441, 0.0
    %v11450 = vmax.f32 %v11443, 0.0
    %v11451 = vmax.f32 %v11445, 0.0
    %v11452 = vmax.f32 %v11447, 0.0
    %v11453 = vpack.c.bf16 %v11451, %v11449
    %v11454 = vpack.c.bf16 %v11452, %v11450
    %v11455 = vld [vmem:[#allocation14] sm:$0xf]
    %v11456 = vld [vmem:[#allocation14 + $0x4] sm:$0xf]
    %v11457 = vld [vmem:[#allocation14 + $0x8] sm:$0xf]
    %v11458 = vld [vmem:[#allocation14 + $0xc] sm:$0xf]
    %v11459 = vld [vmem:[#allocation14 + $0x10] sm:$0xf]
    %v11460 = vld [vmem:[#allocation14 + $0x14] sm:$0xf]
    %v11461 = vld [vmem:[#allocation14 + $0x18] sm:$0xf]
    %v11462 = vld [vmem:[#allocation14 + $0x1c] sm:$0xf]
    %v11463 = vld [vmem:[#allocation14 + $0x20] sm:$0xf]
    %v11464 = vld [vmem:[#allocation14 + $0x24] sm:$0xf]
    %v11465 = vld [vmem:[#allocation14 + $0x28] sm:$0xf]
    %v11466 = vld [vmem:[#allocation14 + $0x2c] sm:$0xf]
    %v11467 = vld [vmem:[#allocation14 + $0x30] sm:$0xf]
    %v11468 = vld [vmem:[#allocation14 + $0x34] sm:$0xf]
    %v11469 = vld [vmem:[#allocation14 + $0x38] sm:$0xf]
    %v11470 = vld [vmem:[#allocation14 + $0x3c] sm:$0xf]
    %v11471 = vld [vmem:[#allocation14 + $0x40] sm:$0xf]
    %v11472 = vld [vmem:[#allocation14 + $0x44] sm:$0xf]
    %v11473 = vld [vmem:[#allocation14 + $0x48] sm:$0xf]
    %v11474 = vld [vmem:[#allocation14 + $0x4c] sm:$0xf]
    %v11475 = vld [vmem:[#allocation14 + $0x50] sm:$0xf]
    %v11476 = vld [vmem:[#allocation14 + $0x54] sm:$0xf]
    %v11477 = vld [vmem:[#allocation14 + $0x58] sm:$0xf]
    %v11478 = vld [vmem:[#allocation14 + $0x5c] sm:$0xf]
    %v11479 = vld [vmem:[#allocation14 + $0x60] sm:$0xf]
    %v11480 = vld [vmem:[#allocation14 + $0x64] sm:$0xf]
    %v11481 = vld [vmem:[#allocation14 + $0x68] sm:$0xf]
    %v11482 = vld [vmem:[#allocation14 + $0x6c] sm:$0xf]
    %v11483 = vld [vmem:[#allocation14 + $0x70] sm:$0xf]
    %v11484 = vld [vmem:[#allocation14 + $0x74] sm:$0xf]
    %v11485 = vld [vmem:[#allocation14 + $0x78] sm:$0xf]
    %v11486 = vld [vmem:[#allocation14 + $0x7c] sm:$0xf]
    %v11487 = vld [vmem:[#allocation16] sm:$0x1]
    %v11489 = vlaneseq
    %v11490 = vshrl.u32 %v11489, 7
    %v11491 = vsub.s32 0, %v11490
    %v11492 = vrot.slane %v11487, %v11491
    %v11526 = vunpack.c.l.b16 %v11455
    %v11527 = vunpack.c.l.b16 %v11456
    %v11528 = vunpack.c.l.b16 %v11457
    %v11529 = vunpack.c.l.b16 %v11458
    %v11530 = vunpack.c.l.b16 %v11459
    %v11531 = vunpack.c.l.b16 %v11460
    %v11532 = vunpack.c.l.b16 %v11461
    %v11533 = vunpack.c.l.b16 %v11462
    %v11534 = vunpack.c.l.b16 %v11463
    %v11535 = vunpack.c.l.b16 %v11464
    %v11536 = vunpack.c.l.b16 %v11465
    %v11537 = vunpack.c.l.b16 %v11466
    %v11538 = vunpack.c.l.b16 %v11467
    %v11539 = vunpack.c.l.b16 %v11468
    %v11540 = vunpack.c.l.b16 %v11469
    %v11541 = vunpack.c.l.b16 %v11470
    %v11542 = vunpack.c.l.b16 %v11471
    %v11543 = vunpack.c.l.b16 %v11472
    %v11544 = vunpack.c.l.b16 %v11473
    %v11545 = vunpack.c.l.b16 %v11474
    %v11546 = vunpack.c.l.b16 %v11475
    %v11547 = vunpack.c.l.b16 %v11476
    %v11548 = vunpack.c.l.b16 %v11477
    %v11549 = vunpack.c.l.b16 %v11478
    %v11550 = vunpack.c.l.b16 %v11479
    %v11551 = vunpack.c.l.b16 %v11480
    %v11552 = vunpack.c.l.b16 %v11481
    %v11553 = vunpack.c.l.b16 %v11482
    %v11554 = vunpack.c.l.b16 %v11483
    %v11555 = vunpack.c.l.b16 %v11484
    %v11556 = vunpack.c.l.b16 %v11485
    %v11557 = vunpack.c.l.b16 %v11486
    %v11558 = vpack.c.b16 %v11527, %v11526
    %v11559 = vpack.c.b16 %v11529, %v11528
    %v11560 = vpack.c.b16 %v11531, %v11530
    %v11561 = vpack.c.b16 %v11533, %v11532
    %v11562 = vpack.c.b16 %v11535, %v11534
    %v11563 = vpack.c.b16 %v11537, %v11536
    %v11564 = vpack.c.b16 %v11539, %v11538
    %v11565 = vpack.c.b16 %v11541, %v11540
    %v11566 = vpack.c.b16 %v11543, %v11542
    %v11567 = vpack.c.b16 %v11545, %v11544
    %v11568 = vpack.c.b16 %v11547, %v11546
    %v11569 = vpack.c.b16 %v11549, %v11548
    %v11570 = vpack.c.b16 %v11551, %v11550
    %v11571 = vpack.c.b16 %v11553, %v11552
    %v11572 = vpack.c.b16 %v11555, %v11554
    %v11573 = vpack.c.b16 %v11557, %v11556
    %11590 = vmatprep.subr.bf16.mxu0 0
    %11591 = vmatpush1.bf16.msra.mxu0 %v11558
    %11592 = vmatprep.subr.bf16.mxu0 0
    %11593 = vmatpush1.bf16.msra.mxu0 %v11559
    %11594 = vmatprep.subr.bf16.mxu0 0
    %11595 = vmatpush1.bf16.msra.mxu0 %v11560
    %11596 = vmatprep.subr.bf16.mxu0 0
    %11597 = vmatpush1.bf16.msra.mxu0 %v11561
    %11598 = vmatprep.subr.bf16.mxu0 0
    %11599 = vmatpush1.bf16.msra.mxu0 %v11562
    %11600 = vmatprep.subr.bf16.mxu0 0
    %11601 = vmatpush1.bf16.msra.mxu0 %v11563
    %11602 = vmatprep.subr.bf16.mxu0 0
    %11603 = vmatpush1.bf16.msra.mxu0 %v11564
    %11604 = vmatprep.subr.bf16.mxu0 0
    %11605 = vmatpush1.bf16.msra.mxu0 %v11565
    %11606 = vmatprep.subr.bf16.mxu0 0
    %11607 = vmatpush1.bf16.msra.mxu0 %v11566
    %11608 = vmatprep.subr.bf16.mxu0 0
    %11609 = vmatpush1.bf16.msra.mxu0 %v11567
    %11610 = vmatprep.subr.bf16.mxu0 0
    %11611 = vmatpush1.bf16.msra.mxu0 %v11568
    %11612 = vmatprep.subr.bf16.mxu0 0
    %11613 = vmatpush1.bf16.msra.mxu0 %v11569
    %11614 = vmatprep.subr.bf16.mxu0 0
    %11615 = vmatpush1.bf16.msra.mxu0 %v11570
    %11616 = vmatprep.subr.bf16.mxu0 0
    %11617 = vmatpush1.bf16.msra.mxu0 %v11571
    %11618 = vmatprep.subr.bf16.mxu0 0
    %11619 = vmatpush1.bf16.msra.mxu0 %v11572
    %11620 = vmatprep.subr.bf16.mxu0 0
    %11621 = vmatpush1.bf16.msra.mxu0 %v11573
    %11622 = vmatprep.mubr.bf16.mxu0 %v11454
    %11623 = vmatmul.mubr.bf16.gmra.mrb[0].mxu0 %v11453
    %v11624 = vpop.f32.mrb[0].mxu0
    %v11625 = vadd.f32 %v11492, %v11624
    %v11626 = vpop.f32.mrb[0].mxu0
    %v11627 = vpop.f32.mrb[0].mxu0
    %v11628 = vadd.f32 %v11492, %v11627
    %v11629 = vpop.f32.mrb[0].mxu0
    %11630 = vdwg.mxu0
    %v11631 = vpack.c.bf16 %v11628, %v11625
    %v11633 = vunpack.c.l.b16 %v11631
    %v11634 = vunpack.c.h.b16 %v11631
    %v11635 = vpack.c.b16 %v11633, %v11633
    %v11636 = vpack.c.b16 %v11634, %v11634
    %11639 = vst [vmem:[#allocation17] sm:$0xf] %v11635
    %11640 = vst [vmem:[#allocation17 + $0x4] sm:$0xf] %v11636
    // Predicated region
    $region74: #{tpu_custom_call.1} parent=1 // pred_check
      _
    $region75: #{tpu_custom_call.1} parent=1 // pred_check_branch
      %11642 = sbr.rel (0) target = $region77
    $region76: #{tpu_custom_call.1} parent=1 // pred_region
      %s11644 = ssub.s32 128, 128
      %11645 = vsyncadd [#allocation4], %s11644
      %s11646 = sshll.u32 [#allocation17], 4
      %s11647 = int_to_ptr.vmem [resolvable:$true] %s11646
      %11652 = dma.vmem_to_hbm [thread:$0]  %s11647, 128, %s9, [#allocation4], 64, 64, 4
    $region77: #{tpu_custom_call.1} parent=1 // pred_fallthru
      _
    // Predicated region
    $region78: #{tpu_custom_call.1} parent=1 // pred_check
      _
    $region79: #{tpu_custom_call.1} parent=1 // pred_check_branch
      %11654 = sbr.rel (0) target = $region81
    $region80: #{tpu_custom_call.1} parent=1 // pred_region
      %11655 = dma.done [#allocation4], 128
    $region81: #{tpu_custom_call.1} parent=1 // pred_fallthru
      _
    %11656 = vsyncpa [#allocation3], 1
    %11657 = vsyncpa [#allocation6], 1
    %11658 = vsyncpa [#allocation9], 1
    %11659 = vsyncpa [#allocation12], 1
    %11660 = vsyncpa [#allocation15], 1
    %11661 = vsyncpa [#allocation4], 1

</llo_original>
